<compile_context>
chip_gen: v7x
topology: tpu7x:2x2x1
jax: 0.10.0
libtpu: 0.0.40
codegen_flags: <defaults>
</compile_context>

<pallas_src>
import math
from functools import partial

import numpy as np
import jax
import jax.numpy as jnp
from jax import lax
from jax.experimental import pallas as pl
from jax.experimental.pallas import tpu as pltpu

LN_EPS = 1e-5
BN_EPS = 1e-5


# ----------------------------- fused kernel -----------------------------

def _layer_norm(x, g, b):
    # single-pass statistics: var = E[x^2] - mean^2
    mu = jnp.mean(x, axis=-1, keepdims=True)
    ms = jnp.mean(x * x, axis=-1, keepdims=True)
    var = ms - mu * mu
    return (x - mu) * lax.rsqrt(var + LN_EPS) * g + b


def _fused_transformer_kernel(x_ref, mask_ref, lng_ref, lnb_ref, aqkv_ref,
                              bqkv_ref, outw_ref, outb_ref, w1_ref, b1_ref,
                              w2_ref, b2_ref, o_ref, xpad_ref, *,
                              depth, heads, dim_head, n_img, n_tok, pad,
                              tap_offsets):
    inner = heads * dim_head
    bf16, f32 = jnp.bfloat16, jnp.float32
    inv_sqrt2 = 1.0 / math.sqrt(2.0)
    n_rows = n_img * n_tok

    # Zero-padded shift slab: pad rows are zeroed once and never touched again;
    # per layer only the middle n_rows are overwritten.
    xpad_ref[...] = jnp.zeros_like(xpad_ref)

    # Per-tap boundary-mask columns, hoisted above the depth loop
    # (JAX does not CSE broadcasts, so load/slice once).
    mask_all = mask_ref[...]                              # (n_rows, 9) f32
    masks = [mask_all[:, t:t + 1] for t in range(9)]

    x = x_ref[...]                                        # (n_rows, D) f32, resident

    for l in range(depth):
        # ---------------- PreNorm + ConvAttention + residual ----------------
        xn = _layer_norm(x, lng_ref[l, 0], lnb_ref[l, 0])
        xpad_ref[pl.ds(pad, n_rows), :] = xn

        # im2col: 9 spatially shifted copies realised as static offset loads
        # from the zero-padded slab + constant boundary masks (replaces the 8
        # permutation-matrix matmuls), lane-concatenated to (n_rows, 9*D).
        cols = [xpad_ref[pl.ds(pad + off, n_rows), :] * masks[t]
                for t, off in enumerate(tap_offsets)]
        x9 = jnp.concatenate(cols, axis=-1).astype(bf16)  # (n_rows, 9*D)

        # One deep matmul (K = 9*D) produces q|k|v together.  Depthwise conv,
        # eval-mode BN, pointwise biases and the 1/sqrt(dh) softmax scale are
        # all folded into aqkv / bqkv at parameter-prep time.
        qkv = jnp.dot(x9, aqkv_ref[l], preferred_element_type=f32) + bqkv_ref[l]

        # Block-diagonal (per-image) multi-head attention over the folded batch.
        img_outs = []
        for b in range(n_img):
            r0 = b * n_tok
            head_outs = []
            for h in range(heads):
                lo = h * dim_head
                qh = qkv[r0:r0 + n_tok, lo:lo + dim_head].astype(bf16)
                kh = qkv[r0:r0 + n_tok,
                         inner + lo:inner + lo + dim_head].astype(bf16)
                vh = qkv[r0:r0 + n_tok,
                         2 * inner + lo:2 * inner + lo + dim_head].astype(bf16)
                dots = lax.dot_general(qh, kh, (((1,), (1,)), ((), ())),
                                       preferred_element_type=f32)
                m = jnp.max(dots, axis=-1, keepdims=True)
                e = jnp.exp(dots - m)
                pr = e * pl.reciprocal(jnp.sum(e, axis=-1, keepdims=True),
                                       approx=True)
                head_outs.append(jnp.dot(pr.astype(bf16), vh,
                                         preferred_element_type=f32))
            img_outs.append(jnp.concatenate(head_outs, axis=-1))
        oh = jnp.concatenate(img_outs, axis=0) if n_img > 1 else img_outs[0]

        # Head-merged output projection: one (n_rows, inner) @ (inner, D) matmul.
        attn = jnp.dot(oh.astype(bf16), outw_ref[l], preferred_element_type=f32)
        x = x + attn + outb_ref[l]

        # ---------------- PreNorm + FeedForward + residual ----------------
        xn2 = _layer_norm(x, lng_ref[l, 1], lnb_ref[l, 1])
        h1 = jnp.dot(xn2.astype(bf16), w1_ref[l],
                     preferred_element_type=f32) + b1_ref[l]
        h1 = 0.5 * h1 * (1.0 + lax.erf(h1 * inv_sqrt2))   # exact GELU (torch nn.GELU)
        h2 = jnp.dot(h1.astype(bf16), w2_ref[l],
                     preferred_element_type=f32) + b2_ref[l]
        x = x + h2

    o_ref[...] = x


# ----------------------------- host-side prep -----------------------------

def _tap_masks(H, W, reps):
    """(reps*H*W, 9) f32: column t is 1 where 3x3 tap t (offset oi=t//3-1,
    oj=t%3-1) of the zero-padded conv stays inside the image, 0 at borders."""
    N = H * W
    m = np.zeros((N, 9), np.float32)
    for t in range(9):
        oi, oj = t // 3 - 1, t % 3 - 1
        for i in range(H):
            for j in range(W):
                if 0 <= i + oi < H and 0 <= j + oj < W:
                    m[i * W + j, t] = 1.0
    return jnp.asarray(np.tile(m, (reps, 1)))


def prepare_params(raw_layers, *, heads, dim_head):
    """Fold SepConv2d (depthwise 3x3 + eval-mode BN + pointwise 1x1) into one
    tap-major (9*D, 3*inner) matmul per layer, fold the softmax scale into the
    q columns, cast matmul weights to bf16 and stack layers on a leading axis."""
    inner = heads * dim_head
    scale = dim_head ** (-0.5)

    def per_layer(rl):
        A_parts, b_parts = [], []
        for name in ("q", "k", "v"):
            P = rl[name]
            s = P["bn_g"] / jnp.sqrt(P["bn_rv"] + BN_EPS)          # real running stats
            dw = P["dw_w"].reshape(9, -1)                           # (9, D) tap-major
            A_parts.append(dw[:, :, None] * (s[:, None] * P["pw_w"])[None])
            b_parts.append(((P["dw_b"] - P["bn_rm"]) * s + P["bn_b"]) @ P["pw_w"]
                           + P["pw_b"])
        aqkv = jnp.concatenate(A_parts, axis=-1)                    # (9, D, 3*inner)
        bqkv = jnp.concatenate(b_parts)                             # (3*inner,)
        # fold the 1/sqrt(dim_head) softmax scale into the q columns
        qscale = jnp.concatenate([jnp.full((inner,), scale, jnp.float32),
                                  jnp.ones((2 * inner,), jnp.float32)])
        aqkv = aqkv * qscale
        bqkv = bqkv * qscale
        d = aqkv.shape[1]
        return dict(
            lng=jnp.stack([rl["ln1_g"], rl["ln2_g"]])[:, None, :],  # (2, 1, D)
            lnb=jnp.stack([rl["ln1_b"], rl["ln2_b"]])[:, None, :],
            aqkv=aqkv.reshape(9 * d, 3 * inner),                    # (9*D, 3*inner)
            bqkv=bqkv[None, :],                                     # (1, 3*inner)
            outw=rl["out_w"],
            outb=rl["out_b"][None, :],
            w1=rl["w1"], b1=rl["b1"][None, :],
            w2=rl["w2"], b2=rl["b2"][None, :],
        )

    per = [per_layer(rl) for rl in raw_layers]
    stacked = {k: jnp.stack([p[k] for p in per], axis=0) for k in per[0]}
    for k in ("aqkv", "outw", "w1", "w2"):
        stacked[k] = stacked[k].astype(jnp.bfloat16)
    return stacked


def transformer_forward(x, params, *, heads, dim_head, img_h, img_w,
                        block_b=None):
    B, N, D = x.shape
    assert N == img_h * img_w
    depth = params["lng"].shape[0]
    if block_b is None:
        block_b = B            # fold the whole batch into one slab (1-TC chips)
    assert B % block_b == 0
    n_rows = block_b * N
    pad = -(-(img_w + 1) // 8) * 8                 # >= max |tap offset|, 8-aligned
    tap_offsets = tuple((t // 3 - 1) * img_w + (t % 3 - 1) for t in range(9))

    masks = _tap_masks(img_h, img_w, block_b)      # (n_rows, 9) f32
    x2 = x.reshape(B * N, D)

    def full(arr):
        nd = arr.ndim
        return pl.BlockSpec(arr.shape, lambda g, nd=nd: (0,) * nd)

    grid_spec = pltpu.PrefetchScalarGridSpec(
        num_scalar_prefetch=0,
        grid=(B // block_b,),
        in_specs=[
            pl.BlockSpec((n_rows, D), lambda g: (g, 0)),
            full(masks),
            full(params["lng"]), full(params["lnb"]),
            full(params["aqkv"]), full(params["bqkv"]),
            full(params["outw"]), full(params["outb"]),
            full(params["w1"]), full(params["b1"]),
            full(params["w2"]), full(params["b2"]),
        ],
        out_specs=pl.BlockSpec((n_rows, D), lambda g: (g, 0)),
        scratch_shapes=[pltpu.VMEM((n_rows + 2 * pad, D), jnp.float32)],
    )
    kernel = partial(_fused_transformer_kernel, depth=depth, heads=heads,
                     dim_head=dim_head, n_img=block_b, n_tok=N, pad=pad,
                     tap_offsets=tap_offsets)
    y2 = pl.pallas_call(
        kernel,
        grid_spec=grid_spec,
        out_shape=jax.ShapeDtypeStruct((B * N, D), jnp.float32),
        compiler_params=pltpu.CompilerParams(
            dimension_semantics=("parallel",)),
    )(x2, masks, params["lng"], params["lnb"], params["aqkv"], params["bqkv"],
      params["outw"], params["outb"], params["w1"], params["b1"],
      params["w2"], params["b2"])
    return y2.reshape(B, N, D)


# ----------------------------- pure-JAX reference -----------------------------

def reference_forward(x, raw_layers, H, W, heads, dim_head):
    B, N, D = x.shape
    inner = heads * dim_head

    def ln(t, g, b):
        mu = jnp.mean(t, axis=-1, keepdims=True)
        var = jnp.mean((t - mu) ** 2, axis=-1, keepdims=True)
        return (t - mu) / jnp.sqrt(var + LN_EPS) * g + b

    def sepconv(img, P):                                   # img (B,H,W,D) NHWC
        xp = jnp.pad(img, ((0, 0), (1, 1), (1, 1), (0, 0)))
        out = jnp.zeros_like(img)
        for di in range(3):
            for dj in range(3):
                out = out + xp[:, di:di + H, dj:dj + W, :] * P["dw_w"][di, dj]
        out = out + P["dw_b"]
        s = P["bn_g"] / jnp.sqrt(P["bn_rv"] + BN_EPS)       # eval-mode BatchNorm
        out = (out - P["bn_rm"]) * s + P["bn_b"]
        out = jnp.einsum("bhwc,co->bhwo", out, P["pw_w"]) + P["pw_b"]
        return out.reshape(B, N, inner)

    for rl in raw_layers:
        xn = ln(x, rl["ln1_g"], rl["ln1_b"])
        img = xn.reshape(B, H, W, D)
        q, k, v = (sepconv(img, rl[n]) for n in ("q", "k", "v"))

        def split(t):
            return t.reshape(B, N, heads, dim_head).transpose(0, 2, 1, 3)

        qh, kh, vh = split(q), split(k), split(v)
        dots = jnp.einsum("bhid,bhjd->bhij", qh, kh) * dim_head ** (-0.5)
        attn = jax.nn.softmax(dots, axis=-1)
        o = jnp.einsum("bhij,bhjd->bhid", attn, vh)
        o = o.transpose(0, 2, 1, 3).reshape(B, N, inner)
        o = o @ rl["out_w"] + rl["out_b"]
        x = x + o

        xn2 = ln(x, rl["ln2_g"], rl["ln2_b"])
        h1 = xn2 @ rl["w1"] + rl["b1"]
        h1 = 0.5 * h1 * (1.0 + lax.erf(h1 * (1.0 / math.sqrt(2.0))))
        x = x + (h1 @ rl["w2"] + rl["b2"])
    return x


# ----------------------------- demo / self-check -----------------------------

if __name__ == "__main__":
    # Small config consistent with the module: dim=32, 8x8 grid (N=64),
    # depth=2, heads=2, dim_head=16, mlp_dim=64, dropout=0, last_stage=False.
    B = 2
    dim = 32
    H = W = 8
    N = H * W
    heads = 2
    dim_head = 16
    inner = heads * dim_head
    mlp_dim = 64
    depth = 2

    key = jax.random.PRNGKey(0)
    key, xk = jax.random.split(key)
    x = jax.random.normal(xk, (B, N, dim), jnp.float32)

    def init_sepconv_raw(k, cin, cout, std=0.1):
        ks = jax.random.split(k, 8)
        return dict(
            dw_w=jax.random.normal(ks[0], (3, 3, cin), jnp.float32) * std,
            dw_b=jax.random.normal(ks[1], (cin,), jnp.float32) * std,
            bn_g=1.0 + jax.random.normal(ks[2], (cin,), jnp.float32) * std,
            bn_b=jax.random.normal(ks[3], (cin,), jnp.float32) * std,
            bn_rm=jax.random.normal(ks[4], (cin,), jnp.float32) * std,
            bn_rv=1.0 + jnp.abs(jax.random.normal(ks[5], (cin,), jnp.float32)) * std,
            pw_w=jax.random.normal(ks[6], (cin, cout), jnp.float32) * std,
            pw_b=jax.random.normal(ks[7], (cout,), jnp.float32) * std,
        )

    raw_layers = []
    for _ in range(depth):
        key, *ks = jax.random.split(key, 14)
        raw_layers.append(dict(
            ln1_g=1.0 + jax.random.normal(ks[0], (dim,), jnp.float32) * 0.05,
            ln1_b=jax.random.normal(ks[1], (dim,), jnp.float32) * 0.05,
            q=init_sepconv_raw(ks[2], dim, inner),
            k=init_sepconv_raw(ks[3], dim, inner),
            v=init_sepconv_raw(ks[4], dim, inner),
            out_w=jax.random.normal(ks[5], (inner, dim), jnp.float32) * 0.1,
            out_b=jax.random.normal(ks[6], (dim,), jnp.float32) * 0.1,
            ln2_g=1.0 + jax.random.normal(ks[7], (dim,), jnp.float32) * 0.05,
            ln2_b=jax.random.normal(ks[8], (dim,), jnp.float32) * 0.05,
            w1=jax.random.normal(ks[9], (dim, mlp_dim), jnp.float32) * 0.1,
            b1=jax.random.normal(ks[10], (mlp_dim,), jnp.float32) * 0.1,
            w2=jax.random.normal(ks[11], (mlp_dim, dim), jnp.float32) * 0.1,
            b2=jax.random.normal(ks[12], (dim,), jnp.float32) * 0.1,
        ))

    params = prepare_params(raw_layers, heads=heads, dim_head=dim_head)

    y = transformer_forward(x, params, heads=heads, dim_head=dim_head,
                            img_h=H, img_w=W)
    jax.block_until_ready(y)

    assert y.shape == (B, N, dim) and y.dtype == jnp.float32
    y_ref = reference_forward(x, raw_layers, H, W, heads, dim_head)
    err = float(jnp.max(jnp.abs(y - y_ref)))
    assert err < 5e-2, f"mismatch vs reference: {err}"
    print("KERNEL_OK")
</pallas_src>

<mosaic_0001>
module attributes {stable_mosaic.version = 11 : i64} {
  func.func @_fused_transformer_kernel(%arg0: i32, %arg1: memref<128x32xf32, #tpu.memory_space<vmem>>, %arg2: memref<128x9xf32, #tpu.memory_space<vmem>>, %arg3: memref<2x2x1x32xf32, #tpu.memory_space<vmem>>, %arg4: memref<2x2x1x32xf32, #tpu.memory_space<vmem>>, %arg5: memref<2x288x96xbf16, #tpu.memory_space<vmem>>, %arg6: memref<2x1x96xf32, #tpu.memory_space<vmem>>, %arg7: memref<2x32x32xbf16, #tpu.memory_space<vmem>>, %arg8: memref<2x1x32xf32, #tpu.memory_space<vmem>>, %arg9: memref<2x32x64xbf16, #tpu.memory_space<vmem>>, %arg10: memref<2x1x64xf32, #tpu.memory_space<vmem>>, %arg11: memref<2x64x32xbf16, #tpu.memory_space<vmem>>, %arg12: memref<2x1x32xf32, #tpu.memory_space<vmem>>, %arg13: memref<128x32xf32, #tpu.memory_space<vmem>>, %arg14: memref<160x32xf32, #tpu.memory_space<vmem>>) attributes {dimension_semantics = [#tpu.dimension_semantics<parallel>], iteration_bounds = array<i64: 1>, scalar_prefetch = 0 : i64, scratch_operands = 1 : i64, tpu.core_type = #tpu.core_type<tc>, window_params = [{transform_indices = @transform_0, window_bounds = array<i64: 128, 32>}, {pipeline_mode = #tpu.pipeline_mode<synchronous>, transform_indices = @transform_1, window_bounds = array<i64: 128, 9>}, {pipeline_mode = #tpu.pipeline_mode<synchronous>, transform_indices = @transform_2, window_bounds = array<i64: 2, 2, 1, 32>}, {pipeline_mode = #tpu.pipeline_mode<synchronous>, transform_indices = @transform_3, window_bounds = array<i64: 2, 2, 1, 32>}, {pipeline_mode = #tpu.pipeline_mode<synchronous>, transform_indices = @transform_4, window_bounds = array<i64: 2, 288, 96>}, {pipeline_mode = #tpu.pipeline_mode<synchronous>, transform_indices = @transform_5, window_bounds = array<i64: 2, 1, 96>}, {pipeline_mode = #tpu.pipeline_mode<synchronous>, transform_indices = @transform_6, window_bounds = array<i64: 2, 32, 32>}, {pipeline_mode = #tpu.pipeline_mode<synchronous>, transform_indices = @transform_7, window_bounds = array<i64: 2, 1, 32>}, {pipeline_mode = #tpu.pipeline_mode<synchronous>, transform_indices = @transform_8, window_bounds = array<i64: 2, 32, 64>}, {pipeline_mode = #tpu.pipeline_mode<synchronous>, transform_indices = @transform_9, window_bounds = array<i64: 2, 1, 64>}, {pipeline_mode = #tpu.pipeline_mode<synchronous>, transform_indices = @transform_10, window_bounds = array<i64: 2, 64, 32>}, {pipeline_mode = #tpu.pipeline_mode<synchronous>, transform_indices = @transform_11, window_bounds = array<i64: 2, 1, 32>}, {transform_indices = @transform_12, window_bounds = array<i64: 128, 32>}]} {
    %cst = arith.constant 0.000000e+00 : f32
    %0 = vector.broadcast %cst : f32 to vector<160x32xf32>
    %c0 = arith.constant 0 : index
    %c0_0 = arith.constant 0 : index
    %1 = vector.load %arg14[%c0, %c0_0] : memref<160x32xf32, #tpu.memory_space<vmem>>, vector<160x32xf32>
    tpu.vector_store %arg14[%c0, %c0_0], %0 {strides = array<i32>} : memref<160x32xf32, #tpu.memory_space<vmem>>, vector<160x32xf32>,
    %c0_1 = arith.constant 0 : index
    %c0_2 = arith.constant 0 : index
    %2 = vector.load %arg2[%c0_1, %c0_2] : memref<128x9xf32, #tpu.memory_space<vmem>>, vector<128x9xf32>
    %3 = vector.extract_strided_slice %2 {offsets = [0, 0], sizes = [128, 1], strides = [1, 1]} : vector<128x9xf32> to vector<128x1xf32>
    %4 = vector.extract_strided_slice %2 {offsets = [0, 1], sizes = [128, 1], strides = [1, 1]} : vector<128x9xf32> to vector<128x1xf32>
    %5 = vector.extract_strided_slice %2 {offsets = [0, 2], sizes = [128, 1], strides = [1, 1]} : vector<128x9xf32> to vector<128x1xf32>
    %6 = vector.extract_strided_slice %2 {offsets = [0, 3], sizes = [128, 1], strides = [1, 1]} : vector<128x9xf32> to vector<128x1xf32>
    %7 = vector.extract_strided_slice %2 {offsets = [0, 4], sizes = [128, 1], strides = [1, 1]} : vector<128x9xf32> to vector<128x1xf32>
    %8 = vector.extract_strided_slice %2 {offsets = [0, 5], sizes = [128, 1], strides = [1, 1]} : vector<128x9xf32> to vector<128x1xf32>
    %9 = vector.extract_strided_slice %2 {offsets = [0, 6], sizes = [128, 1], strides = [1, 1]} : vector<128x9xf32> to vector<128x1xf32>
    %10 = vector.extract_strided_slice %2 {offsets = [0, 7], sizes = [128, 1], strides = [1, 1]} : vector<128x9xf32> to vector<128x1xf32>
    %11 = vector.extract_strided_slice %2 {offsets = [0, 8], sizes = [128, 1], strides = [1, 1]} : vector<128x9xf32> to vector<128x1xf32>
    %c0_3 = arith.constant 0 : index
    %c0_4 = arith.constant 0 : index
    %12 = vector.load %arg1[%c0_3, %c0_4] : memref<128x32xf32, #tpu.memory_space<vmem>>, vector<128x32xf32>
    %c0_5 = arith.constant 0 : index
    %c0_6 = arith.constant 0 : index
    %c0_7 = arith.constant 0 : index
    %c0_8 = arith.constant 0 : index
    %13 = vector.load %arg3[%c0_5, %c0_6, %c0_7, %c0_8] : memref<2x2x1x32xf32, #tpu.memory_space<vmem>>, vector<1x1x1x32xf32>
    %14 = vector.shape_cast %13 : vector<1x1x1x32xf32> to vector<1x32xf32>
    %c0_9 = arith.constant 0 : index
    %c0_10 = arith.constant 0 : index
    %c0_11 = arith.constant 0 : index
    %c0_12 = arith.constant 0 : index
    %15 = vector.load %arg4[%c0_9, %c0_10, %c0_11, %c0_12] : memref<2x2x1x32xf32, #tpu.memory_space<vmem>>, vector<1x1x1x32xf32>
    %16 = vector.shape_cast %15 : vector<1x1x1x32xf32> to vector<1x32xf32>
    %cst_13 = arith.constant dense<0.000000e+00> : vector<128xf32>
    %17 = vector.multi_reduction <add>, %12, %cst_13 [1] : vector<128x32xf32> to vector<128xf32>
    %18 = vector.shape_cast %17 : vector<128xf32> to vector<128x1xf32>
    %cst_14 = arith.constant 3.200000e+01 : f32
    %19 = vector.broadcast %cst_14 : f32 to vector<128x1xf32>
    %20 = arith.divf %18, %19 : vector<128x1xf32>
    %21 = arith.mulf %12, %12 : vector<128x32xf32>
    %cst_15 = arith.constant dense<0.000000e+00> : vector<128xf32>
    %22 = vector.multi_reduction <add>, %21, %cst_15 [1] : vector<128x32xf32> to vector<128xf32>
    %23 = vector.shape_cast %22 : vector<128xf32> to vector<128x1xf32>
    %cst_16 = arith.constant 3.200000e+01 : f32
    %24 = vector.broadcast %cst_16 : f32 to vector<128x1xf32>
    %25 = arith.divf %23, %24 : vector<128x1xf32>
    %26 = arith.mulf %20, %20 : vector<128x1xf32>
    %27 = arith.subf %25, %26 : vector<128x1xf32>
    %28 = vector.broadcast %20 : vector<128x1xf32> to vector<128x32xf32>
    %29 = arith.subf %12, %28 : vector<128x32xf32>
    %cst_17 = arith.constant 9.99999974E-6 : f32
    %30 = vector.broadcast %cst_17 : f32 to vector<128x1xf32>
    %31 = arith.addf %27, %30 : vector<128x1xf32>
    %32 = math.rsqrt %31 : vector<128x1xf32>
    %33 = vector.broadcast %32 : vector<128x1xf32> to vector<128x32xf32>
    %34 = arith.mulf %29, %33 : vector<128x32xf32>
    %35 = vector.broadcast %14 : vector<1x32xf32> to vector<128x32xf32>
    %36 = arith.mulf %34, %35 : vector<128x32xf32>
    %37 = vector.broadcast %16 : vector<1x32xf32> to vector<128x32xf32>
    %38 = arith.addf %36, %37 : vector<128x32xf32>
    %c16 = arith.constant 16 : index
    %c0_18 = arith.constant 0 : index
    %39 = vector.load %arg14[%c16, %c0_18] : memref<160x32xf32, #tpu.memory_space<vmem>>, vector<128x32xf32>
    tpu.vector_store %arg14[%c16, %c0_18], %38 {strides = array<i32>} : memref<160x32xf32, #tpu.memory_space<vmem>>, vector<128x32xf32>,
    %c7 = arith.constant 7 : index
    %c0_19 = arith.constant 0 : index
    %40 = vector.load %arg14[%c7, %c0_19] : memref<160x32xf32, #tpu.memory_space<vmem>>, vector<128x32xf32>
    %41 = vector.broadcast %3 : vector<128x1xf32> to vector<128x32xf32>
    %42 = arith.mulf %40, %41 : vector<128x32xf32>
    %c8 = arith.constant 8 : index
    %c0_20 = arith.constant 0 : index
    %43 = vector.load %arg14[%c8, %c0_20] : memref<160x32xf32, #tpu.memory_space<vmem>>, vector<128x32xf32>
    %44 = vector.broadcast %4 : vector<128x1xf32> to vector<128x32xf32>
    %45 = arith.mulf %43, %44 : vector<128x32xf32>
    %c9 = arith.constant 9 : index
    %c0_21 = arith.constant 0 : index
    %46 = vector.load %arg14[%c9, %c0_21] : memref<160x32xf32, #tpu.memory_space<vmem>>, vector<128x32xf32>
    %47 = vector.broadcast %5 : vector<128x1xf32> to vector<128x32xf32>
    %48 = arith.mulf %46, %47 : vector<128x32xf32>
    %c15 = arith.constant 15 : index
    %c0_22 = arith.constant 0 : index
    %49 = vector.load %arg14[%c15, %c0_22] : memref<160x32xf32, #tpu.memory_space<vmem>>, vector<128x32xf32>
    %50 = vector.broadcast %6 : vector<128x1xf32> to vector<128x32xf32>
    %51 = arith.mulf %49, %50 : vector<128x32xf32>
    %c16_23 = arith.constant 16 : index
    %c0_24 = arith.constant 0 : index
    %52 = vector.load %arg14[%c16_23, %c0_24] : memref<160x32xf32, #tpu.memory_space<vmem>>, vector<128x32xf32>
    %53 = vector.broadcast %7 : vector<128x1xf32> to vector<128x32xf32>
    %54 = arith.mulf %52, %53 : vector<128x32xf32>
    %c17 = arith.constant 17 : index
    %c0_25 = arith.constant 0 : index
    %55 = vector.load %arg14[%c17, %c0_25] : memref<160x32xf32, #tpu.memory_space<vmem>>, vector<128x32xf32>
    %56 = vector.broadcast %8 : vector<128x1xf32> to vector<128x32xf32>
    %57 = arith.mulf %55, %56 : vector<128x32xf32>
    %c23 = arith.constant 23 : index
    %c0_26 = arith.constant 0 : index
    %58 = vector.load %arg14[%c23, %c0_26] : memref<160x32xf32, #tpu.memory_space<vmem>>, vector<128x32xf32>
    %59 = vector.broadcast %9 : vector<128x1xf32> to vector<128x32xf32>
    %60 = arith.mulf %58, %59 : vector<128x32xf32>
    %c24 = arith.constant 24 : index
    %c0_27 = arith.constant 0 : index
    %61 = vector.load %arg14[%c24, %c0_27] : memref<160x32xf32, #tpu.memory_space<vmem>>, vector<128x32xf32>
    %62 = vector.broadcast %10 : vector<128x1xf32> to vector<128x32xf32>
    %63 = arith.mulf %61, %62 : vector<128x32xf32>
    %c25 = arith.constant 25 : index
    %c0_28 = arith.constant 0 : index
    %64 = vector.load %arg14[%c25, %c0_28] : memref<160x32xf32, #tpu.memory_space<vmem>>, vector<128x32xf32>
    %65 = vector.broadcast %11 : vector<128x1xf32> to vector<128x32xf32>
    %66 = arith.mulf %64, %65 : vector<128x32xf32>
    %67 = tpu.concatenate %42, %45, %48, %51, %54, %57, %60, %63, %66 in 1 : vector<128x32xf32>, vector<128x32xf32>, vector<128x32xf32>, vector<128x32xf32>, vector<128x32xf32>, vector<128x32xf32>, vector<128x32xf32>, vector<128x32xf32>, vector<128x32xf32> -> vector<128x288xf32>
    %68 = arith.truncf %67 : vector<128x288xf32> to vector<128x288xbf16>
    %c0_29 = arith.constant 0 : index
    %c0_30 = arith.constant 0 : index
    %c0_31 = arith.constant 0 : index
    %69 = vector.load %arg5[%c0_29, %c0_30, %c0_31] : memref<2x288x96xbf16, #tpu.memory_space<vmem>>, vector<1x288x96xbf16>
    %70 = vector.shape_cast %69 : vector<1x288x96xbf16> to vector<288x96xbf16>
    %cst_32 = arith.constant dense<0.000000e+00> : vector<128x96xf32>
    %71 = tpu.matmul %68, %70, %cst_32 {dimension_numbers = #tpu.dot_dimension_numbers<[1], [0], [0], [1], [0, 0, 1, 1], [], []>} : vector<128x288xbf16>, vector<288x96xbf16>, vector<128x96xf32> -> vector<128x96xf32>
    %c0_33 = arith.constant 0 : index
    %c0_34 = arith.constant 0 : index
    %c0_35 = arith.constant 0 : index
    %72 = vector.load %arg6[%c0_33, %c0_34, %c0_35] : memref<2x1x96xf32, #tpu.memory_space<vmem>>, vector<1x1x96xf32>
    %73 = vector.shape_cast %72 : vector<1x1x96xf32> to vector<1x96xf32>
    %74 = vector.broadcast %73 : vector<1x96xf32> to vector<128x96xf32>
    %75 = arith.addf %71, %74 : vector<128x96xf32>
    %76 = vector.extract_strided_slice %75 {offsets = [0, 0], sizes = [64, 16], strides = [1, 1]} : vector<128x96xf32> to vector<64x16xf32>
    %77 = arith.truncf %76 : vector<64x16xf32> to vector<64x16xbf16>
    %78 = vector.extract_strided_slice %75 {offsets = [0, 32], sizes = [64, 16], strides = [1, 1]} : vector<128x96xf32> to vector<64x16xf32>
    %79 = arith.truncf %78 : vector<64x16xf32> to vector<64x16xbf16>
    %80 = vector.extract_strided_slice %75 {offsets = [0, 64], sizes = [64, 16], strides = [1, 1]} : vector<128x96xf32> to vector<64x16xf32>
    %81 = arith.truncf %80 : vector<64x16xf32> to vector<64x16xbf16>
    %cst_36 = arith.constant dense<0.000000e+00> : vector<64x64xf32>
    %82 = tpu.matmul %77, %79, %cst_36 {dimension_numbers = #tpu.dot_dimension_numbers<[1], [1], [0], [0], [0, 0, 1, 0], [], []>} : vector<64x16xbf16>, vector<64x16xbf16>, vector<64x64xf32> -> vector<64x64xf32>
    %cst_37 = arith.constant dense<0xFF800000> : vector<64xf32>
    %83 = vector.multi_reduction <maximumf>, %82, %cst_37 [1] : vector<64x64xf32> to vector<64xf32>
    %84 = vector.shape_cast %83 : vector<64xf32> to vector<64x1xf32>
    %85 = vector.broadcast %84 : vector<64x1xf32> to vector<64x64xf32>
    %86 = arith.subf %82, %85 : vector<64x64xf32>
    %87 = math.exp %86 : vector<64x64xf32>
    %cst_38 = arith.constant dense<0.000000e+00> : vector<64xf32>
    %88 = vector.multi_reduction <add>, %87, %cst_38 [1] : vector<64x64xf32> to vector<64xf32>
    %89 = vector.shape_cast %88 : vector<64xf32> to vector<64x1xf32>
    %90 = tpu.reciprocal %89 {approx = true} : vector<64x1xf32> -> vector<64x1xf32>
    %91 = vector.broadcast %90 : vector<64x1xf32> to vector<64x64xf32>
    %92 = arith.mulf %87, %91 : vector<64x64xf32>
    %93 = arith.truncf %92 : vector<64x64xf32> to vector<64x64xbf16>
    %cst_39 = arith.constant dense<0.000000e+00> : vector<64x16xf32>
    %94 = tpu.matmul %93, %81, %cst_39 {dimension_numbers = #tpu.dot_dimension_numbers<[1], [0], [0], [1], [0, 0, 1, 1], [], []>} : vector<64x64xbf16>, vector<64x16xbf16>, vector<64x16xf32> -> vector<64x16xf32>
    %95 = vector.extract_strided_slice %75 {offsets = [0, 16], sizes = [64, 16], strides = [1, 1]} : vector<128x96xf32> to vector<64x16xf32>
    %96 = arith.truncf %95 : vector<64x16xf32> to vector<64x16xbf16>
    %97 = vector.extract_strided_slice %75 {offsets = [0, 48], sizes = [64, 16], strides = [1, 1]} : vector<128x96xf32> to vector<64x16xf32>
    %98 = arith.truncf %97 : vector<64x16xf32> to vector<64x16xbf16>
    %99 = vector.extract_strided_slice %75 {offsets = [0, 80], sizes = [64, 16], strides = [1, 1]} : vector<128x96xf32> to vector<64x16xf32>
    %100 = arith.truncf %99 : vector<64x16xf32> to vector<64x16xbf16>
    %cst_40 = arith.constant dense<0.000000e+00> : vector<64x64xf32>
    %101 = tpu.matmul %96, %98, %cst_40 {dimension_numbers = #tpu.dot_dimension_numbers<[1], [1], [0], [0], [0, 0, 1, 0], [], []>} : vector<64x16xbf16>, vector<64x16xbf16>, vector<64x64xf32> -> vector<64x64xf32>
    %cst_41 = arith.constant dense<0xFF800000> : vector<64xf32>
    %102 = vector.multi_reduction <maximumf>, %101, %cst_41 [1] : vector<64x64xf32> to vector<64xf32>
    %103 = vector.shape_cast %102 : vector<64xf32> to vector<64x1xf32>
    %104 = vector.broadcast %103 : vector<64x1xf32> to vector<64x64xf32>
    %105 = arith.subf %101, %104 : vector<64x64xf32>
    %106 = math.exp %105 : vector<64x64xf32>
    %cst_42 = arith.constant dense<0.000000e+00> : vector<64xf32>
    %107 = vector.multi_reduction <add>, %106, %cst_42 [1] : vector<64x64xf32> to vector<64xf32>
    %108 = vector.shape_cast %107 : vector<64xf32> to vector<64x1xf32>
    %109 = tpu.reciprocal %108 {approx = true} : vector<64x1xf32> -> vector<64x1xf32>
    %110 = vector.broadcast %109 : vector<64x1xf32> to vector<64x64xf32>
    %111 = arith.mulf %106, %110 : vector<64x64xf32>
    %112 = arith.truncf %111 : vector<64x64xf32> to vector<64x64xbf16>
    %cst_43 = arith.constant dense<0.000000e+00> : vector<64x16xf32>
    %113 = tpu.matmul %112, %100, %cst_43 {dimension_numbers = #tpu.dot_dimension_numbers<[1], [0], [0], [1], [0, 0, 1, 1], [], []>} : vector<64x64xbf16>, vector<64x16xbf16>, vector<64x16xf32> -> vector<64x16xf32>
    %114 = tpu.concatenate %94, %113 in 1 : vector<64x16xf32>, vector<64x16xf32> -> vector<64x32xf32>
    %115 = vector.extract_strided_slice %75 {offsets = [64, 0], sizes = [64, 16], strides = [1, 1]} : vector<128x96xf32> to vector<64x16xf32>
    %116 = arith.truncf %115 : vector<64x16xf32> to vector<64x16xbf16>
    %117 = vector.extract_strided_slice %75 {offsets = [64, 32], sizes = [64, 16], strides = [1, 1]} : vector<128x96xf32> to vector<64x16xf32>
    %118 = arith.truncf %117 : vector<64x16xf32> to vector<64x16xbf16>
    %119 = vector.extract_strided_slice %75 {offsets = [64, 64], sizes = [64, 16], strides = [1, 1]} : vector<128x96xf32> to vector<64x16xf32>
    %120 = arith.truncf %119 : vector<64x16xf32> to vector<64x16xbf16>
    %cst_44 = arith.constant dense<0.000000e+00> : vector<64x64xf32>
    %121 = tpu.matmul %116, %118, %cst_44 {dimension_numbers = #tpu.dot_dimension_numbers<[1], [1], [0], [0], [0, 0, 1, 0], [], []>} : vector<64x16xbf16>, vector<64x16xbf16>, vector<64x64xf32> -> vector<64x64xf32>
    %cst_45 = arith.constant dense<0xFF800000> : vector<64xf32>
    %122 = vector.multi_reduction <maximumf>, %121, %cst_45 [1] : vector<64x64xf32> to vector<64xf32>
    %123 = vector.shape_cast %122 : vector<64xf32> to vector<64x1xf32>
    %124 = vector.broadcast %123 : vector<64x1xf32> to vector<64x64xf32>
    %125 = arith.subf %121, %124 : vector<64x64xf32>
    %126 = math.exp %125 : vector<64x64xf32>
    %cst_46 = arith.constant dense<0.000000e+00> : vector<64xf32>
    %127 = vector.multi_reduction <add>, %126, %cst_46 [1] : vector<64x64xf32> to vector<64xf32>
    %128 = vector.shape_cast %127 : vector<64xf32> to vector<64x1xf32>
    %129 = tpu.reciprocal %128 {approx = true} : vector<64x1xf32> -> vector<64x1xf32>
    %130 = vector.broadcast %129 : vector<64x1xf32> to vector<64x64xf32>
    %131 = arith.mulf %126, %130 : vector<64x64xf32>
    %132 = arith.truncf %131 : vector<64x64xf32> to vector<64x64xbf16>
    %cst_47 = arith.constant dense<0.000000e+00> : vector<64x16xf32>
    %133 = tpu.matmul %132, %120, %cst_47 {dimension_numbers = #tpu.dot_dimension_numbers<[1], [0], [0], [1], [0, 0, 1, 1], [], []>} : vector<64x64xbf16>, vector<64x16xbf16>, vector<64x16xf32> -> vector<64x16xf32>
    %134 = vector.extract_strided_slice %75 {offsets = [64, 16], sizes = [64, 16], strides = [1, 1]} : vector<128x96xf32> to vector<64x16xf32>
    %135 = arith.truncf %134 : vector<64x16xf32> to vector<64x16xbf16>
    %136 = vector.extract_strided_slice %75 {offsets = [64, 48], sizes = [64, 16], strides = [1, 1]} : vector<128x96xf32> to vector<64x16xf32>
    %137 = arith.truncf %136 : vector<64x16xf32> to vector<64x16xbf16>
    %138 = vector.extract_strided_slice %75 {offsets = [64, 80], sizes = [64, 16], strides = [1, 1]} : vector<128x96xf32> to vector<64x16xf32>
    %139 = arith.truncf %138 : vector<64x16xf32> to vector<64x16xbf16>
    %cst_48 = arith.constant dense<0.000000e+00> : vector<64x64xf32>
    %140 = tpu.matmul %135, %137, %cst_48 {dimension_numbers = #tpu.dot_dimension_numbers<[1], [1], [0], [0], [0, 0, 1, 0], [], []>} : vector<64x16xbf16>, vector<64x16xbf16>, vector<64x64xf32> -> vector<64x64xf32>
    %cst_49 = arith.constant dense<0xFF800000> : vector<64xf32>
    %141 = vector.multi_reduction <maximumf>, %140, %cst_49 [1] : vector<64x64xf32> to vector<64xf32>
    %142 = vector.shape_cast %141 : vector<64xf32> to vector<64x1xf32>
    %143 = vector.broadcast %142 : vector<64x1xf32> to vector<64x64xf32>
    %144 = arith.subf %140, %143 : vector<64x64xf32>
    %145 = math.exp %144 : vector<64x64xf32>
    %cst_50 = arith.constant dense<0.000000e+00> : vector<64xf32>
    %146 = vector.multi_reduction <add>, %145, %cst_50 [1] : vector<64x64xf32> to vector<64xf32>
    %147 = vector.shape_cast %146 : vector<64xf32> to vector<64x1xf32>
    %148 = tpu.reciprocal %147 {approx = true} : vector<64x1xf32> -> vector<64x1xf32>
    %149 = vector.broadcast %148 : vector<64x1xf32> to vector<64x64xf32>
    %150 = arith.mulf %145, %149 : vector<64x64xf32>
    %151 = arith.truncf %150 : vector<64x64xf32> to vector<64x64xbf16>
    %cst_51 = arith.constant dense<0.000000e+00> : vector<64x16xf32>
    %152 = tpu.matmul %151, %139, %cst_51 {dimension_numbers = #tpu.dot_dimension_numbers<[1], [0], [0], [1], [0, 0, 1, 1], [], []>} : vector<64x64xbf16>, vector<64x16xbf16>, vector<64x16xf32> -> vector<64x16xf32>
    %153 = tpu.concatenate %133, %152 in 1 : vector<64x16xf32>, vector<64x16xf32> -> vector<64x32xf32>
    %154 = tpu.concatenate %114, %153 in 0 : vector<64x32xf32>, vector<64x32xf32> -> vector<128x32xf32>
    %155 = arith.truncf %154 : vector<128x32xf32> to vector<128x32xbf16>
    %c0_52 = arith.constant 0 : index
    %c0_53 = arith.constant 0 : index
    %c0_54 = arith.constant 0 : index
    %156 = vector.load %arg7[%c0_52, %c0_53, %c0_54] : memref<2x32x32xbf16, #tpu.memory_space<vmem>>, vector<1x32x32xbf16>
    %157 = vector.shape_cast %156 : vector<1x32x32xbf16> to vector<32x32xbf16>
    %cst_55 = arith.constant dense<0.000000e+00> : vector<128x32xf32>
    %158 = tpu.matmul %155, %157, %cst_55 {dimension_numbers = #tpu.dot_dimension_numbers<[1], [0], [0], [1], [0, 0, 1, 1], [], []>} : vector<128x32xbf16>, vector<32x32xbf16>, vector<128x32xf32> -> vector<128x32xf32>
    %159 = arith.addf %12, %158 : vector<128x32xf32>
    %c0_56 = arith.constant 0 : index
    %c0_57 = arith.constant 0 : index
    %c0_58 = arith.constant 0 : index
    %160 = vector.load %arg8[%c0_56, %c0_57, %c0_58] : memref<2x1x32xf32, #tpu.memory_space<vmem>>, vector<1x1x32xf32>
    %161 = vector.shape_cast %160 : vector<1x1x32xf32> to vector<1x32xf32>
    %162 = vector.broadcast %161 : vector<1x32xf32> to vector<128x32xf32>
    %163 = arith.addf %159, %162 : vector<128x32xf32>
    %c0_59 = arith.constant 0 : index
    %c1 = arith.constant 1 : index
    %c0_60 = arith.constant 0 : index
    %c0_61 = arith.constant 0 : index
    %164 = vector.load %arg3[%c0_59, %c1, %c0_60, %c0_61] : memref<2x2x1x32xf32, #tpu.memory_space<vmem>>, vector<1x1x1x32xf32>
    %165 = vector.shape_cast %164 : vector<1x1x1x32xf32> to vector<1x32xf32>
    %c0_62 = arith.constant 0 : index
    %c1_63 = arith.constant 1 : index
    %c0_64 = arith.constant 0 : index
    %c0_65 = arith.constant 0 : index
    %166 = vector.load %arg4[%c0_62, %c1_63, %c0_64, %c0_65] : memref<2x2x1x32xf32, #tpu.memory_space<vmem>>, vector<1x1x1x32xf32>
    %167 = vector.shape_cast %166 : vector<1x1x1x32xf32> to vector<1x32xf32>
    %cst_66 = arith.constant dense<0.000000e+00> : vector<128xf32>
    %168 = vector.multi_reduction <add>, %163, %cst_66 [1] : vector<128x32xf32> to vector<128xf32>
    %169 = vector.shape_cast %168 : vector<128xf32> to vector<128x1xf32>
    %cst_67 = arith.constant 3.200000e+01 : f32
    %170 = vector.broadcast %cst_67 : f32 to vector<128x1xf32>
    %171 = arith.divf %169, %170 : vector<128x1xf32>
    %172 = arith.mulf %163, %163 : vector<128x32xf32>
    %cst_68 = arith.constant dense<0.000000e+00> : vector<128xf32>
    %173 = vector.multi_reduction <add>, %172, %cst_68 [1] : vector<128x32xf32> to vector<128xf32>
    %174 = vector.shape_cast %173 : vector<128xf32> to vector<128x1xf32>
    %cst_69 = arith.constant 3.200000e+01 : f32
    %175 = vector.broadcast %cst_69 : f32 to vector<128x1xf32>
    %176 = arith.divf %174, %175 : vector<128x1xf32>
    %177 = arith.mulf %171, %171 : vector<128x1xf32>
    %178 = arith.subf %176, %177 : vector<128x1xf32>
    %179 = vector.broadcast %171 : vector<128x1xf32> to vector<128x32xf32>
    %180 = arith.subf %163, %179 : vector<128x32xf32>
    %cst_70 = arith.constant 9.99999974E-6 : f32
    %181 = vector.broadcast %cst_70 : f32 to vector<128x1xf32>
    %182 = arith.addf %178, %181 : vector<128x1xf32>
    %183 = math.rsqrt %182 : vector<128x1xf32>
    %184 = vector.broadcast %183 : vector<128x1xf32> to vector<128x32xf32>
    %185 = arith.mulf %180, %184 : vector<128x32xf32>
    %186 = vector.broadcast %165 : vector<1x32xf32> to vector<128x32xf32>
    %187 = arith.mulf %185, %186 : vector<128x32xf32>
    %188 = vector.broadcast %167 : vector<1x32xf32> to vector<128x32xf32>
    %189 = arith.addf %187, %188 : vector<128x32xf32>
    %190 = arith.truncf %189 : vector<128x32xf32> to vector<128x32xbf16>
    %c0_71 = arith.constant 0 : index
    %c0_72 = arith.constant 0 : index
    %c0_73 = arith.constant 0 : index
    %191 = vector.load %arg9[%c0_71, %c0_72, %c0_73] : memref<2x32x64xbf16, #tpu.memory_space<vmem>>, vector<1x32x64xbf16>
    %192 = vector.shape_cast %191 : vector<1x32x64xbf16> to vector<32x64xbf16>
    %cst_74 = arith.constant dense<0.000000e+00> : vector<128x64xf32>
    %193 = tpu.matmul %190, %192, %cst_74 {dimension_numbers = #tpu.dot_dimension_numbers<[1], [0], [0], [1], [0, 0, 1, 1], [], []>} : vector<128x32xbf16>, vector<32x64xbf16>, vector<128x64xf32> -> vector<128x64xf32>
    %c0_75 = arith.constant 0 : index
    %c0_76 = arith.constant 0 : index
    %c0_77 = arith.constant 0 : index
    %194 = vector.load %arg10[%c0_75, %c0_76, %c0_77] : memref<2x1x64xf32, #tpu.memory_space<vmem>>, vector<1x1x64xf32>
    %195 = vector.shape_cast %194 : vector<1x1x64xf32> to vector<1x64xf32>
    %196 = vector.broadcast %195 : vector<1x64xf32> to vector<128x64xf32>
    %197 = arith.addf %193, %196 : vector<128x64xf32>
    %cst_78 = arith.constant 5.000000e-01 : f32
    %198 = vector.broadcast %cst_78 : f32 to vector<128x64xf32>
    %199 = arith.mulf %198, %197 : vector<128x64xf32>
    %cst_79 = arith.constant 0.707106769 : f32
    %200 = vector.broadcast %cst_79 : f32 to vector<128x64xf32>
    %201 = arith.mulf %197, %200 : vector<128x64xf32>
    %202 = math.erf %201 : vector<128x64xf32>
    %cst_80 = arith.constant 1.000000e+00 : f32
    %203 = vector.broadcast %cst_80 : f32 to vector<128x64xf32>
    %204 = arith.addf %203, %202 : vector<128x64xf32>
    %205 = arith.mulf %199, %204 : vector<128x64xf32>
    %206 = arith.truncf %205 : vector<128x64xf32> to vector<128x64xbf16>
    %c0_81 = arith.constant 0 : index
    %c0_82 = arith.constant 0 : index
    %c0_83 = arith.constant 0 : index
    %207 = vector.load %arg11[%c0_81, %c0_82, %c0_83] : memref<2x64x32xbf16, #tpu.memory_space<vmem>>, vector<1x64x32xbf16>
    %208 = vector.shape_cast %207 : vector<1x64x32xbf16> to vector<64x32xbf16>
    %cst_84 = arith.constant dense<0.000000e+00> : vector<128x32xf32>
    %209 = tpu.matmul %206, %208, %cst_84 {dimension_numbers = #tpu.dot_dimension_numbers<[1], [0], [0], [1], [0, 0, 1, 1], [], []>} : vector<128x64xbf16>, vector<64x32xbf16>, vector<128x32xf32> -> vector<128x32xf32>
    %c0_85 = arith.constant 0 : index
    %c0_86 = arith.constant 0 : index
    %c0_87 = arith.constant 0 : index
    %210 = vector.load %arg12[%c0_85, %c0_86, %c0_87] : memref<2x1x32xf32, #tpu.memory_space<vmem>>, vector<1x1x32xf32>
    %211 = vector.shape_cast %210 : vector<1x1x32xf32> to vector<1x32xf32>
    %212 = vector.broadcast %211 : vector<1x32xf32> to vector<128x32xf32>
    %213 = arith.addf %209, %212 : vector<128x32xf32>
    %214 = arith.addf %163, %213 : vector<128x32xf32>
    %c1_88 = arith.constant 1 : index
    %c0_89 = arith.constant 0 : index
    %c0_90 = arith.constant 0 : index
    %c0_91 = arith.constant 0 : index
    %215 = vector.load %arg3[%c1_88, %c0_89, %c0_90, %c0_91] : memref<2x2x1x32xf32, #tpu.memory_space<vmem>>, vector<1x1x1x32xf32>
    %216 = vector.shape_cast %215 : vector<1x1x1x32xf32> to vector<1x32xf32>
    %c1_92 = arith.constant 1 : index
    %c0_93 = arith.constant 0 : index
    %c0_94 = arith.constant 0 : index
    %c0_95 = arith.constant 0 : index
    %217 = vector.load %arg4[%c1_92, %c0_93, %c0_94, %c0_95] : memref<2x2x1x32xf32, #tpu.memory_space<vmem>>, vector<1x1x1x32xf32>
    %218 = vector.shape_cast %217 : vector<1x1x1x32xf32> to vector<1x32xf32>
    %cst_96 = arith.constant dense<0.000000e+00> : vector<128xf32>
    %219 = vector.multi_reduction <add>, %214, %cst_96 [1] : vector<128x32xf32> to vector<128xf32>
    %220 = vector.shape_cast %219 : vector<128xf32> to vector<128x1xf32>
    %cst_97 = arith.constant 3.200000e+01 : f32
    %221 = vector.broadcast %cst_97 : f32 to vector<128x1xf32>
    %222 = arith.divf %220, %221 : vector<128x1xf32>
    %223 = arith.mulf %214, %214 : vector<128x32xf32>
    %cst_98 = arith.constant dense<0.000000e+00> : vector<128xf32>
    %224 = vector.multi_reduction <add>, %223, %cst_98 [1] : vector<128x32xf32> to vector<128xf32>
    %225 = vector.shape_cast %224 : vector<128xf32> to vector<128x1xf32>
    %cst_99 = arith.constant 3.200000e+01 : f32
    %226 = vector.broadcast %cst_99 : f32 to vector<128x1xf32>
    %227 = arith.divf %225, %226 : vector<128x1xf32>
    %228 = arith.mulf %222, %222 : vector<128x1xf32>
    %229 = arith.subf %227, %228 : vector<128x1xf32>
    %230 = vector.broadcast %222 : vector<128x1xf32> to vector<128x32xf32>
    %231 = arith.subf %214, %230 : vector<128x32xf32>
    %cst_100 = arith.constant 9.99999974E-6 : f32
    %232 = vector.broadcast %cst_100 : f32 to vector<128x1xf32>
    %233 = arith.addf %229, %232 : vector<128x1xf32>
    %234 = math.rsqrt %233 : vector<128x1xf32>
    %235 = vector.broadcast %234 : vector<128x1xf32> to vector<128x32xf32>
    %236 = arith.mulf %231, %235 : vector<128x32xf32>
    %237 = vector.broadcast %216 : vector<1x32xf32> to vector<128x32xf32>
    %238 = arith.mulf %236, %237 : vector<128x32xf32>
    %239 = vector.broadcast %218 : vector<1x32xf32> to vector<128x32xf32>
    %240 = arith.addf %238, %239 : vector<128x32xf32>
    %c16_101 = arith.constant 16 : index
    %c0_102 = arith.constant 0 : index
    %241 = vector.load %arg14[%c16_101, %c0_102] : memref<160x32xf32, #tpu.memory_space<vmem>>, vector<128x32xf32>
    tpu.vector_store %arg14[%c16_101, %c0_102], %240 {strides = array<i32>} : memref<160x32xf32, #tpu.memory_space<vmem>>, vector<128x32xf32>,
    %c7_103 = arith.constant 7 : index
    %c0_104 = arith.constant 0 : index
    %242 = vector.load %arg14[%c7_103, %c0_104] : memref<160x32xf32, #tpu.memory_space<vmem>>, vector<128x32xf32>
    %243 = vector.broadcast %3 : vector<128x1xf32> to vector<128x32xf32>
    %244 = arith.mulf %242, %243 : vector<128x32xf32>
    %c8_105 = arith.constant 8 : index
    %c0_106 = arith.constant 0 : index
    %245 = vector.load %arg14[%c8_105, %c0_106] : memref<160x32xf32, #tpu.memory_space<vmem>>, vector<128x32xf32>
    %246 = vector.broadcast %4 : vector<128x1xf32> to vector<128x32xf32>
    %247 = arith.mulf %245, %246 : vector<128x32xf32>
    %c9_107 = arith.constant 9 : index
    %c0_108 = arith.constant 0 : index
    %248 = vector.load %arg14[%c9_107, %c0_108] : memref<160x32xf32, #tpu.memory_space<vmem>>, vector<128x32xf32>
    %249 = vector.broadcast %5 : vector<128x1xf32> to vector<128x32xf32>
    %250 = arith.mulf %248, %249 : vector<128x32xf32>
    %c15_109 = arith.constant 15 : index
    %c0_110 = arith.constant 0 : index
    %251 = vector.load %arg14[%c15_109, %c0_110] : memref<160x32xf32, #tpu.memory_space<vmem>>, vector<128x32xf32>
    %252 = vector.broadcast %6 : vector<128x1xf32> to vector<128x32xf32>
    %253 = arith.mulf %251, %252 : vector<128x32xf32>
    %c16_111 = arith.constant 16 : index
    %c0_112 = arith.constant 0 : index
    %254 = vector.load %arg14[%c16_111, %c0_112] : memref<160x32xf32, #tpu.memory_space<vmem>>, vector<128x32xf32>
    %255 = vector.broadcast %7 : vector<128x1xf32> to vector<128x32xf32>
    %256 = arith.mulf %254, %255 : vector<128x32xf32>
    %c17_113 = arith.constant 17 : index
    %c0_114 = arith.constant 0 : index
    %257 = vector.load %arg14[%c17_113, %c0_114] : memref<160x32xf32, #tpu.memory_space<vmem>>, vector<128x32xf32>
    %258 = vector.broadcast %8 : vector<128x1xf32> to vector<128x32xf32>
    %259 = arith.mulf %257, %258 : vector<128x32xf32>
    %c23_115 = arith.constant 23 : index
    %c0_116 = arith.constant 0 : index
    %260 = vector.load %arg14[%c23_115, %c0_116] : memref<160x32xf32, #tpu.memory_space<vmem>>, vector<128x32xf32>
    %261 = vector.broadcast %9 : vector<128x1xf32> to vector<128x32xf32>
    %262 = arith.mulf %260, %261 : vector<128x32xf32>
    %c24_117 = arith.constant 24 : index
    %c0_118 = arith.constant 0 : index
    %263 = vector.load %arg14[%c24_117, %c0_118] : memref<160x32xf32, #tpu.memory_space<vmem>>, vector<128x32xf32>
    %264 = vector.broadcast %10 : vector<128x1xf32> to vector<128x32xf32>
    %265 = arith.mulf %263, %264 : vector<128x32xf32>
    %c25_119 = arith.constant 25 : index
    %c0_120 = arith.constant 0 : index
    %266 = vector.load %arg14[%c25_119, %c0_120] : memref<160x32xf32, #tpu.memory_space<vmem>>, vector<128x32xf32>
    %267 = vector.broadcast %11 : vector<128x1xf32> to vector<128x32xf32>
    %268 = arith.mulf %266, %267 : vector<128x32xf32>
    %269 = tpu.concatenate %244, %247, %250, %253, %256, %259, %262, %265, %268 in 1 : vector<128x32xf32>, vector<128x32xf32>, vector<128x32xf32>, vector<128x32xf32>, vector<128x32xf32>, vector<128x32xf32>, vector<128x32xf32>, vector<128x32xf32>, vector<128x32xf32> -> vector<128x288xf32>
    %270 = arith.truncf %269 : vector<128x288xf32> to vector<128x288xbf16>
    %c1_121 = arith.constant 1 : index
    %c0_122 = arith.constant 0 : index
    %c0_123 = arith.constant 0 : index
    %271 = vector.load %arg5[%c1_121, %c0_122, %c0_123] : memref<2x288x96xbf16, #tpu.memory_space<vmem>>, vector<1x288x96xbf16>
    %272 = vector.shape_cast %271 : vector<1x288x96xbf16> to vector<288x96xbf16>
    %cst_124 = arith.constant dense<0.000000e+00> : vector<128x96xf32>
    %273 = tpu.matmul %270, %272, %cst_124 {dimension_numbers = #tpu.dot_dimension_numbers<[1], [0], [0], [1], [0, 0, 1, 1], [], []>} : vector<128x288xbf16>, vector<288x96xbf16>, vector<128x96xf32> -> vector<128x96xf32>
    %c1_125 = arith.constant 1 : index
    %c0_126 = arith.constant 0 : index
    %c0_127 = arith.constant 0 : index
    %274 = vector.load %arg6[%c1_125, %c0_126, %c0_127] : memref<2x1x96xf32, #tpu.memory_space<vmem>>, vector<1x1x96xf32>
    %275 = vector.shape_cast %274 : vector<1x1x96xf32> to vector<1x96xf32>
    %276 = vector.broadcast %275 : vector<1x96xf32> to vector<128x96xf32>
    %277 = arith.addf %273, %276 : vector<128x96xf32>
    %278 = vector.extract_strided_slice %277 {offsets = [0, 0], sizes = [64, 16], strides = [1, 1]} : vector<128x96xf32> to vector<64x16xf32>
    %279 = arith.truncf %278 : vector<64x16xf32> to vector<64x16xbf16>
    %280 = vector.extract_strided_slice %277 {offsets = [0, 32], sizes = [64, 16], strides = [1, 1]} : vector<128x96xf32> to vector<64x16xf32>
    %281 = arith.truncf %280 : vector<64x16xf32> to vector<64x16xbf16>
    %282 = vector.extract_strided_slice %277 {offsets = [0, 64], sizes = [64, 16], strides = [1, 1]} : vector<128x96xf32> to vector<64x16xf32>
    %283 = arith.truncf %282 : vector<64x16xf32> to vector<64x16xbf16>
    %cst_128 = arith.constant dense<0.000000e+00> : vector<64x64xf32>
    %284 = tpu.matmul %279, %281, %cst_128 {dimension_numbers = #tpu.dot_dimension_numbers<[1], [1], [0], [0], [0, 0, 1, 0], [], []>} : vector<64x16xbf16>, vector<64x16xbf16>, vector<64x64xf32> -> vector<64x64xf32>
    %cst_129 = arith.constant dense<0xFF800000> : vector<64xf32>
    %285 = vector.multi_reduction <maximumf>, %284, %cst_129 [1] : vector<64x64xf32> to vector<64xf32>
    %286 = vector.shape_cast %285 : vector<64xf32> to vector<64x1xf32>
    %287 = vector.broadcast %286 : vector<64x1xf32> to vector<64x64xf32>
    %288 = arith.subf %284, %287 : vector<64x64xf32>
    %289 = math.exp %288 : vector<64x64xf32>
    %cst_130 = arith.constant dense<0.000000e+00> : vector<64xf32>
    %290 = vector.multi_reduction <add>, %289, %cst_130 [1] : vector<64x64xf32> to vector<64xf32>
    %291 = vector.shape_cast %290 : vector<64xf32> to vector<64x1xf32>
    %292 = tpu.reciprocal %291 {approx = true} : vector<64x1xf32> -> vector<64x1xf32>
    %293 = vector.broadcast %292 : vector<64x1xf32> to vector<64x64xf32>
    %294 = arith.mulf %289, %293 : vector<64x64xf32>
    %295 = arith.truncf %294 : vector<64x64xf32> to vector<64x64xbf16>
    %cst_131 = arith.constant dense<0.000000e+00> : vector<64x16xf32>
    %296 = tpu.matmul %295, %283, %cst_131 {dimension_numbers = #tpu.dot_dimension_numbers<[1], [0], [0], [1], [0, 0, 1, 1], [], []>} : vector<64x64xbf16>, vector<64x16xbf16>, vector<64x16xf32> -> vector<64x16xf32>
    %297 = vector.extract_strided_slice %277 {offsets = [0, 16], sizes = [64, 16], strides = [1, 1]} : vector<128x96xf32> to vector<64x16xf32>
    %298 = arith.truncf %297 : vector<64x16xf32> to vector<64x16xbf16>
    %299 = vector.extract_strided_slice %277 {offsets = [0, 48], sizes = [64, 16], strides = [1, 1]} : vector<128x96xf32> to vector<64x16xf32>
    %300 = arith.truncf %299 : vector<64x16xf32> to vector<64x16xbf16>
    %301 = vector.extract_strided_slice %277 {offsets = [0, 80], sizes = [64, 16], strides = [1, 1]} : vector<128x96xf32> to vector<64x16xf32>
    %302 = arith.truncf %301 : vector<64x16xf32> to vector<64x16xbf16>
    %cst_132 = arith.constant dense<0.000000e+00> : vector<64x64xf32>
    %303 = tpu.matmul %298, %300, %cst_132 {dimension_numbers = #tpu.dot_dimension_numbers<[1], [1], [0], [0], [0, 0, 1, 0], [], []>} : vector<64x16xbf16>, vector<64x16xbf16>, vector<64x64xf32> -> vector<64x64xf32>
    %cst_133 = arith.constant dense<0xFF800000> : vector<64xf32>
    %304 = vector.multi_reduction <maximumf>, %303, %cst_133 [1] : vector<64x64xf32> to vector<64xf32>
    %305 = vector.shape_cast %304 : vector<64xf32> to vector<64x1xf32>
    %306 = vector.broadcast %305 : vector<64x1xf32> to vector<64x64xf32>
    %307 = arith.subf %303, %306 : vector<64x64xf32>
    %308 = math.exp %307 : vector<64x64xf32>
    %cst_134 = arith.constant dense<0.000000e+00> : vector<64xf32>
    %309 = vector.multi_reduction <add>, %308, %cst_134 [1] : vector<64x64xf32> to vector<64xf32>
    %310 = vector.shape_cast %309 : vector<64xf32> to vector<64x1xf32>
    %311 = tpu.reciprocal %310 {approx = true} : vector<64x1xf32> -> vector<64x1xf32>
    %312 = vector.broadcast %311 : vector<64x1xf32> to vector<64x64xf32>
    %313 = arith.mulf %308, %312 : vector<64x64xf32>
    %314 = arith.truncf %313 : vector<64x64xf32> to vector<64x64xbf16>
    %cst_135 = arith.constant dense<0.000000e+00> : vector<64x16xf32>
    %315 = tpu.matmul %314, %302, %cst_135 {dimension_numbers = #tpu.dot_dimension_numbers<[1], [0], [0], [1], [0, 0, 1, 1], [], []>} : vector<64x64xbf16>, vector<64x16xbf16>, vector<64x16xf32> -> vector<64x16xf32>
    %316 = tpu.concatenate %296, %315 in 1 : vector<64x16xf32>, vector<64x16xf32> -> vector<64x32xf32>
    %317 = vector.extract_strided_slice %277 {offsets = [64, 0], sizes = [64, 16], strides = [1, 1]} : vector<128x96xf32> to vector<64x16xf32>
    %318 = arith.truncf %317 : vector<64x16xf32> to vector<64x16xbf16>
    %319 = vector.extract_strided_slice %277 {offsets = [64, 32], sizes = [64, 16], strides = [1, 1]} : vector<128x96xf32> to vector<64x16xf32>
    %320 = arith.truncf %319 : vector<64x16xf32> to vector<64x16xbf16>
    %321 = vector.extract_strided_slice %277 {offsets = [64, 64], sizes = [64, 16], strides = [1, 1]} : vector<128x96xf32> to vector<64x16xf32>
    %322 = arith.truncf %321 : vector<64x16xf32> to vector<64x16xbf16>
    %cst_136 = arith.constant dense<0.000000e+00> : vector<64x64xf32>
    %323 = tpu.matmul %318, %320, %cst_136 {dimension_numbers = #tpu.dot_dimension_numbers<[1], [1], [0], [0], [0, 0, 1, 0], [], []>} : vector<64x16xbf16>, vector<64x16xbf16>, vector<64x64xf32> -> vector<64x64xf32>
    %cst_137 = arith.constant dense<0xFF800000> : vector<64xf32>
    %324 = vector.multi_reduction <maximumf>, %323, %cst_137 [1] : vector<64x64xf32> to vector<64xf32>
    %325 = vector.shape_cast %324 : vector<64xf32> to vector<64x1xf32>
    %326 = vector.broadcast %325 : vector<64x1xf32> to vector<64x64xf32>
    %327 = arith.subf %323, %326 : vector<64x64xf32>
    %328 = math.exp %327 : vector<64x64xf32>
    %cst_138 = arith.constant dense<0.000000e+00> : vector<64xf32>
    %329 = vector.multi_reduction <add>, %328, %cst_138 [1] : vector<64x64xf32> to vector<64xf32>
    %330 = vector.shape_cast %329 : vector<64xf32> to vector<64x1xf32>
    %331 = tpu.reciprocal %330 {approx = true} : vector<64x1xf32> -> vector<64x1xf32>
    %332 = vector.broadcast %331 : vector<64x1xf32> to vector<64x64xf32>
    %333 = arith.mulf %328, %332 : vector<64x64xf32>
    %334 = arith.truncf %333 : vector<64x64xf32> to vector<64x64xbf16>
    %cst_139 = arith.constant dense<0.000000e+00> : vector<64x16xf32>
    %335 = tpu.matmul %334, %322, %cst_139 {dimension_numbers = #tpu.dot_dimension_numbers<[1], [0], [0], [1], [0, 0, 1, 1], [], []>} : vector<64x64xbf16>, vector<64x16xbf16>, vector<64x16xf32> -> vector<64x16xf32>
    %336 = vector.extract_strided_slice %277 {offsets = [64, 16], sizes = [64, 16], strides = [1, 1]} : vector<128x96xf32> to vector<64x16xf32>
    %337 = arith.truncf %336 : vector<64x16xf32> to vector<64x16xbf16>
    %338 = vector.extract_strided_slice %277 {offsets = [64, 48], sizes = [64, 16], strides = [1, 1]} : vector<128x96xf32> to vector<64x16xf32>
    %339 = arith.truncf %338 : vector<64x16xf32> to vector<64x16xbf16>
    %340 = vector.extract_strided_slice %277 {offsets = [64, 80], sizes = [64, 16], strides = [1, 1]} : vector<128x96xf32> to vector<64x16xf32>
    %341 = arith.truncf %340 : vector<64x16xf32> to vector<64x16xbf16>
    %cst_140 = arith.constant dense<0.000000e+00> : vector<64x64xf32>
    %342 = tpu.matmul %337, %339, %cst_140 {dimension_numbers = #tpu.dot_dimension_numbers<[1], [1], [0], [0], [0, 0, 1, 0], [], []>} : vector<64x16xbf16>, vector<64x16xbf16>, vector<64x64xf32> -> vector<64x64xf32>
    %cst_141 = arith.constant dense<0xFF800000> : vector<64xf32>
    %343 = vector.multi_reduction <maximumf>, %342, %cst_141 [1] : vector<64x64xf32> to vector<64xf32>
    %344 = vector.shape_cast %343 : vector<64xf32> to vector<64x1xf32>
    %345 = vector.broadcast %344 : vector<64x1xf32> to vector<64x64xf32>
    %346 = arith.subf %342, %345 : vector<64x64xf32>
    %347 = math.exp %346 : vector<64x64xf32>
    %cst_142 = arith.constant dense<0.000000e+00> : vector<64xf32>
    %348 = vector.multi_reduction <add>, %347, %cst_142 [1] : vector<64x64xf32> to vector<64xf32>
    %349 = vector.shape_cast %348 : vector<64xf32> to vector<64x1xf32>
    %350 = tpu.reciprocal %349 {approx = true} : vector<64x1xf32> -> vector<64x1xf32>
    %351 = vector.broadcast %350 : vector<64x1xf32> to vector<64x64xf32>
    %352 = arith.mulf %347, %351 : vector<64x64xf32>
    %353 = arith.truncf %352 : vector<64x64xf32> to vector<64x64xbf16>
    %cst_143 = arith.constant dense<0.000000e+00> : vector<64x16xf32>
    %354 = tpu.matmul %353, %341, %cst_143 {dimension_numbers = #tpu.dot_dimension_numbers<[1], [0], [0], [1], [0, 0, 1, 1], [], []>} : vector<64x64xbf16>, vector<64x16xbf16>, vector<64x16xf32> -> vector<64x16xf32>
    %355 = tpu.concatenate %335, %354 in 1 : vector<64x16xf32>, vector<64x16xf32> -> vector<64x32xf32>
    %356 = tpu.concatenate %316, %355 in 0 : vector<64x32xf32>, vector<64x32xf32> -> vector<128x32xf32>
    %357 = arith.truncf %356 : vector<128x32xf32> to vector<128x32xbf16>
    %c1_144 = arith.constant 1 : index
    %c0_145 = arith.constant 0 : index
    %c0_146 = arith.constant 0 : index
    %358 = vector.load %arg7[%c1_144, %c0_145, %c0_146] : memref<2x32x32xbf16, #tpu.memory_space<vmem>>, vector<1x32x32xbf16>
    %359 = vector.shape_cast %358 : vector<1x32x32xbf16> to vector<32x32xbf16>
    %cst_147 = arith.constant dense<0.000000e+00> : vector<128x32xf32>
    %360 = tpu.matmul %357, %359, %cst_147 {dimension_numbers = #tpu.dot_dimension_numbers<[1], [0], [0], [1], [0, 0, 1, 1], [], []>} : vector<128x32xbf16>, vector<32x32xbf16>, vector<128x32xf32> -> vector<128x32xf32>
    %361 = arith.addf %214, %360 : vector<128x32xf32>
    %c1_148 = arith.constant 1 : index
    %c0_149 = arith.constant 0 : index
    %c0_150 = arith.constant 0 : index
    %362 = vector.load %arg8[%c1_148, %c0_149, %c0_150] : memref<2x1x32xf32, #tpu.memory_space<vmem>>, vector<1x1x32xf32>
    %363 = vector.shape_cast %362 : vector<1x1x32xf32> to vector<1x32xf32>
    %364 = vector.broadcast %363 : vector<1x32xf32> to vector<128x32xf32>
    %365 = arith.addf %361, %364 : vector<128x32xf32>
    %c1_151 = arith.constant 1 : index
    %c1_152 = arith.constant 1 : index
    %c0_153 = arith.constant 0 : index
    %c0_154 = arith.constant 0 : index
    %366 = vector.load %arg3[%c1_151, %c1_152, %c0_153, %c0_154] : memref<2x2x1x32xf32, #tpu.memory_space<vmem>>, vector<1x1x1x32xf32>
    %367 = vector.shape_cast %366 : vector<1x1x1x32xf32> to vector<1x32xf32>
    %c1_155 = arith.constant 1 : index
    %c1_156 = arith.constant 1 : index
    %c0_157 = arith.constant 0 : index
    %c0_158 = arith.constant 0 : index
    %368 = vector.load %arg4[%c1_155, %c1_156, %c0_157, %c0_158] : memref<2x2x1x32xf32, #tpu.memory_space<vmem>>, vector<1x1x1x32xf32>
    %369 = vector.shape_cast %368 : vector<1x1x1x32xf32> to vector<1x32xf32>
    %cst_159 = arith.constant dense<0.000000e+00> : vector<128xf32>
    %370 = vector.multi_reduction <add>, %365, %cst_159 [1] : vector<128x32xf32> to vector<128xf32>
    %371 = vector.shape_cast %370 : vector<128xf32> to vector<128x1xf32>
    %cst_160 = arith.constant 3.200000e+01 : f32
    %372 = vector.broadcast %cst_160 : f32 to vector<128x1xf32>
    %373 = arith.divf %371, %372 : vector<128x1xf32>
    %374 = arith.mulf %365, %365 : vector<128x32xf32>
    %cst_161 = arith.constant dense<0.000000e+00> : vector<128xf32>
    %375 = vector.multi_reduction <add>, %374, %cst_161 [1] : vector<128x32xf32> to vector<128xf32>
    %376 = vector.shape_cast %375 : vector<128xf32> to vector<128x1xf32>
    %cst_162 = arith.constant 3.200000e+01 : f32
    %377 = vector.broadcast %cst_162 : f32 to vector<128x1xf32>
    %378 = arith.divf %376, %377 : vector<128x1xf32>
    %379 = arith.mulf %373, %373 : vector<128x1xf32>
    %380 = arith.subf %378, %379 : vector<128x1xf32>
    %381 = vector.broadcast %373 : vector<128x1xf32> to vector<128x32xf32>
    %382 = arith.subf %365, %381 : vector<128x32xf32>
    %cst_163 = arith.constant 9.99999974E-6 : f32
    %383 = vector.broadcast %cst_163 : f32 to vector<128x1xf32>
    %384 = arith.addf %380, %383 : vector<128x1xf32>
    %385 = math.rsqrt %384 : vector<128x1xf32>
    %386 = vector.broadcast %385 : vector<128x1xf32> to vector<128x32xf32>
    %387 = arith.mulf %382, %386 : vector<128x32xf32>
    %388 = vector.broadcast %367 : vector<1x32xf32> to vector<128x32xf32>
    %389 = arith.mulf %387, %388 : vector<128x32xf32>
    %390 = vector.broadcast %369 : vector<1x32xf32> to vector<128x32xf32>
    %391 = arith.addf %389, %390 : vector<128x32xf32>
    %392 = arith.truncf %391 : vector<128x32xf32> to vector<128x32xbf16>
    %c1_164 = arith.constant 1 : index
    %c0_165 = arith.constant 0 : index
    %c0_166 = arith.constant 0 : index
    %393 = vector.load %arg9[%c1_164, %c0_165, %c0_166] : memref<2x32x64xbf16, #tpu.memory_space<vmem>>, vector<1x32x64xbf16>
    %394 = vector.shape_cast %393 : vector<1x32x64xbf16> to vector<32x64xbf16>
    %cst_167 = arith.constant dense<0.000000e+00> : vector<128x64xf32>
    %395 = tpu.matmul %392, %394, %cst_167 {dimension_numbers = #tpu.dot_dimension_numbers<[1], [0], [0], [1], [0, 0, 1, 1], [], []>} : vector<128x32xbf16>, vector<32x64xbf16>, vector<128x64xf32> -> vector<128x64xf32>
    %c1_168 = arith.constant 1 : index
    %c0_169 = arith.constant 0 : index
    %c0_170 = arith.constant 0 : index
    %396 = vector.load %arg10[%c1_168, %c0_169, %c0_170] : memref<2x1x64xf32, #tpu.memory_space<vmem>>, vector<1x1x64xf32>
    %397 = vector.shape_cast %396 : vector<1x1x64xf32> to vector<1x64xf32>
    %398 = vector.broadcast %397 : vector<1x64xf32> to vector<128x64xf32>
    %399 = arith.addf %395, %398 : vector<128x64xf32>
    %cst_171 = arith.constant 5.000000e-01 : f32
    %400 = vector.broadcast %cst_171 : f32 to vector<128x64xf32>
    %401 = arith.mulf %400, %399 : vector<128x64xf32>
    %cst_172 = arith.constant 0.707106769 : f32
    %402 = vector.broadcast %cst_172 : f32 to vector<128x64xf32>
    %403 = arith.mulf %399, %402 : vector<128x64xf32>
    %404 = math.erf %403 : vector<128x64xf32>
    %cst_173 = arith.constant 1.000000e+00 : f32
    %405 = vector.broadcast %cst_173 : f32 to vector<128x64xf32>
    %406 = arith.addf %405, %404 : vector<128x64xf32>
    %407 = arith.mulf %401, %406 : vector<128x64xf32>
    %408 = arith.truncf %407 : vector<128x64xf32> to vector<128x64xbf16>
    %c1_174 = arith.constant 1 : index
    %c0_175 = arith.constant 0 : index
    %c0_176 = arith.constant 0 : index
    %409 = vector.load %arg11[%c1_174, %c0_175, %c0_176] : memref<2x64x32xbf16, #tpu.memory_space<vmem>>, vector<1x64x32xbf16>
    %410 = vector.shape_cast %409 : vector<1x64x32xbf16> to vector<64x32xbf16>
    %cst_177 = arith.constant dense<0.000000e+00> : vector<128x32xf32>
    %411 = tpu.matmul %408, %410, %cst_177 {dimension_numbers = #tpu.dot_dimension_numbers<[1], [0], [0], [1], [0, 0, 1, 1], [], []>} : vector<128x64xbf16>, vector<64x32xbf16>, vector<128x32xf32> -> vector<128x32xf32>
    %c1_178 = arith.constant 1 : index
    %c0_179 = arith.constant 0 : index
    %c0_180 = arith.constant 0 : index
    %412 = vector.load %arg12[%c1_178, %c0_179, %c0_180] : memref<2x1x32xf32, #tpu.memory_space<vmem>>, vector<1x1x32xf32>
    %413 = vector.shape_cast %412 : vector<1x1x32xf32> to vector<1x32xf32>
    %414 = vector.broadcast %413 : vector<1x32xf32> to vector<128x32xf32>
    %415 = arith.addf %411, %414 : vector<128x32xf32>
    %416 = arith.addf %365, %415 : vector<128x32xf32>
    %c0_181 = arith.constant 0 : index
    %c0_182 = arith.constant 0 : index
    %417 = vector.load %arg13[%c0_181, %c0_182] : memref<128x32xf32, #tpu.memory_space<vmem>>, vector<128x32xf32>
    tpu.vector_store %arg13[%c0_181, %c0_182], %416 {strides = array<i32>} : memref<128x32xf32, #tpu.memory_space<vmem>>, vector<128x32xf32>,
    return
  }
  func.func @transform_0(%arg0: i32) -> (i32, i32) {
    %c0_i32 = arith.constant 0 : i32
    %c0_i32_0 = arith.constant 0 : i32
    return %arg0, %c0_i32 : i32, i32
  }
  func.func @transform_1(%arg0: i32) -> (i32, i32) {
    %c0_i32 = arith.constant 0 : i32
    %c0_i32_0 = arith.constant 0 : i32
    %c0_i32_1 = arith.constant 0 : i32
    return %c0_i32, %c0_i32_0 : i32, i32
  }
  func.func @transform_2(%arg0: i32) -> (i32, i32, i32, i32) {
    %c0_i32 = arith.constant 0 : i32
    %c0_i32_0 = arith.constant 0 : i32
    %c0_i32_1 = arith.constant 0 : i32
    %c0_i32_2 = arith.constant 0 : i32
    %c0_i32_3 = arith.constant 0 : i32
    return %c0_i32, %c0_i32_0, %c0_i32_1, %c0_i32_2 : i32, i32, i32, i32
  }
  func.func @transform_3(%arg0: i32) -> (i32, i32, i32, i32) {
    %c0_i32 = arith.constant 0 : i32
    %c0_i32_0 = arith.constant 0 : i32
    %c0_i32_1 = arith.constant 0 : i32
    %c0_i32_2 = arith.constant 0 : i32
    %c0_i32_3 = arith.constant 0 : i32
    return %c0_i32, %c0_i32_0, %c0_i32_1, %c0_i32_2 : i32, i32, i32, i32
  }
  func.func @transform_4(%arg0: i32) -> (i32, i32, i32) {
    %c0_i32 = arith.constant 0 : i32
    %c0_i32_0 = arith.constant 0 : i32
    %c0_i32_1 = arith.constant 0 : i32
    %c0_i32_2 = arith.constant 0 : i32
    return %c0_i32, %c0_i32_0, %c0_i32_1 : i32, i32, i32
  }
  func.func @transform_5(%arg0: i32) -> (i32, i32, i32) {
    %c0_i32 = arith.constant 0 : i32
    %c0_i32_0 = arith.constant 0 : i32
    %c0_i32_1 = arith.constant 0 : i32
    %c0_i32_2 = arith.constant 0 : i32
    return %c0_i32, %c0_i32_0, %c0_i32_1 : i32, i32, i32
  }
  func.func @transform_6(%arg0: i32) -> (i32, i32, i32) {
    %c0_i32 = arith.constant 0 : i32
    %c0_i32_0 = arith.constant 0 : i32
    %c0_i32_1 = arith.constant 0 : i32
    %c0_i32_2 = arith.constant 0 : i32
    return %c0_i32, %c0_i32_0, %c0_i32_1 : i32, i32, i32
  }
  func.func @transform_7(%arg0: i32) -> (i32, i32, i32) {
    %c0_i32 = arith.constant 0 : i32
    %c0_i32_0 = arith.constant 0 : i32
    %c0_i32_1 = arith.constant 0 : i32
    %c0_i32_2 = arith.constant 0 : i32
    return %c0_i32, %c0_i32_0, %c0_i32_1 : i32, i32, i32
  }
  func.func @transform_8(%arg0: i32) -> (i32, i32, i32) {
    %c0_i32 = arith.constant 0 : i32
    %c0_i32_0 = arith.constant 0 : i32
    %c0_i32_1 = arith.constant 0 : i32
    %c0_i32_2 = arith.constant 0 : i32
    return %c0_i32, %c0_i32_0, %c0_i32_1 : i32, i32, i32
  }
  func.func @transform_9(%arg0: i32) -> (i32, i32, i32) {
    %c0_i32 = arith.constant 0 : i32
    %c0_i32_0 = arith.constant 0 : i32
    %c0_i32_1 = arith.constant 0 : i32
    %c0_i32_2 = arith.constant 0 : i32
    return %c0_i32, %c0_i32_0, %c0_i32_1 : i32, i32, i32
  }
  func.func @transform_10(%arg0: i32) -> (i32, i32, i32) {
    %c0_i32 = arith.constant 0 : i32
    %c0_i32_0 = arith.constant 0 : i32
    %c0_i32_1 = arith.constant 0 : i32
    %c0_i32_2 = arith.constant 0 : i32
    return %c0_i32, %c0_i32_0, %c0_i32_1 : i32, i32, i32
  }
  func.func @transform_11(%arg0: i32) -> (i32, i32, i32) {
    %c0_i32 = arith.constant 0 : i32
    %c0_i32_0 = arith.constant 0 : i32
    %c0_i32_1 = arith.constant 0 : i32
    %c0_i32_2 = arith.constant 0 : i32
    return %c0_i32, %c0_i32_0, %c0_i32_1 : i32, i32, i32
  }
  func.func @transform_12(%arg0: i32) -> (i32, i32) {
    %c0_i32 = arith.constant 0 : i32
    %c0_i32_0 = arith.constant 0 : i32
    return %arg0, %c0_i32 : i32, i32
  }
}

</mosaic_0001>

<llo_original>
// kernel: tpu_custom_call.1
$region0: #{tpu_custom_call.1}
  #allocation0 [shape = 'u32[]', space=smem, size = 0x4, offset = 0x4, fixed_abs, tag = 'smem constant byte address 0x4 - core index']
  #allocation1 [shape = 'u32[144,128]{1,0:T(1,128)}', space=vmem, size = 0x12000, scoped, tag = 'internal scratch']
  #allocation2 [shape = 'f32[160,32]{1,0:T(8,128)}', space=vmem, size = 0x14000, scoped, tag = 'scratch operand']
  %s0 = inlined_call_operand.vmem [shape: f32[128,32], index: 0, kind: input, shape index: {}]
  %s1 = inlined_call_operand.vmem [shape: f32[128,9], index: 1, kind: input, shape index: {}]
  %s2 = inlined_call_operand.vmem [shape: f32[2,2,1,32], index: 2, kind: input, shape index: {}]
  %s3 = inlined_call_operand.vmem [shape: f32[2,2,1,32], index: 3, kind: input, shape index: {}]
  %s4 = inlined_call_operand.vmem [shape: bf16[2,288,96], index: 4, kind: input, shape index: {}]
  %s5 = inlined_call_operand.vmem [shape: f32[2,1,96], index: 5, kind: input, shape index: {}]
  %s6 = inlined_call_operand.vmem [shape: bf16[2,32,32], index: 6, kind: input, shape index: {}]
  %s7 = inlined_call_operand.vmem [shape: f32[2,1,32], index: 7, kind: input, shape index: {}]
  %s8 = inlined_call_operand.vmem [shape: bf16[2,32,64], index: 8, kind: input, shape index: {}]
  %s9 = inlined_call_operand.vmem [shape: f32[2,1,64], index: 9, kind: input, shape index: {}]
  %s10 = inlined_call_operand.vmem [shape: bf16[2,64,32], index: 10, kind: input, shape index: {}]
  %s11 = inlined_call_operand.vmem [shape: f32[2,1,32], index: 11, kind: input, shape index: {}]
  %s12 = inlined_call_operand.vmem [shape: f32[128,32], index: 12, kind: output, shape index: {}]
  %s13 = sld [smem:[#allocation0]]
  $region58: #{tpu_custom_call.1} parent=0
    _
  %s15 = ssub.s32 1, %s13
  %s16 = scalar_select 0, %s15, %s13
  // Predicated region
  $region2: #{tpu_custom_call.1} parent=0 // pred_check
    _
  $region3: #{tpu_custom_call.1} parent=0 // pred_check_branch
    %18 = sbr.rel (0) target = $region5
  $region4: #{tpu_custom_call.1} parent=0 // pred_region
    _
  $region5: #{tpu_custom_call.1} parent=0 // pred_fallthru
    _
  // Predicated region
  $region6: #{tpu_custom_call.1} parent=0 // pred_check
    _
  $region7: #{tpu_custom_call.1} parent=0 // pred_check_branch
    %20 = sbr.rel (0) target = $region9
  $region8: #{tpu_custom_call.1} parent=0 // pred_region
    _
  $region9: #{tpu_custom_call.1} parent=0 // pred_fallthru
    _
  // Predicated region
  $region10: #{tpu_custom_call.1} parent=0 // pred_check
    _
  $region11: #{tpu_custom_call.1} parent=0 // pred_check_branch
    %22 = sbr.rel (0) target = $region13
  $region12: #{tpu_custom_call.1} parent=0 // pred_region
    _
  $region13: #{tpu_custom_call.1} parent=0 // pred_fallthru
    _
  // Predicated region
  $region14: #{tpu_custom_call.1} parent=0 // pred_check
    _
  $region15: #{tpu_custom_call.1} parent=0 // pred_check_branch
    %24 = sbr.rel (0) target = $region17
  $region16: #{tpu_custom_call.1} parent=0 // pred_region
    _
  $region17: #{tpu_custom_call.1} parent=0 // pred_fallthru
    _
  // Predicated region
  $region18: #{tpu_custom_call.1} parent=0 // pred_check
    _
  $region19: #{tpu_custom_call.1} parent=0 // pred_check_branch
    %26 = sbr.rel (0) target = $region21
  $region20: #{tpu_custom_call.1} parent=0 // pred_region
    _
  $region21: #{tpu_custom_call.1} parent=0 // pred_fallthru
    _
  // Predicated region
  $region22: #{tpu_custom_call.1} parent=0 // pred_check
    _
  $region23: #{tpu_custom_call.1} parent=0 // pred_check_branch
    %28 = sbr.rel (0) target = $region25
  $region24: #{tpu_custom_call.1} parent=0 // pred_region
    _
  $region25: #{tpu_custom_call.1} parent=0 // pred_fallthru
    _
  // Predicated region
  $region26: #{tpu_custom_call.1} parent=0 // pred_check
    _
  $region27: #{tpu_custom_call.1} parent=0 // pred_check_branch
    %30 = sbr.rel (0) target = $region29
  $region28: #{tpu_custom_call.1} parent=0 // pred_region
    _
  $region29: #{tpu_custom_call.1} parent=0 // pred_fallthru
    _
  // Predicated region
  $region30: #{tpu_custom_call.1} parent=0 // pred_check
    _
  $region31: #{tpu_custom_call.1} parent=0 // pred_check_branch
    %32 = sbr.rel (0) target = $region33
  $region32: #{tpu_custom_call.1} parent=0 // pred_region
    _
  $region33: #{tpu_custom_call.1} parent=0 // pred_fallthru
    _
  // Predicated region
  $region34: #{tpu_custom_call.1} parent=0 // pred_check
    _
  $region35: #{tpu_custom_call.1} parent=0 // pred_check_branch
    %34 = sbr.rel (0) target = $region37
  $region36: #{tpu_custom_call.1} parent=0 // pred_region
    _
  $region37: #{tpu_custom_call.1} parent=0 // pred_fallthru
    _
  // Predicated region
  $region38: #{tpu_custom_call.1} parent=0 // pred_check
    _
  $region39: #{tpu_custom_call.1} parent=0 // pred_check_branch
    %36 = sbr.rel (0) target = $region41
  $region40: #{tpu_custom_call.1} parent=0 // pred_region
    _
  $region41: #{tpu_custom_call.1} parent=0 // pred_fallthru
    _
  // Predicated region
  $region42: #{tpu_custom_call.1} parent=0 // pred_check
    _
  $region43: #{tpu_custom_call.1} parent=0 // pred_check_branch
    %38 = sbr.rel (0) target = $region45
  $region44: #{tpu_custom_call.1} parent=0 // pred_region
    _
  $region45: #{tpu_custom_call.1} parent=0 // pred_fallthru
    _
  // Predicated region
  $region46: #{tpu_custom_call.1} parent=0 // pred_check
    _
  $region47: #{tpu_custom_call.1} parent=0 // pred_check_branch
    %40 = sbr.rel (0) target = $region49
  $region48: #{tpu_custom_call.1} parent=0 // pred_region
    _
  $region49: #{tpu_custom_call.1} parent=0 // pred_fallthru
    _
  %vm42 = vcmask 261120
  %43 = vst.msk [vmem:[#allocation2] sm:$0xff] %vm42, 0.0
  %44 = vst.msk [vmem:[#allocation2 + $0x8] sm:$0xff] %vm42, 0.0
  %45 = vst.msk [vmem:[#allocation2 + $0x10] sm:$0xff] %vm42, 0.0
  %46 = vst.msk [vmem:[#allocation2 + $0x18] sm:$0xff] %vm42, 0.0
  %47 = vst.msk [vmem:[#allocation2 + $0x20] sm:$0xff] %vm42, 0.0
  %48 = vst.msk [vmem:[#allocation2 + $0x28] sm:$0xff] %vm42, 0.0
  %49 = vst.msk [vmem:[#allocation2 + $0x30] sm:$0xff] %vm42, 0.0
  %50 = vst.msk [vmem:[#allocation2 + $0x38] sm:$0xff] %vm42, 0.0
  %51 = vst.msk [vmem:[#allocation2 + $0x40] sm:$0xff] %vm42, 0.0
  %52 = vst.msk [vmem:[#allocation2 + $0x48] sm:$0xff] %vm42, 0.0
  %53 = vst.msk [vmem:[#allocation2 + $0x50] sm:$0xff] %vm42, 0.0
  %54 = vst.msk [vmem:[#allocation2 + $0x58] sm:$0xff] %vm42, 0.0
  %55 = vst.msk [vmem:[#allocation2 + $0x60] sm:$0xff] %vm42, 0.0
  %56 = vst.msk [vmem:[#allocation2 + $0x68] sm:$0xff] %vm42, 0.0
  %57 = vst.msk [vmem:[#allocation2 + $0x70] sm:$0xff] %vm42, 0.0
  %58 = vst.msk [vmem:[#allocation2 + $0x78] sm:$0xff] %vm42, 0.0
  %59 = vst.msk [vmem:[#allocation2 + $0x80] sm:$0xff] %vm42, 0.0
  %60 = vst.msk [vmem:[#allocation2 + $0x88] sm:$0xff] %vm42, 0.0
  %61 = vst.msk [vmem:[#allocation2 + $0x90] sm:$0xff] %vm42, 0.0
  %62 = vst.msk [vmem:[#allocation2 + $0x98] sm:$0xff] %vm42, 0.0
  %v63 = vld [vmem:[%s1] sm:$0xff]
  %v64 = vld [vmem:[%s1 + $0x8] sm:$0xff]
  %v65 = vld [vmem:[%s1 + $0x10] sm:$0xff]
  %v66 = vld [vmem:[%s1 + $0x18] sm:$0xff]
  %v67 = vld [vmem:[%s1 + $0x20] sm:$0xff]
  %v68 = vld [vmem:[%s1 + $0x28] sm:$0xff]
  %v69 = vld [vmem:[%s1 + $0x30] sm:$0xff]
  %v70 = vld [vmem:[%s1 + $0x38] sm:$0xff]
  %v71 = vld [vmem:[%s1 + $0x40] sm:$0xff]
  %v72 = vld [vmem:[%s1 + $0x48] sm:$0xff]
  %v73 = vld [vmem:[%s1 + $0x50] sm:$0xff]
  %v74 = vld [vmem:[%s1 + $0x58] sm:$0xff]
  %v75 = vld [vmem:[%s1 + $0x60] sm:$0xff]
  %v76 = vld [vmem:[%s1 + $0x68] sm:$0xff]
  %v77 = vld [vmem:[%s1 + $0x70] sm:$0xff]
  %v78 = vld [vmem:[%s1 + $0x78] sm:$0xff]
  %v79 = vld [vmem:[%s0] sm:$0xff]
  %v80 = vld [vmem:[%s0 + $0x8] sm:$0xff]
  %v81 = vld [vmem:[%s0 + $0x10] sm:$0xff]
  %v82 = vld [vmem:[%s0 + $0x18] sm:$0xff]
  %v83 = vld [vmem:[%s0 + $0x20] sm:$0xff]
  %v84 = vld [vmem:[%s0 + $0x28] sm:$0xff]
  %v85 = vld [vmem:[%s0 + $0x30] sm:$0xff]
  %v86 = vld [vmem:[%s0 + $0x38] sm:$0xff]
  %v87 = vld [vmem:[%s0 + $0x40] sm:$0xff]
  %v88 = vld [vmem:[%s0 + $0x48] sm:$0xff]
  %v89 = vld [vmem:[%s0 + $0x50] sm:$0xff]
  %v90 = vld [vmem:[%s0 + $0x58] sm:$0xff]
  %v91 = vld [vmem:[%s0 + $0x60] sm:$0xff]
  %v92 = vld [vmem:[%s0 + $0x68] sm:$0xff]
  %v93 = vld [vmem:[%s0 + $0x70] sm:$0xff]
  %v94 = vld [vmem:[%s0 + $0x78] sm:$0xff]
  %v95 = vld [vmem:[%s2] sm:$0x1]
  %v96 = vld [vmem:[%s3] sm:$0x1]
  %v97 = vsel %vm42, %v79, 0.0
  %98 = vadd.xlane.f32.xlu0 %v97
  %v99 = vpop.xlane.xlu0 %98
  %v100 = vsel %vm42, %v80, 0.0
  %101 = vadd.xlane.f32.xlu0 %v100
  %v102 = vpop.xlane.xlu0 %101
  %v103 = vsel %vm42, %v81, 0.0
  %104 = vadd.xlane.f32.xlu0 %v103
  %v105 = vpop.xlane.xlu0 %104
  %v106 = vsel %vm42, %v82, 0.0
  %107 = vadd.xlane.f32.xlu0 %v106
  %v108 = vpop.xlane.xlu0 %107
  %v109 = vsel %vm42, %v83, 0.0
  %110 = vadd.xlane.f32.xlu0 %v109
  %v111 = vpop.xlane.xlu0 %110
  %v112 = vsel %vm42, %v84, 0.0
  %113 = vadd.xlane.f32.xlu0 %v112
  %v114 = vpop.xlane.xlu0 %113
  %v115 = vsel %vm42, %v85, 0.0
  %116 = vadd.xlane.f32.xlu0 %v115
  %v117 = vpop.xlane.xlu0 %116
  %v118 = vsel %vm42, %v86, 0.0
  %119 = vadd.xlane.f32.xlu0 %v118
  %v120 = vpop.xlane.xlu0 %119
  %v121 = vsel %vm42, %v87, 0.0
  %122 = vadd.xlane.f32.xlu0 %v121
  %v123 = vpop.xlane.xlu0 %122
  %v124 = vsel %vm42, %v88, 0.0
  %125 = vadd.xlane.f32.xlu0 %v124
  %v126 = vpop.xlane.xlu0 %125
  %v127 = vsel %vm42, %v89, 0.0
  %128 = vadd.xlane.f32.xlu0 %v127
  %v129 = vpop.xlane.xlu0 %128
  %v130 = vsel %vm42, %v90, 0.0
  %131 = vadd.xlane.f32.xlu0 %v130
  %v132 = vpop.xlane.xlu0 %131
  %v133 = vsel %vm42, %v91, 0.0
  %134 = vadd.xlane.f32.xlu0 %v133
  %v135 = vpop.xlane.xlu0 %134
  %v136 = vsel %vm42, %v92, 0.0
  %137 = vadd.xlane.f32.xlu0 %v136
  %v138 = vpop.xlane.xlu0 %137
  %v139 = vsel %vm42, %v93, 0.0
  %140 = vadd.xlane.f32.xlu0 %v139
  %v141 = vpop.xlane.xlu0 %140
  %v142 = vsel %vm42, %v94, 0.0
  %143 = vadd.xlane.f32.xlu0 %v142
  %v144 = vpop.xlane.xlu0 %143
  %v145 = vrcp.pop 32.0
  %v146 = vmul.f32 %v99, %v145
  %v147 = vmul.f32 %v102, %v145
  %v148 = vmul.f32 %v105, %v145
  %v149 = vmul.f32 %v108, %v145
  %v150 = vmul.f32 %v111, %v145
  %v151 = vmul.f32 %v114, %v145
  %v152 = vmul.f32 %v117, %v145
  %v153 = vmul.f32 %v120, %v145
  %v154 = vmul.f32 %v123, %v145
  %v155 = vmul.f32 %v126, %v145
  %v156 = vmul.f32 %v129, %v145
  %v157 = vmul.f32 %v132, %v145
  %v158 = vmul.f32 %v135, %v145
  %v159 = vmul.f32 %v138, %v145
  %v160 = vmul.f32 %v141, %v145
  %v161 = vmul.f32 %v144, %v145
  %v162 = vmul.f32 %v79, %v79
  %v163 = vmul.f32 %v80, %v80
  %v164 = vmul.f32 %v81, %v81
  %v165 = vmul.f32 %v82, %v82
  %v166 = vmul.f32 %v83, %v83
  %v167 = vmul.f32 %v84, %v84
  %v168 = vmul.f32 %v85, %v85
  %v169 = vmul.f32 %v86, %v86
  %v170 = vmul.f32 %v87, %v87
  %v171 = vmul.f32 %v88, %v88
  %v172 = vmul.f32 %v89, %v89
  %v173 = vmul.f32 %v90, %v90
  %v174 = vmul.f32 %v91, %v91
  %v175 = vmul.f32 %v92, %v92
  %v176 = vmul.f32 %v93, %v93
  %v177 = vmul.f32 %v94, %v94
  %v178 = vsel %vm42, %v162, 0.0
  %179 = vadd.xlane.f32.xlu0 %v178
  %v180 = vpop.xlane.xlu0 %179
  %v181 = vsel %vm42, %v163, 0.0
  %182 = vadd.xlane.f32.xlu0 %v181
  %v183 = vpop.xlane.xlu0 %182
  %v184 = vsel %vm42, %v164, 0.0
  %185 = vadd.xlane.f32.xlu0 %v184
  %v186 = vpop.xlane.xlu0 %185
  %v187 = vsel %vm42, %v165, 0.0
  %188 = vadd.xlane.f32.xlu0 %v187
  %v189 = vpop.xlane.xlu0 %188
  %v190 = vsel %vm42, %v166, 0.0
  %191 = vadd.xlane.f32.xlu0 %v190
  %v192 = vpop.xlane.xlu0 %191
  %v193 = vsel %vm42, %v167, 0.0
  %194 = vadd.xlane.f32.xlu0 %v193
  %v195 = vpop.xlane.xlu0 %194
  %v196 = vsel %vm42, %v168, 0.0
  %197 = vadd.xlane.f32.xlu0 %v196
  %v198 = vpop.xlane.xlu0 %197
  %v199 = vsel %vm42, %v169, 0.0
  %200 = vadd.xlane.f32.xlu0 %v199
  %v201 = vpop.xlane.xlu0 %200
  %v202 = vsel %vm42, %v170, 0.0
  %203 = vadd.xlane.f32.xlu0 %v202
  %v204 = vpop.xlane.xlu0 %203
  %v205 = vsel %vm42, %v171, 0.0
  %206 = vadd.xlane.f32.xlu0 %v205
  %v207 = vpop.xlane.xlu0 %206
  %v208 = vsel %vm42, %v172, 0.0
  %209 = vadd.xlane.f32.xlu0 %v208
  %v210 = vpop.xlane.xlu0 %209
  %v211 = vsel %vm42, %v173, 0.0
  %212 = vadd.xlane.f32.xlu0 %v211
  %v213 = vpop.xlane.xlu0 %212
  %v214 = vsel %vm42, %v174, 0.0
  %215 = vadd.xlane.f32.xlu0 %v214
  %v216 = vpop.xlane.xlu0 %215
  %v217 = vsel %vm42, %v175, 0.0
  %218 = vadd.xlane.f32.xlu0 %v217
  %v219 = vpop.xlane.xlu0 %218
  %v220 = vsel %vm42, %v176, 0.0
  %221 = vadd.xlane.f32.xlu0 %v220
  %v222 = vpop.xlane.xlu0 %221
  %v223 = vsel %vm42, %v177, 0.0
  %224 = vadd.xlane.f32.xlu0 %v223
  %v225 = vpop.xlane.xlu0 %224
  %v226 = vmul.f32 %v180, %v145
  %v227 = vmul.f32 %v183, %v145
  %v228 = vmul.f32 %v186, %v145
  %v229 = vmul.f32 %v189, %v145
  %v230 = vmul.f32 %v192, %v145
  %v231 = vmul.f32 %v195, %v145
  %v232 = vmul.f32 %v198, %v145
  %v233 = vmul.f32 %v201, %v145
  %v234 = vmul.f32 %v204, %v145
  %v235 = vmul.f32 %v207, %v145
  %v236 = vmul.f32 %v210, %v145
  %v237 = vmul.f32 %v213, %v145
  %v238 = vmul.f32 %v216, %v145
  %v239 = vmul.f32 %v219, %v145
  %v240 = vmul.f32 %v222, %v145
  %v241 = vmul.f32 %v225, %v145
  %v242 = vmul.f32 %v146, %v146
  %v243 = vmul.f32 %v147, %v147
  %v244 = vmul.f32 %v148, %v148
  %v245 = vmul.f32 %v149, %v149
  %v246 = vmul.f32 %v150, %v150
  %v247 = vmul.f32 %v151, %v151
  %v248 = vmul.f32 %v152, %v152
  %v249 = vmul.f32 %v153, %v153
  %v250 = vmul.f32 %v154, %v154
  %v251 = vmul.f32 %v155, %v155
  %v252 = vmul.f32 %v156, %v156
  %v253 = vmul.f32 %v157, %v157
  %v254 = vmul.f32 %v158, %v158
  %v255 = vmul.f32 %v159, %v159
  %v256 = vmul.f32 %v160, %v160
  %v257 = vmul.f32 %v161, %v161
  %v258 = vsub.f32 %v226, %v242
  %v259 = vsub.f32 %v227, %v243
  %v260 = vsub.f32 %v228, %v244
  %v261 = vsub.f32 %v229, %v245
  %v262 = vsub.f32 %v230, %v246
  %v263 = vsub.f32 %v231, %v247
  %v264 = vsub.f32 %v232, %v248
  %v265 = vsub.f32 %v233, %v249
  %v266 = vsub.f32 %v234, %v250
  %v267 = vsub.f32 %v235, %v251
  %v268 = vsub.f32 %v236, %v252
  %v269 = vsub.f32 %v237, %v253
  %v270 = vsub.f32 %v238, %v254
  %v271 = vsub.f32 %v239, %v255
  %v272 = vsub.f32 %v240, %v256
  %v273 = vsub.f32 %v241, %v257
  %v274 = vsub.f32 %v79, %v146
  %v275 = vsub.f32 %v80, %v147
  %v276 = vsub.f32 %v81, %v148
  %v277 = vsub.f32 %v82, %v149
  %v278 = vsub.f32 %v83, %v150
  %v279 = vsub.f32 %v84, %v151
  %v280 = vsub.f32 %v85, %v152
  %v281 = vsub.f32 %v86, %v153
  %v282 = vsub.f32 %v87, %v154
  %v283 = vsub.f32 %v88, %v155
  %v284 = vsub.f32 %v89, %v156
  %v285 = vsub.f32 %v90, %v157
  %v286 = vsub.f32 %v91, %v158
  %v287 = vsub.f32 %v92, %v159
  %v288 = vsub.f32 %v93, %v160
  %v289 = vsub.f32 %v94, %v161
  %v290 = vadd.f32 %v258, 1e-05
  %v291 = vadd.f32 %v259, 1e-05
  %v292 = vadd.f32 %v260, 1e-05
  %v293 = vadd.f32 %v261, 1e-05
  %v294 = vadd.f32 %v262, 1e-05
  %v295 = vadd.f32 %v263, 1e-05
  %v296 = vadd.f32 %v264, 1e-05
  %v297 = vadd.f32 %v265, 1e-05
  %v298 = vadd.f32 %v266, 1e-05
  %v299 = vadd.f32 %v267, 1e-05
  %v300 = vadd.f32 %v268, 1e-05
  %v301 = vadd.f32 %v269, 1e-05
  %v302 = vadd.f32 %v270, 1e-05
  %v303 = vadd.f32 %v271, 1e-05
  %v304 = vadd.f32 %v272, 1e-05
  %v305 = vadd.f32 %v273, 1e-05
  %v306 = vrsqrt.pop %v290
  %v307 = vrsqrt.pop %v291
  %v308 = vrsqrt.pop %v292
  %v309 = vrsqrt.pop %v293
  %v310 = vrsqrt.pop %v294
  %v311 = vrsqrt.pop %v295
  %v312 = vrsqrt.pop %v296
  %v313 = vrsqrt.pop %v297
  %v314 = vrsqrt.pop %v298
  %v315 = vrsqrt.pop %v299
  %v316 = vrsqrt.pop %v300
  %v317 = vrsqrt.pop %v301
  %v318 = vrsqrt.pop %v302
  %v319 = vrsqrt.pop %v303
  %v320 = vrsqrt.pop %v304
  %v321 = vrsqrt.pop %v305
  %v322 = vmul.f32 %v274, %v306
  %v323 = vmul.f32 %v275, %v307
  %v324 = vmul.f32 %v276, %v308
  %v325 = vmul.f32 %v277, %v309
  %v326 = vmul.f32 %v278, %v310
  %v327 = vmul.f32 %v279, %v311
  %v328 = vmul.f32 %v280, %v312
  %v329 = vmul.f32 %v281, %v313
  %v330 = vmul.f32 %v282, %v314
  %v331 = vmul.f32 %v283, %v315
  %v332 = vmul.f32 %v284, %v316
  %v333 = vmul.f32 %v285, %v317
  %v334 = vmul.f32 %v286, %v318
  %v335 = vmul.f32 %v287, %v319
  %v336 = vmul.f32 %v288, %v320
  %v337 = vmul.f32 %v289, %v321
  %v339 = vlaneseq
  %v340 = vshrl.u32 %v339, 7
  %v341 = vsub.s32 0, %v340
  %v342 = vrot.slane %v95, %v341
  %v344 = vmul.f32 %v322, %v342
  %v345 = vmul.f32 %v323, %v342
  %v346 = vmul.f32 %v324, %v342
  %v347 = vmul.f32 %v325, %v342
  %v348 = vmul.f32 %v326, %v342
  %v349 = vmul.f32 %v327, %v342
  %v350 = vmul.f32 %v328, %v342
  %v351 = vmul.f32 %v329, %v342
  %v352 = vmul.f32 %v330, %v342
  %v353 = vmul.f32 %v331, %v342
  %v354 = vmul.f32 %v332, %v342
  %v355 = vmul.f32 %v333, %v342
  %v356 = vmul.f32 %v334, %v342
  %v357 = vmul.f32 %v335, %v342
  %v358 = vmul.f32 %v336, %v342
  %v359 = vmul.f32 %v337, %v342
  %v361 = vlaneseq
  %v362 = vshrl.u32 %v361, 7
  %v363 = vsub.s32 0, %v362
  %v364 = vrot.slane %v96, %v363
  %v366 = vadd.f32 %v344, %v364
  %v367 = vadd.f32 %v345, %v364
  %v368 = vadd.f32 %v346, %v364
  %v369 = vadd.f32 %v347, %v364
  %v370 = vadd.f32 %v348, %v364
  %v371 = vadd.f32 %v349, %v364
  %v372 = vadd.f32 %v350, %v364
  %v373 = vadd.f32 %v351, %v364
  %v374 = vadd.f32 %v352, %v364
  %v375 = vadd.f32 %v353, %v364
  %v376 = vadd.f32 %v354, %v364
  %v377 = vadd.f32 %v355, %v364
  %v378 = vadd.f32 %v356, %v364
  %v379 = vadd.f32 %v357, %v364
  %v380 = vadd.f32 %v358, %v364
  %v381 = vadd.f32 %v359, %v364
  %382 = vst.msk [vmem:[#allocation2 + $0x10] sm:$0xff] %vm42, %v366
  %383 = vst.msk [vmem:[#allocation2 + $0x18] sm:$0xff] %vm42, %v367
  %384 = vst.msk [vmem:[#allocation2 + $0x20] sm:$0xff] %vm42, %v368
  %385 = vst.msk [vmem:[#allocation2 + $0x28] sm:$0xff] %vm42, %v369
  %386 = vst.msk [vmem:[#allocation2 + $0x30] sm:$0xff] %vm42, %v370
  %387 = vst.msk [vmem:[#allocation2 + $0x38] sm:$0xff] %vm42, %v371
  %388 = vst.msk [vmem:[#allocation2 + $0x40] sm:$0xff] %vm42, %v372
  %389 = vst.msk [vmem:[#allocation2 + $0x48] sm:$0xff] %vm42, %v373
  %390 = vst.msk [vmem:[#allocation2 + $0x50] sm:$0xff] %vm42, %v374
  %391 = vst.msk [vmem:[#allocation2 + $0x58] sm:$0xff] %vm42, %v375
  %392 = vst.msk [vmem:[#allocation2 + $0x60] sm:$0xff] %vm42, %v376
  %393 = vst.msk [vmem:[#allocation2 + $0x68] sm:$0xff] %vm42, %v377
  %394 = vst.msk [vmem:[#allocation2 + $0x70] sm:$0xff] %vm42, %v378
  %395 = vst.msk [vmem:[#allocation2 + $0x78] sm:$0xff] %vm42, %v379
  %396 = vst.msk [vmem:[#allocation2 + $0x80] sm:$0xff] %vm42, %v380
  %397 = vst.msk [vmem:[#allocation2 + $0x88] sm:$0xff] %vm42, %v381
  %v398 = vld [vmem:[#allocation2 + $0x7] sm:$0xff]
  %v399 = vld [vmem:[#allocation2 + $0xf] sm:$0xff]
  %v400 = vld [vmem:[#allocation2 + $0x17] sm:$0xff]
  %v401 = vld [vmem:[#allocation2 + $0x1f] sm:$0xff]
  %v402 = vld [vmem:[#allocation2 + $0x27] sm:$0xff]
  %v403 = vld [vmem:[#allocation2 + $0x2f] sm:$0xff]
  %v404 = vld [vmem:[#allocation2 + $0x37] sm:$0xff]
  %v405 = vld [vmem:[#allocation2 + $0x3f] sm:$0xff]
  %v406 = vld [vmem:[#allocation2 + $0x47] sm:$0xff]
  %v407 = vld [vmem:[#allocation2 + $0x4f] sm:$0xff]
  %v408 = vld [vmem:[#allocation2 + $0x57] sm:$0xff]
  %v409 = vld [vmem:[#allocation2 + $0x5f] sm:$0xff]
  %v410 = vld [vmem:[#allocation2 + $0x67] sm:$0xff]
  %v411 = vld [vmem:[#allocation2 + $0x6f] sm:$0xff]
  %v412 = vld [vmem:[#allocation2 + $0x77] sm:$0xff]
  %v413 = vld [vmem:[#allocation2 + $0x7f] sm:$0xff]
  %415 = vset.pattern.permute.xlu0 0
  %416 = vperm.xlu0 %415, %v63
  %v417 = vpop.permute.xlu0 %416
  %420 = vset.pattern.permute.xlu0 0
  %421 = vperm.xlu0 %420, %v64
  %v422 = vpop.permute.xlu0 %421
  %425 = vset.pattern.permute.xlu0 0
  %426 = vperm.xlu0 %425, %v65
  %v427 = vpop.permute.xlu0 %426
  %430 = vset.pattern.permute.xlu0 0
  %431 = vperm.xlu0 %430, %v66
  %v432 = vpop.permute.xlu0 %431
  %435 = vset.pattern.permute.xlu0 0
  %436 = vperm.xlu0 %435, %v67
  %v437 = vpop.permute.xlu0 %436
  %440 = vset.pattern.permute.xlu0 0
  %441 = vperm.xlu0 %440, %v68
  %v442 = vpop.permute.xlu0 %441
  %445 = vset.pattern.permute.xlu0 0
  %446 = vperm.xlu0 %445, %v69
  %v447 = vpop.permute.xlu0 %446
  %450 = vset.pattern.permute.xlu0 0
  %451 = vperm.xlu0 %450, %v70
  %v452 = vpop.permute.xlu0 %451
  %455 = vset.pattern.permute.xlu0 0
  %456 = vperm.xlu0 %455, %v71
  %v457 = vpop.permute.xlu0 %456
  %460 = vset.pattern.permute.xlu0 0
  %461 = vperm.xlu0 %460, %v72
  %v462 = vpop.permute.xlu0 %461
  %465 = vset.pattern.permute.xlu0 0
  %466 = vperm.xlu0 %465, %v73
  %v467 = vpop.permute.xlu0 %466
  %470 = vset.pattern.permute.xlu0 0
  %471 = vperm.xlu0 %470, %v74
  %v472 = vpop.permute.xlu0 %471
  %475 = vset.pattern.permute.xlu0 0
  %476 = vperm.xlu0 %475, %v75
  %v477 = vpop.permute.xlu0 %476
  %480 = vset.pattern.permute.xlu0 0
  %481 = vperm.xlu0 %480, %v76
  %v482 = vpop.permute.xlu0 %481
  %485 = vset.pattern.permute.xlu0 0
  %486 = vperm.xlu0 %485, %v77
  %v487 = vpop.permute.xlu0 %486
  %490 = vset.pattern.permute.xlu0 0
  %491 = vperm.xlu0 %490, %v78
  %v492 = vpop.permute.xlu0 %491
  %v494 = vmul.f32 %v398, %v417
  %v495 = vmul.f32 %v399, %v422
  %v496 = vmul.f32 %v400, %v427
  %v497 = vmul.f32 %v401, %v432
  %v498 = vmul.f32 %v402, %v437
  %v499 = vmul.f32 %v403, %v442
  %v500 = vmul.f32 %v404, %v447
  %v501 = vmul.f32 %v405, %v452
  %v502 = vmul.f32 %v406, %v457
  %v503 = vmul.f32 %v407, %v462
  %v504 = vmul.f32 %v408, %v467
  %v505 = vmul.f32 %v409, %v472
  %v506 = vmul.f32 %v410, %v477
  %v507 = vmul.f32 %v411, %v482
  %v508 = vmul.f32 %v412, %v487
  %v509 = vmul.f32 %v413, %v492
  %v510 = vld [vmem:[#allocation2 + $0x8] sm:$0xff]
  %v511 = vld [vmem:[#allocation2 + $0x10] sm:$0xff]
  %v512 = vld [vmem:[#allocation2 + $0x18] sm:$0xff]
  %v513 = vld [vmem:[#allocation2 + $0x20] sm:$0xff]
  %v514 = vld [vmem:[#allocation2 + $0x28] sm:$0xff]
  %v515 = vld [vmem:[#allocation2 + $0x30] sm:$0xff]
  %v516 = vld [vmem:[#allocation2 + $0x38] sm:$0xff]
  %v517 = vld [vmem:[#allocation2 + $0x40] sm:$0xff]
  %v518 = vld [vmem:[#allocation2 + $0x48] sm:$0xff]
  %v519 = vld [vmem:[#allocation2 + $0x50] sm:$0xff]
  %v520 = vld [vmem:[#allocation2 + $0x58] sm:$0xff]
  %v521 = vld [vmem:[#allocation2 + $0x60] sm:$0xff]
  %v522 = vld [vmem:[#allocation2 + $0x68] sm:$0xff]
  %v523 = vld [vmem:[#allocation2 + $0x70] sm:$0xff]
  %v524 = vld [vmem:[#allocation2 + $0x78] sm:$0xff]
  %v525 = vld [vmem:[#allocation2 + $0x80] sm:$0xff]
  %526 = vset.pattern.permute.xlu0 1
  %527 = vperm.xlu0 %526, %v63
  %v528 = vpop.permute.xlu0 %527
  %530 = vset.pattern.permute.xlu0 1
  %531 = vperm.xlu0 %530, %v64
  %v532 = vpop.permute.xlu0 %531
  %534 = vset.pattern.permute.xlu0 1
  %535 = vperm.xlu0 %534, %v65
  %v536 = vpop.permute.xlu0 %535
  %538 = vset.pattern.permute.xlu0 1
  %539 = vperm.xlu0 %538, %v66
  %v540 = vpop.permute.xlu0 %539
  %542 = vset.pattern.permute.xlu0 1
  %543 = vperm.xlu0 %542, %v67
  %v544 = vpop.permute.xlu0 %543
  %546 = vset.pattern.permute.xlu0 1
  %547 = vperm.xlu0 %546, %v68
  %v548 = vpop.permute.xlu0 %547
  %550 = vset.pattern.permute.xlu0 1
  %551 = vperm.xlu0 %550, %v69
  %v552 = vpop.permute.xlu0 %551
  %554 = vset.pattern.permute.xlu0 1
  %555 = vperm.xlu0 %554, %v70
  %v556 = vpop.permute.xlu0 %555
  %558 = vset.pattern.permute.xlu0 1
  %559 = vperm.xlu0 %558, %v71
  %v560 = vpop.permute.xlu0 %559
  %562 = vset.pattern.permute.xlu0 1
  %563 = vperm.xlu0 %562, %v72
  %v564 = vpop.permute.xlu0 %563
  %566 = vset.pattern.permute.xlu0 1
  %567 = vperm.xlu0 %566, %v73
  %v568 = vpop.permute.xlu0 %567
  %570 = vset.pattern.permute.xlu0 1
  %571 = vperm.xlu0 %570, %v74
  %v572 = vpop.permute.xlu0 %571
  %574 = vset.pattern.permute.xlu0 1
  %575 = vperm.xlu0 %574, %v75
  %v576 = vpop.permute.xlu0 %575
  %578 = vset.pattern.permute.xlu0 1
  %579 = vperm.xlu0 %578, %v76
  %v580 = vpop.permute.xlu0 %579
  %582 = vset.pattern.permute.xlu0 1
  %583 = vperm.xlu0 %582, %v77
  %v584 = vpop.permute.xlu0 %583
  %586 = vset.pattern.permute.xlu0 1
  %587 = vperm.xlu0 %586, %v78
  %v588 = vpop.permute.xlu0 %587
  %v590 = vmul.f32 %v510, %v528
  %v591 = vmul.f32 %v511, %v532
  %v592 = vmul.f32 %v512, %v536
  %v593 = vmul.f32 %v513, %v540
  %v594 = vmul.f32 %v514, %v544
  %v595 = vmul.f32 %v515, %v548
  %v596 = vmul.f32 %v516, %v552
  %v597 = vmul.f32 %v517, %v556
  %v598 = vmul.f32 %v518, %v560
  %v599 = vmul.f32 %v519, %v564
  %v600 = vmul.f32 %v520, %v568
  %v601 = vmul.f32 %v521, %v572
  %v602 = vmul.f32 %v522, %v576
  %v603 = vmul.f32 %v523, %v580
  %v604 = vmul.f32 %v524, %v584
  %v605 = vmul.f32 %v525, %v588
  %v606 = vld [vmem:[#allocation2 + $0x9] sm:$0xff]
  %v607 = vld [vmem:[#allocation2 + $0x11] sm:$0xff]
  %v608 = vld [vmem:[#allocation2 + $0x19] sm:$0xff]
  %v609 = vld [vmem:[#allocation2 + $0x21] sm:$0xff]
  %v610 = vld [vmem:[#allocation2 + $0x29] sm:$0xff]
  %v611 = vld [vmem:[#allocation2 + $0x31] sm:$0xff]
  %v612 = vld [vmem:[#allocation2 + $0x39] sm:$0xff]
  %v613 = vld [vmem:[#allocation2 + $0x41] sm:$0xff]
  %v614 = vld [vmem:[#allocation2 + $0x49] sm:$0xff]
  %v615 = vld [vmem:[#allocation2 + $0x51] sm:$0xff]
  %v616 = vld [vmem:[#allocation2 + $0x59] sm:$0xff]
  %v617 = vld [vmem:[#allocation2 + $0x61] sm:$0xff]
  %v618 = vld [vmem:[#allocation2 + $0x69] sm:$0xff]
  %v619 = vld [vmem:[#allocation2 + $0x71] sm:$0xff]
  %v620 = vld [vmem:[#allocation2 + $0x79] sm:$0xff]
  %v621 = vld [vmem:[#allocation2 + $0x81] sm:$0xff]
  %622 = vset.pattern.permute.xlu0 2
  %623 = vperm.xlu0 %622, %v63
  %v624 = vpop.permute.xlu0 %623
  %626 = vset.pattern.permute.xlu0 2
  %627 = vperm.xlu0 %626, %v64
  %v628 = vpop.permute.xlu0 %627
  %630 = vset.pattern.permute.xlu0 2
  %631 = vperm.xlu0 %630, %v65
  %v632 = vpop.permute.xlu0 %631
  %634 = vset.pattern.permute.xlu0 2
  %635 = vperm.xlu0 %634, %v66
  %v636 = vpop.permute.xlu0 %635
  %638 = vset.pattern.permute.xlu0 2
  %639 = vperm.xlu0 %638, %v67
  %v640 = vpop.permute.xlu0 %639
  %642 = vset.pattern.permute.xlu0 2
  %643 = vperm.xlu0 %642, %v68
  %v644 = vpop.permute.xlu0 %643
  %646 = vset.pattern.permute.xlu0 2
  %647 = vperm.xlu0 %646, %v69
  %v648 = vpop.permute.xlu0 %647
  %650 = vset.pattern.permute.xlu0 2
  %651 = vperm.xlu0 %650, %v70
  %v652 = vpop.permute.xlu0 %651
  %654 = vset.pattern.permute.xlu0 2
  %655 = vperm.xlu0 %654, %v71
  %v656 = vpop.permute.xlu0 %655
  %658 = vset.pattern.permute.xlu0 2
  %659 = vperm.xlu0 %658, %v72
  %v660 = vpop.permute.xlu0 %659
  %662 = vset.pattern.permute.xlu0 2
  %663 = vperm.xlu0 %662, %v73
  %v664 = vpop.permute.xlu0 %663
  %666 = vset.pattern.permute.xlu0 2
  %667 = vperm.xlu0 %666, %v74
  %v668 = vpop.permute.xlu0 %667
  %670 = vset.pattern.permute.xlu0 2
  %671 = vperm.xlu0 %670, %v75
  %v672 = vpop.permute.xlu0 %671
  %674 = vset.pattern.permute.xlu0 2
  %675 = vperm.xlu0 %674, %v76
  %v676 = vpop.permute.xlu0 %675
  %678 = vset.pattern.permute.xlu0 2
  %679 = vperm.xlu0 %678, %v77
  %v680 = vpop.permute.xlu0 %679
  %682 = vset.pattern.permute.xlu0 2
  %683 = vperm.xlu0 %682, %v78
  %v684 = vpop.permute.xlu0 %683
  %v686 = vmul.f32 %v606, %v624
  %v687 = vmul.f32 %v607, %v628
  %v688 = vmul.f32 %v608, %v632
  %v689 = vmul.f32 %v609, %v636
  %v690 = vmul.f32 %v610, %v640
  %v691 = vmul.f32 %v611, %v644
  %v692 = vmul.f32 %v612, %v648
  %v693 = vmul.f32 %v613, %v652
  %v694 = vmul.f32 %v614, %v656
  %v695 = vmul.f32 %v615, %v660
  %v696 = vmul.f32 %v616, %v664
  %v697 = vmul.f32 %v617, %v668
  %v698 = vmul.f32 %v618, %v672
  %v699 = vmul.f32 %v619, %v676
  %v700 = vmul.f32 %v620, %v680
  %v701 = vmul.f32 %v621, %v684
  %v702 = vld [vmem:[#allocation2 + $0xf] sm:$0xff]
  %v703 = vld [vmem:[#allocation2 + $0x17] sm:$0xff]
  %v704 = vld [vmem:[#allocation2 + $0x1f] sm:$0xff]
  %v705 = vld [vmem:[#allocation2 + $0x27] sm:$0xff]
  %v706 = vld [vmem:[#allocation2 + $0x2f] sm:$0xff]
  %v707 = vld [vmem:[#allocation2 + $0x37] sm:$0xff]
  %v708 = vld [vmem:[#allocation2 + $0x3f] sm:$0xff]
  %v709 = vld [vmem:[#allocation2 + $0x47] sm:$0xff]
  %v710 = vld [vmem:[#allocation2 + $0x4f] sm:$0xff]
  %v711 = vld [vmem:[#allocation2 + $0x57] sm:$0xff]
  %v712 = vld [vmem:[#allocation2 + $0x5f] sm:$0xff]
  %v713 = vld [vmem:[#allocation2 + $0x67] sm:$0xff]
  %v714 = vld [vmem:[#allocation2 + $0x6f] sm:$0xff]
  %v715 = vld [vmem:[#allocation2 + $0x77] sm:$0xff]
  %v716 = vld [vmem:[#allocation2 + $0x7f] sm:$0xff]
  %v717 = vld [vmem:[#allocation2 + $0x87] sm:$0xff]
  %718 = vset.pattern.permute.xlu0 3
  %719 = vperm.xlu0 %718, %v63
  %v720 = vpop.permute.xlu0 %719
  %722 = vset.pattern.permute.xlu0 3
  %723 = vperm.xlu0 %722, %v64
  %v724 = vpop.permute.xlu0 %723
  %726 = vset.pattern.permute.xlu0 3
  %727 = vperm.xlu0 %726, %v65
  %v728 = vpop.permute.xlu0 %727
  %730 = vset.pattern.permute.xlu0 3
  %731 = vperm.xlu0 %730, %v66
  %v732 = vpop.permute.xlu0 %731
  %734 = vset.pattern.permute.xlu0 3
  %735 = vperm.xlu0 %734, %v67
  %v736 = vpop.permute.xlu0 %735
  %738 = vset.pattern.permute.xlu0 3
  %739 = vperm.xlu0 %738, %v68
  %v740 = vpop.permute.xlu0 %739
  %742 = vset.pattern.permute.xlu0 3
  %743 = vperm.xlu0 %742, %v69
  %v744 = vpop.permute.xlu0 %743
  %746 = vset.pattern.permute.xlu0 3
  %747 = vperm.xlu0 %746, %v70
  %v748 = vpop.permute.xlu0 %747
  %750 = vset.pattern.permute.xlu0 3
  %751 = vperm.xlu0 %750, %v71
  %v752 = vpop.permute.xlu0 %751
  %754 = vset.pattern.permute.xlu0 3
  %755 = vperm.xlu0 %754, %v72
  %v756 = vpop.permute.xlu0 %755
  %758 = vset.pattern.permute.xlu0 3
  %759 = vperm.xlu0 %758, %v73
  %v760 = vpop.permute.xlu0 %759
  %762 = vset.pattern.permute.xlu0 3
  %763 = vperm.xlu0 %762, %v74
  %v764 = vpop.permute.xlu0 %763
  %766 = vset.pattern.permute.xlu0 3
  %767 = vperm.xlu0 %766, %v75
  %v768 = vpop.permute.xlu0 %767
  %770 = vset.pattern.permute.xlu0 3
  %771 = vperm.xlu0 %770, %v76
  %v772 = vpop.permute.xlu0 %771
  %774 = vset.pattern.permute.xlu0 3
  %775 = vperm.xlu0 %774, %v77
  %v776 = vpop.permute.xlu0 %775
  %778 = vset.pattern.permute.xlu0 3
  %779 = vperm.xlu0 %778, %v78
  %v780 = vpop.permute.xlu0 %779
  %v782 = vmul.f32 %v702, %v720
  %v783 = vmul.f32 %v703, %v724
  %v784 = vmul.f32 %v704, %v728
  %v785 = vmul.f32 %v705, %v732
  %v786 = vmul.f32 %v706, %v736
  %v787 = vmul.f32 %v707, %v740
  %v788 = vmul.f32 %v708, %v744
  %v789 = vmul.f32 %v709, %v748
  %v790 = vmul.f32 %v710, %v752
  %v791 = vmul.f32 %v711, %v756
  %v792 = vmul.f32 %v712, %v760
  %v793 = vmul.f32 %v713, %v764
  %v794 = vmul.f32 %v714, %v768
  %v795 = vmul.f32 %v715, %v772
  %v796 = vmul.f32 %v716, %v776
  %v797 = vmul.f32 %v717, %v780
  %v798 = vld [vmem:[#allocation2 + $0x10] sm:$0xff]
  %v799 = vld [vmem:[#allocation2 + $0x18] sm:$0xff]
  %v800 = vld [vmem:[#allocation2 + $0x20] sm:$0xff]
  %v801 = vld [vmem:[#allocation2 + $0x28] sm:$0xff]
  %v802 = vld [vmem:[#allocation2 + $0x30] sm:$0xff]
  %v803 = vld [vmem:[#allocation2 + $0x38] sm:$0xff]
  %v804 = vld [vmem:[#allocation2 + $0x40] sm:$0xff]
  %v805 = vld [vmem:[#allocation2 + $0x48] sm:$0xff]
  %v806 = vld [vmem:[#allocation2 + $0x50] sm:$0xff]
  %v807 = vld [vmem:[#allocation2 + $0x58] sm:$0xff]
  %v808 = vld [vmem:[#allocation2 + $0x60] sm:$0xff]
  %v809 = vld [vmem:[#allocation2 + $0x68] sm:$0xff]
  %v810 = vld [vmem:[#allocation2 + $0x70] sm:$0xff]
  %v811 = vld [vmem:[#allocation2 + $0x78] sm:$0xff]
  %v812 = vld [vmem:[#allocation2 + $0x80] sm:$0xff]
  %v813 = vld [vmem:[#allocation2 + $0x88] sm:$0xff]
  %814 = vset.pattern.permute.xlu0 4
  %815 = vperm.xlu0 %814, %v63
  %v816 = vpop.permute.xlu0 %815
  %818 = vset.pattern.permute.xlu0 4
  %819 = vperm.xlu0 %818, %v64
  %v820 = vpop.permute.xlu0 %819
  %822 = vset.pattern.permute.xlu0 4
  %823 = vperm.xlu0 %822, %v65
  %v824 = vpop.permute.xlu0 %823
  %826 = vset.pattern.permute.xlu0 4
  %827 = vperm.xlu0 %826, %v66
  %v828 = vpop.permute.xlu0 %827
  %830 = vset.pattern.permute.xlu0 4
  %831 = vperm.xlu0 %830, %v67
  %v832 = vpop.permute.xlu0 %831
  %834 = vset.pattern.permute.xlu0 4
  %835 = vperm.xlu0 %834, %v68
  %v836 = vpop.permute.xlu0 %835
  %838 = vset.pattern.permute.xlu0 4
  %839 = vperm.xlu0 %838, %v69
  %v840 = vpop.permute.xlu0 %839
  %842 = vset.pattern.permute.xlu0 4
  %843 = vperm.xlu0 %842, %v70
  %v844 = vpop.permute.xlu0 %843
  %846 = vset.pattern.permute.xlu0 4
  %847 = vperm.xlu0 %846, %v71
  %v848 = vpop.permute.xlu0 %847
  %850 = vset.pattern.permute.xlu0 4
  %851 = vperm.xlu0 %850, %v72
  %v852 = vpop.permute.xlu0 %851
  %854 = vset.pattern.permute.xlu0 4
  %855 = vperm.xlu0 %854, %v73
  %v856 = vpop.permute.xlu0 %855
  %858 = vset.pattern.permute.xlu0 4
  %859 = vperm.xlu0 %858, %v74
  %v860 = vpop.permute.xlu0 %859
  %862 = vset.pattern.permute.xlu0 4
  %863 = vperm.xlu0 %862, %v75
  %v864 = vpop.permute.xlu0 %863
  %866 = vset.pattern.permute.xlu0 4
  %867 = vperm.xlu0 %866, %v76
  %v868 = vpop.permute.xlu0 %867
  %870 = vset.pattern.permute.xlu0 4
  %871 = vperm.xlu0 %870, %v77
  %v872 = vpop.permute.xlu0 %871
  %874 = vset.pattern.permute.xlu0 4
  %875 = vperm.xlu0 %874, %v78
  %v876 = vpop.permute.xlu0 %875
  %v878 = vmul.f32 %v798, %v816
  %v879 = vmul.f32 %v799, %v820
  %v880 = vmul.f32 %v800, %v824
  %v881 = vmul.f32 %v801, %v828
  %v882 = vmul.f32 %v802, %v832
  %v883 = vmul.f32 %v803, %v836
  %v884 = vmul.f32 %v804, %v840
  %v885 = vmul.f32 %v805, %v844
  %v886 = vmul.f32 %v806, %v848
  %v887 = vmul.f32 %v807, %v852
  %v888 = vmul.f32 %v808, %v856
  %v889 = vmul.f32 %v809, %v860
  %v890 = vmul.f32 %v810, %v864
  %v891 = vmul.f32 %v811, %v868
  %v892 = vmul.f32 %v812, %v872
  %v893 = vmul.f32 %v813, %v876
  %v894 = vld [vmem:[#allocation2 + $0x11] sm:$0xff]
  %v895 = vld [vmem:[#allocation2 + $0x19] sm:$0xff]
  %v896 = vld [vmem:[#allocation2 + $0x21] sm:$0xff]
  %v897 = vld [vmem:[#allocation2 + $0x29] sm:$0xff]
  %v898 = vld [vmem:[#allocation2 + $0x31] sm:$0xff]
  %v899 = vld [vmem:[#allocation2 + $0x39] sm:$0xff]
  %v900 = vld [vmem:[#allocation2 + $0x41] sm:$0xff]
  %v901 = vld [vmem:[#allocation2 + $0x49] sm:$0xff]
  %v902 = vld [vmem:[#allocation2 + $0x51] sm:$0xff]
  %v903 = vld [vmem:[#allocation2 + $0x59] sm:$0xff]
  %v904 = vld [vmem:[#allocation2 + $0x61] sm:$0xff]
  %v905 = vld [vmem:[#allocation2 + $0x69] sm:$0xff]
  %v906 = vld [vmem:[#allocation2 + $0x71] sm:$0xff]
  %v907 = vld [vmem:[#allocation2 + $0x79] sm:$0xff]
  %v908 = vld [vmem:[#allocation2 + $0x81] sm:$0xff]
  %v909 = vld [vmem:[#allocation2 + $0x89] sm:$0xff]
  %910 = vset.pattern.permute.xlu0 5
  %911 = vperm.xlu0 %910, %v63
  %v912 = vpop.permute.xlu0 %911
  %914 = vset.pattern.permute.xlu0 5
  %915 = vperm.xlu0 %914, %v64
  %v916 = vpop.permute.xlu0 %915
  %918 = vset.pattern.permute.xlu0 5
  %919 = vperm.xlu0 %918, %v65
  %v920 = vpop.permute.xlu0 %919
  %922 = vset.pattern.permute.xlu0 5
  %923 = vperm.xlu0 %922, %v66
  %v924 = vpop.permute.xlu0 %923
  %926 = vset.pattern.permute.xlu0 5
  %927 = vperm.xlu0 %926, %v67
  %v928 = vpop.permute.xlu0 %927
  %930 = vset.pattern.permute.xlu0 5
  %931 = vperm.xlu0 %930, %v68
  %v932 = vpop.permute.xlu0 %931
  %934 = vset.pattern.permute.xlu0 5
  %935 = vperm.xlu0 %934, %v69
  %v936 = vpop.permute.xlu0 %935
  %938 = vset.pattern.permute.xlu0 5
  %939 = vperm.xlu0 %938, %v70
  %v940 = vpop.permute.xlu0 %939
  %942 = vset.pattern.permute.xlu0 5
  %943 = vperm.xlu0 %942, %v71
  %v944 = vpop.permute.xlu0 %943
  %946 = vset.pattern.permute.xlu0 5
  %947 = vperm.xlu0 %946, %v72
  %v948 = vpop.permute.xlu0 %947
  %950 = vset.pattern.permute.xlu0 5
  %951 = vperm.xlu0 %950, %v73
  %v952 = vpop.permute.xlu0 %951
  %954 = vset.pattern.permute.xlu0 5
  %955 = vperm.xlu0 %954, %v74
  %v956 = vpop.permute.xlu0 %955
  %958 = vset.pattern.permute.xlu0 5
  %959 = vperm.xlu0 %958, %v75
  %v960 = vpop.permute.xlu0 %959
  %962 = vset.pattern.permute.xlu0 5
  %963 = vperm.xlu0 %962, %v76
  %v964 = vpop.permute.xlu0 %963
  %966 = vset.pattern.permute.xlu0 5
  %967 = vperm.xlu0 %966, %v77
  %v968 = vpop.permute.xlu0 %967
  %970 = vset.pattern.permute.xlu0 5
  %971 = vperm.xlu0 %970, %v78
  %v972 = vpop.permute.xlu0 %971
  %v974 = vmul.f32 %v894, %v912
  %v975 = vmul.f32 %v895, %v916
  %v976 = vmul.f32 %v896, %v920
  %v977 = vmul.f32 %v897, %v924
  %v978 = vmul.f32 %v898, %v928
  %v979 = vmul.f32 %v899, %v932
  %v980 = vmul.f32 %v900, %v936
  %v981 = vmul.f32 %v901, %v940
  %v982 = vmul.f32 %v902, %v944
  %v983 = vmul.f32 %v903, %v948
  %v984 = vmul.f32 %v904, %v952
  %v985 = vmul.f32 %v905, %v956
  %v986 = vmul.f32 %v906, %v960
  %v987 = vmul.f32 %v907, %v964
  %v988 = vmul.f32 %v908, %v968
  %v989 = vmul.f32 %v909, %v972
  %v990 = vld [vmem:[#allocation2 + $0x17] sm:$0xff]
  %v991 = vld [vmem:[#allocation2 + $0x1f] sm:$0xff]
  %v992 = vld [vmem:[#allocation2 + $0x27] sm:$0xff]
  %v993 = vld [vmem:[#allocation2 + $0x2f] sm:$0xff]
  %v994 = vld [vmem:[#allocation2 + $0x37] sm:$0xff]
  %v995 = vld [vmem:[#allocation2 + $0x3f] sm:$0xff]
  %v996 = vld [vmem:[#allocation2 + $0x47] sm:$0xff]
  %v997 = vld [vmem:[#allocation2 + $0x4f] sm:$0xff]
  %v998 = vld [vmem:[#allocation2 + $0x57] sm:$0xff]
  %v999 = vld [vmem:[#allocation2 + $0x5f] sm:$0xff]
  %v1000 = vld [vmem:[#allocation2 + $0x67] sm:$0xff]
  %v1001 = vld [vmem:[#allocation2 + $0x6f] sm:$0xff]
  %v1002 = vld [vmem:[#allocation2 + $0x77] sm:$0xff]
  %v1003 = vld [vmem:[#allocation2 + $0x7f] sm:$0xff]
  %v1004 = vld [vmem:[#allocation2 + $0x87] sm:$0xff]
  %v1005 = vld [vmem:[#allocation2 + $0x8f] sm:$0xff]
  %1006 = vset.pattern.permute.xlu0 6
  %1007 = vperm.xlu0 %1006, %v63
  %v1008 = vpop.permute.xlu0 %1007
  %1010 = vset.pattern.permute.xlu0 6
  %1011 = vperm.xlu0 %1010, %v64
  %v1012 = vpop.permute.xlu0 %1011
  %1014 = vset.pattern.permute.xlu0 6
  %1015 = vperm.xlu0 %1014, %v65
  %v1016 = vpop.permute.xlu0 %1015
  %1018 = vset.pattern.permute.xlu0 6
  %1019 = vperm.xlu0 %1018, %v66
  %v1020 = vpop.permute.xlu0 %1019
  %1022 = vset.pattern.permute.xlu0 6
  %1023 = vperm.xlu0 %1022, %v67
  %v1024 = vpop.permute.xlu0 %1023
  %1026 = vset.pattern.permute.xlu0 6
  %1027 = vperm.xlu0 %1026, %v68
  %v1028 = vpop.permute.xlu0 %1027
  %1030 = vset.pattern.permute.xlu0 6
  %1031 = vperm.xlu0 %1030, %v69
  %v1032 = vpop.permute.xlu0 %1031
  %1034 = vset.pattern.permute.xlu0 6
  %1035 = vperm.xlu0 %1034, %v70
  %v1036 = vpop.permute.xlu0 %1035
  %1038 = vset.pattern.permute.xlu0 6
  %1039 = vperm.xlu0 %1038, %v71
  %v1040 = vpop.permute.xlu0 %1039
  %1042 = vset.pattern.permute.xlu0 6
  %1043 = vperm.xlu0 %1042, %v72
  %v1044 = vpop.permute.xlu0 %1043
  %1046 = vset.pattern.permute.xlu0 6
  %1047 = vperm.xlu0 %1046, %v73
  %v1048 = vpop.permute.xlu0 %1047
  %1050 = vset.pattern.permute.xlu0 6
  %1051 = vperm.xlu0 %1050, %v74
  %v1052 = vpop.permute.xlu0 %1051
  %1054 = vset.pattern.permute.xlu0 6
  %1055 = vperm.xlu0 %1054, %v75
  %v1056 = vpop.permute.xlu0 %1055
  %1058 = vset.pattern.permute.xlu0 6
  %1059 = vperm.xlu0 %1058, %v76
  %v1060 = vpop.permute.xlu0 %1059
  %1062 = vset.pattern.permute.xlu0 6
  %1063 = vperm.xlu0 %1062, %v77
  %v1064 = vpop.permute.xlu0 %1063
  %1066 = vset.pattern.permute.xlu0 6
  %1067 = vperm.xlu0 %1066, %v78
  %v1068 = vpop.permute.xlu0 %1067
  %v1070 = vmul.f32 %v990, %v1008
  %v1071 = vmul.f32 %v991, %v1012
  %v1072 = vmul.f32 %v992, %v1016
  %v1073 = vmul.f32 %v993, %v1020
  %v1074 = vmul.f32 %v994, %v1024
  %v1075 = vmul.f32 %v995, %v1028
  %v1076 = vmul.f32 %v996, %v1032
  %v1077 = vmul.f32 %v997, %v1036
  %v1078 = vmul.f32 %v998, %v1040
  %v1079 = vmul.f32 %v999, %v1044
  %v1080 = vmul.f32 %v1000, %v1048
  %v1081 = vmul.f32 %v1001, %v1052
  %v1082 = vmul.f32 %v1002, %v1056
  %v1083 = vmul.f32 %v1003, %v1060
  %v1084 = vmul.f32 %v1004, %v1064
  %v1085 = vmul.f32 %v1005, %v1068
  %v1086 = vld [vmem:[#allocation2 + $0x18] sm:$0xff]
  %v1087 = vld [vmem:[#allocation2 + $0x20] sm:$0xff]
  %v1088 = vld [vmem:[#allocation2 + $0x28] sm:$0xff]
  %v1089 = vld [vmem:[#allocation2 + $0x30] sm:$0xff]
  %v1090 = vld [vmem:[#allocation2 + $0x38] sm:$0xff]
  %v1091 = vld [vmem:[#allocation2 + $0x40] sm:$0xff]
  %v1092 = vld [vmem:[#allocation2 + $0x48] sm:$0xff]
  %v1093 = vld [vmem:[#allocation2 + $0x50] sm:$0xff]
  %v1094 = vld [vmem:[#allocation2 + $0x58] sm:$0xff]
  %v1095 = vld [vmem:[#allocation2 + $0x60] sm:$0xff]
  %v1096 = vld [vmem:[#allocation2 + $0x68] sm:$0xff]
  %v1097 = vld [vmem:[#allocation2 + $0x70] sm:$0xff]
  %v1098 = vld [vmem:[#allocation2 + $0x78] sm:$0xff]
  %v1099 = vld [vmem:[#allocation2 + $0x80] sm:$0xff]
  %v1100 = vld [vmem:[#allocation2 + $0x88] sm:$0xff]
  %v1101 = vld [vmem:[#allocation2 + $0x90] sm:$0xff]
  %1102 = vset.pattern.permute.xlu0 7
  %1103 = vperm.xlu0 %1102, %v63
  %v1104 = vpop.permute.xlu0 %1103
  %1106 = vset.pattern.permute.xlu0 7
  %1107 = vperm.xlu0 %1106, %v64
  %v1108 = vpop.permute.xlu0 %1107
  %1110 = vset.pattern.permute.xlu0 7
  %1111 = vperm.xlu0 %1110, %v65
  %v1112 = vpop.permute.xlu0 %1111
  %1114 = vset.pattern.permute.xlu0 7
  %1115 = vperm.xlu0 %1114, %v66
  %v1116 = vpop.permute.xlu0 %1115
  %1118 = vset.pattern.permute.xlu0 7
  %1119 = vperm.xlu0 %1118, %v67
  %v1120 = vpop.permute.xlu0 %1119
  %1122 = vset.pattern.permute.xlu0 7
  %1123 = vperm.xlu0 %1122, %v68
  %v1124 = vpop.permute.xlu0 %1123
  %1126 = vset.pattern.permute.xlu0 7
  %1127 = vperm.xlu0 %1126, %v69
  %v1128 = vpop.permute.xlu0 %1127
  %1130 = vset.pattern.permute.xlu0 7
  %1131 = vperm.xlu0 %1130, %v70
  %v1132 = vpop.permute.xlu0 %1131
  %1134 = vset.pattern.permute.xlu0 7
  %1135 = vperm.xlu0 %1134, %v71
  %v1136 = vpop.permute.xlu0 %1135
  %1138 = vset.pattern.permute.xlu0 7
  %1139 = vperm.xlu0 %1138, %v72
  %v1140 = vpop.permute.xlu0 %1139
  %1142 = vset.pattern.permute.xlu0 7
  %1143 = vperm.xlu0 %1142, %v73
  %v1144 = vpop.permute.xlu0 %1143
  %1146 = vset.pattern.permute.xlu0 7
  %1147 = vperm.xlu0 %1146, %v74
  %v1148 = vpop.permute.xlu0 %1147
  %1150 = vset.pattern.permute.xlu0 7
  %1151 = vperm.xlu0 %1150, %v75
  %v1152 = vpop.permute.xlu0 %1151
  %1154 = vset.pattern.permute.xlu0 7
  %1155 = vperm.xlu0 %1154, %v76
  %v1156 = vpop.permute.xlu0 %1155
  %1158 = vset.pattern.permute.xlu0 7
  %1159 = vperm.xlu0 %1158, %v77
  %v1160 = vpop.permute.xlu0 %1159
  %1162 = vset.pattern.permute.xlu0 7
  %1163 = vperm.xlu0 %1162, %v78
  %v1164 = vpop.permute.xlu0 %1163
  %v1166 = vmul.f32 %v1086, %v1104
  %v1167 = vmul.f32 %v1087, %v1108
  %v1168 = vmul.f32 %v1088, %v1112
  %v1169 = vmul.f32 %v1089, %v1116
  %v1170 = vmul.f32 %v1090, %v1120
  %v1171 = vmul.f32 %v1091, %v1124
  %v1172 = vmul.f32 %v1092, %v1128
  %v1173 = vmul.f32 %v1093, %v1132
  %v1174 = vmul.f32 %v1094, %v1136
  %v1175 = vmul.f32 %v1095, %v1140
  %v1176 = vmul.f32 %v1096, %v1144
  %v1177 = vmul.f32 %v1097, %v1148
  %v1178 = vmul.f32 %v1098, %v1152
  %v1179 = vmul.f32 %v1099, %v1156
  %v1180 = vmul.f32 %v1100, %v1160
  %v1181 = vmul.f32 %v1101, %v1164
  %v1182 = vld [vmem:[#allocation2 + $0x19] sm:$0xff]
  %v1183 = vld [vmem:[#allocation2 + $0x21] sm:$0xff]
  %v1184 = vld [vmem:[#allocation2 + $0x29] sm:$0xff]
  %v1185 = vld [vmem:[#allocation2 + $0x31] sm:$0xff]
  %v1186 = vld [vmem:[#allocation2 + $0x39] sm:$0xff]
  %v1187 = vld [vmem:[#allocation2 + $0x41] sm:$0xff]
  %v1188 = vld [vmem:[#allocation2 + $0x49] sm:$0xff]
  %v1189 = vld [vmem:[#allocation2 + $0x51] sm:$0xff]
  %v1190 = vld [vmem:[#allocation2 + $0x59] sm:$0xff]
  %v1191 = vld [vmem:[#allocation2 + $0x61] sm:$0xff]
  %v1192 = vld [vmem:[#allocation2 + $0x69] sm:$0xff]
  %v1193 = vld [vmem:[#allocation2 + $0x71] sm:$0xff]
  %v1194 = vld [vmem:[#allocation2 + $0x79] sm:$0xff]
  %v1195 = vld [vmem:[#allocation2 + $0x81] sm:$0xff]
  %v1196 = vld [vmem:[#allocation2 + $0x89] sm:$0xff]
  %v1197 = vld [vmem:[#allocation2 + $0x91] sm:$0xff]
  %1198 = vset.pattern.permute.xlu0 8
  %1199 = vperm.xlu0 %1198, %v63
  %v1200 = vpop.permute.xlu0 %1199
  %1202 = vset.pattern.permute.xlu0 8
  %1203 = vperm.xlu0 %1202, %v64
  %v1204 = vpop.permute.xlu0 %1203
  %1206 = vset.pattern.permute.xlu0 8
  %1207 = vperm.xlu0 %1206, %v65
  %v1208 = vpop.permute.xlu0 %1207
  %1210 = vset.pattern.permute.xlu0 8
  %1211 = vperm.xlu0 %1210, %v66
  %v1212 = vpop.permute.xlu0 %1211
  %1214 = vset.pattern.permute.xlu0 8
  %1215 = vperm.xlu0 %1214, %v67
  %v1216 = vpop.permute.xlu0 %1215
  %1218 = vset.pattern.permute.xlu0 8
  %1219 = vperm.xlu0 %1218, %v68
  %v1220 = vpop.permute.xlu0 %1219
  %1222 = vset.pattern.permute.xlu0 8
  %1223 = vperm.xlu0 %1222, %v69
  %v1224 = vpop.permute.xlu0 %1223
  %1226 = vset.pattern.permute.xlu0 8
  %1227 = vperm.xlu0 %1226, %v70
  %v1228 = vpop.permute.xlu0 %1227
  %1230 = vset.pattern.permute.xlu0 8
  %1231 = vperm.xlu0 %1230, %v71
  %v1232 = vpop.permute.xlu0 %1231
  %1234 = vset.pattern.permute.xlu0 8
  %1235 = vperm.xlu0 %1234, %v72
  %v1236 = vpop.permute.xlu0 %1235
  %1238 = vset.pattern.permute.xlu0 8
  %1239 = vperm.xlu0 %1238, %v73
  %v1240 = vpop.permute.xlu0 %1239
  %1242 = vset.pattern.permute.xlu0 8
  %1243 = vperm.xlu0 %1242, %v74
  %v1244 = vpop.permute.xlu0 %1243
  %1246 = vset.pattern.permute.xlu0 8
  %1247 = vperm.xlu0 %1246, %v75
  %v1248 = vpop.permute.xlu0 %1247
  %1250 = vset.pattern.permute.xlu0 8
  %1251 = vperm.xlu0 %1250, %v76
  %v1252 = vpop.permute.xlu0 %1251
  %1254 = vset.pattern.permute.xlu0 8
  %1255 = vperm.xlu0 %1254, %v77
  %v1256 = vpop.permute.xlu0 %1255
  %1258 = vset.pattern.permute.xlu0 8
  %1259 = vperm.xlu0 %1258, %v78
  %v1260 = vpop.permute.xlu0 %1259
  %v1262 = vmul.f32 %v1182, %v1200
  %v1263 = vmul.f32 %v1183, %v1204
  %v1264 = vmul.f32 %v1184, %v1208
  %v1265 = vmul.f32 %v1185, %v1212
  %v1266 = vmul.f32 %v1186, %v1216
  %v1267 = vmul.f32 %v1187, %v1220
  %v1268 = vmul.f32 %v1188, %v1224
  %v1269 = vmul.f32 %v1189, %v1228
  %v1270 = vmul.f32 %v1190, %v1232
  %v1271 = vmul.f32 %v1191, %v1236
  %v1272 = vmul.f32 %v1192, %v1240
  %v1273 = vmul.f32 %v1193, %v1244
  %v1274 = vmul.f32 %v1194, %v1248
  %v1275 = vmul.f32 %v1195, %v1252
  %v1276 = vmul.f32 %v1196, %v1256
  %v1277 = vmul.f32 %v1197, %v1260
  %1294 = vrot.lane.b32.xlu0 %v590, 32
  %v1295 = vpop.permute.xlu0 %1294
  %1296 = vrot.lane.b32.xlu0 %v591, 32
  %v1297 = vpop.permute.xlu0 %1296
  %1298 = vrot.lane.b32.xlu0 %v592, 32
  %v1299 = vpop.permute.xlu0 %1298
  %1300 = vrot.lane.b32.xlu0 %v593, 32
  %v1301 = vpop.permute.xlu0 %1300
  %1302 = vrot.lane.b32.xlu0 %v594, 32
  %v1303 = vpop.permute.xlu0 %1302
  %1304 = vrot.lane.b32.xlu0 %v595, 32
  %v1305 = vpop.permute.xlu0 %1304
  %1306 = vrot.lane.b32.xlu0 %v596, 32
  %v1307 = vpop.permute.xlu0 %1306
  %1308 = vrot.lane.b32.xlu0 %v597, 32
  %v1309 = vpop.permute.xlu0 %1308
  %1310 = vrot.lane.b32.xlu0 %v598, 32
  %v1311 = vpop.permute.xlu0 %1310
  %1312 = vrot.lane.b32.xlu0 %v599, 32
  %v1313 = vpop.permute.xlu0 %1312
  %1314 = vrot.lane.b32.xlu0 %v600, 32
  %v1315 = vpop.permute.xlu0 %1314
  %1316 = vrot.lane.b32.xlu0 %v601, 32
  %v1317 = vpop.permute.xlu0 %1316
  %1318 = vrot.lane.b32.xlu0 %v602, 32
  %v1319 = vpop.permute.xlu0 %1318
  %1320 = vrot.lane.b32.xlu0 %v603, 32
  %v1321 = vpop.permute.xlu0 %1320
  %1322 = vrot.lane.b32.xlu0 %v604, 32
  %v1323 = vpop.permute.xlu0 %1322
  %1324 = vrot.lane.b32.xlu0 %v605, 32
  %v1325 = vpop.permute.xlu0 %1324
  %1358 = vrot.lane.b32.xlu0 %v686, 64
  %v1359 = vpop.permute.xlu0 %1358
  %1360 = vrot.lane.b32.xlu0 %v687, 64
  %v1361 = vpop.permute.xlu0 %1360
  %1362 = vrot.lane.b32.xlu0 %v688, 64
  %v1363 = vpop.permute.xlu0 %1362
  %1364 = vrot.lane.b32.xlu0 %v689, 64
  %v1365 = vpop.permute.xlu0 %1364
  %1366 = vrot.lane.b32.xlu0 %v690, 64
  %v1367 = vpop.permute.xlu0 %1366
  %1368 = vrot.lane.b32.xlu0 %v691, 64
  %v1369 = vpop.permute.xlu0 %1368
  %1370 = vrot.lane.b32.xlu0 %v692, 64
  %v1371 = vpop.permute.xlu0 %1370
  %1372 = vrot.lane.b32.xlu0 %v693, 64
  %v1373 = vpop.permute.xlu0 %1372
  %1374 = vrot.lane.b32.xlu0 %v694, 64
  %v1375 = vpop.permute.xlu0 %1374
  %1376 = vrot.lane.b32.xlu0 %v695, 64
  %v1377 = vpop.permute.xlu0 %1376
  %1378 = vrot.lane.b32.xlu0 %v696, 64
  %v1379 = vpop.permute.xlu0 %1378
  %1380 = vrot.lane.b32.xlu0 %v697, 64
  %v1381 = vpop.permute.xlu0 %1380
  %1382 = vrot.lane.b32.xlu0 %v698, 64
  %v1383 = vpop.permute.xlu0 %1382
  %1384 = vrot.lane.b32.xlu0 %v699, 64
  %v1385 = vpop.permute.xlu0 %1384
  %1386 = vrot.lane.b32.xlu0 %v700, 64
  %v1387 = vpop.permute.xlu0 %1386
  %1388 = vrot.lane.b32.xlu0 %v701, 64
  %v1389 = vpop.permute.xlu0 %1388
  %1422 = vrot.lane.b32.xlu0 %v782, 96
  %v1423 = vpop.permute.xlu0 %1422
  %1424 = vrot.lane.b32.xlu0 %v783, 96
  %v1425 = vpop.permute.xlu0 %1424
  %1426 = vrot.lane.b32.xlu0 %v784, 96
  %v1427 = vpop.permute.xlu0 %1426
  %1428 = vrot.lane.b32.xlu0 %v785, 96
  %v1429 = vpop.permute.xlu0 %1428
  %1430 = vrot.lane.b32.xlu0 %v786, 96
  %v1431 = vpop.permute.xlu0 %1430
  %1432 = vrot.lane.b32.xlu0 %v787, 96
  %v1433 = vpop.permute.xlu0 %1432
  %1434 = vrot.lane.b32.xlu0 %v788, 96
  %v1435 = vpop.permute.xlu0 %1434
  %1436 = vrot.lane.b32.xlu0 %v789, 96
  %v1437 = vpop.permute.xlu0 %1436
  %1438 = vrot.lane.b32.xlu0 %v790, 96
  %v1439 = vpop.permute.xlu0 %1438
  %1440 = vrot.lane.b32.xlu0 %v791, 96
  %v1441 = vpop.permute.xlu0 %1440
  %1442 = vrot.lane.b32.xlu0 %v792, 96
  %v1443 = vpop.permute.xlu0 %1442
  %1444 = vrot.lane.b32.xlu0 %v793, 96
  %v1445 = vpop.permute.xlu0 %1444
  %1446 = vrot.lane.b32.xlu0 %v794, 96
  %v1447 = vpop.permute.xlu0 %1446
  %1448 = vrot.lane.b32.xlu0 %v795, 96
  %v1449 = vpop.permute.xlu0 %1448
  %1450 = vrot.lane.b32.xlu0 %v796, 96
  %v1451 = vpop.permute.xlu0 %1450
  %1452 = vrot.lane.b32.xlu0 %v797, 96
  %v1453 = vpop.permute.xlu0 %1452
  %1486 = vrot.lane.b32.xlu0 %v974, 32
  %v1487 = vpop.permute.xlu0 %1486
  %1488 = vrot.lane.b32.xlu0 %v975, 32
  %v1489 = vpop.permute.xlu0 %1488
  %1490 = vrot.lane.b32.xlu0 %v976, 32
  %v1491 = vpop.permute.xlu0 %1490
  %1492 = vrot.lane.b32.xlu0 %v977, 32
  %v1493 = vpop.permute.xlu0 %1492
  %1494 = vrot.lane.b32.xlu0 %v978, 32
  %v1495 = vpop.permute.xlu0 %1494
  %1496 = vrot.lane.b32.xlu0 %v979, 32
  %v1497 = vpop.permute.xlu0 %1496
  %1498 = vrot.lane.b32.xlu0 %v980, 32
  %v1499 = vpop.permute.xlu0 %1498
  %1500 = vrot.lane.b32.xlu0 %v981, 32
  %v1501 = vpop.permute.xlu0 %1500
  %1502 = vrot.lane.b32.xlu0 %v982, 32
  %v1503 = vpop.permute.xlu0 %1502
  %1504 = vrot.lane.b32.xlu0 %v983, 32
  %v1505 = vpop.permute.xlu0 %1504
  %1506 = vrot.lane.b32.xlu0 %v984, 32
  %v1507 = vpop.permute.xlu0 %1506
  %1508 = vrot.lane.b32.xlu0 %v985, 32
  %v1509 = vpop.permute.xlu0 %1508
  %1510 = vrot.lane.b32.xlu0 %v986, 32
  %v1511 = vpop.permute.xlu0 %1510
  %1512 = vrot.lane.b32.xlu0 %v987, 32
  %v1513 = vpop.permute.xlu0 %1512
  %1514 = vrot.lane.b32.xlu0 %v988, 32
  %v1515 = vpop.permute.xlu0 %1514
  %1516 = vrot.lane.b32.xlu0 %v989, 32
  %v1517 = vpop.permute.xlu0 %1516
  %1550 = vrot.lane.b32.xlu0 %v1070, 64
  %v1551 = vpop.permute.xlu0 %1550
  %1552 = vrot.lane.b32.xlu0 %v1071, 64
  %v1553 = vpop.permute.xlu0 %1552
  %1554 = vrot.lane.b32.xlu0 %v1072, 64
  %v1555 = vpop.permute.xlu0 %1554
  %1556 = vrot.lane.b32.xlu0 %v1073, 64
  %v1557 = vpop.permute.xlu0 %1556
  %1558 = vrot.lane.b32.xlu0 %v1074, 64
  %v1559 = vpop.permute.xlu0 %1558
  %1560 = vrot.lane.b32.xlu0 %v1075, 64
  %v1561 = vpop.permute.xlu0 %1560
  %1562 = vrot.lane.b32.xlu0 %v1076, 64
  %v1563 = vpop.permute.xlu0 %1562
  %1564 = vrot.lane.b32.xlu0 %v1077, 64
  %v1565 = vpop.permute.xlu0 %1564
  %1566 = vrot.lane.b32.xlu0 %v1078, 64
  %v1567 = vpop.permute.xlu0 %1566
  %1568 = vrot.lane.b32.xlu0 %v1079, 64
  %v1569 = vpop.permute.xlu0 %1568
  %1570 = vrot.lane.b32.xlu0 %v1080, 64
  %v1571 = vpop.permute.xlu0 %1570
  %1572 = vrot.lane.b32.xlu0 %v1081, 64
  %v1573 = vpop.permute.xlu0 %1572
  %1574 = vrot.lane.b32.xlu0 %v1082, 64
  %v1575 = vpop.permute.xlu0 %1574
  %1576 = vrot.lane.b32.xlu0 %v1083, 64
  %v1577 = vpop.permute.xlu0 %1576
  %1578 = vrot.lane.b32.xlu0 %v1084, 64
  %v1579 = vpop.permute.xlu0 %1578
  %1580 = vrot.lane.b32.xlu0 %v1085, 64
  %v1581 = vpop.permute.xlu0 %1580
  %1614 = vrot.lane.b32.xlu0 %v1166, 96
  %v1615 = vpop.permute.xlu0 %1614
  %1616 = vrot.lane.b32.xlu0 %v1167, 96
  %v1617 = vpop.permute.xlu0 %1616
  %1618 = vrot.lane.b32.xlu0 %v1168, 96
  %v1619 = vpop.permute.xlu0 %1618
  %1620 = vrot.lane.b32.xlu0 %v1169, 96
  %v1621 = vpop.permute.xlu0 %1620
  %1622 = vrot.lane.b32.xlu0 %v1170, 96
  %v1623 = vpop.permute.xlu0 %1622
  %1624 = vrot.lane.b32.xlu0 %v1171, 96
  %v1625 = vpop.permute.xlu0 %1624
  %1626 = vrot.lane.b32.xlu0 %v1172, 96
  %v1627 = vpop.permute.xlu0 %1626
  %1628 = vrot.lane.b32.xlu0 %v1173, 96
  %v1629 = vpop.permute.xlu0 %1628
  %1630 = vrot.lane.b32.xlu0 %v1174, 96
  %v1631 = vpop.permute.xlu0 %1630
  %1632 = vrot.lane.b32.xlu0 %v1175, 96
  %v1633 = vpop.permute.xlu0 %1632
  %1634 = vrot.lane.b32.xlu0 %v1176, 96
  %v1635 = vpop.permute.xlu0 %1634
  %1636 = vrot.lane.b32.xlu0 %v1177, 96
  %v1637 = vpop.permute.xlu0 %1636
  %1638 = vrot.lane.b32.xlu0 %v1178, 96
  %v1639 = vpop.permute.xlu0 %1638
  %1640 = vrot.lane.b32.xlu0 %v1179, 96
  %v1641 = vpop.permute.xlu0 %1640
  %1642 = vrot.lane.b32.xlu0 %v1180, 96
  %v1643 = vpop.permute.xlu0 %1642
  %1644 = vrot.lane.b32.xlu0 %v1181, 96
  %v1645 = vpop.permute.xlu0 %1644
  %v1662 = vsel %vm42, %v494, %v1295
  %v1663 = vsel %vm42, %v495, %v1297
  %v1664 = vsel %vm42, %v496, %v1299
  %v1665 = vsel %vm42, %v497, %v1301
  %v1666 = vsel %vm42, %v498, %v1303
  %v1667 = vsel %vm42, %v499, %v1305
  %v1668 = vsel %vm42, %v500, %v1307
  %v1669 = vsel %vm42, %v501, %v1309
  %v1670 = vsel %vm42, %v502, %v1311
  %v1671 = vsel %vm42, %v503, %v1313
  %v1672 = vsel %vm42, %v504, %v1315
  %v1673 = vsel %vm42, %v505, %v1317
  %v1674 = vsel %vm42, %v506, %v1319
  %v1675 = vsel %vm42, %v507, %v1321
  %v1676 = vsel %vm42, %v508, %v1323
  %v1677 = vsel %vm42, %v509, %v1325
  %vm1678 = vcmask 523264
  %v1679 = vsel %vm1678, %v1662, %v1359
  %v1680 = vsel %vm1678, %v1663, %v1361
  %v1681 = vsel %vm1678, %v1664, %v1363
  %v1682 = vsel %vm1678, %v1665, %v1365
  %v1683 = vsel %vm1678, %v1666, %v1367
  %v1684 = vsel %vm1678, %v1667, %v1369
  %v1685 = vsel %vm1678, %v1668, %v1371
  %v1686 = vsel %vm1678, %v1669, %v1373
  %v1687 = vsel %vm1678, %v1670, %v1375
  %v1688 = vsel %vm1678, %v1671, %v1377
  %v1689 = vsel %vm1678, %v1672, %v1379
  %v1690 = vsel %vm1678, %v1673, %v1381
  %v1691 = vsel %vm1678, %v1674, %v1383
  %v1692 = vsel %vm1678, %v1675, %v1385
  %v1693 = vsel %vm1678, %v1676, %v1387
  %v1694 = vsel %vm1678, %v1677, %v1389
  %vm1695 = vcmask 785408
  %v1696 = vsel %vm1695, %v1679, %v1423
  %v1697 = vsel %vm1695, %v1680, %v1425
  %v1698 = vsel %vm1695, %v1681, %v1427
  %v1699 = vsel %vm1695, %v1682, %v1429
  %v1700 = vsel %vm1695, %v1683, %v1431
  %v1701 = vsel %vm1695, %v1684, %v1433
  %v1702 = vsel %vm1695, %v1685, %v1435
  %v1703 = vsel %vm1695, %v1686, %v1437
  %v1704 = vsel %vm1695, %v1687, %v1439
  %v1705 = vsel %vm1695, %v1688, %v1441
  %v1706 = vsel %vm1695, %v1689, %v1443
  %v1707 = vsel %vm1695, %v1690, %v1445
  %v1708 = vsel %vm1695, %v1691, %v1447
  %v1709 = vsel %vm1695, %v1692, %v1449
  %v1710 = vsel %vm1695, %v1693, %v1451
  %v1711 = vsel %vm1695, %v1694, %v1453
  %v1712 = vsel %vm42, %v878, %v1487
  %v1713 = vsel %vm42, %v879, %v1489
  %v1714 = vsel %vm42, %v880, %v1491
  %v1715 = vsel %vm42, %v881, %v1493
  %v1716 = vsel %vm42, %v882, %v1495
  %v1717 = vsel %vm42, %v883, %v1497
  %v1718 = vsel %vm42, %v884, %v1499
  %v1719 = vsel %vm42, %v885, %v1501
  %v1720 = vsel %vm42, %v886, %v1503
  %v1721 = vsel %vm42, %v887, %v1505
  %v1722 = vsel %vm42, %v888, %v1507
  %v1723 = vsel %vm42, %v889, %v1509
  %v1724 = vsel %vm42, %v890, %v1511
  %v1725 = vsel %vm42, %v891, %v1513
  %v1726 = vsel %vm42, %v892, %v1515
  %v1727 = vsel %vm42, %v893, %v1517
  %v1728 = vsel %vm1678, %v1712, %v1551
  %v1729 = vsel %vm1678, %v1713, %v1553
  %v1730 = vsel %vm1678, %v1714, %v1555
  %v1731 = vsel %vm1678, %v1715, %v1557
  %v1732 = vsel %vm1678, %v1716, %v1559
  %v1733 = vsel %vm1678, %v1717, %v1561
  %v1734 = vsel %vm1678, %v1718, %v1563
  %v1735 = vsel %vm1678, %v1719, %v1565
  %v1736 = vsel %vm1678, %v1720, %v1567
  %v1737 = vsel %vm1678, %v1721, %v1569
  %v1738 = vsel %vm1678, %v1722, %v1571
  %v1739 = vsel %vm1678, %v1723, %v1573
  %v1740 = vsel %vm1678, %v1724, %v1575
  %v1741 = vsel %vm1678, %v1725, %v1577
  %v1742 = vsel %vm1678, %v1726, %v1579
  %v1743 = vsel %vm1678, %v1727, %v1581
  %v1744 = vsel %vm1695, %v1728, %v1615
  %v1745 = vsel %vm1695, %v1729, %v1617
  %v1746 = vsel %vm1695, %v1730, %v1619
  %v1747 = vsel %vm1695, %v1731, %v1621
  %v1748 = vsel %vm1695, %v1732, %v1623
  %v1749 = vsel %vm1695, %v1733, %v1625
  %v1750 = vsel %vm1695, %v1734, %v1627
  %v1751 = vsel %vm1695, %v1735, %v1629
  %v1752 = vsel %vm1695, %v1736, %v1631
  %v1753 = vsel %vm1695, %v1737, %v1633
  %v1754 = vsel %vm1695, %v1738, %v1635
  %v1755 = vsel %vm1695, %v1739, %v1637
  %v1756 = vsel %vm1695, %v1740, %v1639
  %v1757 = vsel %vm1695, %v1741, %v1641
  %v1758 = vsel %vm1695, %v1742, %v1643
  %v1759 = vsel %vm1695, %v1743, %v1645
  %v1760 = vpack.c.bf16 %v1697, %v1696
  %v1761 = vpack.c.bf16 %v1745, %v1744
  %v1762 = vpack.c.bf16 %v1263, %v1262
  %v1763 = vpack.c.bf16 %v1699, %v1698
  %v1764 = vpack.c.bf16 %v1747, %v1746
  %v1765 = vpack.c.bf16 %v1265, %v1264
  %v1766 = vpack.c.bf16 %v1701, %v1700
  %v1767 = vpack.c.bf16 %v1749, %v1748
  %v1768 = vpack.c.bf16 %v1267, %v1266
  %v1769 = vpack.c.bf16 %v1703, %v1702
  %v1770 = vpack.c.bf16 %v1751, %v1750
  %v1771 = vpack.c.bf16 %v1269, %v1268
  %v1772 = vpack.c.bf16 %v1705, %v1704
  %v1773 = vpack.c.bf16 %v1753, %v1752
  %v1774 = vpack.c.bf16 %v1271, %v1270
  %v1775 = vpack.c.bf16 %v1707, %v1706
  %v1776 = vpack.c.bf16 %v1755, %v1754
  %v1777 = vpack.c.bf16 %v1273, %v1272
  %v1778 = vpack.c.bf16 %v1709, %v1708
  %v1779 = vpack.c.bf16 %v1757, %v1756
  %v1780 = vpack.c.bf16 %v1275, %v1274
  %v1781 = vpack.c.bf16 %v1711, %v1710
  %v1782 = vpack.c.bf16 %v1759, %v1758
  %v1783 = vpack.c.bf16 %v1277, %v1276
  %v1784 = vld [vmem:[%s4] sm:$0xf]
  %v1785 = vld [vmem:[%s4 + $0x4] sm:$0xf]
  %v1786 = vld [vmem:[%s4 + $0x8] sm:$0xf]
  %v1787 = vld [vmem:[%s4 + $0xc] sm:$0xf]
  %v1788 = vld [vmem:[%s4 + $0x10] sm:$0xf]
  %v1789 = vld [vmem:[%s4 + $0x14] sm:$0xf]
  %v1790 = vld [vmem:[%s4 + $0x18] sm:$0xf]
  %v1791 = vld [vmem:[%s4 + $0x1c] sm:$0xf]
  %v1792 = vld [vmem:[%s4 + $0x20] sm:$0xf]
  %v1793 = vld [vmem:[%s4 + $0x24] sm:$0xf]
  %v1794 = vld [vmem:[%s4 + $0x28] sm:$0xf]
  %v1795 = vld [vmem:[%s4 + $0x2c] sm:$0xf]
  %v1796 = vld [vmem:[%s4 + $0x30] sm:$0xf]
  %v1797 = vld [vmem:[%s4 + $0x34] sm:$0xf]
  %v1798 = vld [vmem:[%s4 + $0x38] sm:$0xf]
  %v1799 = vld [vmem:[%s4 + $0x3c] sm:$0xf]
  %v1800 = vld [vmem:[%s4 + $0x40] sm:$0xf]
  %v1801 = vld [vmem:[%s4 + $0x44] sm:$0xf]
  %v1802 = vld [vmem:[%s4 + $0x48] sm:$0xf]
  %v1803 = vld [vmem:[%s4 + $0x4c] sm:$0xf]
  %v1804 = vld [vmem:[%s4 + $0x50] sm:$0xf]
  %v1805 = vld [vmem:[%s4 + $0x54] sm:$0xf]
  %v1806 = vld [vmem:[%s4 + $0x58] sm:$0xf]
  %v1807 = vld [vmem:[%s4 + $0x5c] sm:$0xf]
  %v1808 = vld [vmem:[%s4 + $0x60] sm:$0xf]
  %v1809 = vld [vmem:[%s4 + $0x64] sm:$0xf]
  %v1810 = vld [vmem:[%s4 + $0x68] sm:$0xf]
  %v1811 = vld [vmem:[%s4 + $0x6c] sm:$0xf]
  %v1812 = vld [vmem:[%s4 + $0x70] sm:$0xf]
  %v1813 = vld [vmem:[%s4 + $0x74] sm:$0xf]
  %v1814 = vld [vmem:[%s4 + $0x78] sm:$0xf]
  %v1815 = vld [vmem:[%s4 + $0x7c] sm:$0xf]
  %v1816 = vld [vmem:[%s4 + $0x80] sm:$0xf]
  %v1817 = vld [vmem:[%s4 + $0x84] sm:$0xf]
  %v1818 = vld [vmem:[%s4 + $0x88] sm:$0xf]
  %v1819 = vld [vmem:[%s4 + $0x8c] sm:$0xf]
  %v1820 = vld [vmem:[%s5] sm:$0x1]
  %v1822 = vlaneseq
  %v1823 = vshrl.u32 %v1822, 7
  %v1824 = vsub.s32 0, %v1823
  %v1825 = vrot.slane %v1820, %v1824
  %v1863 = vunpack.c.l.b16 %v1784
  %v1864 = vunpack.c.l.b16 %v1785
  %v1865 = vunpack.c.l.b16 %v1786
  %v1866 = vunpack.c.l.b16 %v1787
  %v1867 = vunpack.c.l.b16 %v1788
  %v1868 = vunpack.c.l.b16 %v1789
  %v1869 = vunpack.c.l.b16 %v1790
  %v1870 = vunpack.c.l.b16 %v1791
  %v1871 = vunpack.c.l.b16 %v1792
  %v1872 = vunpack.c.l.b16 %v1793
  %v1873 = vunpack.c.l.b16 %v1794
  %v1874 = vunpack.c.l.b16 %v1795
  %v1875 = vunpack.c.l.b16 %v1796
  %v1876 = vunpack.c.l.b16 %v1797
  %v1877 = vunpack.c.l.b16 %v1798
  %v1878 = vunpack.c.l.b16 %v1799
  %v1879 = vunpack.c.l.b16 %v1800
  %v1880 = vunpack.c.l.b16 %v1801
  %v1881 = vunpack.c.l.b16 %v1802
  %v1882 = vunpack.c.l.b16 %v1803
  %v1883 = vunpack.c.l.b16 %v1804
  %v1884 = vunpack.c.l.b16 %v1805
  %v1885 = vunpack.c.l.b16 %v1806
  %v1886 = vunpack.c.l.b16 %v1807
  %v1887 = vunpack.c.l.b16 %v1808
  %v1888 = vunpack.c.l.b16 %v1809
  %v1889 = vunpack.c.l.b16 %v1810
  %v1890 = vunpack.c.l.b16 %v1811
  %v1891 = vunpack.c.l.b16 %v1812
  %v1892 = vunpack.c.l.b16 %v1813
  %v1893 = vunpack.c.l.b16 %v1814
  %v1894 = vunpack.c.l.b16 %v1815
  %v1895 = vunpack.c.l.b16 %v1816
  %v1896 = vunpack.c.l.b16 %v1817
  %v1897 = vunpack.c.l.b16 %v1818
  %v1898 = vunpack.c.l.b16 %v1819
  %v1899 = vpack.c.b16 %v1864, %v1863
  %v1900 = vpack.c.b16 %v1866, %v1865
  %v1901 = vpack.c.b16 %v1868, %v1867
  %v1902 = vpack.c.b16 %v1870, %v1869
  %v1903 = vpack.c.b16 %v1872, %v1871
  %v1904 = vpack.c.b16 %v1874, %v1873
  %v1905 = vpack.c.b16 %v1876, %v1875
  %v1906 = vpack.c.b16 %v1878, %v1877
  %v1907 = vpack.c.b16 %v1880, %v1879
  %v1908 = vpack.c.b16 %v1882, %v1881
  %v1909 = vpack.c.b16 %v1884, %v1883
  %v1910 = vpack.c.b16 %v1886, %v1885
  %v1911 = vpack.c.b16 %v1888, %v1887
  %v1912 = vpack.c.b16 %v1890, %v1889
  %v1913 = vpack.c.b16 %v1892, %v1891
  %v1914 = vpack.c.b16 %v1894, %v1893
  %v1915 = vpack.c.b16 %v1896, %v1895
  %v1916 = vpack.c.b16 %v1898, %v1897
  %v1936 = vsel %vm42, %v1762, 0
  %v1939 = vsel %vm42, %v1765, 0
  %v1942 = vsel %vm42, %v1768, 0
  %v1945 = vsel %vm42, %v1771, 0
  %v1948 = vsel %vm42, %v1774, 0
  %v1951 = vsel %vm42, %v1777, 0
  %v1954 = vsel %vm42, %v1780, 0
  %v1957 = vsel %vm42, %v1783, 0
  %1959 = vmatprep.subr.bf16.mxu0 0
  %1960 = vmatpush1.bf16.msra.mxu0 %v1899
  %1961 = vmatprep.subr.bf16.mxu0 0
  %1962 = vmatpush1.bf16.msra.mxu0 %v1900
  %1963 = vmatprep.subr.bf16.mxu0 0
  %1964 = vmatpush1.bf16.msra.mxu0 %v1901
  %1965 = vmatprep.subr.bf16.mxu0 0
  %1966 = vmatpush1.bf16.msra.mxu0 %v1902
  %1967 = vmatprep.subr.bf16.mxu0 0
  %1968 = vmatpush1.bf16.msra.mxu0 %v1903
  %1969 = vmatprep.subr.bf16.mxu0 0
  %1970 = vmatpush1.bf16.msra.mxu0 %v1904
  %1971 = vmatprep.subr.bf16.mxu0 0
  %1972 = vmatpush1.bf16.msra.mxu0 %v1905
  %1973 = vmatprep.subr.bf16.mxu0 0
  %1974 = vmatpush1.bf16.msra.mxu0 %v1906
  %1975 = vmatprep.subr.bf16.mxu0 0
  %1976 = vmatpush1.bf16.msra.mxu0 %v1907
  %1977 = vmatprep.subr.bf16.mxu0 0
  %1978 = vmatpush1.bf16.msra.mxu0 %v1908
  %1979 = vmatprep.subr.bf16.mxu0 0
  %1980 = vmatpush1.bf16.msra.mxu0 %v1909
  %1981 = vmatprep.subr.bf16.mxu0 0
  %1982 = vmatpush1.bf16.msra.mxu0 %v1910
  %1983 = vmatprep.subr.bf16.mxu0 0
  %1984 = vmatpush1.bf16.msra.mxu0 %v1911
  %1985 = vmatprep.subr.bf16.mxu0 0
  %1986 = vmatpush1.bf16.msra.mxu0 %v1912
  %1987 = vmatprep.subr.bf16.mxu0 0
  %1988 = vmatpush1.bf16.msra.mxu0 %v1913
  %1989 = vmatprep.subr.bf16.mxu0 0
  %1990 = vmatpush1.bf16.msra.mxu0 %v1914
  %1991 = vmatprep.mubr.bf16.mxu0 %v1761
  %1992 = vmatmul.mubr.bf16.gmra.mrb[0].mxu0 %v1760
  %v1993 = vpop.f32.mrb[0].mxu0
  %v1994 = vadd.f32 %v1825, %v1993
  %v1995 = vpop.f32.mrb[0].mxu0
  %v1996 = vpop.f32.mrb[0].mxu0
  %v1997 = vadd.f32 %v1825, %v1996
  %v1998 = vpop.f32.mrb[0].mxu0
  %1999 = vmatprep.mubr.bf16.mxu0 %v1764
  %2000 = vmatmul.mubr.bf16.gmra.mrb[0].mxu0 %v1763
  %v2001 = vpop.f32.mrb[0].mxu0
  %v2002 = vadd.f32 %v1825, %v2001
  %v2003 = vpop.f32.mrb[0].mxu0
  %v2004 = vpop.f32.mrb[0].mxu0
  %v2005 = vadd.f32 %v1825, %v2004
  %v2006 = vpop.f32.mrb[0].mxu0
  %2007 = vmatprep.mubr.bf16.mxu0 %v1767
  %2008 = vmatmul.mubr.bf16.gmra.mrb[0].mxu0 %v1766
  %v2009 = vpop.f32.mrb[0].mxu0
  %v2010 = vadd.f32 %v1825, %v2009
  %v2011 = vpop.f32.mrb[0].mxu0
  %v2012 = vpop.f32.mrb[0].mxu0
  %v2013 = vadd.f32 %v1825, %v2012
  %v2014 = vpop.f32.mrb[0].mxu0
  %2015 = vmatprep.mubr.bf16.mxu0 %v1770
  %2016 = vmatmul.mubr.bf16.gmra.mrb[0].mxu0 %v1769
  %v2017 = vpop.f32.mrb[0].mxu0
  %v2018 = vadd.f32 %v1825, %v2017
  %v2019 = vpop.f32.mrb[0].mxu0
  %v2020 = vpop.f32.mrb[0].mxu0
  %v2021 = vadd.f32 %v1825, %v2020
  %v2022 = vpop.f32.mrb[0].mxu0
  %2023 = vmatprep.mubr.bf16.mxu0 %v1773
  %2024 = vmatmul.mubr.bf16.gmra.mrb[0].mxu0 %v1772
  %v2025 = vpop.f32.mrb[0].mxu0
  %v2026 = vadd.f32 %v1825, %v2025
  %v2027 = vpop.f32.mrb[0].mxu0
  %v2028 = vpop.f32.mrb[0].mxu0
  %v2029 = vadd.f32 %v1825, %v2028
  %v2030 = vpop.f32.mrb[0].mxu0
  %2031 = vmatprep.mubr.bf16.mxu0 %v1776
  %2032 = vmatmul.mubr.bf16.gmra.mrb[0].mxu0 %v1775
  %v2033 = vpop.f32.mrb[0].mxu0
  %v2034 = vadd.f32 %v1825, %v2033
  %v2035 = vpop.f32.mrb[0].mxu0
  %v2036 = vpop.f32.mrb[0].mxu0
  %v2037 = vadd.f32 %v1825, %v2036
  %v2038 = vpop.f32.mrb[0].mxu0
  %2039 = vmatprep.mubr.bf16.mxu0 %v1779
  %2040 = vmatmul.mubr.bf16.gmra.mrb[0].mxu0 %v1778
  %v2041 = vpop.f32.mrb[0].mxu0
  %v2042 = vadd.f32 %v1825, %v2041
  %v2043 = vpop.f32.mrb[0].mxu0
  %v2044 = vpop.f32.mrb[0].mxu0
  %v2045 = vadd.f32 %v1825, %v2044
  %v2046 = vpop.f32.mrb[0].mxu0
  %2047 = vmatprep.mubr.bf16.mxu0 %v1782
  %2048 = vmatmul.mubr.bf16.gmra.mrb[0].mxu0 %v1781
  %v2049 = vpop.f32.mrb[0].mxu0
  %v2050 = vadd.f32 %v1825, %v2049
  %v2051 = vpop.f32.mrb[0].mxu0
  %v2052 = vpop.f32.mrb[0].mxu0
  %v2053 = vadd.f32 %v1825, %v2052
  %v2054 = vpop.f32.mrb[0].mxu0
  %2055 = vdwg.mxu0
  %2056 = vmatprep.subr.bf16.mxu0 0
  %2057 = vmatpush1.bf16.msra.mxu0 %v1915
  %2058 = vmatprep.subr.bf16.mxu0 0
  %2059 = vmatpush1.bf16.msra.mxu0 %v1916
  %2060 = vmatprep.subr.bf16.mxu0 0
  %2061 = vmatpush1.bf16.msra.mxu0 0
  %2062 = vmatprep.subr.bf16.mxu0 0
  %2063 = vmatpush1.bf16.msra.mxu0 0
  %2064 = vmatprep.subr.bf16.mxu0 0
  %2065 = vmatpush1.bf16.msra.mxu0 0
  %2066 = vmatprep.subr.bf16.mxu0 0
  %2067 = vmatpush1.bf16.msra.mxu0 0
  %2068 = vmatprep.subr.bf16.mxu0 0
  %2069 = vmatpush1.bf16.msra.mxu0 0
  %2070 = vmatprep.subr.bf16.mxu0 0
  %2071 = vmatpush1.bf16.msra.mxu0 0
  %2072 = vmatprep.subr.bf16.mxu0 0
  %2073 = vmatpush1.bf16.msra.mxu0 0
  %2074 = vmatprep.subr.bf16.mxu0 0
  %2075 = vmatpush1.bf16.msra.mxu0 0
  %2076 = vmatprep.subr.bf16.mxu0 0
  %2077 = vmatpush1.bf16.msra.mxu0 0
  %2078 = vmatprep.subr.bf16.mxu0 0
  %2079 = vmatpush1.bf16.msra.mxu0 0
  %2080 = vmatprep.subr.bf16.mxu0 0
  %2081 = vmatpush1.bf16.msra.mxu0 0
  %2082 = vmatprep.subr.bf16.mxu0 0
  %2083 = vmatpush1.bf16.msra.mxu0 0
  %2084 = vmatprep.subr.bf16.mxu0 0
  %2085 = vmatpush1.bf16.msra.mxu0 0
  %2086 = vmatprep.subr.bf16.mxu0 0
  %2087 = vmatpush1.bf16.msra.mxu0 0
  %2088 = vmatprep.mubr.bf16.mxu0 0
  %2089 = vmatmul.mubr.bf16.gmra.mrb[0].mxu0 %v1936
  %v2090 = vpop.f32.mrb[0].mxu0
  %v2091 = vadd.f32 %v1994, %v2090
  %v2092 = vpop.f32.mrb[0].mxu0
  %v2093 = vpop.f32.mrb[0].mxu0
  %v2094 = vadd.f32 %v1997, %v2093
  %v2095 = vpop.f32.mrb[0].mxu0
  %2096 = vmatprep.mubr.bf16.mxu0 0
  %2097 = vmatmul.mubr.bf16.gmra.mrb[0].mxu0 %v1939
  %v2098 = vpop.f32.mrb[0].mxu0
  %v2099 = vadd.f32 %v2002, %v2098
  %v2100 = vpop.f32.mrb[0].mxu0
  %v2101 = vpop.f32.mrb[0].mxu0
  %v2102 = vadd.f32 %v2005, %v2101
  %v2103 = vpop.f32.mrb[0].mxu0
  %2104 = vmatprep.mubr.bf16.mxu0 0
  %2105 = vmatmul.mubr.bf16.gmra.mrb[0].mxu0 %v1942
  %v2106 = vpop.f32.mrb[0].mxu0
  %v2107 = vadd.f32 %v2010, %v2106
  %v2108 = vpop.f32.mrb[0].mxu0
  %v2109 = vpop.f32.mrb[0].mxu0
  %v2110 = vadd.f32 %v2013, %v2109
  %v2111 = vpop.f32.mrb[0].mxu0
  %2112 = vmatprep.mubr.bf16.mxu0 0
  %2113 = vmatmul.mubr.bf16.gmra.mrb[0].mxu0 %v1945
  %v2114 = vpop.f32.mrb[0].mxu0
  %v2115 = vadd.f32 %v2018, %v2114
  %v2116 = vpop.f32.mrb[0].mxu0
  %v2117 = vpop.f32.mrb[0].mxu0
  %v2118 = vadd.f32 %v2021, %v2117
  %v2119 = vpop.f32.mrb[0].mxu0
  %2120 = vmatprep.mubr.bf16.mxu0 0
  %2121 = vmatmul.mubr.bf16.gmra.mrb[0].mxu0 %v1948
  %v2122 = vpop.f32.mrb[0].mxu0
  %v2123 = vadd.f32 %v2026, %v2122
  %v2124 = vpop.f32.mrb[0].mxu0
  %v2125 = vpop.f32.mrb[0].mxu0
  %v2126 = vadd.f32 %v2029, %v2125
  %v2127 = vpop.f32.mrb[0].mxu0
  %2128 = vmatprep.mubr.bf16.mxu0 0
  %2129 = vmatmul.mubr.bf16.gmra.mrb[0].mxu0 %v1951
  %v2130 = vpop.f32.mrb[0].mxu0
  %v2131 = vadd.f32 %v2034, %v2130
  %v2132 = vpop.f32.mrb[0].mxu0
  %v2133 = vpop.f32.mrb[0].mxu0
  %v2134 = vadd.f32 %v2037, %v2133
  %v2135 = vpop.f32.mrb[0].mxu0
  %2136 = vmatprep.mubr.bf16.mxu0 0
  %2137 = vmatmul.mubr.bf16.gmra.mrb[0].mxu0 %v1954
  %v2138 = vpop.f32.mrb[0].mxu0
  %v2139 = vadd.f32 %v2042, %v2138
  %v2140 = vpop.f32.mrb[0].mxu0
  %v2141 = vpop.f32.mrb[0].mxu0
  %v2142 = vadd.f32 %v2045, %v2141
  %v2143 = vpop.f32.mrb[0].mxu0
  %2144 = vmatprep.mubr.bf16.mxu0 0
  %2145 = vmatmul.mubr.bf16.gmra.mrb[0].mxu0 %v1957
  %v2146 = vpop.f32.mrb[0].mxu0
  %v2147 = vadd.f32 %v2050, %v2146
  %v2148 = vpop.f32.mrb[0].mxu0
  %v2149 = vpop.f32.mrb[0].mxu0
  %v2150 = vadd.f32 %v2053, %v2149
  %v2151 = vpop.f32.mrb[0].mxu0
  %2152 = vdwg.mxu0
  %v2153 = vpack.c.bf16 %v2094, %v2091
  %v2154 = vpack.c.bf16 %v2102, %v2099
  %v2155 = vpack.c.bf16 %v2110, %v2107
  %v2156 = vpack.c.bf16 %v2118, %v2115
  %2161 = vrot.lane.b32.xlu0 %v2153, 96
  %v2162 = vpop.permute.xlu0 %2161
  %2163 = vrot.lane.b32.xlu0 %v2154, 96
  %v2164 = vpop.permute.xlu0 %2163
  %2165 = vrot.lane.b32.xlu0 %v2155, 96
  %v2166 = vpop.permute.xlu0 %2165
  %2167 = vrot.lane.b32.xlu0 %v2156, 96
  %v2168 = vpop.permute.xlu0 %2167
  %vm2169 = vcmask 130048
  %v2171 = vsel %vm2169, %v2153, 0
  %v2174 = vsel %vm2169, %v2154, 0
  %v2177 = vsel %vm2169, %v2155, 0
  %v2180 = vsel %vm2169, %v2156, 0
  %v2183 = vsel %vm2169, %v2162, 0
  %v2186 = vsel %vm2169, %v2164, 0
  %v2189 = vsel %vm2169, %v2166, 0
  %v2192 = vsel %vm2169, %v2168, 0
  %2194 = vmatprep.subr.bf16.mxu0 0
  %2195 = vmatpush1.bf16.xpose.msra.mxu0 %v2183
  %2196 = vmatprep.subr.bf16.mxu0 0
  %2197 = vmatpush1.bf16.xpose.msra.mxu0 %v2186
  %2198 = vmatprep.subr.bf16.mxu0 0
  %2199 = vmatpush1.bf16.xpose.msra.mxu0 %v2189
  %2200 = vmatprep.subr.bf16.mxu0 0
  %2201 = vmatpush1.bf16.xpose.msra.mxu0 %v2192
  %2202 = vmatprep.subr.bf16.mxu0 0
  %2203 = vmatpush1.bf16.xpose.msra.mxu0 0
  %2204 = vmatprep.subr.bf16.mxu0 0
  %2205 = vmatpush1.bf16.xpose.msra.mxu0 0
  %2206 = vmatprep.subr.bf16.mxu0 0
  %2207 = vmatpush1.bf16.xpose.msra.mxu0 0
  %2208 = vmatprep.subr.bf16.mxu0 0
  %2209 = vmatpush1.bf16.xpose.msra.mxu0 0
  %2210 = vmatprep.subr.bf16.mxu0 0
  %2211 = vmatpush1.bf16.xpose.msra.mxu0 0
  %2212 = vmatprep.subr.bf16.mxu0 0
  %2213 = vmatpush1.bf16.xpose.msra.mxu0 0
  %2214 = vmatprep.subr.bf16.mxu0 0
  %2215 = vmatpush1.bf16.xpose.msra.mxu0 0
  %2216 = vmatprep.subr.bf16.mxu0 0
  %2217 = vmatpush1.bf16.xpose.msra.mxu0 0
  %2218 = vmatprep.subr.bf16.mxu0 0
  %2219 = vmatpush1.bf16.xpose.msra.mxu0 0
  %2220 = vmatprep.subr.bf16.mxu0 0
  %2221 = vmatpush1.bf16.xpose.msra.mxu0 0
  %2222 = vmatprep.subr.bf16.mxu0 0
  %2223 = vmatpush1.bf16.xpose.msra.mxu0 0
  %2224 = vmatprep.subr.bf16.mxu0 0
  %2225 = vmatpush1.bf16.xpose.msra.mxu0 0
  %2226 = vmatprep.mubr.bf16.mxu0 0
  %2227 = vmatmul.mubr.bf16.gmra.mrb[0].mxu0 %v2171
  %v2228 = vpop.f32.mrb[0].mxu0
  %v2229 = vadd.f32 0.0, %v2228
  %v2230 = vpop.f32.mrb[0].mxu0
  %v2231 = vpop.f32.mrb[0].mxu0
  %v2232 = vadd.f32 0.0, %v2231
  %v2233 = vpop.f32.mrb[0].mxu0
  %2234 = vmatprep.mubr.bf16.mxu0 0
  %2235 = vmatmul.mubr.bf16.gmra.mrb[0].mxu0 %v2174
  %v2236 = vpop.f32.mrb[0].mxu0
  %v2237 = vadd.f32 0.0, %v2236
  %v2238 = vpop.f32.mrb[0].mxu0
  %v2239 = vpop.f32.mrb[0].mxu0
  %v2240 = vadd.f32 0.0, %v2239
  %v2241 = vpop.f32.mrb[0].mxu0
  %2242 = vmatprep.mubr.bf16.mxu0 0
  %2243 = vmatmul.mubr.bf16.gmra.mrb[0].mxu0 %v2177
  %v2244 = vpop.f32.mrb[0].mxu0
  %v2245 = vadd.f32 0.0, %v2244
  %v2246 = vpop.f32.mrb[0].mxu0
  %v2247 = vpop.f32.mrb[0].mxu0
  %v2248 = vadd.f32 0.0, %v2247
  %v2249 = vpop.f32.mrb[0].mxu0
  %2250 = vmatprep.mubr.bf16.mxu0 0
  %2251 = vmatmul.mubr.bf16.gmra.mrb[0].mxu0 %v2180
  %v2252 = vpop.f32.mrb[0].mxu0
  %v2253 = vadd.f32 0.0, %v2252
  %v2254 = vpop.f32.mrb[0].mxu0
  %v2255 = vpop.f32.mrb[0].mxu0
  %v2256 = vadd.f32 0.0, %v2255
  %v2257 = vpop.f32.mrb[0].mxu0
  %2258 = vdwg.mxu0
  %v2259 = vsel %vm1678, %v2229, -inf
  %2260 = vmax.xlane.f32.xlu0 %v2259
  %v2261 = vpop.xlane.xlu0 %2260
  %v2262 = vsel %vm1678, %v2232, -inf
  %2263 = vmax.xlane.f32.xlu0 %v2262
  %v2264 = vpop.xlane.xlu0 %2263
  %v2265 = vsel %vm1678, %v2237, -inf
  %2266 = vmax.xlane.f32.xlu0 %v2265
  %v2267 = vpop.xlane.xlu0 %2266
  %v2268 = vsel %vm1678, %v2240, -inf
  %2269 = vmax.xlane.f32.xlu0 %v2268
  %v2270 = vpop.xlane.xlu0 %2269
  %v2271 = vsel %vm1678, %v2245, -inf
  %2272 = vmax.xlane.f32.xlu0 %v2271
  %v2273 = vpop.xlane.xlu0 %2272
  %v2274 = vsel %vm1678, %v2248, -inf
  %2275 = vmax.xlane.f32.xlu0 %v2274
  %v2276 = vpop.xlane.xlu0 %2275
  %v2277 = vsel %vm1678, %v2253, -inf
  %2278 = vmax.xlane.f32.xlu0 %v2277
  %v2279 = vpop.xlane.xlu0 %2278
  %v2280 = vsel %vm1678, %v2256, -inf
  %2281 = vmax.xlane.f32.xlu0 %v2280
  %v2282 = vpop.xlane.xlu0 %2281
  %v2283 = vsub.f32 %v2229, %v2261
  %v2284 = vsub.f32 %v2232, %v2264
  %v2285 = vsub.f32 %v2237, %v2267
  %v2286 = vsub.f32 %v2240, %v2270
  %v2287 = vsub.f32 %v2245, %v2273
  %v2288 = vsub.f32 %v2248, %v2276
  %v2289 = vsub.f32 %v2253, %v2279
  %v2290 = vsub.f32 %v2256, %v2282
  %v2291 = vmul.f32 %v2283, 1.442695
  %v2292 = vpow.pop %v2291
  %v2293 = vmul.f32 %v2284, 1.442695
  %v2294 = vpow.pop %v2293
  %v2295 = vmul.f32 %v2285, 1.442695
  %v2296 = vpow.pop %v2295
  %v2297 = vmul.f32 %v2286, 1.442695
  %v2298 = vpow.pop %v2297
  %v2299 = vmul.f32 %v2287, 1.442695
  %v2300 = vpow.pop %v2299
  %v2301 = vmul.f32 %v2288, 1.442695
  %v2302 = vpow.pop %v2301
  %v2303 = vmul.f32 %v2289, 1.442695
  %v2304 = vpow.pop %v2303
  %v2305 = vmul.f32 %v2290, 1.442695
  %v2306 = vpow.pop %v2305
  %v2307 = vsel %vm1678, %v2292, 0.0
  %2308 = vadd.xlane.f32.xlu0 %v2307
  %v2309 = vpop.xlane.xlu0 %2308
  %v2310 = vsel %vm1678, %v2294, 0.0
  %2311 = vadd.xlane.f32.xlu0 %v2310
  %v2312 = vpop.xlane.xlu0 %2311
  %v2313 = vsel %vm1678, %v2296, 0.0
  %2314 = vadd.xlane.f32.xlu0 %v2313
  %v2315 = vpop.xlane.xlu0 %2314
  %v2316 = vsel %vm1678, %v2298, 0.0
  %2317 = vadd.xlane.f32.xlu0 %v2316
  %v2318 = vpop.xlane.xlu0 %2317
  %v2319 = vsel %vm1678, %v2300, 0.0
  %2320 = vadd.xlane.f32.xlu0 %v2319
  %v2321 = vpop.xlane.xlu0 %2320
  %v2322 = vsel %vm1678, %v2302, 0.0
  %2323 = vadd.xlane.f32.xlu0 %v2322
  %v2324 = vpop.xlane.xlu0 %2323
  %v2325 = vsel %vm1678, %v2304, 0.0
  %2326 = vadd.xlane.f32.xlu0 %v2325
  %v2327 = vpop.xlane.xlu0 %2326
  %v2328 = vsel %vm1678, %v2306, 0.0
  %2329 = vadd.xlane.f32.xlu0 %v2328
  %v2330 = vpop.xlane.xlu0 %2329
  %v2331 = vrcp.pop %v2309
  %v2332 = vrcp.pop %v2312
  %v2333 = vrcp.pop %v2315
  %v2334 = vrcp.pop %v2318
  %v2335 = vrcp.pop %v2321
  %v2336 = vrcp.pop %v2324
  %v2337 = vrcp.pop %v2327
  %v2338 = vrcp.pop %v2330
  %v2339 = vmul.f32 %v2292, %v2331
  %v2340 = vmul.f32 %v2294, %v2332
  %v2341 = vmul.f32 %v2296, %v2333
  %v2342 = vmul.f32 %v2298, %v2334
  %v2343 = vmul.f32 %v2300, %v2335
  %v2344 = vmul.f32 %v2302, %v2336
  %v2345 = vmul.f32 %v2304, %v2337
  %v2346 = vmul.f32 %v2306, %v2338
  %v2347 = vpack.c.bf16 %v2340, %v2339
  %v2348 = vpack.c.bf16 %v2342, %v2341
  %v2349 = vpack.c.bf16 %v2344, %v2343
  %v2350 = vpack.c.bf16 %v2346, %v2345
  %2351 = vrot.lane.b32.xlu0 %v2153, 64
  %v2352 = vpop.permute.xlu0 %2351
  %2353 = vrot.lane.b32.xlu0 %v2154, 64
  %v2354 = vpop.permute.xlu0 %2353
  %2355 = vrot.lane.b32.xlu0 %v2155, 64
  %v2356 = vpop.permute.xlu0 %2355
  %2357 = vrot.lane.b32.xlu0 %v2156, 64
  %v2358 = vpop.permute.xlu0 %2357
  %v2364 = vsel %vm1678, %v2347, 0
  %v2367 = vsel %vm1678, %v2348, 0
  %v2370 = vsel %vm1678, %v2349, 0
  %v2373 = vsel %vm1678, %v2350, 0
  %2375 = vmatprep.subr.bf16.mxu0 0
  %2376 = vmatpush1.bf16.msra.mxu0 %v2352
  %2377 = vmatprep.subr.bf16.mxu0 0
  %2378 = vmatpush1.bf16.msra.mxu0 %v2354
  %2379 = vmatprep.subr.bf16.mxu0 0
  %2380 = vmatpush1.bf16.msra.mxu0 %v2356
  %2381 = vmatprep.subr.bf16.mxu0 0
  %2382 = vmatpush1.bf16.msra.mxu0 %v2358
  %2383 = vmatprep.subr.bf16.mxu0 0
  %2384 = vmatpush1.bf16.msra.mxu0 0
  %2385 = vmatprep.subr.bf16.mxu0 0
  %2386 = vmatpush1.bf16.msra.mxu0 0
  %2387 = vmatprep.subr.bf16.mxu0 0
  %2388 = vmatpush1.bf16.msra.mxu0 0
  %2389 = vmatprep.subr.bf16.mxu0 0
  %2390 = vmatpush1.bf16.msra.mxu0 0
  %2391 = vmatprep.subr.bf16.mxu0 0
  %2392 = vmatpush1.bf16.msra.mxu0 0
  %2393 = vmatprep.subr.bf16.mxu0 0
  %2394 = vmatpush1.bf16.msra.mxu0 0
  %2395 = vmatprep.subr.bf16.mxu0 0
  %2396 = vmatpush1.bf16.msra.mxu0 0
  %2397 = vmatprep.subr.bf16.mxu0 0
  %2398 = vmatpush1.bf16.msra.mxu0 0
  %2399 = vmatprep.subr.bf16.mxu0 0
  %2400 = vmatpush1.bf16.msra.mxu0 0
  %2401 = vmatprep.subr.bf16.mxu0 0
  %2402 = vmatpush1.bf16.msra.mxu0 0
  %2403 = vmatprep.subr.bf16.mxu0 0
  %2404 = vmatpush1.bf16.msra.mxu0 0
  %2405 = vmatprep.subr.bf16.mxu0 0
  %2406 = vmatpush1.bf16.msra.mxu0 0
  %2407 = vmatprep.mubr.bf16.mxu0 0
  %2408 = vmatmul.mubr.bf16.gmra.mrb[0].mxu0 %v2364
  %v2409 = vpop.f32.mrb[0].mxu0
  %v2410 = vadd.f32 0.0, %v2409
  %v2411 = vpop.f32.mrb[0].mxu0
  %v2412 = vpop.f32.mrb[0].mxu0
  %v2413 = vadd.f32 0.0, %v2412
  %v2414 = vpop.f32.mrb[0].mxu0
  %2415 = vmatprep.mubr.bf16.mxu0 0
  %2416 = vmatmul.mubr.bf16.gmra.mrb[0].mxu0 %v2367
  %v2417 = vpop.f32.mrb[0].mxu0
  %v2418 = vadd.f32 0.0, %v2417
  %v2419 = vpop.f32.mrb[0].mxu0
  %v2420 = vpop.f32.mrb[0].mxu0
  %v2421 = vadd.f32 0.0, %v2420
  %v2422 = vpop.f32.mrb[0].mxu0
  %2423 = vmatprep.mubr.bf16.mxu0 0
  %2424 = vmatmul.mubr.bf16.gmra.mrb[0].mxu0 %v2370
  %v2425 = vpop.f32.mrb[0].mxu0
  %v2426 = vadd.f32 0.0, %v2425
  %v2427 = vpop.f32.mrb[0].mxu0
  %v2428 = vpop.f32.mrb[0].mxu0
  %v2429 = vadd.f32 0.0, %v2428
  %v2430 = vpop.f32.mrb[0].mxu0
  %2431 = vmatprep.mubr.bf16.mxu0 0
  %2432 = vmatmul.mubr.bf16.gmra.mrb[0].mxu0 %v2373
  %v2433 = vpop.f32.mrb[0].mxu0
  %v2434 = vadd.f32 0.0, %v2433
  %v2435 = vpop.f32.mrb[0].mxu0
  %v2436 = vpop.f32.mrb[0].mxu0
  %v2437 = vadd.f32 0.0, %v2436
  %v2438 = vpop.f32.mrb[0].mxu0
  %2439 = vdwg.mxu0
  %2440 = vrot.lane.b32.xlu0 %v2153, 112
  %v2441 = vpop.permute.xlu0 %2440
  %2442 = vrot.lane.b32.xlu0 %v2154, 112
  %v2443 = vpop.permute.xlu0 %2442
  %2444 = vrot.lane.b32.xlu0 %v2155, 112
  %v2445 = vpop.permute.xlu0 %2444
  %2446 = vrot.lane.b32.xlu0 %v2156, 112
  %v2447 = vpop.permute.xlu0 %2446
  %2448 = vrot.lane.b32.xlu0 %v2153, 80
  %v2449 = vpop.permute.xlu0 %2448
  %2450 = vrot.lane.b32.xlu0 %v2154, 80
  %v2451 = vpop.permute.xlu0 %2450
  %2452 = vrot.lane.b32.xlu0 %v2155, 80
  %v2453 = vpop.permute.xlu0 %2452
  %2454 = vrot.lane.b32.xlu0 %v2156, 80
  %v2455 = vpop.permute.xlu0 %2454
  %v2457 = vsel %vm2169, %v2441, 0
  %v2460 = vsel %vm2169, %v2443, 0
  %v2463 = vsel %vm2169, %v2445, 0
  %v2466 = vsel %vm2169, %v2447, 0
  %v2469 = vsel %vm2169, %v2449, 0
  %v2472 = vsel %vm2169, %v2451, 0
  %v2475 = vsel %vm2169, %v2453, 0
  %v2478 = vsel %vm2169, %v2455, 0
  %2480 = vmatprep.subr.bf16.mxu0 0
  %2481 = vmatpush1.bf16.xpose.msra.mxu0 %v2469
  %2482 = vmatprep.subr.bf16.mxu0 0
  %2483 = vmatpush1.bf16.xpose.msra.mxu0 %v2472
  %2484 = vmatprep.subr.bf16.mxu0 0
  %2485 = vmatpush1.bf16.xpose.msra.mxu0 %v2475
  %2486 = vmatprep.subr.bf16.mxu0 0
  %2487 = vmatpush1.bf16.xpose.msra.mxu0 %v2478
  %2488 = vmatprep.subr.bf16.mxu0 0
  %2489 = vmatpush1.bf16.xpose.msra.mxu0 0
  %2490 = vmatprep.subr.bf16.mxu0 0
  %2491 = vmatpush1.bf16.xpose.msra.mxu0 0
  %2492 = vmatprep.subr.bf16.mxu0 0
  %2493 = vmatpush1.bf16.xpose.msra.mxu0 0
  %2494 = vmatprep.subr.bf16.mxu0 0
  %2495 = vmatpush1.bf16.xpose.msra.mxu0 0
  %2496 = vmatprep.subr.bf16.mxu0 0
  %2497 = vmatpush1.bf16.xpose.msra.mxu0 0
  %2498 = vmatprep.subr.bf16.mxu0 0
  %2499 = vmatpush1.bf16.xpose.msra.mxu0 0
  %2500 = vmatprep.subr.bf16.mxu0 0
  %2501 = vmatpush1.bf16.xpose.msra.mxu0 0
  %2502 = vmatprep.subr.bf16.mxu0 0
  %2503 = vmatpush1.bf16.xpose.msra.mxu0 0
  %2504 = vmatprep.subr.bf16.mxu0 0
  %2505 = vmatpush1.bf16.xpose.msra.mxu0 0
  %2506 = vmatprep.subr.bf16.mxu0 0
  %2507 = vmatpush1.bf16.xpose.msra.mxu0 0
  %2508 = vmatprep.subr.bf16.mxu0 0
  %2509 = vmatpush1.bf16.xpose.msra.mxu0 0
  %2510 = vmatprep.subr.bf16.mxu0 0
  %2511 = vmatpush1.bf16.xpose.msra.mxu0 0
  %2512 = vmatprep.mubr.bf16.mxu0 0
  %2513 = vmatmul.mubr.bf16.gmra.mrb[0].mxu0 %v2457
  %v2514 = vpop.f32.mrb[0].mxu0
  %v2515 = vadd.f32 0.0, %v2514
  %v2516 = vpop.f32.mrb[0].mxu0
  %v2517 = vpop.f32.mrb[0].mxu0
  %v2518 = vadd.f32 0.0, %v2517
  %v2519 = vpop.f32.mrb[0].mxu0
  %2520 = vmatprep.mubr.bf16.mxu0 0
  %2521 = vmatmul.mubr.bf16.gmra.mrb[0].mxu0 %v2460
  %v2522 = vpop.f32.mrb[0].mxu0
  %v2523 = vadd.f32 0.0, %v2522
  %v2524 = vpop.f32.mrb[0].mxu0
  %v2525 = vpop.f32.mrb[0].mxu0
  %v2526 = vadd.f32 0.0, %v2525
  %v2527 = vpop.f32.mrb[0].mxu0
  %2528 = vmatprep.mubr.bf16.mxu0 0
  %2529 = vmatmul.mubr.bf16.gmra.mrb[0].mxu0 %v2463
  %v2530 = vpop.f32.mrb[0].mxu0
  %v2531 = vadd.f32 0.0, %v2530
  %v2532 = vpop.f32.mrb[0].mxu0
  %v2533 = vpop.f32.mrb[0].mxu0
  %v2534 = vadd.f32 0.0, %v2533
  %v2535 = vpop.f32.mrb[0].mxu0
  %2536 = vmatprep.mubr.bf16.mxu0 0
  %2537 = vmatmul.mubr.bf16.gmra.mrb[0].mxu0 %v2466
  %v2538 = vpop.f32.mrb[0].mxu0
  %v2539 = vadd.f32 0.0, %v2538
  %v2540 = vpop.f32.mrb[0].mxu0
  %v2541 = vpop.f32.mrb[0].mxu0
  %v2542 = vadd.f32 0.0, %v2541
  %v2543 = vpop.f32.mrb[0].mxu0
  %2544 = vdwg.mxu0
  %v2545 = vsel %vm1678, %v2515, -inf
  %2546 = vmax.xlane.f32.xlu0 %v2545
  %v2547 = vpop.xlane.xlu0 %2546
  %v2548 = vsel %vm1678, %v2518, -inf
  %2549 = vmax.xlane.f32.xlu0 %v2548
  %v2550 = vpop.xlane.xlu0 %2549
  %v2551 = vsel %vm1678, %v2523, -inf
  %2552 = vmax.xlane.f32.xlu0 %v2551
  %v2553 = vpop.xlane.xlu0 %2552
  %v2554 = vsel %vm1678, %v2526, -inf
  %2555 = vmax.xlane.f32.xlu0 %v2554
  %v2556 = vpop.xlane.xlu0 %2555
  %v2557 = vsel %vm1678, %v2531, -inf
  %2558 = vmax.xlane.f32.xlu0 %v2557
  %v2559 = vpop.xlane.xlu0 %2558
  %v2560 = vsel %vm1678, %v2534, -inf
  %2561 = vmax.xlane.f32.xlu0 %v2560
  %v2562 = vpop.xlane.xlu0 %2561
  %v2563 = vsel %vm1678, %v2539, -inf
  %2564 = vmax.xlane.f32.xlu0 %v2563
  %v2565 = vpop.xlane.xlu0 %2564
  %v2566 = vsel %vm1678, %v2542, -inf
  %2567 = vmax.xlane.f32.xlu0 %v2566
  %v2568 = vpop.xlane.xlu0 %2567
  %v2569 = vsub.f32 %v2515, %v2547
  %v2570 = vsub.f32 %v2518, %v2550
  %v2571 = vsub.f32 %v2523, %v2553
  %v2572 = vsub.f32 %v2526, %v2556
  %v2573 = vsub.f32 %v2531, %v2559
  %v2574 = vsub.f32 %v2534, %v2562
  %v2575 = vsub.f32 %v2539, %v2565
  %v2576 = vsub.f32 %v2542, %v2568
  %v2577 = vmul.f32 %v2569, 1.442695
  %v2578 = vpow.pop %v2577
  %v2579 = vmul.f32 %v2570, 1.442695
  %v2580 = vpow.pop %v2579
  %v2581 = vmul.f32 %v2571, 1.442695
  %v2582 = vpow.pop %v2581
  %v2583 = vmul.f32 %v2572, 1.442695
  %v2584 = vpow.pop %v2583
  %v2585 = vmul.f32 %v2573, 1.442695
  %v2586 = vpow.pop %v2585
  %v2587 = vmul.f32 %v2574, 1.442695
  %v2588 = vpow.pop %v2587
  %v2589 = vmul.f32 %v2575, 1.442695
  %v2590 = vpow.pop %v2589
  %v2591 = vmul.f32 %v2576, 1.442695
  %v2592 = vpow.pop %v2591
  %v2593 = vsel %vm1678, %v2578, 0.0
  %2594 = vadd.xlane.f32.xlu0 %v2593
  %v2595 = vpop.xlane.xlu0 %2594
  %v2596 = vsel %vm1678, %v2580, 0.0
  %2597 = vadd.xlane.f32.xlu0 %v2596
  %v2598 = vpop.xlane.xlu0 %2597
  %v2599 = vsel %vm1678, %v2582, 0.0
  %2600 = vadd.xlane.f32.xlu0 %v2599
  %v2601 = vpop.xlane.xlu0 %2600
  %v2602 = vsel %vm1678, %v2584, 0.0
  %2603 = vadd.xlane.f32.xlu0 %v2602
  %v2604 = vpop.xlane.xlu0 %2603
  %v2605 = vsel %vm1678, %v2586, 0.0
  %2606 = vadd.xlane.f32.xlu0 %v2605
  %v2607 = vpop.xlane.xlu0 %2606
  %v2608 = vsel %vm1678, %v2588, 0.0
  %2609 = vadd.xlane.f32.xlu0 %v2608
  %v2610 = vpop.xlane.xlu0 %2609
  %v2611 = vsel %vm1678, %v2590, 0.0
  %2612 = vadd.xlane.f32.xlu0 %v2611
  %v2613 = vpop.xlane.xlu0 %2612
  %v2614 = vsel %vm1678, %v2592, 0.0
  %2615 = vadd.xlane.f32.xlu0 %v2614
  %v2616 = vpop.xlane.xlu0 %2615
  %v2617 = vrcp.pop %v2595
  %v2618 = vrcp.pop %v2598
  %v2619 = vrcp.pop %v2601
  %v2620 = vrcp.pop %v2604
  %v2621 = vrcp.pop %v2607
  %v2622 = vrcp.pop %v2610
  %v2623 = vrcp.pop %v2613
  %v2624 = vrcp.pop %v2616
  %v2625 = vmul.f32 %v2578, %v2617
  %v2626 = vmul.f32 %v2580, %v2618
  %v2627 = vmul.f32 %v2582, %v2619
  %v2628 = vmul.f32 %v2584, %v2620
  %v2629 = vmul.f32 %v2586, %v2621
  %v2630 = vmul.f32 %v2588, %v2622
  %v2631 = vmul.f32 %v2590, %v2623
  %v2632 = vmul.f32 %v2592, %v2624
  %v2633 = vpack.c.bf16 %v2626, %v2625
  %v2634 = vpack.c.bf16 %v2628, %v2627
  %v2635 = vpack.c.bf16 %v2630, %v2629
  %v2636 = vpack.c.bf16 %v2632, %v2631
  %2637 = vrot.lane.b32.xlu0 %v2153, 48
  %v2638 = vpop.permute.xlu0 %2637
  %2639 = vrot.lane.b32.xlu0 %v2154, 48
  %v2640 = vpop.permute.xlu0 %2639
  %2641 = vrot.lane.b32.xlu0 %v2155, 48
  %v2642 = vpop.permute.xlu0 %2641
  %2643 = vrot.lane.b32.xlu0 %v2156, 48
  %v2644 = vpop.permute.xlu0 %2643
  %v2650 = vsel %vm1678, %v2633, 0
  %v2653 = vsel %vm1678, %v2634, 0
  %v2656 = vsel %vm1678, %v2635, 0
  %v2659 = vsel %vm1678, %v2636, 0
  %2661 = vmatprep.subr.bf16.mxu0 0
  %2662 = vmatpush1.bf16.msra.mxu0 %v2638
  %2663 = vmatprep.subr.bf16.mxu0 0
  %2664 = vmatpush1.bf16.msra.mxu0 %v2640
  %2665 = vmatprep.subr.bf16.mxu0 0
  %2666 = vmatpush1.bf16.msra.mxu0 %v2642
  %2667 = vmatprep.subr.bf16.mxu0 0
  %2668 = vmatpush1.bf16.msra.mxu0 %v2644
  %2669 = vmatprep.subr.bf16.mxu0 0
  %2670 = vmatpush1.bf16.msra.mxu0 0
  %2671 = vmatprep.subr.bf16.mxu0 0
  %2672 = vmatpush1.bf16.msra.mxu0 0
  %2673 = vmatprep.subr.bf16.mxu0 0
  %2674 = vmatpush1.bf16.msra.mxu0 0
  %2675 = vmatprep.subr.bf16.mxu0 0
  %2676 = vmatpush1.bf16.msra.mxu0 0
  %2677 = vmatprep.subr.bf16.mxu0 0
  %2678 = vmatpush1.bf16.msra.mxu0 0
  %2679 = vmatprep.subr.bf16.mxu0 0
  %2680 = vmatpush1.bf16.msra.mxu0 0
  %2681 = vmatprep.subr.bf16.mxu0 0
  %2682 = vmatpush1.bf16.msra.mxu0 0
  %2683 = vmatprep.subr.bf16.mxu0 0
  %2684 = vmatpush1.bf16.msra.mxu0 0
  %2685 = vmatprep.subr.bf16.mxu0 0
  %2686 = vmatpush1.bf16.msra.mxu0 0
  %2687 = vmatprep.subr.bf16.mxu0 0
  %2688 = vmatpush1.bf16.msra.mxu0 0
  %2689 = vmatprep.subr.bf16.mxu0 0
  %2690 = vmatpush1.bf16.msra.mxu0 0
  %2691 = vmatprep.subr.bf16.mxu0 0
  %2692 = vmatpush1.bf16.msra.mxu0 0
  %2693 = vmatprep.mubr.bf16.mxu0 0
  %2694 = vmatmul.mubr.bf16.gmra.mrb[0].mxu0 %v2650
  %v2695 = vpop.f32.mrb[0].mxu0
  %v2696 = vadd.f32 0.0, %v2695
  %v2697 = vpop.f32.mrb[0].mxu0
  %v2698 = vpop.f32.mrb[0].mxu0
  %v2699 = vadd.f32 0.0, %v2698
  %v2700 = vpop.f32.mrb[0].mxu0
  %2701 = vmatprep.mubr.bf16.mxu0 0
  %2702 = vmatmul.mubr.bf16.gmra.mrb[0].mxu0 %v2653
  %v2703 = vpop.f32.mrb[0].mxu0
  %v2704 = vadd.f32 0.0, %v2703
  %v2705 = vpop.f32.mrb[0].mxu0
  %v2706 = vpop.f32.mrb[0].mxu0
  %v2707 = vadd.f32 0.0, %v2706
  %v2708 = vpop.f32.mrb[0].mxu0
  %2709 = vmatprep.mubr.bf16.mxu0 0
  %2710 = vmatmul.mubr.bf16.gmra.mrb[0].mxu0 %v2656
  %v2711 = vpop.f32.mrb[0].mxu0
  %v2712 = vadd.f32 0.0, %v2711
  %v2713 = vpop.f32.mrb[0].mxu0
  %v2714 = vpop.f32.mrb[0].mxu0
  %v2715 = vadd.f32 0.0, %v2714
  %v2716 = vpop.f32.mrb[0].mxu0
  %2717 = vmatprep.mubr.bf16.mxu0 0
  %2718 = vmatmul.mubr.bf16.gmra.mrb[0].mxu0 %v2659
  %v2719 = vpop.f32.mrb[0].mxu0
  %v2720 = vadd.f32 0.0, %v2719
  %v2721 = vpop.f32.mrb[0].mxu0
  %v2722 = vpop.f32.mrb[0].mxu0
  %v2723 = vadd.f32 0.0, %v2722
  %v2724 = vpop.f32.mrb[0].mxu0
  %2725 = vdwg.mxu0
  %2734 = vrot.lane.b32.xlu0 %v2696, 16
  %v2735 = vpop.permute.xlu0 %2734
  %2736 = vrot.lane.b32.xlu0 %v2699, 16
  %v2737 = vpop.permute.xlu0 %2736
  %2738 = vrot.lane.b32.xlu0 %v2704, 16
  %v2739 = vpop.permute.xlu0 %2738
  %2740 = vrot.lane.b32.xlu0 %v2707, 16
  %v2741 = vpop.permute.xlu0 %2740
  %2742 = vrot.lane.b32.xlu0 %v2712, 16
  %v2743 = vpop.permute.xlu0 %2742
  %2744 = vrot.lane.b32.xlu0 %v2715, 16
  %v2745 = vpop.permute.xlu0 %2744
  %2746 = vrot.lane.b32.xlu0 %v2720, 16
  %v2747 = vpop.permute.xlu0 %2746
  %2748 = vrot.lane.b32.xlu0 %v2723, 16
  %v2749 = vpop.permute.xlu0 %2748
  %v2758 = vsel %vm2169, %v2410, %v2735
  %v2759 = vsel %vm2169, %v2413, %v2737
  %v2760 = vsel %vm2169, %v2418, %v2739
  %v2761 = vsel %vm2169, %v2421, %v2741
  %v2762 = vsel %vm2169, %v2426, %v2743
  %v2763 = vsel %vm2169, %v2429, %v2745
  %v2764 = vsel %vm2169, %v2434, %v2747
  %v2765 = vsel %vm2169, %v2437, %v2749
  %v2766 = vpack.c.bf16 %v2126, %v2123
  %v2767 = vpack.c.bf16 %v2134, %v2131
  %v2768 = vpack.c.bf16 %v2142, %v2139
  %v2769 = vpack.c.bf16 %v2150, %v2147
  %2774 = vrot.lane.b32.xlu0 %v2766, 96
  %v2775 = vpop.permute.xlu0 %2774
  %2776 = vrot.lane.b32.xlu0 %v2767, 96
  %v2777 = vpop.permute.xlu0 %2776
  %2778 = vrot.lane.b32.xlu0 %v2768, 96
  %v2779 = vpop.permute.xlu0 %2778
  %2780 = vrot.lane.b32.xlu0 %v2769, 96
  %v2781 = vpop.permute.xlu0 %2780
  %v2783 = vsel %vm2169, %v2766, 0
  %v2786 = vsel %vm2169, %v2767, 0
  %v2789 = vsel %vm2169, %v2768, 0
  %v2792 = vsel %vm2169, %v2769, 0
  %v2795 = vsel %vm2169, %v2775, 0
  %v2798 = vsel %vm2169, %v2777, 0
  %v2801 = vsel %vm2169, %v2779, 0
  %v2804 = vsel %vm2169, %v2781, 0
  %2806 = vmatprep.subr.bf16.mxu0 0
  %2807 = vmatpush1.bf16.xpose.msra.mxu0 %v2795
  %2808 = vmatprep.subr.bf16.mxu0 0
  %2809 = vmatpush1.bf16.xpose.msra.mxu0 %v2798
  %2810 = vmatprep.subr.bf16.mxu0 0
  %2811 = vmatpush1.bf16.xpose.msra.mxu0 %v2801
  %2812 = vmatprep.subr.bf16.mxu0 0
  %2813 = vmatpush1.bf16.xpose.msra.mxu0 %v2804
  %2814 = vmatprep.subr.bf16.mxu0 0
  %2815 = vmatpush1.bf16.xpose.msra.mxu0 0
  %2816 = vmatprep.subr.bf16.mxu0 0
  %2817 = vmatpush1.bf16.xpose.msra.mxu0 0
  %2818 = vmatprep.subr.bf16.mxu0 0
  %2819 = vmatpush1.bf16.xpose.msra.mxu0 0
  %2820 = vmatprep.subr.bf16.mxu0 0
  %2821 = vmatpush1.bf16.xpose.msra.mxu0 0
  %2822 = vmatprep.subr.bf16.mxu0 0
  %2823 = vmatpush1.bf16.xpose.msra.mxu0 0
  %2824 = vmatprep.subr.bf16.mxu0 0
  %2825 = vmatpush1.bf16.xpose.msra.mxu0 0
  %2826 = vmatprep.subr.bf16.mxu0 0
  %2827 = vmatpush1.bf16.xpose.msra.mxu0 0
  %2828 = vmatprep.subr.bf16.mxu0 0
  %2829 = vmatpush1.bf16.xpose.msra.mxu0 0
  %2830 = vmatprep.subr.bf16.mxu0 0
  %2831 = vmatpush1.bf16.xpose.msra.mxu0 0
  %2832 = vmatprep.subr.bf16.mxu0 0
  %2833 = vmatpush1.bf16.xpose.msra.mxu0 0
  %2834 = vmatprep.subr.bf16.mxu0 0
  %2835 = vmatpush1.bf16.xpose.msra.mxu0 0
  %2836 = vmatprep.subr.bf16.mxu0 0
  %2837 = vmatpush1.bf16.xpose.msra.mxu0 0
  %2838 = vmatprep.mubr.bf16.mxu0 0
  %2839 = vmatmul.mubr.bf16.gmra.mrb[0].mxu0 %v2783
  %v2840 = vpop.f32.mrb[0].mxu0
  %v2841 = vadd.f32 0.0, %v2840
  %v2842 = vpop.f32.mrb[0].mxu0
  %v2843 = vpop.f32.mrb[0].mxu0
  %v2844 = vadd.f32 0.0, %v2843
  %v2845 = vpop.f32.mrb[0].mxu0
  %2846 = vmatprep.mubr.bf16.mxu0 0
  %2847 = vmatmul.mubr.bf16.gmra.mrb[0].mxu0 %v2786
  %v2848 = vpop.f32.mrb[0].mxu0
  %v2849 = vadd.f32 0.0, %v2848
  %v2850 = vpop.f32.mrb[0].mxu0
  %v2851 = vpop.f32.mrb[0].mxu0
  %v2852 = vadd.f32 0.0, %v2851
  %v2853 = vpop.f32.mrb[0].mxu0
  %2854 = vmatprep.mubr.bf16.mxu0 0
  %2855 = vmatmul.mubr.bf16.gmra.mrb[0].mxu0 %v2789
  %v2856 = vpop.f32.mrb[0].mxu0
  %v2857 = vadd.f32 0.0, %v2856
  %v2858 = vpop.f32.mrb[0].mxu0
  %v2859 = vpop.f32.mrb[0].mxu0
  %v2860 = vadd.f32 0.0, %v2859
  %v2861 = vpop.f32.mrb[0].mxu0
  %2862 = vmatprep.mubr.bf16.mxu0 0
  %2863 = vmatmul.mubr.bf16.gmra.mrb[0].mxu0 %v2792
  %v2864 = vpop.f32.mrb[0].mxu0
  %v2865 = vadd.f32 0.0, %v2864
  %v2866 = vpop.f32.mrb[0].mxu0
  %v2867 = vpop.f32.mrb[0].mxu0
  %v2868 = vadd.f32 0.0, %v2867
  %v2869 = vpop.f32.mrb[0].mxu0
  %2870 = vdwg.mxu0
  %v2871 = vsel %vm1678, %v2841, -inf
  %2872 = vmax.xlane.f32.xlu0 %v2871
  %v2873 = vpop.xlane.xlu0 %2872
  %v2874 = vsel %vm1678, %v2844, -inf
  %2875 = vmax.xlane.f32.xlu0 %v2874
  %v2876 = vpop.xlane.xlu0 %2875
  %v2877 = vsel %vm1678, %v2849, -inf
  %2878 = vmax.xlane.f32.xlu0 %v2877
  %v2879 = vpop.xlane.xlu0 %2878
  %v2880 = vsel %vm1678, %v2852, -inf
  %2881 = vmax.xlane.f32.xlu0 %v2880
  %v2882 = vpop.xlane.xlu0 %2881
  %v2883 = vsel %vm1678, %v2857, -inf
  %2884 = vmax.xlane.f32.xlu0 %v2883
  %v2885 = vpop.xlane.xlu0 %2884
  %v2886 = vsel %vm1678, %v2860, -inf
  %2887 = vmax.xlane.f32.xlu0 %v2886
  %v2888 = vpop.xlane.xlu0 %2887
  %v2889 = vsel %vm1678, %v2865, -inf
  %2890 = vmax.xlane.f32.xlu0 %v2889
  %v2891 = vpop.xlane.xlu0 %2890
  %v2892 = vsel %vm1678, %v2868, -inf
  %2893 = vmax.xlane.f32.xlu0 %v2892
  %v2894 = vpop.xlane.xlu0 %2893
  %v2895 = vsub.f32 %v2841, %v2873
  %v2896 = vsub.f32 %v2844, %v2876
  %v2897 = vsub.f32 %v2849, %v2879
  %v2898 = vsub.f32 %v2852, %v2882
  %v2899 = vsub.f32 %v2857, %v2885
  %v2900 = vsub.f32 %v2860, %v2888
  %v2901 = vsub.f32 %v2865, %v2891
  %v2902 = vsub.f32 %v2868, %v2894
  %v2903 = vmul.f32 %v2895, 1.442695
  %v2904 = vpow.pop %v2903
  %v2905 = vmul.f32 %v2896, 1.442695
  %v2906 = vpow.pop %v2905
  %v2907 = vmul.f32 %v2897, 1.442695
  %v2908 = vpow.pop %v2907
  %v2909 = vmul.f32 %v2898, 1.442695
  %v2910 = vpow.pop %v2909
  %v2911 = vmul.f32 %v2899, 1.442695
  %v2912 = vpow.pop %v2911
  %v2913 = vmul.f32 %v2900, 1.442695
  %v2914 = vpow.pop %v2913
  %v2915 = vmul.f32 %v2901, 1.442695
  %v2916 = vpow.pop %v2915
  %v2917 = vmul.f32 %v2902, 1.442695
  %v2918 = vpow.pop %v2917
  %v2919 = vsel %vm1678, %v2904, 0.0
  %2920 = vadd.xlane.f32.xlu0 %v2919
  %v2921 = vpop.xlane.xlu0 %2920
  %v2922 = vsel %vm1678, %v2906, 0.0
  %2923 = vadd.xlane.f32.xlu0 %v2922
  %v2924 = vpop.xlane.xlu0 %2923
  %v2925 = vsel %vm1678, %v2908, 0.0
  %2926 = vadd.xlane.f32.xlu0 %v2925
  %v2927 = vpop.xlane.xlu0 %2926
  %v2928 = vsel %vm1678, %v2910, 0.0
  %2929 = vadd.xlane.f32.xlu0 %v2928
  %v2930 = vpop.xlane.xlu0 %2929
  %v2931 = vsel %vm1678, %v2912, 0.0
  %2932 = vadd.xlane.f32.xlu0 %v2931
  %v2933 = vpop.xlane.xlu0 %2932
  %v2934 = vsel %vm1678, %v2914, 0.0
  %2935 = vadd.xlane.f32.xlu0 %v2934
  %v2936 = vpop.xlane.xlu0 %2935
  %v2937 = vsel %vm1678, %v2916, 0.0
  %2938 = vadd.xlane.f32.xlu0 %v2937
  %v2939 = vpop.xlane.xlu0 %2938
  %v2940 = vsel %vm1678, %v2918, 0.0
  %2941 = vadd.xlane.f32.xlu0 %v2940
  %v2942 = vpop.xlane.xlu0 %2941
  %v2943 = vrcp.pop %v2921
  %v2944 = vrcp.pop %v2924
  %v2945 = vrcp.pop %v2927
  %v2946 = vrcp.pop %v2930
  %v2947 = vrcp.pop %v2933
  %v2948 = vrcp.pop %v2936
  %v2949 = vrcp.pop %v2939
  %v2950 = vrcp.pop %v2942
  %v2951 = vmul.f32 %v2904, %v2943
  %v2952 = vmul.f32 %v2906, %v2944
  %v2953 = vmul.f32 %v2908, %v2945
  %v2954 = vmul.f32 %v2910, %v2946
  %v2955 = vmul.f32 %v2912, %v2947
  %v2956 = vmul.f32 %v2914, %v2948
  %v2957 = vmul.f32 %v2916, %v2949
  %v2958 = vmul.f32 %v2918, %v2950
  %v2959 = vpack.c.bf16 %v2952, %v2951
  %v2960 = vpack.c.bf16 %v2954, %v2953
  %v2961 = vpack.c.bf16 %v2956, %v2955
  %v2962 = vpack.c.bf16 %v2958, %v2957
  %2963 = vrot.lane.b32.xlu0 %v2766, 64
  %v2964 = vpop.permute.xlu0 %2963
  %2965 = vrot.lane.b32.xlu0 %v2767, 64
  %v2966 = vpop.permute.xlu0 %2965
  %2967 = vrot.lane.b32.xlu0 %v2768, 64
  %v2968 = vpop.permute.xlu0 %2967
  %2969 = vrot.lane.b32.xlu0 %v2769, 64
  %v2970 = vpop.permute.xlu0 %2969
  %v2976 = vsel %vm1678, %v2959, 0
  %v2979 = vsel %vm1678, %v2960, 0
  %v2982 = vsel %vm1678, %v2961, 0
  %v2985 = vsel %vm1678, %v2962, 0
  %2987 = vmatprep.subr.bf16.mxu0 0
  %2988 = vmatpush1.bf16.msra.mxu0 %v2964
  %2989 = vmatprep.subr.bf16.mxu0 0
  %2990 = vmatpush1.bf16.msra.mxu0 %v2966
  %2991 = vmatprep.subr.bf16.mxu0 0
  %2992 = vmatpush1.bf16.msra.mxu0 %v2968
  %2993 = vmatprep.subr.bf16.mxu0 0
  %2994 = vmatpush1.bf16.msra.mxu0 %v2970
  %2995 = vmatprep.subr.bf16.mxu0 0
  %2996 = vmatpush1.bf16.msra.mxu0 0
  %2997 = vmatprep.subr.bf16.mxu0 0
  %2998 = vmatpush1.bf16.msra.mxu0 0
  %2999 = vmatprep.subr.bf16.mxu0 0
  %3000 = vmatpush1.bf16.msra.mxu0 0
  %3001 = vmatprep.subr.bf16.mxu0 0
  %3002 = vmatpush1.bf16.msra.mxu0 0
  %3003 = vmatprep.subr.bf16.mxu0 0
  %3004 = vmatpush1.bf16.msra.mxu0 0
  %3005 = vmatprep.subr.bf16.mxu0 0
  %3006 = vmatpush1.bf16.msra.mxu0 0
  %3007 = vmatprep.subr.bf16.mxu0 0
  %3008 = vmatpush1.bf16.msra.mxu0 0
  %3009 = vmatprep.subr.bf16.mxu0 0
  %3010 = vmatpush1.bf16.msra.mxu0 0
  %3011 = vmatprep.subr.bf16.mxu0 0
  %3012 = vmatpush1.bf16.msra.mxu0 0
  %3013 = vmatprep.subr.bf16.mxu0 0
  %3014 = vmatpush1.bf16.msra.mxu0 0
  %3015 = vmatprep.subr.bf16.mxu0 0
  %3016 = vmatpush1.bf16.msra.mxu0 0
  %3017 = vmatprep.subr.bf16.mxu0 0
  %3018 = vmatpush1.bf16.msra.mxu0 0
  %3019 = vmatprep.mubr.bf16.mxu0 0
  %3020 = vmatmul.mubr.bf16.gmra.mrb[0].mxu0 %v2976
  %v3021 = vpop.f32.mrb[0].mxu0
  %v3022 = vadd.f32 0.0, %v3021
  %v3023 = vpop.f32.mrb[0].mxu0
  %v3024 = vpop.f32.mrb[0].mxu0
  %v3025 = vadd.f32 0.0, %v3024
  %v3026 = vpop.f32.mrb[0].mxu0
  %3027 = vmatprep.mubr.bf16.mxu0 0
  %3028 = vmatmul.mubr.bf16.gmra.mrb[0].mxu0 %v2979
  %v3029 = vpop.f32.mrb[0].mxu0
  %v3030 = vadd.f32 0.0, %v3029
  %v3031 = vpop.f32.mrb[0].mxu0
  %v3032 = vpop.f32.mrb[0].mxu0
  %v3033 = vadd.f32 0.0, %v3032
  %v3034 = vpop.f32.mrb[0].mxu0
  %3035 = vmatprep.mubr.bf16.mxu0 0
  %3036 = vmatmul.mubr.bf16.gmra.mrb[0].mxu0 %v2982
  %v3037 = vpop.f32.mrb[0].mxu0
  %v3038 = vadd.f32 0.0, %v3037
  %v3039 = vpop.f32.mrb[0].mxu0
  %v3040 = vpop.f32.mrb[0].mxu0
  %v3041 = vadd.f32 0.0, %v3040
  %v3042 = vpop.f32.mrb[0].mxu0
  %3043 = vmatprep.mubr.bf16.mxu0 0
  %3044 = vmatmul.mubr.bf16.gmra.mrb[0].mxu0 %v2985
  %v3045 = vpop.f32.mrb[0].mxu0
  %v3046 = vadd.f32 0.0, %v3045
  %v3047 = vpop.f32.mrb[0].mxu0
  %v3048 = vpop.f32.mrb[0].mxu0
  %v3049 = vadd.f32 0.0, %v3048
  %v3050 = vpop.f32.mrb[0].mxu0
  %3051 = vdwg.mxu0
  %3052 = vrot.lane.b32.xlu0 %v2766, 112
  %v3053 = vpop.permute.xlu0 %3052
  %3054 = vrot.lane.b32.xlu0 %v2767, 112
  %v3055 = vpop.permute.xlu0 %3054
  %3056 = vrot.lane.b32.xlu0 %v2768, 112
  %v3057 = vpop.permute.xlu0 %3056
  %3058 = vrot.lane.b32.xlu0 %v2769, 112
  %v3059 = vpop.permute.xlu0 %3058
  %3060 = vrot.lane.b32.xlu0 %v2766, 80
  %v3061 = vpop.permute.xlu0 %3060
  %3062 = vrot.lane.b32.xlu0 %v2767, 80
  %v3063 = vpop.permute.xlu0 %3062
  %3064 = vrot.lane.b32.xlu0 %v2768, 80
  %v3065 = vpop.permute.xlu0 %3064
  %3066 = vrot.lane.b32.xlu0 %v2769, 80
  %v3067 = vpop.permute.xlu0 %3066
  %v3069 = vsel %vm2169, %v3053, 0
  %v3072 = vsel %vm2169, %v3055, 0
  %v3075 = vsel %vm2169, %v3057, 0
  %v3078 = vsel %vm2169, %v3059, 0
  %v3081 = vsel %vm2169, %v3061, 0
  %v3084 = vsel %vm2169, %v3063, 0
  %v3087 = vsel %vm2169, %v3065, 0
  %v3090 = vsel %vm2169, %v3067, 0
  %3092 = vmatprep.subr.bf16.mxu0 0
  %3093 = vmatpush1.bf16.xpose.msra.mxu0 %v3081
  %3094 = vmatprep.subr.bf16.mxu0 0
  %3095 = vmatpush1.bf16.xpose.msra.mxu0 %v3084
  %3096 = vmatprep.subr.bf16.mxu0 0
  %3097 = vmatpush1.bf16.xpose.msra.mxu0 %v3087
  %3098 = vmatprep.subr.bf16.mxu0 0
  %3099 = vmatpush1.bf16.xpose.msra.mxu0 %v3090
  %3100 = vmatprep.subr.bf16.mxu0 0
  %3101 = vmatpush1.bf16.xpose.msra.mxu0 0
  %3102 = vmatprep.subr.bf16.mxu0 0
  %3103 = vmatpush1.bf16.xpose.msra.mxu0 0
  %3104 = vmatprep.subr.bf16.mxu0 0
  %3105 = vmatpush1.bf16.xpose.msra.mxu0 0
  %3106 = vmatprep.subr.bf16.mxu0 0
  %3107 = vmatpush1.bf16.xpose.msra.mxu0 0
  %3108 = vmatprep.subr.bf16.mxu0 0
  %3109 = vmatpush1.bf16.xpose.msra.mxu0 0
  %3110 = vmatprep.subr.bf16.mxu0 0
  %3111 = vmatpush1.bf16.xpose.msra.mxu0 0
  %3112 = vmatprep.subr.bf16.mxu0 0
  %3113 = vmatpush1.bf16.xpose.msra.mxu0 0
  %3114 = vmatprep.subr.bf16.mxu0 0
  %3115 = vmatpush1.bf16.xpose.msra.mxu0 0
  %3116 = vmatprep.subr.bf16.mxu0 0
  %3117 = vmatpush1.bf16.xpose.msra.mxu0 0
  %3118 = vmatprep.subr.bf16.mxu0 0
  %3119 = vmatpush1.bf16.xpose.msra.mxu0 0
  %3120 = vmatprep.subr.bf16.mxu0 0
  %3121 = vmatpush1.bf16.xpose.msra.mxu0 0
  %3122 = vmatprep.subr.bf16.mxu0 0
  %3123 = vmatpush1.bf16.xpose.msra.mxu0 0
  %3124 = vmatprep.mubr.bf16.mxu0 0
  %3125 = vmatmul.mubr.bf16.gmra.mrb[0].mxu0 %v3069
  %v3126 = vpop.f32.mrb[0].mxu0
  %v3127 = vadd.f32 0.0, %v3126
  %v3128 = vpop.f32.mrb[0].mxu0
  %v3129 = vpop.f32.mrb[0].mxu0
  %v3130 = vadd.f32 0.0, %v3129
  %v3131 = vpop.f32.mrb[0].mxu0
  %3132 = vmatprep.mubr.bf16.mxu0 0
  %3133 = vmatmul.mubr.bf16.gmra.mrb[0].mxu0 %v3072
  %v3134 = vpop.f32.mrb[0].mxu0
  %v3135 = vadd.f32 0.0, %v3134
  %v3136 = vpop.f32.mrb[0].mxu0
  %v3137 = vpop.f32.mrb[0].mxu0
  %v3138 = vadd.f32 0.0, %v3137
  %v3139 = vpop.f32.mrb[0].mxu0
  %3140 = vmatprep.mubr.bf16.mxu0 0
  %3141 = vmatmul.mubr.bf16.gmra.mrb[0].mxu0 %v3075
  %v3142 = vpop.f32.mrb[0].mxu0
  %v3143 = vadd.f32 0.0, %v3142
  %v3144 = vpop.f32.mrb[0].mxu0
  %v3145 = vpop.f32.mrb[0].mxu0
  %v3146 = vadd.f32 0.0, %v3145
  %v3147 = vpop.f32.mrb[0].mxu0
  %3148 = vmatprep.mubr.bf16.mxu0 0
  %3149 = vmatmul.mubr.bf16.gmra.mrb[0].mxu0 %v3078
  %v3150 = vpop.f32.mrb[0].mxu0
  %v3151 = vadd.f32 0.0, %v3150
  %v3152 = vpop.f32.mrb[0].mxu0
  %v3153 = vpop.f32.mrb[0].mxu0
  %v3154 = vadd.f32 0.0, %v3153
  %v3155 = vpop.f32.mrb[0].mxu0
  %3156 = vdwg.mxu0
  %v3157 = vsel %vm1678, %v3127, -inf
  %3158 = vmax.xlane.f32.xlu0 %v3157
  %v3159 = vpop.xlane.xlu0 %3158
  %v3160 = vsel %vm1678, %v3130, -inf
  %3161 = vmax.xlane.f32.xlu0 %v3160
  %v3162 = vpop.xlane.xlu0 %3161
  %v3163 = vsel %vm1678, %v3135, -inf
  %3164 = vmax.xlane.f32.xlu0 %v3163
  %v3165 = vpop.xlane.xlu0 %3164
  %v3166 = vsel %vm1678, %v3138, -inf
  %3167 = vmax.xlane.f32.xlu0 %v3166
  %v3168 = vpop.xlane.xlu0 %3167
  %v3169 = vsel %vm1678, %v3143, -inf
  %3170 = vmax.xlane.f32.xlu0 %v3169
  %v3171 = vpop.xlane.xlu0 %3170
  %v3172 = vsel %vm1678, %v3146, -inf
  %3173 = vmax.xlane.f32.xlu0 %v3172
  %v3174 = vpop.xlane.xlu0 %3173
  %v3175 = vsel %vm1678, %v3151, -inf
  %3176 = vmax.xlane.f32.xlu0 %v3175
  %v3177 = vpop.xlane.xlu0 %3176
  %v3178 = vsel %vm1678, %v3154, -inf
  %3179 = vmax.xlane.f32.xlu0 %v3178
  %v3180 = vpop.xlane.xlu0 %3179
  %v3181 = vsub.f32 %v3127, %v3159
  %v3182 = vsub.f32 %v3130, %v3162
  %v3183 = vsub.f32 %v3135, %v3165
  %v3184 = vsub.f32 %v3138, %v3168
  %v3185 = vsub.f32 %v3143, %v3171
  %v3186 = vsub.f32 %v3146, %v3174
  %v3187 = vsub.f32 %v3151, %v3177
  %v3188 = vsub.f32 %v3154, %v3180
  %v3189 = vmul.f32 %v3181, 1.442695
  %v3190 = vpow.pop %v3189
  %v3191 = vmul.f32 %v3182, 1.442695
  %v3192 = vpow.pop %v3191
  %v3193 = vmul.f32 %v3183, 1.442695
  %v3194 = vpow.pop %v3193
  %v3195 = vmul.f32 %v3184, 1.442695
  %v3196 = vpow.pop %v3195
  %v3197 = vmul.f32 %v3185, 1.442695
  %v3198 = vpow.pop %v3197
  %v3199 = vmul.f32 %v3186, 1.442695
  %v3200 = vpow.pop %v3199
  %v3201 = vmul.f32 %v3187, 1.442695
  %v3202 = vpow.pop %v3201
  %v3203 = vmul.f32 %v3188, 1.442695
  %v3204 = vpow.pop %v3203
  %v3205 = vsel %vm1678, %v3190, 0.0
  %3206 = vadd.xlane.f32.xlu0 %v3205
  %v3207 = vpop.xlane.xlu0 %3206
  %v3208 = vsel %vm1678, %v3192, 0.0
  %3209 = vadd.xlane.f32.xlu0 %v3208
  %v3210 = vpop.xlane.xlu0 %3209
  %v3211 = vsel %vm1678, %v3194, 0.0
  %3212 = vadd.xlane.f32.xlu0 %v3211
  %v3213 = vpop.xlane.xlu0 %3212
  %v3214 = vsel %vm1678, %v3196, 0.0
  %3215 = vadd.xlane.f32.xlu0 %v3214
  %v3216 = vpop.xlane.xlu0 %3215
  %v3217 = vsel %vm1678, %v3198, 0.0
  %3218 = vadd.xlane.f32.xlu0 %v3217
  %v3219 = vpop.xlane.xlu0 %3218
  %v3220 = vsel %vm1678, %v3200, 0.0
  %3221 = vadd.xlane.f32.xlu0 %v3220
  %v3222 = vpop.xlane.xlu0 %3221
  %v3223 = vsel %vm1678, %v3202, 0.0
  %3224 = vadd.xlane.f32.xlu0 %v3223
  %v3225 = vpop.xlane.xlu0 %3224
  %v3226 = vsel %vm1678, %v3204, 0.0
  %3227 = vadd.xlane.f32.xlu0 %v3226
  %v3228 = vpop.xlane.xlu0 %3227
  %v3229 = vrcp.pop %v3207
  %v3230 = vrcp.pop %v3210
  %v3231 = vrcp.pop %v3213
  %v3232 = vrcp.pop %v3216
  %v3233 = vrcp.pop %v3219
  %v3234 = vrcp.pop %v3222
  %v3235 = vrcp.pop %v3225
  %v3236 = vrcp.pop %v3228
  %v3237 = vmul.f32 %v3190, %v3229
  %v3238 = vmul.f32 %v3192, %v3230
  %v3239 = vmul.f32 %v3194, %v3231
  %v3240 = vmul.f32 %v3196, %v3232
  %v3241 = vmul.f32 %v3198, %v3233
  %v3242 = vmul.f32 %v3200, %v3234
  %v3243 = vmul.f32 %v3202, %v3235
  %v3244 = vmul.f32 %v3204, %v3236
  %v3245 = vpack.c.bf16 %v3238, %v3237
  %v3246 = vpack.c.bf16 %v3240, %v3239
  %v3247 = vpack.c.bf16 %v3242, %v3241
  %v3248 = vpack.c.bf16 %v3244, %v3243
  %3249 = vrot.lane.b32.xlu0 %v2766, 48
  %v3250 = vpop.permute.xlu0 %3249
  %3251 = vrot.lane.b32.xlu0 %v2767, 48
  %v3252 = vpop.permute.xlu0 %3251
  %3253 = vrot.lane.b32.xlu0 %v2768, 48
  %v3254 = vpop.permute.xlu0 %3253
  %3255 = vrot.lane.b32.xlu0 %v2769, 48
  %v3256 = vpop.permute.xlu0 %3255
  %v3262 = vsel %vm1678, %v3245, 0
  %v3265 = vsel %vm1678, %v3246, 0
  %v3268 = vsel %vm1678, %v3247, 0
  %v3271 = vsel %vm1678, %v3248, 0
  %3273 = vmatprep.subr.bf16.mxu0 0
  %3274 = vmatpush1.bf16.msra.mxu0 %v3250
  %3275 = vmatprep.subr.bf16.mxu0 0
  %3276 = vmatpush1.bf16.msra.mxu0 %v3252
  %3277 = vmatprep.subr.bf16.mxu0 0
  %3278 = vmatpush1.bf16.msra.mxu0 %v3254
  %3279 = vmatprep.subr.bf16.mxu0 0
  %3280 = vmatpush1.bf16.msra.mxu0 %v3256
  %3281 = vmatprep.subr.bf16.mxu0 0
  %3282 = vmatpush1.bf16.msra.mxu0 0
  %3283 = vmatprep.subr.bf16.mxu0 0
  %3284 = vmatpush1.bf16.msra.mxu0 0
  %3285 = vmatprep.subr.bf16.mxu0 0
  %3286 = vmatpush1.bf16.msra.mxu0 0
  %3287 = vmatprep.subr.bf16.mxu0 0
  %3288 = vmatpush1.bf16.msra.mxu0 0
  %3289 = vmatprep.subr.bf16.mxu0 0
  %3290 = vmatpush1.bf16.msra.mxu0 0
  %3291 = vmatprep.subr.bf16.mxu0 0
  %3292 = vmatpush1.bf16.msra.mxu0 0
  %3293 = vmatprep.subr.bf16.mxu0 0
  %3294 = vmatpush1.bf16.msra.mxu0 0
  %3295 = vmatprep.subr.bf16.mxu0 0
  %3296 = vmatpush1.bf16.msra.mxu0 0
  %3297 = vmatprep.subr.bf16.mxu0 0
  %3298 = vmatpush1.bf16.msra.mxu0 0
  %3299 = vmatprep.subr.bf16.mxu0 0
  %3300 = vmatpush1.bf16.msra.mxu0 0
  %3301 = vmatprep.subr.bf16.mxu0 0
  %3302 = vmatpush1.bf16.msra.mxu0 0
  %3303 = vmatprep.subr.bf16.mxu0 0
  %3304 = vmatpush1.bf16.msra.mxu0 0
  %3305 = vmatprep.mubr.bf16.mxu0 0
  %3306 = vmatmul.mubr.bf16.gmra.mrb[0].mxu0 %v3262
  %v3307 = vpop.f32.mrb[0].mxu0
  %v3308 = vadd.f32 0.0, %v3307
  %v3309 = vpop.f32.mrb[0].mxu0
  %v3310 = vpop.f32.mrb[0].mxu0
  %v3311 = vadd.f32 0.0, %v3310
  %v3312 = vpop.f32.mrb[0].mxu0
  %3313 = vmatprep.mubr.bf16.mxu0 0
  %3314 = vmatmul.mubr.bf16.gmra.mrb[0].mxu0 %v3265
  %v3315 = vpop.f32.mrb[0].mxu0
  %v3316 = vadd.f32 0.0, %v3315
  %v3317 = vpop.f32.mrb[0].mxu0
  %v3318 = vpop.f32.mrb[0].mxu0
  %v3319 = vadd.f32 0.0, %v3318
  %v3320 = vpop.f32.mrb[0].mxu0
  %3321 = vmatprep.mubr.bf16.mxu0 0
  %3322 = vmatmul.mubr.bf16.gmra.mrb[0].mxu0 %v3268
  %v3323 = vpop.f32.mrb[0].mxu0
  %v3324 = vadd.f32 0.0, %v3323
  %v3325 = vpop.f32.mrb[0].mxu0
  %v3326 = vpop.f32.mrb[0].mxu0
  %v3327 = vadd.f32 0.0, %v3326
  %v3328 = vpop.f32.mrb[0].mxu0
  %3329 = vmatprep.mubr.bf16.mxu0 0
  %3330 = vmatmul.mubr.bf16.gmra.mrb[0].mxu0 %v3271
  %v3331 = vpop.f32.mrb[0].mxu0
  %v3332 = vadd.f32 0.0, %v3331
  %v3333 = vpop.f32.mrb[0].mxu0
  %v3334 = vpop.f32.mrb[0].mxu0
  %v3335 = vadd.f32 0.0, %v3334
  %v3336 = vpop.f32.mrb[0].mxu0
  %3337 = vdwg.mxu0
  %3346 = vrot.lane.b32.xlu0 %v3308, 16
  %v3347 = vpop.permute.xlu0 %3346
  %3348 = vrot.lane.b32.xlu0 %v3311, 16
  %v3349 = vpop.permute.xlu0 %3348
  %3350 = vrot.lane.b32.xlu0 %v3316, 16
  %v3351 = vpop.permute.xlu0 %3350
  %3352 = vrot.lane.b32.xlu0 %v3319, 16
  %v3353 = vpop.permute.xlu0 %3352
  %3354 = vrot.lane.b32.xlu0 %v3324, 16
  %v3355 = vpop.permute.xlu0 %3354
  %3356 = vrot.lane.b32.xlu0 %v3327, 16
  %v3357 = vpop.permute.xlu0 %3356
  %3358 = vrot.lane.b32.xlu0 %v3332, 16
  %v3359 = vpop.permute.xlu0 %3358
  %3360 = vrot.lane.b32.xlu0 %v3335, 16
  %v3361 = vpop.permute.xlu0 %3360
  %v3370 = vsel %vm2169, %v3022, %v3347
  %v3371 = vsel %vm2169, %v3025, %v3349
  %v3372 = vsel %vm2169, %v3030, %v3351
  %v3373 = vsel %vm2169, %v3033, %v3353
  %v3374 = vsel %vm2169, %v3038, %v3355
  %v3375 = vsel %vm2169, %v3041, %v3357
  %v3376 = vsel %vm2169, %v3046, %v3359
  %v3377 = vsel %vm2169, %v3049, %v3361
  %v3378 = vpack.c.bf16 %v2759, %v2758
  %v3379 = vpack.c.bf16 %v2761, %v2760
  %v3380 = vpack.c.bf16 %v2763, %v2762
  %v3381 = vpack.c.bf16 %v2765, %v2764
  %v3382 = vpack.c.bf16 %v3371, %v3370
  %v3383 = vpack.c.bf16 %v3373, %v3372
  %v3384 = vpack.c.bf16 %v3375, %v3374
  %v3385 = vpack.c.bf16 %v3377, %v3376
  %v3386 = vld [vmem:[%s6] sm:$0xf]
  %v3387 = vld [vmem:[%s6 + $0x4] sm:$0xf]
  %v3388 = vld [vmem:[%s6 + $0x8] sm:$0xf]
  %v3389 = vld [vmem:[%s6 + $0xc] sm:$0xf]
  %v3394 = vunpack.c.l.b16 %v3386
  %v3395 = vunpack.c.l.b16 %v3387
  %v3396 = vunpack.c.l.b16 %v3388
  %v3397 = vunpack.c.l.b16 %v3389
  %v3398 = vpack.c.b16 %v3395, %v3394
  %v3399 = vpack.c.b16 %v3397, %v3396
  %v3403 = vsel %vm42, %v3378, 0
  %v3406 = vsel %vm42, %v3379, 0
  %v3409 = vsel %vm42, %v3380, 0
  %v3412 = vsel %vm42, %v3381, 0
  %v3415 = vsel %vm42, %v3382, 0
  %v3418 = vsel %vm42, %v3383, 0
  %v3421 = vsel %vm42, %v3384, 0
  %v3424 = vsel %vm42, %v3385, 0
  %3426 = vmatprep.subr.bf16.mxu0 0
  %3427 = vmatpush1.bf16.msra.mxu0 %v3398
  %3428 = vmatprep.subr.bf16.mxu0 0
  %3429 = vmatpush1.bf16.msra.mxu0 %v3399
  %3430 = vmatprep.subr.bf16.mxu0 0
  %3431 = vmatpush1.bf16.msra.mxu0 0
  %3432 = vmatprep.subr.bf16.mxu0 0
  %3433 = vmatpush1.bf16.msra.mxu0 0
  %3434 = vmatprep.subr.bf16.mxu0 0
  %3435 = vmatpush1.bf16.msra.mxu0 0
  %3436 = vmatprep.subr.bf16.mxu0 0
  %3437 = vmatpush1.bf16.msra.mxu0 0
  %3438 = vmatprep.subr.bf16.mxu0 0
  %3439 = vmatpush1.bf16.msra.mxu0 0
  %3440 = vmatprep.subr.bf16.mxu0 0
  %3441 = vmatpush1.bf16.msra.mxu0 0
  %3442 = vmatprep.subr.bf16.mxu0 0
  %3443 = vmatpush1.bf16.msra.mxu0 0
  %3444 = vmatprep.subr.bf16.mxu0 0
  %3445 = vmatpush1.bf16.msra.mxu0 0
  %3446 = vmatprep.subr.bf16.mxu0 0
  %3447 = vmatpush1.bf16.msra.mxu0 0
  %3448 = vmatprep.subr.bf16.mxu0 0
  %3449 = vmatpush1.bf16.msra.mxu0 0
  %3450 = vmatprep.subr.bf16.mxu0 0
  %3451 = vmatpush1.bf16.msra.mxu0 0
  %3452 = vmatprep.subr.bf16.mxu0 0
  %3453 = vmatpush1.bf16.msra.mxu0 0
  %3454 = vmatprep.subr.bf16.mxu0 0
  %3455 = vmatpush1.bf16.msra.mxu0 0
  %3456 = vmatprep.subr.bf16.mxu0 0
  %3457 = vmatpush1.bf16.msra.mxu0 0
  %3458 = vmatprep.mubr.bf16.mxu0 0
  %3459 = vmatmul.mubr.bf16.gmra.mrb[0].mxu0 %v3403
  %v3460 = vpop.f32.mrb[0].mxu0
  %v3461 = vadd.f32 0.0, %v3460
  %v3462 = vpop.f32.mrb[0].mxu0
  %v3463 = vpop.f32.mrb[0].mxu0
  %v3464 = vadd.f32 0.0, %v3463
  %v3465 = vpop.f32.mrb[0].mxu0
  %3466 = vmatprep.mubr.bf16.mxu0 0
  %3467 = vmatmul.mubr.bf16.gmra.mrb[0].mxu0 %v3406
  %v3468 = vpop.f32.mrb[0].mxu0
  %v3469 = vadd.f32 0.0, %v3468
  %v3470 = vpop.f32.mrb[0].mxu0
  %v3471 = vpop.f32.mrb[0].mxu0
  %v3472 = vadd.f32 0.0, %v3471
  %v3473 = vpop.f32.mrb[0].mxu0
  %3474 = vmatprep.mubr.bf16.mxu0 0
  %3475 = vmatmul.mubr.bf16.gmra.mrb[0].mxu0 %v3409
  %v3476 = vpop.f32.mrb[0].mxu0
  %v3477 = vadd.f32 0.0, %v3476
  %v3478 = vpop.f32.mrb[0].mxu0
  %v3479 = vpop.f32.mrb[0].mxu0
  %v3480 = vadd.f32 0.0, %v3479
  %v3481 = vpop.f32.mrb[0].mxu0
  %3482 = vmatprep.mubr.bf16.mxu0 0
  %3483 = vmatmul.mubr.bf16.gmra.mrb[0].mxu0 %v3412
  %v3484 = vpop.f32.mrb[0].mxu0
  %v3485 = vadd.f32 0.0, %v3484
  %v3486 = vpop.f32.mrb[0].mxu0
  %v3487 = vpop.f32.mrb[0].mxu0
  %v3488 = vadd.f32 0.0, %v3487
  %v3489 = vpop.f32.mrb[0].mxu0
  %3490 = vmatprep.mubr.bf16.mxu0 0
  %3491 = vmatmul.mubr.bf16.gmra.mrb[0].mxu0 %v3415
  %v3492 = vpop.f32.mrb[0].mxu0
  %v3493 = vadd.f32 0.0, %v3492
  %v3494 = vpop.f32.mrb[0].mxu0
  %v3495 = vpop.f32.mrb[0].mxu0
  %v3496 = vadd.f32 0.0, %v3495
  %v3497 = vpop.f32.mrb[0].mxu0
  %3498 = vmatprep.mubr.bf16.mxu0 0
  %3499 = vmatmul.mubr.bf16.gmra.mrb[0].mxu0 %v3418
  %v3500 = vpop.f32.mrb[0].mxu0
  %v3501 = vadd.f32 0.0, %v3500
  %v3502 = vpop.f32.mrb[0].mxu0
  %v3503 = vpop.f32.mrb[0].mxu0
  %v3504 = vadd.f32 0.0, %v3503
  %v3505 = vpop.f32.mrb[0].mxu0
  %3506 = vmatprep.mubr.bf16.mxu0 0
  %3507 = vmatmul.mubr.bf16.gmra.mrb[0].mxu0 %v3421
  %v3508 = vpop.f32.mrb[0].mxu0
  %v3509 = vadd.f32 0.0, %v3508
  %v3510 = vpop.f32.mrb[0].mxu0
  %v3511 = vpop.f32.mrb[0].mxu0
  %v3512 = vadd.f32 0.0, %v3511
  %v3513 = vpop.f32.mrb[0].mxu0
  %3514 = vmatprep.mubr.bf16.mxu0 0
  %3515 = vmatmul.mubr.bf16.gmra.mrb[0].mxu0 %v3424
  %v3516 = vpop.f32.mrb[0].mxu0
  %v3517 = vadd.f32 0.0, %v3516
  %v3518 = vpop.f32.mrb[0].mxu0
  %v3519 = vpop.f32.mrb[0].mxu0
  %v3520 = vadd.f32 0.0, %v3519
  %v3521 = vpop.f32.mrb[0].mxu0
  %3522 = vdwg.mxu0
  %v3523 = vadd.f32 %v79, %v3461
  %v3524 = vadd.f32 %v80, %v3464
  %v3525 = vadd.f32 %v81, %v3469
  %v3526 = vadd.f32 %v82, %v3472
  %v3527 = vadd.f32 %v83, %v3477
  %v3528 = vadd.f32 %v84, %v3480
  %v3529 = vadd.f32 %v85, %v3485
  %v3530 = vadd.f32 %v86, %v3488
  %v3531 = vadd.f32 %v87, %v3493
  %v3532 = vadd.f32 %v88, %v3496
  %v3533 = vadd.f32 %v89, %v3501
  %v3534 = vadd.f32 %v90, %v3504
  %v3535 = vadd.f32 %v91, %v3509
  %v3536 = vadd.f32 %v92, %v3512
  %v3537 = vadd.f32 %v93, %v3517
  %v3538 = vadd.f32 %v94, %v3520
  %v3539 = vld [vmem:[%s7] sm:$0x1]
  %v3541 = vlaneseq
  %v3542 = vshrl.u32 %v3541, 7
  %v3543 = vsub.s32 0, %v3542
  %v3544 = vrot.slane %v3539, %v3543
  %v3546 = vadd.f32 %v3523, %v3544
  %v3547 = vadd.f32 %v3524, %v3544
  %v3548 = vadd.f32 %v3525, %v3544
  %v3549 = vadd.f32 %v3526, %v3544
  %v3550 = vadd.f32 %v3527, %v3544
  %v3551 = vadd.f32 %v3528, %v3544
  %v3552 = vadd.f32 %v3529, %v3544
  %v3553 = vadd.f32 %v3530, %v3544
  %v3554 = vadd.f32 %v3531, %v3544
  %v3555 = vadd.f32 %v3532, %v3544
  %v3556 = vadd.f32 %v3533, %v3544
  %v3557 = vadd.f32 %v3534, %v3544
  %v3558 = vadd.f32 %v3535, %v3544
  %v3559 = vadd.f32 %v3536, %v3544
  %v3560 = vadd.f32 %v3537, %v3544
  %v3561 = vadd.f32 %v3538, %v3544
  %s3562 = scalar_lea.vmem %s2, 1
  %v3563 = vld [vmem:[%s3562] sm:$0x1]
  %s3564 = scalar_lea.vmem %s3, 1
  %v3565 = vld [vmem:[%s3564] sm:$0x1]
  %v3566 = vsel %vm42, %v3546, 0.0
  %3567 = vadd.xlane.f32.xlu0 %v3566
  %v3568 = vpop.xlane.xlu0 %3567
  %v3569 = vsel %vm42, %v3547, 0.0
  %3570 = vadd.xlane.f32.xlu0 %v3569
  %v3571 = vpop.xlane.xlu0 %3570
  %v3572 = vsel %vm42, %v3548, 0.0
  %3573 = vadd.xlane.f32.xlu0 %v3572
  %v3574 = vpop.xlane.xlu0 %3573
  %v3575 = vsel %vm42, %v3549, 0.0
  %3576 = vadd.xlane.f32.xlu0 %v3575
  %v3577 = vpop.xlane.xlu0 %3576
  %v3578 = vsel %vm42, %v3550, 0.0
  %3579 = vadd.xlane.f32.xlu0 %v3578
  %v3580 = vpop.xlane.xlu0 %3579
  %v3581 = vsel %vm42, %v3551, 0.0
  %3582 = vadd.xlane.f32.xlu0 %v3581
  %v3583 = vpop.xlane.xlu0 %3582
  %v3584 = vsel %vm42, %v3552, 0.0
  %3585 = vadd.xlane.f32.xlu0 %v3584
  %v3586 = vpop.xlane.xlu0 %3585
  %v3587 = vsel %vm42, %v3553, 0.0
  %3588 = vadd.xlane.f32.xlu0 %v3587
  %v3589 = vpop.xlane.xlu0 %3588
  %v3590 = vsel %vm42, %v3554, 0.0
  %3591 = vadd.xlane.f32.xlu0 %v3590
  %v3592 = vpop.xlane.xlu0 %3591
  %v3593 = vsel %vm42, %v3555, 0.0
  %3594 = vadd.xlane.f32.xlu0 %v3593
  %v3595 = vpop.xlane.xlu0 %3594
  %v3596 = vsel %vm42, %v3556, 0.0
  %3597 = vadd.xlane.f32.xlu0 %v3596
  %v3598 = vpop.xlane.xlu0 %3597
  %v3599 = vsel %vm42, %v3557, 0.0
  %3600 = vadd.xlane.f32.xlu0 %v3599
  %v3601 = vpop.xlane.xlu0 %3600
  %v3602 = vsel %vm42, %v3558, 0.0
  %3603 = vadd.xlane.f32.xlu0 %v3602
  %v3604 = vpop.xlane.xlu0 %3603
  %v3605 = vsel %vm42, %v3559, 0.0
  %3606 = vadd.xlane.f32.xlu0 %v3605
  %v3607 = vpop.xlane.xlu0 %3606
  %v3608 = vsel %vm42, %v3560, 0.0
  %3609 = vadd.xlane.f32.xlu0 %v3608
  %v3610 = vpop.xlane.xlu0 %3609
  %v3611 = vsel %vm42, %v3561, 0.0
  %3612 = vadd.xlane.f32.xlu0 %v3611
  %v3613 = vpop.xlane.xlu0 %3612
  %v3614 = vmul.f32 %v3568, %v145
  %v3615 = vmul.f32 %v3571, %v145
  %v3616 = vmul.f32 %v3574, %v145
  %v3617 = vmul.f32 %v3577, %v145
  %v3618 = vmul.f32 %v3580, %v145
  %v3619 = vmul.f32 %v3583, %v145
  %v3620 = vmul.f32 %v3586, %v145
  %v3621 = vmul.f32 %v3589, %v145
  %v3622 = vmul.f32 %v3592, %v145
  %v3623 = vmul.f32 %v3595, %v145
  %v3624 = vmul.f32 %v3598, %v145
  %v3625 = vmul.f32 %v3601, %v145
  %v3626 = vmul.f32 %v3604, %v145
  %v3627 = vmul.f32 %v3607, %v145
  %v3628 = vmul.f32 %v3610, %v145
  %v3629 = vmul.f32 %v3613, %v145
  %v3630 = vmul.f32 %v3546, %v3546
  %v3631 = vmul.f32 %v3547, %v3547
  %v3632 = vmul.f32 %v3548, %v3548
  %v3633 = vmul.f32 %v3549, %v3549
  %v3634 = vmul.f32 %v3550, %v3550
  %v3635 = vmul.f32 %v3551, %v3551
  %v3636 = vmul.f32 %v3552, %v3552
  %v3637 = vmul.f32 %v3553, %v3553
  %v3638 = vmul.f32 %v3554, %v3554
  %v3639 = vmul.f32 %v3555, %v3555
  %v3640 = vmul.f32 %v3556, %v3556
  %v3641 = vmul.f32 %v3557, %v3557
  %v3642 = vmul.f32 %v3558, %v3558
  %v3643 = vmul.f32 %v3559, %v3559
  %v3644 = vmul.f32 %v3560, %v3560
  %v3645 = vmul.f32 %v3561, %v3561
  %v3646 = vsel %vm42, %v3630, 0.0
  %3647 = vadd.xlane.f32.xlu0 %v3646
  %v3648 = vpop.xlane.xlu0 %3647
  %v3649 = vsel %vm42, %v3631, 0.0
  %3650 = vadd.xlane.f32.xlu0 %v3649
  %v3651 = vpop.xlane.xlu0 %3650
  %v3652 = vsel %vm42, %v3632, 0.0
  %3653 = vadd.xlane.f32.xlu0 %v3652
  %v3654 = vpop.xlane.xlu0 %3653
  %v3655 = vsel %vm42, %v3633, 0.0
  %3656 = vadd.xlane.f32.xlu0 %v3655
  %v3657 = vpop.xlane.xlu0 %3656
  %v3658 = vsel %vm42, %v3634, 0.0
  %3659 = vadd.xlane.f32.xlu0 %v3658
  %v3660 = vpop.xlane.xlu0 %3659
  %v3661 = vsel %vm42, %v3635, 0.0
  %3662 = vadd.xlane.f32.xlu0 %v3661
  %v3663 = vpop.xlane.xlu0 %3662
  %v3664 = vsel %vm42, %v3636, 0.0
  %3665 = vadd.xlane.f32.xlu0 %v3664
  %v3666 = vpop.xlane.xlu0 %3665
  %v3667 = vsel %vm42, %v3637, 0.0
  %3668 = vadd.xlane.f32.xlu0 %v3667
  %v3669 = vpop.xlane.xlu0 %3668
  %v3670 = vsel %vm42, %v3638, 0.0
  %3671 = vadd.xlane.f32.xlu0 %v3670
  %v3672 = vpop.xlane.xlu0 %3671
  %v3673 = vsel %vm42, %v3639, 0.0
  %3674 = vadd.xlane.f32.xlu0 %v3673
  %v3675 = vpop.xlane.xlu0 %3674
  %v3676 = vsel %vm42, %v3640, 0.0
  %3677 = vadd.xlane.f32.xlu0 %v3676
  %v3678 = vpop.xlane.xlu0 %3677
  %v3679 = vsel %vm42, %v3641, 0.0
  %3680 = vadd.xlane.f32.xlu0 %v3679
  %v3681 = vpop.xlane.xlu0 %3680
  %v3682 = vsel %vm42, %v3642, 0.0
  %3683 = vadd.xlane.f32.xlu0 %v3682
  %v3684 = vpop.xlane.xlu0 %3683
  %v3685 = vsel %vm42, %v3643, 0.0
  %3686 = vadd.xlane.f32.xlu0 %v3685
  %v3687 = vpop.xlane.xlu0 %3686
  %v3688 = vsel %vm42, %v3644, 0.0
  %3689 = vadd.xlane.f32.xlu0 %v3688
  %v3690 = vpop.xlane.xlu0 %3689
  %v3691 = vsel %vm42, %v3645, 0.0
  %3692 = vadd.xlane.f32.xlu0 %v3691
  %v3693 = vpop.xlane.xlu0 %3692
  %v3694 = vmul.f32 %v3648, %v145
  %v3695 = vmul.f32 %v3651, %v145
  %v3696 = vmul.f32 %v3654, %v145
  %v3697 = vmul.f32 %v3657, %v145
  %v3698 = vmul.f32 %v3660, %v145
  %v3699 = vmul.f32 %v3663, %v145
  %v3700 = vmul.f32 %v3666, %v145
  %v3701 = vmul.f32 %v3669, %v145
  %v3702 = vmul.f32 %v3672, %v145
  %v3703 = vmul.f32 %v3675, %v145
  %v3704 = vmul.f32 %v3678, %v145
  %v3705 = vmul.f32 %v3681, %v145
  %v3706 = vmul.f32 %v3684, %v145
  %v3707 = vmul.f32 %v3687, %v145
  %v3708 = vmul.f32 %v3690, %v145
  %v3709 = vmul.f32 %v3693, %v145
  %v3710 = vmul.f32 %v3614, %v3614
  %v3711 = vmul.f32 %v3615, %v3615
  %v3712 = vmul.f32 %v3616, %v3616
  %v3713 = vmul.f32 %v3617, %v3617
  %v3714 = vmul.f32 %v3618, %v3618
  %v3715 = vmul.f32 %v3619, %v3619
  %v3716 = vmul.f32 %v3620, %v3620
  %v3717 = vmul.f32 %v3621, %v3621
  %v3718 = vmul.f32 %v3622, %v3622
  %v3719 = vmul.f32 %v3623, %v3623
  %v3720 = vmul.f32 %v3624, %v3624
  %v3721 = vmul.f32 %v3625, %v3625
  %v3722 = vmul.f32 %v3626, %v3626
  %v3723 = vmul.f32 %v3627, %v3627
  %v3724 = vmul.f32 %v3628, %v3628
  %v3725 = vmul.f32 %v3629, %v3629
  %v3726 = vsub.f32 %v3694, %v3710
  %v3727 = vsub.f32 %v3695, %v3711
  %v3728 = vsub.f32 %v3696, %v3712
  %v3729 = vsub.f32 %v3697, %v3713
  %v3730 = vsub.f32 %v3698, %v3714
  %v3731 = vsub.f32 %v3699, %v3715
  %v3732 = vsub.f32 %v3700, %v3716
  %v3733 = vsub.f32 %v3701, %v3717
  %v3734 = vsub.f32 %v3702, %v3718
  %v3735 = vsub.f32 %v3703, %v3719
  %v3736 = vsub.f32 %v3704, %v3720
  %v3737 = vsub.f32 %v3705, %v3721
  %v3738 = vsub.f32 %v3706, %v3722
  %v3739 = vsub.f32 %v3707, %v3723
  %v3740 = vsub.f32 %v3708, %v3724
  %v3741 = vsub.f32 %v3709, %v3725
  %v3742 = vsub.f32 %v3546, %v3614
  %v3743 = vsub.f32 %v3547, %v3615
  %v3744 = vsub.f32 %v3548, %v3616
  %v3745 = vsub.f32 %v3549, %v3617
  %v3746 = vsub.f32 %v3550, %v3618
  %v3747 = vsub.f32 %v3551, %v3619
  %v3748 = vsub.f32 %v3552, %v3620
  %v3749 = vsub.f32 %v3553, %v3621
  %v3750 = vsub.f32 %v3554, %v3622
  %v3751 = vsub.f32 %v3555, %v3623
  %v3752 = vsub.f32 %v3556, %v3624
  %v3753 = vsub.f32 %v3557, %v3625
  %v3754 = vsub.f32 %v3558, %v3626
  %v3755 = vsub.f32 %v3559, %v3627
  %v3756 = vsub.f32 %v3560, %v3628
  %v3757 = vsub.f32 %v3561, %v3629
  %v3758 = vadd.f32 %v3726, 1e-05
  %v3759 = vadd.f32 %v3727, 1e-05
  %v3760 = vadd.f32 %v3728, 1e-05
  %v3761 = vadd.f32 %v3729, 1e-05
  %v3762 = vadd.f32 %v3730, 1e-05
  %v3763 = vadd.f32 %v3731, 1e-05
  %v3764 = vadd.f32 %v3732, 1e-05
  %v3765 = vadd.f32 %v3733, 1e-05
  %v3766 = vadd.f32 %v3734, 1e-05
  %v3767 = vadd.f32 %v3735, 1e-05
  %v3768 = vadd.f32 %v3736, 1e-05
  %v3769 = vadd.f32 %v3737, 1e-05
  %v3770 = vadd.f32 %v3738, 1e-05
  %v3771 = vadd.f32 %v3739, 1e-05
  %v3772 = vadd.f32 %v3740, 1e-05
  %v3773 = vadd.f32 %v3741, 1e-05
  %v3774 = vrsqrt.pop %v3758
  %v3775 = vrsqrt.pop %v3759
  %v3776 = vrsqrt.pop %v3760
  %v3777 = vrsqrt.pop %v3761
  %v3778 = vrsqrt.pop %v3762
  %v3779 = vrsqrt.pop %v3763
  %v3780 = vrsqrt.pop %v3764
  %v3781 = vrsqrt.pop %v3765
  %v3782 = vrsqrt.pop %v3766
  %v3783 = vrsqrt.pop %v3767
  %v3784 = vrsqrt.pop %v3768
  %v3785 = vrsqrt.pop %v3769
  %v3786 = vrsqrt.pop %v3770
  %v3787 = vrsqrt.pop %v3771
  %v3788 = vrsqrt.pop %v3772
  %v3789 = vrsqrt.pop %v3773
  %v3790 = vmul.f32 %v3742, %v3774
  %v3791 = vmul.f32 %v3743, %v3775
  %v3792 = vmul.f32 %v3744, %v3776
  %v3793 = vmul.f32 %v3745, %v3777
  %v3794 = vmul.f32 %v3746, %v3778
  %v3795 = vmul.f32 %v3747, %v3779
  %v3796 = vmul.f32 %v3748, %v3780
  %v3797 = vmul.f32 %v3749, %v3781
  %v3798 = vmul.f32 %v3750, %v3782
  %v3799 = vmul.f32 %v3751, %v3783
  %v3800 = vmul.f32 %v3752, %v3784
  %v3801 = vmul.f32 %v3753, %v3785
  %v3802 = vmul.f32 %v3754, %v3786
  %v3803 = vmul.f32 %v3755, %v3787
  %v3804 = vmul.f32 %v3756, %v3788
  %v3805 = vmul.f32 %v3757, %v3789
  %v3807 = vlaneseq
  %v3808 = vshrl.u32 %v3807, 7
  %v3809 = vsub.s32 0, %v3808
  %v3810 = vrot.slane %v3563, %v3809
  %v3812 = vmul.f32 %v3790, %v3810
  %v3813 = vmul.f32 %v3791, %v3810
  %v3814 = vmul.f32 %v3792, %v3810
  %v3815 = vmul.f32 %v3793, %v3810
  %v3816 = vmul.f32 %v3794, %v3810
  %v3817 = vmul.f32 %v3795, %v3810
  %v3818 = vmul.f32 %v3796, %v3810
  %v3819 = vmul.f32 %v3797, %v3810
  %v3820 = vmul.f32 %v3798, %v3810
  %v3821 = vmul.f32 %v3799, %v3810
  %v3822 = vmul.f32 %v3800, %v3810
  %v3823 = vmul.f32 %v3801, %v3810
  %v3824 = vmul.f32 %v3802, %v3810
  %v3825 = vmul.f32 %v3803, %v3810
  %v3826 = vmul.f32 %v3804, %v3810
  %v3827 = vmul.f32 %v3805, %v3810
  %v3829 = vlaneseq
  %v3830 = vshrl.u32 %v3829, 7
  %v3831 = vsub.s32 0, %v3830
  %v3832 = vrot.slane %v3565, %v3831
  %v3834 = vadd.f32 %v3812, %v3832
  %v3835 = vadd.f32 %v3813, %v3832
  %v3836 = vadd.f32 %v3814, %v3832
  %v3837 = vadd.f32 %v3815, %v3832
  %v3838 = vadd.f32 %v3816, %v3832
  %v3839 = vadd.f32 %v3817, %v3832
  %v3840 = vadd.f32 %v3818, %v3832
  %v3841 = vadd.f32 %v3819, %v3832
  %v3842 = vadd.f32 %v3820, %v3832
  %v3843 = vadd.f32 %v3821, %v3832
  %v3844 = vadd.f32 %v3822, %v3832
  %v3845 = vadd.f32 %v3823, %v3832
  %v3846 = vadd.f32 %v3824, %v3832
  %v3847 = vadd.f32 %v3825, %v3832
  %v3848 = vadd.f32 %v3826, %v3832
  %v3849 = vadd.f32 %v3827, %v3832
  %v3850 = vpack.c.bf16 %v3835, %v3834
  %v3851 = vpack.c.bf16 %v3837, %v3836
  %v3852 = vpack.c.bf16 %v3839, %v3838
  %v3853 = vpack.c.bf16 %v3841, %v3840
  %v3854 = vpack.c.bf16 %v3843, %v3842
  %v3855 = vpack.c.bf16 %v3845, %v3844
  %v3856 = vpack.c.bf16 %v3847, %v3846
  %v3857 = vpack.c.bf16 %v3849, %v3848
  %v3858 = vld [vmem:[%s8] sm:$0xf]
  %v3859 = vld [vmem:[%s8 + $0x4] sm:$0xf]
  %v3860 = vld [vmem:[%s8 + $0x8] sm:$0xf]
  %v3861 = vld [vmem:[%s8 + $0xc] sm:$0xf]
  %v3862 = vld [vmem:[%s9] sm:$0x1]
  %v3864 = vlaneseq
  %v3865 = vshrl.u32 %v3864, 7
  %v3866 = vsub.s32 0, %v3865
  %v3867 = vrot.slane %v3862, %v3866
  %v3873 = vunpack.c.l.b16 %v3858
  %v3874 = vunpack.c.l.b16 %v3859
  %v3875 = vunpack.c.l.b16 %v3860
  %v3876 = vunpack.c.l.b16 %v3861
  %v3877 = vpack.c.b16 %v3874, %v3873
  %v3878 = vpack.c.b16 %v3876, %v3875
  %v3882 = vsel %vm42, %v3850, 0
  %v3885 = vsel %vm42, %v3851, 0
  %v3888 = vsel %vm42, %v3852, 0
  %v3891 = vsel %vm42, %v3853, 0
  %v3894 = vsel %vm42, %v3854, 0
  %v3897 = vsel %vm42, %v3855, 0
  %v3900 = vsel %vm42, %v3856, 0
  %v3903 = vsel %vm42, %v3857, 0
  %3905 = vmatprep.subr.bf16.mxu0 0
  %3906 = vmatpush1.bf16.msra.mxu0 %v3877
  %3907 = vmatprep.subr.bf16.mxu0 0
  %3908 = vmatpush1.bf16.msra.mxu0 %v3878
  %3909 = vmatprep.subr.bf16.mxu0 0
  %3910 = vmatpush1.bf16.msra.mxu0 0
  %3911 = vmatprep.subr.bf16.mxu0 0
  %3912 = vmatpush1.bf16.msra.mxu0 0
  %3913 = vmatprep.subr.bf16.mxu0 0
  %3914 = vmatpush1.bf16.msra.mxu0 0
  %3915 = vmatprep.subr.bf16.mxu0 0
  %3916 = vmatpush1.bf16.msra.mxu0 0
  %3917 = vmatprep.subr.bf16.mxu0 0
  %3918 = vmatpush1.bf16.msra.mxu0 0
  %3919 = vmatprep.subr.bf16.mxu0 0
  %3920 = vmatpush1.bf16.msra.mxu0 0
  %3921 = vmatprep.subr.bf16.mxu0 0
  %3922 = vmatpush1.bf16.msra.mxu0 0
  %3923 = vmatprep.subr.bf16.mxu0 0
  %3924 = vmatpush1.bf16.msra.mxu0 0
  %3925 = vmatprep.subr.bf16.mxu0 0
  %3926 = vmatpush1.bf16.msra.mxu0 0
  %3927 = vmatprep.subr.bf16.mxu0 0
  %3928 = vmatpush1.bf16.msra.mxu0 0
  %3929 = vmatprep.subr.bf16.mxu0 0
  %3930 = vmatpush1.bf16.msra.mxu0 0
  %3931 = vmatprep.subr.bf16.mxu0 0
  %3932 = vmatpush1.bf16.msra.mxu0 0
  %3933 = vmatprep.subr.bf16.mxu0 0
  %3934 = vmatpush1.bf16.msra.mxu0 0
  %3935 = vmatprep.subr.bf16.mxu0 0
  %3936 = vmatpush1.bf16.msra.mxu0 0
  %3937 = vmatprep.mubr.bf16.mxu0 0
  %3938 = vmatmul.mubr.bf16.gmra.mrb[0].mxu0 %v3882
  %v3939 = vpop.f32.mrb[0].mxu0
  %v3940 = vadd.f32 %v3867, %v3939
  %v3941 = vpop.f32.mrb[0].mxu0
  %v3942 = vpop.f32.mrb[0].mxu0
  %v3943 = vadd.f32 %v3867, %v3942
  %v3944 = vpop.f32.mrb[0].mxu0
  %3945 = vmatprep.mubr.bf16.mxu0 0
  %3946 = vmatmul.mubr.bf16.gmra.mrb[0].mxu0 %v3885
  %v3947 = vpop.f32.mrb[0].mxu0
  %v3948 = vadd.f32 %v3867, %v3947
  %v3949 = vpop.f32.mrb[0].mxu0
  %v3950 = vpop.f32.mrb[0].mxu0
  %v3951 = vadd.f32 %v3867, %v3950
  %v3952 = vpop.f32.mrb[0].mxu0
  %3953 = vmatprep.mubr.bf16.mxu0 0
  %3954 = vmatmul.mubr.bf16.gmra.mrb[0].mxu0 %v3888
  %v3955 = vpop.f32.mrb[0].mxu0
  %v3956 = vadd.f32 %v3867, %v3955
  %v3957 = vpop.f32.mrb[0].mxu0
  %v3958 = vpop.f32.mrb[0].mxu0
  %v3959 = vadd.f32 %v3867, %v3958
  %v3960 = vpop.f32.mrb[0].mxu0
  %3961 = vmatprep.mubr.bf16.mxu0 0
  %3962 = vmatmul.mubr.bf16.gmra.mrb[0].mxu0 %v3891
  %v3963 = vpop.f32.mrb[0].mxu0
  %v3964 = vadd.f32 %v3867, %v3963
  %v3965 = vpop.f32.mrb[0].mxu0
  %v3966 = vpop.f32.mrb[0].mxu0
  %v3967 = vadd.f32 %v3867, %v3966
  %v3968 = vpop.f32.mrb[0].mxu0
  %3969 = vmatprep.mubr.bf16.mxu0 0
  %3970 = vmatmul.mubr.bf16.gmra.mrb[0].mxu0 %v3894
  %v3971 = vpop.f32.mrb[0].mxu0
  %v3972 = vadd.f32 %v3867, %v3971
  %v3973 = vpop.f32.mrb[0].mxu0
  %v3974 = vpop.f32.mrb[0].mxu0
  %v3975 = vadd.f32 %v3867, %v3974
  %v3976 = vpop.f32.mrb[0].mxu0
  %3977 = vmatprep.mubr.bf16.mxu0 0
  %3978 = vmatmul.mubr.bf16.gmra.mrb[0].mxu0 %v3897
  %v3979 = vpop.f32.mrb[0].mxu0
  %v3980 = vadd.f32 %v3867, %v3979
  %v3981 = vpop.f32.mrb[0].mxu0
  %v3982 = vpop.f32.mrb[0].mxu0
  %v3983 = vadd.f32 %v3867, %v3982
  %v3984 = vpop.f32.mrb[0].mxu0
  %3985 = vmatprep.mubr.bf16.mxu0 0
  %3986 = vmatmul.mubr.bf16.gmra.mrb[0].mxu0 %v3900
  %v3987 = vpop.f32.mrb[0].mxu0
  %v3988 = vadd.f32 %v3867, %v3987
  %v3989 = vpop.f32.mrb[0].mxu0
  %v3990 = vpop.f32.mrb[0].mxu0
  %v3991 = vadd.f32 %v3867, %v3990
  %v3992 = vpop.f32.mrb[0].mxu0
  %3993 = vmatprep.mubr.bf16.mxu0 0
  %3994 = vmatmul.mubr.bf16.gmra.mrb[0].mxu0 %v3903
  %v3995 = vpop.f32.mrb[0].mxu0
  %v3996 = vadd.f32 %v3867, %v3995
  %v3997 = vpop.f32.mrb[0].mxu0
  %v3998 = vpop.f32.mrb[0].mxu0
  %v3999 = vadd.f32 %v3867, %v3998
  %v4000 = vpop.f32.mrb[0].mxu0
  %4001 = vdwg.mxu0
  %v4002 = vmul.f32 %v3940, 0.5
  %v4003 = vmul.f32 %v3943, 0.5
  %v4004 = vmul.f32 %v3948, 0.5
  %v4005 = vmul.f32 %v3951, 0.5
  %v4006 = vmul.f32 %v3956, 0.5
  %v4007 = vmul.f32 %v3959, 0.5
  %v4008 = vmul.f32 %v3964, 0.5
  %v4009 = vmul.f32 %v3967, 0.5
  %v4010 = vmul.f32 %v3972, 0.5
  %v4011 = vmul.f32 %v3975, 0.5
  %v4012 = vmul.f32 %v3980, 0.5
  %v4013 = vmul.f32 %v3983, 0.5
  %v4014 = vmul.f32 %v3988, 0.5
  %v4015 = vmul.f32 %v3991, 0.5
  %v4016 = vmul.f32 %v3996, 0.5
  %v4017 = vmul.f32 %v3999, 0.5
  %v4018 = vmul.f32 %v3940, 0.70710677
  %v4019 = vmul.f32 %v3943, 0.70710677
  %v4020 = vmul.f32 %v3948, 0.70710677
  %v4021 = vmul.f32 %v3951, 0.70710677
  %v4022 = vmul.f32 %v3956, 0.70710677
  %v4023 = vmul.f32 %v3959, 0.70710677
  %v4024 = vmul.f32 %v3964, 0.70710677
  %v4025 = vmul.f32 %v3967, 0.70710677
  %v4026 = vmul.f32 %v3972, 0.70710677
  %v4027 = vmul.f32 %v3975, 0.70710677
  %v4028 = vmul.f32 %v3980, 0.70710677
  %v4029 = vmul.f32 %v3983, 0.70710677
  %v4030 = vmul.f32 %v3988, 0.70710677
  %v4031 = vmul.f32 %v3991, 0.70710677
  %v4032 = vmul.f32 %v3996, 0.70710677
  %v4033 = vmul.f32 %v3999, 0.70710677
  %v4034 = verf.f32.pop %v4018
  %v4035 = verf.f32.pop %v4019
  %v4036 = verf.f32.pop %v4020
  %v4037 = verf.f32.pop %v4021
  %v4038 = verf.f32.pop %v4022
  %v4039 = verf.f32.pop %v4023
  %v4040 = verf.f32.pop %v4024
  %v4041 = verf.f32.pop %v4025
  %v4042 = verf.f32.pop %v4026
  %v4043 = verf.f32.pop %v4027
  %v4044 = verf.f32.pop %v4028
  %v4045 = verf.f32.pop %v4029
  %v4046 = verf.f32.pop %v4030
  %v4047 = verf.f32.pop %v4031
  %v4048 = verf.f32.pop %v4032
  %v4049 = verf.f32.pop %v4033
  %v4050 = vadd.f32 %v4034, 1.0
  %v4051 = vadd.f32 %v4035, 1.0
  %v4052 = vadd.f32 %v4036, 1.0
  %v4053 = vadd.f32 %v4037, 1.0
  %v4054 = vadd.f32 %v4038, 1.0
  %v4055 = vadd.f32 %v4039, 1.0
  %v4056 = vadd.f32 %v4040, 1.0
  %v4057 = vadd.f32 %v4041, 1.0
  %v4058 = vadd.f32 %v4042, 1.0
  %v4059 = vadd.f32 %v4043, 1.0
  %v4060 = vadd.f32 %v4044, 1.0
  %v4061 = vadd.f32 %v4045, 1.0
  %v4062 = vadd.f32 %v4046, 1.0
  %v4063 = vadd.f32 %v4047, 1.0
  %v4064 = vadd.f32 %v4048, 1.0
  %v4065 = vadd.f32 %v4049, 1.0
  %v4066 = vmul.f32 %v4002, %v4050
  %v4067 = vmul.f32 %v4003, %v4051
  %v4068 = vmul.f32 %v4004, %v4052
  %v4069 = vmul.f32 %v4005, %v4053
  %v4070 = vmul.f32 %v4006, %v4054
  %v4071 = vmul.f32 %v4007, %v4055
  %v4072 = vmul.f32 %v4008, %v4056
  %v4073 = vmul.f32 %v4009, %v4057
  %v4074 = vmul.f32 %v4010, %v4058
  %v4075 = vmul.f32 %v4011, %v4059
  %v4076 = vmul.f32 %v4012, %v4060
  %v4077 = vmul.f32 %v4013, %v4061
  %v4078 = vmul.f32 %v4014, %v4062
  %v4079 = vmul.f32 %v4015, %v4063
  %v4080 = vmul.f32 %v4016, %v4064
  %v4081 = vmul.f32 %v4017, %v4065
  %v4082 = vpack.c.bf16 %v4067, %v4066
  %v4083 = vpack.c.bf16 %v4069, %v4068
  %v4084 = vpack.c.bf16 %v4071, %v4070
  %v4085 = vpack.c.bf16 %v4073, %v4072
  %v4086 = vpack.c.bf16 %v4075, %v4074
  %v4087 = vpack.c.bf16 %v4077, %v4076
  %v4088 = vpack.c.bf16 %v4079, %v4078
  %v4089 = vpack.c.bf16 %v4081, %v4080
  %v4090 = vld [vmem:[%s10] sm:$0xf]
  %v4091 = vld [vmem:[%s10 + $0x4] sm:$0xf]
  %v4092 = vld [vmem:[%s10 + $0x8] sm:$0xf]
  %v4093 = vld [vmem:[%s10 + $0xc] sm:$0xf]
  %v4094 = vld [vmem:[%s10 + $0x10] sm:$0xf]
  %v4095 = vld [vmem:[%s10 + $0x14] sm:$0xf]
  %v4096 = vld [vmem:[%s10 + $0x18] sm:$0xf]
  %v4097 = vld [vmem:[%s10 + $0x1c] sm:$0xf]
  %v4098 = vld [vmem:[%s11] sm:$0x1]
  %v4100 = vlaneseq
  %v4101 = vshrl.u32 %v4100, 7
  %v4102 = vsub.s32 0, %v4101
  %v4103 = vrot.slane %v4098, %v4102
  %v4113 = vunpack.c.l.b16 %v4090
  %v4114 = vunpack.c.l.b16 %v4091
  %v4115 = vunpack.c.l.b16 %v4092
  %v4116 = vunpack.c.l.b16 %v4093
  %v4117 = vunpack.c.l.b16 %v4094
  %v4118 = vunpack.c.l.b16 %v4095
  %v4119 = vunpack.c.l.b16 %v4096
  %v4120 = vunpack.c.l.b16 %v4097
  %v4121 = vpack.c.b16 %v4114, %v4113
  %v4122 = vpack.c.b16 %v4116, %v4115
  %v4123 = vpack.c.b16 %v4118, %v4117
  %v4124 = vpack.c.b16 %v4120, %v4119
  %v4130 = vsel %vm1678, %v4082, 0
  %v4133 = vsel %vm1678, %v4083, 0
  %v4136 = vsel %vm1678, %v4084, 0
  %v4139 = vsel %vm1678, %v4085, 0
  %v4142 = vsel %vm1678, %v4086, 0
  %v4145 = vsel %vm1678, %v4087, 0
  %v4148 = vsel %vm1678, %v4088, 0
  %v4151 = vsel %vm1678, %v4089, 0
  %4153 = vmatprep.subr.bf16.mxu0 0
  %4154 = vmatpush1.bf16.msra.mxu0 %v4121
  %4155 = vmatprep.subr.bf16.mxu0 0
  %4156 = vmatpush1.bf16.msra.mxu0 %v4122
  %4157 = vmatprep.subr.bf16.mxu0 0
  %4158 = vmatpush1.bf16.msra.mxu0 %v4123
  %4159 = vmatprep.subr.bf16.mxu0 0
  %4160 = vmatpush1.bf16.msra.mxu0 %v4124
  %4161 = vmatprep.subr.bf16.mxu0 0
  %4162 = vmatpush1.bf16.msra.mxu0 0
  %4163 = vmatprep.subr.bf16.mxu0 0
  %4164 = vmatpush1.bf16.msra.mxu0 0
  %4165 = vmatprep.subr.bf16.mxu0 0
  %4166 = vmatpush1.bf16.msra.mxu0 0
  %4167 = vmatprep.subr.bf16.mxu0 0
  %4168 = vmatpush1.bf16.msra.mxu0 0
  %4169 = vmatprep.subr.bf16.mxu0 0
  %4170 = vmatpush1.bf16.msra.mxu0 0
  %4171 = vmatprep.subr.bf16.mxu0 0
  %4172 = vmatpush1.bf16.msra.mxu0 0
  %4173 = vmatprep.subr.bf16.mxu0 0
  %4174 = vmatpush1.bf16.msra.mxu0 0
  %4175 = vmatprep.subr.bf16.mxu0 0
  %4176 = vmatpush1.bf16.msra.mxu0 0
  %4177 = vmatprep.subr.bf16.mxu0 0
  %4178 = vmatpush1.bf16.msra.mxu0 0
  %4179 = vmatprep.subr.bf16.mxu0 0
  %4180 = vmatpush1.bf16.msra.mxu0 0
  %4181 = vmatprep.subr.bf16.mxu0 0
  %4182 = vmatpush1.bf16.msra.mxu0 0
  %4183 = vmatprep.subr.bf16.mxu0 0
  %4184 = vmatpush1.bf16.msra.mxu0 0
  %4185 = vmatprep.mubr.bf16.mxu0 0
  %4186 = vmatmul.mubr.bf16.gmra.mrb[0].mxu0 %v4130
  %v4187 = vpop.f32.mrb[0].mxu0
  %v4188 = vadd.f32 %v4103, %v4187
  %v4189 = vpop.f32.mrb[0].mxu0
  %v4190 = vpop.f32.mrb[0].mxu0
  %v4191 = vadd.f32 %v4103, %v4190
  %v4192 = vpop.f32.mrb[0].mxu0
  %4193 = vmatprep.mubr.bf16.mxu0 0
  %4194 = vmatmul.mubr.bf16.gmra.mrb[0].mxu0 %v4133
  %v4195 = vpop.f32.mrb[0].mxu0
  %v4196 = vadd.f32 %v4103, %v4195
  %v4197 = vpop.f32.mrb[0].mxu0
  %v4198 = vpop.f32.mrb[0].mxu0
  %v4199 = vadd.f32 %v4103, %v4198
  %v4200 = vpop.f32.mrb[0].mxu0
  %4201 = vmatprep.mubr.bf16.mxu0 0
  %4202 = vmatmul.mubr.bf16.gmra.mrb[0].mxu0 %v4136
  %v4203 = vpop.f32.mrb[0].mxu0
  %v4204 = vadd.f32 %v4103, %v4203
  %v4205 = vpop.f32.mrb[0].mxu0
  %v4206 = vpop.f32.mrb[0].mxu0
  %v4207 = vadd.f32 %v4103, %v4206
  %v4208 = vpop.f32.mrb[0].mxu0
  %4209 = vmatprep.mubr.bf16.mxu0 0
  %4210 = vmatmul.mubr.bf16.gmra.mrb[0].mxu0 %v4139
  %v4211 = vpop.f32.mrb[0].mxu0
  %v4212 = vadd.f32 %v4103, %v4211
  %v4213 = vpop.f32.mrb[0].mxu0
  %v4214 = vpop.f32.mrb[0].mxu0
  %v4215 = vadd.f32 %v4103, %v4214
  %v4216 = vpop.f32.mrb[0].mxu0
  %4217 = vmatprep.mubr.bf16.mxu0 0
  %4218 = vmatmul.mubr.bf16.gmra.mrb[0].mxu0 %v4142
  %v4219 = vpop.f32.mrb[0].mxu0
  %v4220 = vadd.f32 %v4103, %v4219
  %v4221 = vpop.f32.mrb[0].mxu0
  %v4222 = vpop.f32.mrb[0].mxu0
  %v4223 = vadd.f32 %v4103, %v4222
  %v4224 = vpop.f32.mrb[0].mxu0
  %4225 = vmatprep.mubr.bf16.mxu0 0
  %4226 = vmatmul.mubr.bf16.gmra.mrb[0].mxu0 %v4145
  %v4227 = vpop.f32.mrb[0].mxu0
  %v4228 = vadd.f32 %v4103, %v4227
  %v4229 = vpop.f32.mrb[0].mxu0
  %v4230 = vpop.f32.mrb[0].mxu0
  %v4231 = vadd.f32 %v4103, %v4230
  %v4232 = vpop.f32.mrb[0].mxu0
  %4233 = vmatprep.mubr.bf16.mxu0 0
  %4234 = vmatmul.mubr.bf16.gmra.mrb[0].mxu0 %v4148
  %v4235 = vpop.f32.mrb[0].mxu0
  %v4236 = vadd.f32 %v4103, %v4235
  %v4237 = vpop.f32.mrb[0].mxu0
  %v4238 = vpop.f32.mrb[0].mxu0
  %v4239 = vadd.f32 %v4103, %v4238
  %v4240 = vpop.f32.mrb[0].mxu0
  %4241 = vmatprep.mubr.bf16.mxu0 0
  %4242 = vmatmul.mubr.bf16.gmra.mrb[0].mxu0 %v4151
  %v4243 = vpop.f32.mrb[0].mxu0
  %v4244 = vadd.f32 %v4103, %v4243
  %v4245 = vpop.f32.mrb[0].mxu0
  %v4246 = vpop.f32.mrb[0].mxu0
  %v4247 = vadd.f32 %v4103, %v4246
  %v4248 = vpop.f32.mrb[0].mxu0
  %4249 = vdwg.mxu0
  %v4250 = vadd.f32 %v3546, %v4188
  %v4251 = vadd.f32 %v3547, %v4191
  %v4252 = vadd.f32 %v3548, %v4196
  %v4253 = vadd.f32 %v3549, %v4199
  %v4254 = vadd.f32 %v3550, %v4204
  %v4255 = vadd.f32 %v3551, %v4207
  %v4256 = vadd.f32 %v3552, %v4212
  %v4257 = vadd.f32 %v3553, %v4215
  %v4258 = vadd.f32 %v3554, %v4220
  %v4259 = vadd.f32 %v3555, %v4223
  %v4260 = vadd.f32 %v3556, %v4228
  %v4261 = vadd.f32 %v3557, %v4231
  %v4262 = vadd.f32 %v3558, %v4236
  %v4263 = vadd.f32 %v3559, %v4239
  %v4264 = vadd.f32 %v3560, %v4244
  %v4265 = vadd.f32 %v3561, %v4247
  %s4266 = scalar_lea.vmem %s2, 2
  %v4267 = vld [vmem:[%s4266] sm:$0x1]
  %s4268 = scalar_lea.vmem %s3, 2
  %v4269 = vld [vmem:[%s4268] sm:$0x1]
  %v4270 = vsel %vm42, %v4250, 0.0
  %4271 = vadd.xlane.f32.xlu0 %v4270
  %v4272 = vpop.xlane.xlu0 %4271
  %v4273 = vsel %vm42, %v4251, 0.0
  %4274 = vadd.xlane.f32.xlu0 %v4273
  %v4275 = vpop.xlane.xlu0 %4274
  %v4276 = vsel %vm42, %v4252, 0.0
  %4277 = vadd.xlane.f32.xlu0 %v4276
  %v4278 = vpop.xlane.xlu0 %4277
  %v4279 = vsel %vm42, %v4253, 0.0
  %4280 = vadd.xlane.f32.xlu0 %v4279
  %v4281 = vpop.xlane.xlu0 %4280
  %v4282 = vsel %vm42, %v4254, 0.0
  %4283 = vadd.xlane.f32.xlu0 %v4282
  %v4284 = vpop.xlane.xlu0 %4283
  %v4285 = vsel %vm42, %v4255, 0.0
  %4286 = vadd.xlane.f32.xlu0 %v4285
  %v4287 = vpop.xlane.xlu0 %4286
  %v4288 = vsel %vm42, %v4256, 0.0
  %4289 = vadd.xlane.f32.xlu0 %v4288
  %v4290 = vpop.xlane.xlu0 %4289
  %v4291 = vsel %vm42, %v4257, 0.0
  %4292 = vadd.xlane.f32.xlu0 %v4291
  %v4293 = vpop.xlane.xlu0 %4292
  %v4294 = vsel %vm42, %v4258, 0.0
  %4295 = vadd.xlane.f32.xlu0 %v4294
  %v4296 = vpop.xlane.xlu0 %4295
  %v4297 = vsel %vm42, %v4259, 0.0
  %4298 = vadd.xlane.f32.xlu0 %v4297
  %v4299 = vpop.xlane.xlu0 %4298
  %v4300 = vsel %vm42, %v4260, 0.0
  %4301 = vadd.xlane.f32.xlu0 %v4300
  %v4302 = vpop.xlane.xlu0 %4301
  %v4303 = vsel %vm42, %v4261, 0.0
  %4304 = vadd.xlane.f32.xlu0 %v4303
  %v4305 = vpop.xlane.xlu0 %4304
  %v4306 = vsel %vm42, %v4262, 0.0
  %4307 = vadd.xlane.f32.xlu0 %v4306
  %v4308 = vpop.xlane.xlu0 %4307
  %v4309 = vsel %vm42, %v4263, 0.0
  %4310 = vadd.xlane.f32.xlu0 %v4309
  %v4311 = vpop.xlane.xlu0 %4310
  %v4312 = vsel %vm42, %v4264, 0.0
  %4313 = vadd.xlane.f32.xlu0 %v4312
  %v4314 = vpop.xlane.xlu0 %4313
  %v4315 = vsel %vm42, %v4265, 0.0
  %4316 = vadd.xlane.f32.xlu0 %v4315
  %v4317 = vpop.xlane.xlu0 %4316
  %v4318 = vmul.f32 %v4272, %v145
  %v4319 = vmul.f32 %v4275, %v145
  %v4320 = vmul.f32 %v4278, %v145
  %v4321 = vmul.f32 %v4281, %v145
  %v4322 = vmul.f32 %v4284, %v145
  %v4323 = vmul.f32 %v4287, %v145
  %v4324 = vmul.f32 %v4290, %v145
  %v4325 = vmul.f32 %v4293, %v145
  %v4326 = vmul.f32 %v4296, %v145
  %v4327 = vmul.f32 %v4299, %v145
  %v4328 = vmul.f32 %v4302, %v145
  %v4329 = vmul.f32 %v4305, %v145
  %v4330 = vmul.f32 %v4308, %v145
  %v4331 = vmul.f32 %v4311, %v145
  %v4332 = vmul.f32 %v4314, %v145
  %v4333 = vmul.f32 %v4317, %v145
  %v4334 = vmul.f32 %v4250, %v4250
  %v4335 = vmul.f32 %v4251, %v4251
  %v4336 = vmul.f32 %v4252, %v4252
  %v4337 = vmul.f32 %v4253, %v4253
  %v4338 = vmul.f32 %v4254, %v4254
  %v4339 = vmul.f32 %v4255, %v4255
  %v4340 = vmul.f32 %v4256, %v4256
  %v4341 = vmul.f32 %v4257, %v4257
  %v4342 = vmul.f32 %v4258, %v4258
  %v4343 = vmul.f32 %v4259, %v4259
  %v4344 = vmul.f32 %v4260, %v4260
  %v4345 = vmul.f32 %v4261, %v4261
  %v4346 = vmul.f32 %v4262, %v4262
  %v4347 = vmul.f32 %v4263, %v4263
  %v4348 = vmul.f32 %v4264, %v4264
  %v4349 = vmul.f32 %v4265, %v4265
  %v4350 = vsel %vm42, %v4334, 0.0
  %4351 = vadd.xlane.f32.xlu0 %v4350
  %v4352 = vpop.xlane.xlu0 %4351
  %v4353 = vsel %vm42, %v4335, 0.0
  %4354 = vadd.xlane.f32.xlu0 %v4353
  %v4355 = vpop.xlane.xlu0 %4354
  %v4356 = vsel %vm42, %v4336, 0.0
  %4357 = vadd.xlane.f32.xlu0 %v4356
  %v4358 = vpop.xlane.xlu0 %4357
  %v4359 = vsel %vm42, %v4337, 0.0
  %4360 = vadd.xlane.f32.xlu0 %v4359
  %v4361 = vpop.xlane.xlu0 %4360
  %v4362 = vsel %vm42, %v4338, 0.0
  %4363 = vadd.xlane.f32.xlu0 %v4362
  %v4364 = vpop.xlane.xlu0 %4363
  %v4365 = vsel %vm42, %v4339, 0.0
  %4366 = vadd.xlane.f32.xlu0 %v4365
  %v4367 = vpop.xlane.xlu0 %4366
  %v4368 = vsel %vm42, %v4340, 0.0
  %4369 = vadd.xlane.f32.xlu0 %v4368
  %v4370 = vpop.xlane.xlu0 %4369
  %v4371 = vsel %vm42, %v4341, 0.0
  %4372 = vadd.xlane.f32.xlu0 %v4371
  %v4373 = vpop.xlane.xlu0 %4372
  %v4374 = vsel %vm42, %v4342, 0.0
  %4375 = vadd.xlane.f32.xlu0 %v4374
  %v4376 = vpop.xlane.xlu0 %4375
  %v4377 = vsel %vm42, %v4343, 0.0
  %4378 = vadd.xlane.f32.xlu0 %v4377
  %v4379 = vpop.xlane.xlu0 %4378
  %v4380 = vsel %vm42, %v4344, 0.0
  %4381 = vadd.xlane.f32.xlu0 %v4380
  %v4382 = vpop.xlane.xlu0 %4381
  %v4383 = vsel %vm42, %v4345, 0.0
  %4384 = vadd.xlane.f32.xlu0 %v4383
  %v4385 = vpop.xlane.xlu0 %4384
  %v4386 = vsel %vm42, %v4346, 0.0
  %4387 = vadd.xlane.f32.xlu0 %v4386
  %v4388 = vpop.xlane.xlu0 %4387
  %v4389 = vsel %vm42, %v4347, 0.0
  %4390 = vadd.xlane.f32.xlu0 %v4389
  %v4391 = vpop.xlane.xlu0 %4390
  %v4392 = vsel %vm42, %v4348, 0.0
  %4393 = vadd.xlane.f32.xlu0 %v4392
  %v4394 = vpop.xlane.xlu0 %4393
  %v4395 = vsel %vm42, %v4349, 0.0
  %4396 = vadd.xlane.f32.xlu0 %v4395
  %v4397 = vpop.xlane.xlu0 %4396
  %v4398 = vmul.f32 %v4352, %v145
  %v4399 = vmul.f32 %v4355, %v145
  %v4400 = vmul.f32 %v4358, %v145
  %v4401 = vmul.f32 %v4361, %v145
  %v4402 = vmul.f32 %v4364, %v145
  %v4403 = vmul.f32 %v4367, %v145
  %v4404 = vmul.f32 %v4370, %v145
  %v4405 = vmul.f32 %v4373, %v145
  %v4406 = vmul.f32 %v4376, %v145
  %v4407 = vmul.f32 %v4379, %v145
  %v4408 = vmul.f32 %v4382, %v145
  %v4409 = vmul.f32 %v4385, %v145
  %v4410 = vmul.f32 %v4388, %v145
  %v4411 = vmul.f32 %v4391, %v145
  %v4412 = vmul.f32 %v4394, %v145
  %v4413 = vmul.f32 %v4397, %v145
  %v4414 = vmul.f32 %v4318, %v4318
  %v4415 = vmul.f32 %v4319, %v4319
  %v4416 = vmul.f32 %v4320, %v4320
  %v4417 = vmul.f32 %v4321, %v4321
  %v4418 = vmul.f32 %v4322, %v4322
  %v4419 = vmul.f32 %v4323, %v4323
  %v4420 = vmul.f32 %v4324, %v4324
  %v4421 = vmul.f32 %v4325, %v4325
  %v4422 = vmul.f32 %v4326, %v4326
  %v4423 = vmul.f32 %v4327, %v4327
  %v4424 = vmul.f32 %v4328, %v4328
  %v4425 = vmul.f32 %v4329, %v4329
  %v4426 = vmul.f32 %v4330, %v4330
  %v4427 = vmul.f32 %v4331, %v4331
  %v4428 = vmul.f32 %v4332, %v4332
  %v4429 = vmul.f32 %v4333, %v4333
  %v4430 = vsub.f32 %v4398, %v4414
  %v4431 = vsub.f32 %v4399, %v4415
  %v4432 = vsub.f32 %v4400, %v4416
  %v4433 = vsub.f32 %v4401, %v4417
  %v4434 = vsub.f32 %v4402, %v4418
  %v4435 = vsub.f32 %v4403, %v4419
  %v4436 = vsub.f32 %v4404, %v4420
  %v4437 = vsub.f32 %v4405, %v4421
  %v4438 = vsub.f32 %v4406, %v4422
  %v4439 = vsub.f32 %v4407, %v4423
  %v4440 = vsub.f32 %v4408, %v4424
  %v4441 = vsub.f32 %v4409, %v4425
  %v4442 = vsub.f32 %v4410, %v4426
  %v4443 = vsub.f32 %v4411, %v4427
  %v4444 = vsub.f32 %v4412, %v4428
  %v4445 = vsub.f32 %v4413, %v4429
  %v4446 = vsub.f32 %v4250, %v4318
  %v4447 = vsub.f32 %v4251, %v4319
  %v4448 = vsub.f32 %v4252, %v4320
  %v4449 = vsub.f32 %v4253, %v4321
  %v4450 = vsub.f32 %v4254, %v4322
  %v4451 = vsub.f32 %v4255, %v4323
  %v4452 = vsub.f32 %v4256, %v4324
  %v4453 = vsub.f32 %v4257, %v4325
  %v4454 = vsub.f32 %v4258, %v4326
  %v4455 = vsub.f32 %v4259, %v4327
  %v4456 = vsub.f32 %v4260, %v4328
  %v4457 = vsub.f32 %v4261, %v4329
  %v4458 = vsub.f32 %v4262, %v4330
  %v4459 = vsub.f32 %v4263, %v4331
  %v4460 = vsub.f32 %v4264, %v4332
  %v4461 = vsub.f32 %v4265, %v4333
  %v4462 = vadd.f32 %v4430, 1e-05
  %v4463 = vadd.f32 %v4431, 1e-05
  %v4464 = vadd.f32 %v4432, 1e-05
  %v4465 = vadd.f32 %v4433, 1e-05
  %v4466 = vadd.f32 %v4434, 1e-05
  %v4467 = vadd.f32 %v4435, 1e-05
  %v4468 = vadd.f32 %v4436, 1e-05
  %v4469 = vadd.f32 %v4437, 1e-05
  %v4470 = vadd.f32 %v4438, 1e-05
  %v4471 = vadd.f32 %v4439, 1e-05
  %v4472 = vadd.f32 %v4440, 1e-05
  %v4473 = vadd.f32 %v4441, 1e-05
  %v4474 = vadd.f32 %v4442, 1e-05
  %v4475 = vadd.f32 %v4443, 1e-05
  %v4476 = vadd.f32 %v4444, 1e-05
  %v4477 = vadd.f32 %v4445, 1e-05
  %v4478 = vrsqrt.pop %v4462
  %v4479 = vrsqrt.pop %v4463
  %v4480 = vrsqrt.pop %v4464
  %v4481 = vrsqrt.pop %v4465
  %v4482 = vrsqrt.pop %v4466
  %v4483 = vrsqrt.pop %v4467
  %v4484 = vrsqrt.pop %v4468
  %v4485 = vrsqrt.pop %v4469
  %v4486 = vrsqrt.pop %v4470
  %v4487 = vrsqrt.pop %v4471
  %v4488 = vrsqrt.pop %v4472
  %v4489 = vrsqrt.pop %v4473
  %v4490 = vrsqrt.pop %v4474
  %v4491 = vrsqrt.pop %v4475
  %v4492 = vrsqrt.pop %v4476
  %v4493 = vrsqrt.pop %v4477
  %v4494 = vmul.f32 %v4446, %v4478
  %v4495 = vmul.f32 %v4447, %v4479
  %v4496 = vmul.f32 %v4448, %v4480
  %v4497 = vmul.f32 %v4449, %v4481
  %v4498 = vmul.f32 %v4450, %v4482
  %v4499 = vmul.f32 %v4451, %v4483
  %v4500 = vmul.f32 %v4452, %v4484
  %v4501 = vmul.f32 %v4453, %v4485
  %v4502 = vmul.f32 %v4454, %v4486
  %v4503 = vmul.f32 %v4455, %v4487
  %v4504 = vmul.f32 %v4456, %v4488
  %v4505 = vmul.f32 %v4457, %v4489
  %v4506 = vmul.f32 %v4458, %v4490
  %v4507 = vmul.f32 %v4459, %v4491
  %v4508 = vmul.f32 %v4460, %v4492
  %v4509 = vmul.f32 %v4461, %v4493
  %v4511 = vlaneseq
  %v4512 = vshrl.u32 %v4511, 7
  %v4513 = vsub.s32 0, %v4512
  %v4514 = vrot.slane %v4267, %v4513
  %v4516 = vmul.f32 %v4494, %v4514
  %v4517 = vmul.f32 %v4495, %v4514
  %v4518 = vmul.f32 %v4496, %v4514
  %v4519 = vmul.f32 %v4497, %v4514
  %v4520 = vmul.f32 %v4498, %v4514
  %v4521 = vmul.f32 %v4499, %v4514
  %v4522 = vmul.f32 %v4500, %v4514
  %v4523 = vmul.f32 %v4501, %v4514
  %v4524 = vmul.f32 %v4502, %v4514
  %v4525 = vmul.f32 %v4503, %v4514
  %v4526 = vmul.f32 %v4504, %v4514
  %v4527 = vmul.f32 %v4505, %v4514
  %v4528 = vmul.f32 %v4506, %v4514
  %v4529 = vmul.f32 %v4507, %v4514
  %v4530 = vmul.f32 %v4508, %v4514
  %v4531 = vmul.f32 %v4509, %v4514
  %v4533 = vlaneseq
  %v4534 = vshrl.u32 %v4533, 7
  %v4535 = vsub.s32 0, %v4534
  %v4536 = vrot.slane %v4269, %v4535
  %v4538 = vadd.f32 %v4516, %v4536
  %v4539 = vadd.f32 %v4517, %v4536
  %v4540 = vadd.f32 %v4518, %v4536
  %v4541 = vadd.f32 %v4519, %v4536
  %v4542 = vadd.f32 %v4520, %v4536
  %v4543 = vadd.f32 %v4521, %v4536
  %v4544 = vadd.f32 %v4522, %v4536
  %v4545 = vadd.f32 %v4523, %v4536
  %v4546 = vadd.f32 %v4524, %v4536
  %v4547 = vadd.f32 %v4525, %v4536
  %v4548 = vadd.f32 %v4526, %v4536
  %v4549 = vadd.f32 %v4527, %v4536
  %v4550 = vadd.f32 %v4528, %v4536
  %v4551 = vadd.f32 %v4529, %v4536
  %v4552 = vadd.f32 %v4530, %v4536
  %v4553 = vadd.f32 %v4531, %v4536
  %4554 = vst.msk [vmem:[#allocation2 + $0x10] sm:$0xff] %vm42, %v4538
  %4555 = vst.msk [vmem:[#allocation2 + $0x18] sm:$0xff] %vm42, %v4539
  %4556 = vst.msk [vmem:[#allocation2 + $0x20] sm:$0xff] %vm42, %v4540
  %4557 = vst.msk [vmem:[#allocation2 + $0x28] sm:$0xff] %vm42, %v4541
  %4558 = vst.msk [vmem:[#allocation2 + $0x30] sm:$0xff] %vm42, %v4542
  %4559 = vst.msk [vmem:[#allocation2 + $0x38] sm:$0xff] %vm42, %v4543
  %4560 = vst.msk [vmem:[#allocation2 + $0x40] sm:$0xff] %vm42, %v4544
  %4561 = vst.msk [vmem:[#allocation2 + $0x48] sm:$0xff] %vm42, %v4545
  %4562 = vst.msk [vmem:[#allocation2 + $0x50] sm:$0xff] %vm42, %v4546
  %4563 = vst.msk [vmem:[#allocation2 + $0x58] sm:$0xff] %vm42, %v4547
  %4564 = vst.msk [vmem:[#allocation2 + $0x60] sm:$0xff] %vm42, %v4548
  %4565 = vst.msk [vmem:[#allocation2 + $0x68] sm:$0xff] %vm42, %v4549
  %4566 = vst.msk [vmem:[#allocation2 + $0x70] sm:$0xff] %vm42, %v4550
  %4567 = vst.msk [vmem:[#allocation2 + $0x78] sm:$0xff] %vm42, %v4551
  %4568 = vst.msk [vmem:[#allocation2 + $0x80] sm:$0xff] %vm42, %v4552
  %4569 = vst.msk [vmem:[#allocation2 + $0x88] sm:$0xff] %vm42, %v4553
  %v4570 = vld [vmem:[#allocation2 + $0x7] sm:$0xff]
  %v4571 = vld [vmem:[#allocation2 + $0xf] sm:$0xff]
  %v4572 = vld [vmem:[#allocation2 + $0x17] sm:$0xff]
  %v4573 = vld [vmem:[#allocation2 + $0x1f] sm:$0xff]
  %v4574 = vld [vmem:[#allocation2 + $0x27] sm:$0xff]
  %v4575 = vld [vmem:[#allocation2 + $0x2f] sm:$0xff]
  %v4576 = vld [vmem:[#allocation2 + $0x37] sm:$0xff]
  %v4577 = vld [vmem:[#allocation2 + $0x3f] sm:$0xff]
  %v4578 = vld [vmem:[#allocation2 + $0x47] sm:$0xff]
  %v4579 = vld [vmem:[#allocation2 + $0x4f] sm:$0xff]
  %v4580 = vld [vmem:[#allocation2 + $0x57] sm:$0xff]
  %v4581 = vld [vmem:[#allocation2 + $0x5f] sm:$0xff]
  %v4582 = vld [vmem:[#allocation2 + $0x67] sm:$0xff]
  %v4583 = vld [vmem:[#allocation2 + $0x6f] sm:$0xff]
  %v4584 = vld [vmem:[#allocation2 + $0x77] sm:$0xff]
  %v4585 = vld [vmem:[#allocation2 + $0x7f] sm:$0xff]
  %v4586 = vmul.f32 %v4570, %v417
  %v4587 = vmul.f32 %v4571, %v422
  %v4588 = vmul.f32 %v4572, %v427
  %v4589 = vmul.f32 %v4573, %v432
  %v4590 = vmul.f32 %v4574, %v437
  %v4591 = vmul.f32 %v4575, %v442
  %v4592 = vmul.f32 %v4576, %v447
  %v4593 = vmul.f32 %v4577, %v452
  %v4594 = vmul.f32 %v4578, %v457
  %v4595 = vmul.f32 %v4579, %v462
  %v4596 = vmul.f32 %v4580, %v467
  %v4597 = vmul.f32 %v4581, %v472
  %v4598 = vmul.f32 %v4582, %v477
  %v4599 = vmul.f32 %v4583, %v482
  %v4600 = vmul.f32 %v4584, %v487
  %v4601 = vmul.f32 %v4585, %v492
  %v4602 = vld [vmem:[#allocation2 + $0x8] sm:$0xff]
  %v4603 = vld [vmem:[#allocation2 + $0x10] sm:$0xff]
  %v4604 = vld [vmem:[#allocation2 + $0x18] sm:$0xff]
  %v4605 = vld [vmem:[#allocation2 + $0x20] sm:$0xff]
  %v4606 = vld [vmem:[#allocation2 + $0x28] sm:$0xff]
  %v4607 = vld [vmem:[#allocation2 + $0x30] sm:$0xff]
  %v4608 = vld [vmem:[#allocation2 + $0x38] sm:$0xff]
  %v4609 = vld [vmem:[#allocation2 + $0x40] sm:$0xff]
  %v4610 = vld [vmem:[#allocation2 + $0x48] sm:$0xff]
  %v4611 = vld [vmem:[#allocation2 + $0x50] sm:$0xff]
  %v4612 = vld [vmem:[#allocation2 + $0x58] sm:$0xff]
  %v4613 = vld [vmem:[#allocation2 + $0x60] sm:$0xff]
  %v4614 = vld [vmem:[#allocation2 + $0x68] sm:$0xff]
  %v4615 = vld [vmem:[#allocation2 + $0x70] sm:$0xff]
  %v4616 = vld [vmem:[#allocation2 + $0x78] sm:$0xff]
  %v4617 = vld [vmem:[#allocation2 + $0x80] sm:$0xff]
  %v4618 = vmul.f32 %v4602, %v528
  %v4619 = vmul.f32 %v4603, %v532
  %v4620 = vmul.f32 %v4604, %v536
  %v4621 = vmul.f32 %v4605, %v540
  %v4622 = vmul.f32 %v4606, %v544
  %v4623 = vmul.f32 %v4607, %v548
  %v4624 = vmul.f32 %v4608, %v552
  %v4625 = vmul.f32 %v4609, %v556
  %v4626 = vmul.f32 %v4610, %v560
  %v4627 = vmul.f32 %v4611, %v564
  %v4628 = vmul.f32 %v4612, %v568
  %v4629 = vmul.f32 %v4613, %v572
  %v4630 = vmul.f32 %v4614, %v576
  %v4631 = vmul.f32 %v4615, %v580
  %v4632 = vmul.f32 %v4616, %v584
  %v4633 = vmul.f32 %v4617, %v588
  %v4634 = vld [vmem:[#allocation2 + $0x9] sm:$0xff]
  %v4635 = vld [vmem:[#allocation2 + $0x11] sm:$0xff]
  %v4636 = vld [vmem:[#allocation2 + $0x19] sm:$0xff]
  %v4637 = vld [vmem:[#allocation2 + $0x21] sm:$0xff]
  %v4638 = vld [vmem:[#allocation2 + $0x29] sm:$0xff]
  %v4639 = vld [vmem:[#allocation2 + $0x31] sm:$0xff]
  %v4640 = vld [vmem:[#allocation2 + $0x39] sm:$0xff]
  %v4641 = vld [vmem:[#allocation2 + $0x41] sm:$0xff]
  %v4642 = vld [vmem:[#allocation2 + $0x49] sm:$0xff]
  %v4643 = vld [vmem:[#allocation2 + $0x51] sm:$0xff]
  %v4644 = vld [vmem:[#allocation2 + $0x59] sm:$0xff]
  %v4645 = vld [vmem:[#allocation2 + $0x61] sm:$0xff]
  %v4646 = vld [vmem:[#allocation2 + $0x69] sm:$0xff]
  %v4647 = vld [vmem:[#allocation2 + $0x71] sm:$0xff]
  %v4648 = vld [vmem:[#allocation2 + $0x79] sm:$0xff]
  %v4649 = vld [vmem:[#allocation2 + $0x81] sm:$0xff]
  %v4650 = vmul.f32 %v4634, %v624
  %v4651 = vmul.f32 %v4635, %v628
  %v4652 = vmul.f32 %v4636, %v632
  %v4653 = vmul.f32 %v4637, %v636
  %v4654 = vmul.f32 %v4638, %v640
  %v4655 = vmul.f32 %v4639, %v644
  %v4656 = vmul.f32 %v4640, %v648
  %v4657 = vmul.f32 %v4641, %v652
  %v4658 = vmul.f32 %v4642, %v656
  %v4659 = vmul.f32 %v4643, %v660
  %v4660 = vmul.f32 %v4644, %v664
  %v4661 = vmul.f32 %v4645, %v668
  %v4662 = vmul.f32 %v4646, %v672
  %v4663 = vmul.f32 %v4647, %v676
  %v4664 = vmul.f32 %v4648, %v680
  %v4665 = vmul.f32 %v4649, %v684
  %v4666 = vld [vmem:[#allocation2 + $0x87] sm:$0xff]
  %v4667 = vmul.f32 %v4571, %v720
  %v4668 = vmul.f32 %v4572, %v724
  %v4669 = vmul.f32 %v4573, %v728
  %v4670 = vmul.f32 %v4574, %v732
  %v4671 = vmul.f32 %v4575, %v736
  %v4672 = vmul.f32 %v4576, %v740
  %v4673 = vmul.f32 %v4577, %v744
  %v4674 = vmul.f32 %v4578, %v748
  %v4675 = vmul.f32 %v4579, %v752
  %v4676 = vmul.f32 %v4580, %v756
  %v4677 = vmul.f32 %v4581, %v760
  %v4678 = vmul.f32 %v4582, %v764
  %v4679 = vmul.f32 %v4583, %v768
  %v4680 = vmul.f32 %v4584, %v772
  %v4681 = vmul.f32 %v4585, %v776
  %v4682 = vmul.f32 %v4666, %v780
  %v4683 = vld [vmem:[#allocation2 + $0x88] sm:$0xff]
  %v4684 = vmul.f32 %v4603, %v816
  %v4685 = vmul.f32 %v4604, %v820
  %v4686 = vmul.f32 %v4605, %v824
  %v4687 = vmul.f32 %v4606, %v828
  %v4688 = vmul.f32 %v4607, %v832
  %v4689 = vmul.f32 %v4608, %v836
  %v4690 = vmul.f32 %v4609, %v840
  %v4691 = vmul.f32 %v4610, %v844
  %v4692 = vmul.f32 %v4611, %v848
  %v4693 = vmul.f32 %v4612, %v852
  %v4694 = vmul.f32 %v4613, %v856
  %v4695 = vmul.f32 %v4614, %v860
  %v4696 = vmul.f32 %v4615, %v864
  %v4697 = vmul.f32 %v4616, %v868
  %v4698 = vmul.f32 %v4617, %v872
  %v4699 = vmul.f32 %v4683, %v876
  %v4700 = vld [vmem:[#allocation2 + $0x89] sm:$0xff]
  %v4701 = vmul.f32 %v4635, %v912
  %v4702 = vmul.f32 %v4636, %v916
  %v4703 = vmul.f32 %v4637, %v920
  %v4704 = vmul.f32 %v4638, %v924
  %v4705 = vmul.f32 %v4639, %v928
  %v4706 = vmul.f32 %v4640, %v932
  %v4707 = vmul.f32 %v4641, %v936
  %v4708 = vmul.f32 %v4642, %v940
  %v4709 = vmul.f32 %v4643, %v944
  %v4710 = vmul.f32 %v4644, %v948
  %v4711 = vmul.f32 %v4645, %v952
  %v4712 = vmul.f32 %v4646, %v956
  %v4713 = vmul.f32 %v4647, %v960
  %v4714 = vmul.f32 %v4648, %v964
  %v4715 = vmul.f32 %v4649, %v968
  %v4716 = vmul.f32 %v4700, %v972
  %v4717 = vld [vmem:[#allocation2 + $0x8f] sm:$0xff]
  %v4718 = vmul.f32 %v4572, %v1008
  %v4719 = vmul.f32 %v4573, %v1012
  %v4720 = vmul.f32 %v4574, %v1016
  %v4721 = vmul.f32 %v4575, %v1020
  %v4722 = vmul.f32 %v4576, %v1024
  %v4723 = vmul.f32 %v4577, %v1028
  %v4724 = vmul.f32 %v4578, %v1032
  %v4725 = vmul.f32 %v4579, %v1036
  %v4726 = vmul.f32 %v4580, %v1040
  %v4727 = vmul.f32 %v4581, %v1044
  %v4728 = vmul.f32 %v4582, %v1048
  %v4729 = vmul.f32 %v4583, %v1052
  %v4730 = vmul.f32 %v4584, %v1056
  %v4731 = vmul.f32 %v4585, %v1060
  %v4732 = vmul.f32 %v4666, %v1064
  %v4733 = vmul.f32 %v4717, %v1068
  %v4734 = vld [vmem:[#allocation2 + $0x90] sm:$0xff]
  %v4735 = vmul.f32 %v4604, %v1104
  %v4736 = vmul.f32 %v4605, %v1108
  %v4737 = vmul.f32 %v4606, %v1112
  %v4738 = vmul.f32 %v4607, %v1116
  %v4739 = vmul.f32 %v4608, %v1120
  %v4740 = vmul.f32 %v4609, %v1124
  %v4741 = vmul.f32 %v4610, %v1128
  %v4742 = vmul.f32 %v4611, %v1132
  %v4743 = vmul.f32 %v4612, %v1136
  %v4744 = vmul.f32 %v4613, %v1140
  %v4745 = vmul.f32 %v4614, %v1144
  %v4746 = vmul.f32 %v4615, %v1148
  %v4747 = vmul.f32 %v4616, %v1152
  %v4748 = vmul.f32 %v4617, %v1156
  %v4749 = vmul.f32 %v4683, %v1160
  %v4750 = vmul.f32 %v4734, %v1164
  %v4751 = vld [vmem:[#allocation2 + $0x91] sm:$0xff]
  %v4752 = vmul.f32 %v4636, %v1200
  %v4753 = vmul.f32 %v4637, %v1204
  %v4754 = vmul.f32 %v4638, %v1208
  %v4755 = vmul.f32 %v4639, %v1212
  %v4756 = vmul.f32 %v4640, %v1216
  %v4757 = vmul.f32 %v4641, %v1220
  %v4758 = vmul.f32 %v4642, %v1224
  %v4759 = vmul.f32 %v4643, %v1228
  %v4760 = vmul.f32 %v4644, %v1232
  %v4761 = vmul.f32 %v4645, %v1236
  %v4762 = vmul.f32 %v4646, %v1240
  %v4763 = vmul.f32 %v4647, %v1244
  %v4764 = vmul.f32 %v4648, %v1248
  %v4765 = vmul.f32 %v4649, %v1252
  %v4766 = vmul.f32 %v4700, %v1256
  %v4767 = vmul.f32 %v4751, %v1260
  %4784 = vrot.lane.b32.xlu0 %v4618, 32
  %v4785 = vpop.permute.xlu0 %4784
  %4786 = vrot.lane.b32.xlu0 %v4619, 32
  %v4787 = vpop.permute.xlu0 %4786
  %4788 = vrot.lane.b32.xlu0 %v4620, 32
  %v4789 = vpop.permute.xlu0 %4788
  %4790 = vrot.lane.b32.xlu0 %v4621, 32
  %v4791 = vpop.permute.xlu0 %4790
  %4792 = vrot.lane.b32.xlu0 %v4622, 32
  %v4793 = vpop.permute.xlu0 %4792
  %4794 = vrot.lane.b32.xlu0 %v4623, 32
  %v4795 = vpop.permute.xlu0 %4794
  %4796 = vrot.lane.b32.xlu0 %v4624, 32
  %v4797 = vpop.permute.xlu0 %4796
  %4798 = vrot.lane.b32.xlu0 %v4625, 32
  %v4799 = vpop.permute.xlu0 %4798
  %4800 = vrot.lane.b32.xlu0 %v4626, 32
  %v4801 = vpop.permute.xlu0 %4800
  %4802 = vrot.lane.b32.xlu0 %v4627, 32
  %v4803 = vpop.permute.xlu0 %4802
  %4804 = vrot.lane.b32.xlu0 %v4628, 32
  %v4805 = vpop.permute.xlu0 %4804
  %4806 = vrot.lane.b32.xlu0 %v4629, 32
  %v4807 = vpop.permute.xlu0 %4806
  %4808 = vrot.lane.b32.xlu0 %v4630, 32
  %v4809 = vpop.permute.xlu0 %4808
  %4810 = vrot.lane.b32.xlu0 %v4631, 32
  %v4811 = vpop.permute.xlu0 %4810
  %4812 = vrot.lane.b32.xlu0 %v4632, 32
  %v4813 = vpop.permute.xlu0 %4812
  %4814 = vrot.lane.b32.xlu0 %v4633, 32
  %v4815 = vpop.permute.xlu0 %4814
  %4848 = vrot.lane.b32.xlu0 %v4650, 64
  %v4849 = vpop.permute.xlu0 %4848
  %4850 = vrot.lane.b32.xlu0 %v4651, 64
  %v4851 = vpop.permute.xlu0 %4850
  %4852 = vrot.lane.b32.xlu0 %v4652, 64
  %v4853 = vpop.permute.xlu0 %4852
  %4854 = vrot.lane.b32.xlu0 %v4653, 64
  %v4855 = vpop.permute.xlu0 %4854
  %4856 = vrot.lane.b32.xlu0 %v4654, 64
  %v4857 = vpop.permute.xlu0 %4856
  %4858 = vrot.lane.b32.xlu0 %v4655, 64
  %v4859 = vpop.permute.xlu0 %4858
  %4860 = vrot.lane.b32.xlu0 %v4656, 64
  %v4861 = vpop.permute.xlu0 %4860
  %4862 = vrot.lane.b32.xlu0 %v4657, 64
  %v4863 = vpop.permute.xlu0 %4862
  %4864 = vrot.lane.b32.xlu0 %v4658, 64
  %v4865 = vpop.permute.xlu0 %4864
  %4866 = vrot.lane.b32.xlu0 %v4659, 64
  %v4867 = vpop.permute.xlu0 %4866
  %4868 = vrot.lane.b32.xlu0 %v4660, 64
  %v4869 = vpop.permute.xlu0 %4868
  %4870 = vrot.lane.b32.xlu0 %v4661, 64
  %v4871 = vpop.permute.xlu0 %4870
  %4872 = vrot.lane.b32.xlu0 %v4662, 64
  %v4873 = vpop.permute.xlu0 %4872
  %4874 = vrot.lane.b32.xlu0 %v4663, 64
  %v4875 = vpop.permute.xlu0 %4874
  %4876 = vrot.lane.b32.xlu0 %v4664, 64
  %v4877 = vpop.permute.xlu0 %4876
  %4878 = vrot.lane.b32.xlu0 %v4665, 64
  %v4879 = vpop.permute.xlu0 %4878
  %4912 = vrot.lane.b32.xlu0 %v4667, 96
  %v4913 = vpop.permute.xlu0 %4912
  %4914 = vrot.lane.b32.xlu0 %v4668, 96
  %v4915 = vpop.permute.xlu0 %4914
  %4916 = vrot.lane.b32.xlu0 %v4669, 96
  %v4917 = vpop.permute.xlu0 %4916
  %4918 = vrot.lane.b32.xlu0 %v4670, 96
  %v4919 = vpop.permute.xlu0 %4918
  %4920 = vrot.lane.b32.xlu0 %v4671, 96
  %v4921 = vpop.permute.xlu0 %4920
  %4922 = vrot.lane.b32.xlu0 %v4672, 96
  %v4923 = vpop.permute.xlu0 %4922
  %4924 = vrot.lane.b32.xlu0 %v4673, 96
  %v4925 = vpop.permute.xlu0 %4924
  %4926 = vrot.lane.b32.xlu0 %v4674, 96
  %v4927 = vpop.permute.xlu0 %4926
  %4928 = vrot.lane.b32.xlu0 %v4675, 96
  %v4929 = vpop.permute.xlu0 %4928
  %4930 = vrot.lane.b32.xlu0 %v4676, 96
  %v4931 = vpop.permute.xlu0 %4930
  %4932 = vrot.lane.b32.xlu0 %v4677, 96
  %v4933 = vpop.permute.xlu0 %4932
  %4934 = vrot.lane.b32.xlu0 %v4678, 96
  %v4935 = vpop.permute.xlu0 %4934
  %4936 = vrot.lane.b32.xlu0 %v4679, 96
  %v4937 = vpop.permute.xlu0 %4936
  %4938 = vrot.lane.b32.xlu0 %v4680, 96
  %v4939 = vpop.permute.xlu0 %4938
  %4940 = vrot.lane.b32.xlu0 %v4681, 96
  %v4941 = vpop.permute.xlu0 %4940
  %4942 = vrot.lane.b32.xlu0 %v4682, 96
  %v4943 = vpop.permute.xlu0 %4942
  %4976 = vrot.lane.b32.xlu0 %v4701, 32
  %v4977 = vpop.permute.xlu0 %4976
  %4978 = vrot.lane.b32.xlu0 %v4702, 32
  %v4979 = vpop.permute.xlu0 %4978
  %4980 = vrot.lane.b32.xlu0 %v4703, 32
  %v4981 = vpop.permute.xlu0 %4980
  %4982 = vrot.lane.b32.xlu0 %v4704, 32
  %v4983 = vpop.permute.xlu0 %4982
  %4984 = vrot.lane.b32.xlu0 %v4705, 32
  %v4985 = vpop.permute.xlu0 %4984
  %4986 = vrot.lane.b32.xlu0 %v4706, 32
  %v4987 = vpop.permute.xlu0 %4986
  %4988 = vrot.lane.b32.xlu0 %v4707, 32
  %v4989 = vpop.permute.xlu0 %4988
  %4990 = vrot.lane.b32.xlu0 %v4708, 32
  %v4991 = vpop.permute.xlu0 %4990
  %4992 = vrot.lane.b32.xlu0 %v4709, 32
  %v4993 = vpop.permute.xlu0 %4992
  %4994 = vrot.lane.b32.xlu0 %v4710, 32
  %v4995 = vpop.permute.xlu0 %4994
  %4996 = vrot.lane.b32.xlu0 %v4711, 32
  %v4997 = vpop.permute.xlu0 %4996
  %4998 = vrot.lane.b32.xlu0 %v4712, 32
  %v4999 = vpop.permute.xlu0 %4998
  %5000 = vrot.lane.b32.xlu0 %v4713, 32
  %v5001 = vpop.permute.xlu0 %5000
  %5002 = vrot.lane.b32.xlu0 %v4714, 32
  %v5003 = vpop.permute.xlu0 %5002
  %5004 = vrot.lane.b32.xlu0 %v4715, 32
  %v5005 = vpop.permute.xlu0 %5004
  %5006 = vrot.lane.b32.xlu0 %v4716, 32
  %v5007 = vpop.permute.xlu0 %5006
  %5040 = vrot.lane.b32.xlu0 %v4718, 64
  %v5041 = vpop.permute.xlu0 %5040
  %5042 = vrot.lane.b32.xlu0 %v4719, 64
  %v5043 = vpop.permute.xlu0 %5042
  %5044 = vrot.lane.b32.xlu0 %v4720, 64
  %v5045 = vpop.permute.xlu0 %5044
  %5046 = vrot.lane.b32.xlu0 %v4721, 64
  %v5047 = vpop.permute.xlu0 %5046
  %5048 = vrot.lane.b32.xlu0 %v4722, 64
  %v5049 = vpop.permute.xlu0 %5048
  %5050 = vrot.lane.b32.xlu0 %v4723, 64
  %v5051 = vpop.permute.xlu0 %5050
  %5052 = vrot.lane.b32.xlu0 %v4724, 64
  %v5053 = vpop.permute.xlu0 %5052
  %5054 = vrot.lane.b32.xlu0 %v4725, 64
  %v5055 = vpop.permute.xlu0 %5054
  %5056 = vrot.lane.b32.xlu0 %v4726, 64
  %v5057 = vpop.permute.xlu0 %5056
  %5058 = vrot.lane.b32.xlu0 %v4727, 64
  %v5059 = vpop.permute.xlu0 %5058
  %5060 = vrot.lane.b32.xlu0 %v4728, 64
  %v5061 = vpop.permute.xlu0 %5060
  %5062 = vrot.lane.b32.xlu0 %v4729, 64
  %v5063 = vpop.permute.xlu0 %5062
  %5064 = vrot.lane.b32.xlu0 %v4730, 64
  %v5065 = vpop.permute.xlu0 %5064
  %5066 = vrot.lane.b32.xlu0 %v4731, 64
  %v5067 = vpop.permute.xlu0 %5066
  %5068 = vrot.lane.b32.xlu0 %v4732, 64
  %v5069 = vpop.permute.xlu0 %5068
  %5070 = vrot.lane.b32.xlu0 %v4733, 64
  %v5071 = vpop.permute.xlu0 %5070
  %5104 = vrot.lane.b32.xlu0 %v4735, 96
  %v5105 = vpop.permute.xlu0 %5104
  %5106 = vrot.lane.b32.xlu0 %v4736, 96
  %v5107 = vpop.permute.xlu0 %5106
  %5108 = vrot.lane.b32.xlu0 %v4737, 96
  %v5109 = vpop.permute.xlu0 %5108
  %5110 = vrot.lane.b32.xlu0 %v4738, 96
  %v5111 = vpop.permute.xlu0 %5110
  %5112 = vrot.lane.b32.xlu0 %v4739, 96
  %v5113 = vpop.permute.xlu0 %5112
  %5114 = vrot.lane.b32.xlu0 %v4740, 96
  %v5115 = vpop.permute.xlu0 %5114
  %5116 = vrot.lane.b32.xlu0 %v4741, 96
  %v5117 = vpop.permute.xlu0 %5116
  %5118 = vrot.lane.b32.xlu0 %v4742, 96
  %v5119 = vpop.permute.xlu0 %5118
  %5120 = vrot.lane.b32.xlu0 %v4743, 96
  %v5121 = vpop.permute.xlu0 %5120
  %5122 = vrot.lane.b32.xlu0 %v4744, 96
  %v5123 = vpop.permute.xlu0 %5122
  %5124 = vrot.lane.b32.xlu0 %v4745, 96
  %v5125 = vpop.permute.xlu0 %5124
  %5126 = vrot.lane.b32.xlu0 %v4746, 96
  %v5127 = vpop.permute.xlu0 %5126
  %5128 = vrot.lane.b32.xlu0 %v4747, 96
  %v5129 = vpop.permute.xlu0 %5128
  %5130 = vrot.lane.b32.xlu0 %v4748, 96
  %v5131 = vpop.permute.xlu0 %5130
  %5132 = vrot.lane.b32.xlu0 %v4749, 96
  %v5133 = vpop.permute.xlu0 %5132
  %5134 = vrot.lane.b32.xlu0 %v4750, 96
  %v5135 = vpop.permute.xlu0 %5134
  %v5152 = vsel %vm42, %v4586, %v4785
  %v5153 = vsel %vm42, %v4587, %v4787
  %v5154 = vsel %vm42, %v4588, %v4789
  %v5155 = vsel %vm42, %v4589, %v4791
  %v5156 = vsel %vm42, %v4590, %v4793
  %v5157 = vsel %vm42, %v4591, %v4795
  %v5158 = vsel %vm42, %v4592, %v4797
  %v5159 = vsel %vm42, %v4593, %v4799
  %v5160 = vsel %vm42, %v4594, %v4801
  %v5161 = vsel %vm42, %v4595, %v4803
  %v5162 = vsel %vm42, %v4596, %v4805
  %v5163 = vsel %vm42, %v4597, %v4807
  %v5164 = vsel %vm42, %v4598, %v4809
  %v5165 = vsel %vm42, %v4599, %v4811
  %v5166 = vsel %vm42, %v4600, %v4813
  %v5167 = vsel %vm42, %v4601, %v4815
  %v5168 = vsel %vm1678, %v5152, %v4849
  %v5169 = vsel %vm1678, %v5153, %v4851
  %v5170 = vsel %vm1678, %v5154, %v4853
  %v5171 = vsel %vm1678, %v5155, %v4855
  %v5172 = vsel %vm1678, %v5156, %v4857
  %v5173 = vsel %vm1678, %v5157, %v4859
  %v5174 = vsel %vm1678, %v5158, %v4861
  %v5175 = vsel %vm1678, %v5159, %v4863
  %v5176 = vsel %vm1678, %v5160, %v4865
  %v5177 = vsel %vm1678, %v5161, %v4867
  %v5178 = vsel %vm1678, %v5162, %v4869
  %v5179 = vsel %vm1678, %v5163, %v4871
  %v5180 = vsel %vm1678, %v5164, %v4873
  %v5181 = vsel %vm1678, %v5165, %v4875
  %v5182 = vsel %vm1678, %v5166, %v4877
  %v5183 = vsel %vm1678, %v5167, %v4879
  %v5184 = vsel %vm1695, %v5168, %v4913
  %v5185 = vsel %vm1695, %v5169, %v4915
  %v5186 = vsel %vm1695, %v5170, %v4917
  %v5187 = vsel %vm1695, %v5171, %v4919
  %v5188 = vsel %vm1695, %v5172, %v4921
  %v5189 = vsel %vm1695, %v5173, %v4923
  %v5190 = vsel %vm1695, %v5174, %v4925
  %v5191 = vsel %vm1695, %v5175, %v4927
  %v5192 = vsel %vm1695, %v5176, %v4929
  %v5193 = vsel %vm1695, %v5177, %v4931
  %v5194 = vsel %vm1695, %v5178, %v4933
  %v5195 = vsel %vm1695, %v5179, %v4935
  %v5196 = vsel %vm1695, %v5180, %v4937
  %v5197 = vsel %vm1695, %v5181, %v4939
  %v5198 = vsel %vm1695, %v5182, %v4941
  %v5199 = vsel %vm1695, %v5183, %v4943
  %v5200 = vsel %vm42, %v4684, %v4977
  %v5201 = vsel %vm42, %v4685, %v4979
  %v5202 = vsel %vm42, %v4686, %v4981
  %v5203 = vsel %vm42, %v4687, %v4983
  %v5204 = vsel %vm42, %v4688, %v4985
  %v5205 = vsel %vm42, %v4689, %v4987
  %v5206 = vsel %vm42, %v4690, %v4989
  %v5207 = vsel %vm42, %v4691, %v4991
  %v5208 = vsel %vm42, %v4692, %v4993
  %v5209 = vsel %vm42, %v4693, %v4995
  %v5210 = vsel %vm42, %v4694, %v4997
  %v5211 = vsel %vm42, %v4695, %v4999
  %v5212 = vsel %vm42, %v4696, %v5001
  %v5213 = vsel %vm42, %v4697, %v5003
  %v5214 = vsel %vm42, %v4698, %v5005
  %v5215 = vsel %vm42, %v4699, %v5007
  %v5216 = vsel %vm1678, %v5200, %v5041
  %v5217 = vsel %vm1678, %v5201, %v5043
  %v5218 = vsel %vm1678, %v5202, %v5045
  %v5219 = vsel %vm1678, %v5203, %v5047
  %v5220 = vsel %vm1678, %v5204, %v5049
  %v5221 = vsel %vm1678, %v5205, %v5051
  %v5222 = vsel %vm1678, %v5206, %v5053
  %v5223 = vsel %vm1678, %v5207, %v5055
  %v5224 = vsel %vm1678, %v5208, %v5057
  %v5225 = vsel %vm1678, %v5209, %v5059
  %v5226 = vsel %vm1678, %v5210, %v5061
  %v5227 = vsel %vm1678, %v5211, %v5063
  %v5228 = vsel %vm1678, %v5212, %v5065
  %v5229 = vsel %vm1678, %v5213, %v5067
  %v5230 = vsel %vm1678, %v5214, %v5069
  %v5231 = vsel %vm1678, %v5215, %v5071
  %v5232 = vsel %vm1695, %v5216, %v5105
  %v5233 = vsel %vm1695, %v5217, %v5107
  %v5234 = vsel %vm1695, %v5218, %v5109
  %v5235 = vsel %vm1695, %v5219, %v5111
  %v5236 = vsel %vm1695, %v5220, %v5113
  %v5237 = vsel %vm1695, %v5221, %v5115
  %v5238 = vsel %vm1695, %v5222, %v5117
  %v5239 = vsel %vm1695, %v5223, %v5119
  %v5240 = vsel %vm1695, %v5224, %v5121
  %v5241 = vsel %vm1695, %v5225, %v5123
  %v5242 = vsel %vm1695, %v5226, %v5125
  %v5243 = vsel %vm1695, %v5227, %v5127
  %v5244 = vsel %vm1695, %v5228, %v5129
  %v5245 = vsel %vm1695, %v5229, %v5131
  %v5246 = vsel %vm1695, %v5230, %v5133
  %v5247 = vsel %vm1695, %v5231, %v5135
  %v5248 = vpack.c.bf16 %v5185, %v5184
  %v5249 = vpack.c.bf16 %v5233, %v5232
  %v5250 = vpack.c.bf16 %v4753, %v4752
  %v5251 = vpack.c.bf16 %v5187, %v5186
  %v5252 = vpack.c.bf16 %v5235, %v5234
  %v5253 = vpack.c.bf16 %v4755, %v4754
  %v5254 = vpack.c.bf16 %v5189, %v5188
  %v5255 = vpack.c.bf16 %v5237, %v5236
  %v5256 = vpack.c.bf16 %v4757, %v4756
  %v5257 = vpack.c.bf16 %v5191, %v5190
  %v5258 = vpack.c.bf16 %v5239, %v5238
  %v5259 = vpack.c.bf16 %v4759, %v4758
  %v5260 = vpack.c.bf16 %v5193, %v5192
  %v5261 = vpack.c.bf16 %v5241, %v5240
  %v5262 = vpack.c.bf16 %v4761, %v4760
  %v5263 = vpack.c.bf16 %v5195, %v5194
  %v5264 = vpack.c.bf16 %v5243, %v5242
  %v5265 = vpack.c.bf16 %v4763, %v4762
  %v5266 = vpack.c.bf16 %v5197, %v5196
  %v5267 = vpack.c.bf16 %v5245, %v5244
  %v5268 = vpack.c.bf16 %v4765, %v4764
  %v5269 = vpack.c.bf16 %v5199, %v5198
  %v5270 = vpack.c.bf16 %v5247, %v5246
  %v5271 = vpack.c.bf16 %v4767, %v4766
  %s5272 = scalar_lea.vmem %s4, 144
  %v5273 = vld [vmem:[%s5272] sm:$0xf]
  %v5274 = vld [vmem:[%s5272 + $0x4] sm:$0xf]
  %v5275 = vld [vmem:[%s5272 + $0x8] sm:$0xf]
  %v5276 = vld [vmem:[%s5272 + $0xc] sm:$0xf]
  %v5277 = vld [vmem:[%s5272 + $0x10] sm:$0xf]
  %v5278 = vld [vmem:[%s5272 + $0x14] sm:$0xf]
  %v5279 = vld [vmem:[%s5272 + $0x18] sm:$0xf]
  %v5280 = vld [vmem:[%s5272 + $0x1c] sm:$0xf]
  %v5281 = vld [vmem:[%s5272 + $0x20] sm:$0xf]
  %v5282 = vld [vmem:[%s5272 + $0x24] sm:$0xf]
  %v5283 = vld [vmem:[%s5272 + $0x28] sm:$0xf]
  %v5284 = vld [vmem:[%s5272 + $0x2c] sm:$0xf]
  %v5285 = vld [vmem:[%s5272 + $0x30] sm:$0xf]
  %v5286 = vld [vmem:[%s5272 + $0x34] sm:$0xf]
  %v5287 = vld [vmem:[%s5272 + $0x38] sm:$0xf]
  %v5288 = vld [vmem:[%s5272 + $0x3c] sm:$0xf]
  %v5289 = vld [vmem:[%s5272 + $0x40] sm:$0xf]
  %v5290 = vld [vmem:[%s5272 + $0x44] sm:$0xf]
  %v5291 = vld [vmem:[%s5272 + $0x48] sm:$0xf]
  %v5292 = vld [vmem:[%s5272 + $0x4c] sm:$0xf]
  %v5293 = vld [vmem:[%s5272 + $0x50] sm:$0xf]
  %v5294 = vld [vmem:[%s5272 + $0x54] sm:$0xf]
  %v5295 = vld [vmem:[%s5272 + $0x58] sm:$0xf]
  %v5296 = vld [vmem:[%s5272 + $0x5c] sm:$0xf]
  %v5297 = vld [vmem:[%s5272 + $0x60] sm:$0xf]
  %v5298 = vld [vmem:[%s5272 + $0x64] sm:$0xf]
  %v5299 = vld [vmem:[%s5272 + $0x68] sm:$0xf]
  %v5300 = vld [vmem:[%s5272 + $0x6c] sm:$0xf]
  %v5301 = vld [vmem:[%s5272 + $0x70] sm:$0xf]
  %v5302 = vld [vmem:[%s5272 + $0x74] sm:$0xf]
  %v5303 = vld [vmem:[%s5272 + $0x78] sm:$0xf]
  %v5304 = vld [vmem:[%s5272 + $0x7c] sm:$0xf]
  %v5305 = vld [vmem:[%s5272 + $0x80] sm:$0xf]
  %v5306 = vld [vmem:[%s5272 + $0x84] sm:$0xf]
  %v5307 = vld [vmem:[%s5272 + $0x88] sm:$0xf]
  %v5308 = vld [vmem:[%s5272 + $0x8c] sm:$0xf]
  %s5309 = scalar_lea.vmem %s5, 1
  %v5310 = vld [vmem:[%s5309] sm:$0x1]
  %v5312 = vlaneseq
  %v5313 = vshrl.u32 %v5312, 7
  %v5314 = vsub.s32 0, %v5313
  %v5315 = vrot.slane %v5310, %v5314
  %v5353 = vunpack.c.l.b16 %v5273
  %v5354 = vunpack.c.l.b16 %v5274
  %v5355 = vunpack.c.l.b16 %v5275
  %v5356 = vunpack.c.l.b16 %v5276
  %v5357 = vunpack.c.l.b16 %v5277
  %v5358 = vunpack.c.l.b16 %v5278
  %v5359 = vunpack.c.l.b16 %v5279
  %v5360 = vunpack.c.l.b16 %v5280
  %v5361 = vunpack.c.l.b16 %v5281
  %v5362 = vunpack.c.l.b16 %v5282
  %v5363 = vunpack.c.l.b16 %v5283
  %v5364 = vunpack.c.l.b16 %v5284
  %v5365 = vunpack.c.l.b16 %v5285
  %v5366 = vunpack.c.l.b16 %v5286
  %v5367 = vunpack.c.l.b16 %v5287
  %v5368 = vunpack.c.l.b16 %v5288
  %v5369 = vunpack.c.l.b16 %v5289
  %v5370 = vunpack.c.l.b16 %v5290
  %v5371 = vunpack.c.l.b16 %v5291
  %v5372 = vunpack.c.l.b16 %v5292
  %v5373 = vunpack.c.l.b16 %v5293
  %v5374 = vunpack.c.l.b16 %v5294
  %v5375 = vunpack.c.l.b16 %v5295
  %v5376 = vunpack.c.l.b16 %v5296
  %v5377 = vunpack.c.l.b16 %v5297
  %v5378 = vunpack.c.l.b16 %v5298
  %v5379 = vunpack.c.l.b16 %v5299
  %v5380 = vunpack.c.l.b16 %v5300
  %v5381 = vunpack.c.l.b16 %v5301
  %v5382 = vunpack.c.l.b16 %v5302
  %v5383 = vunpack.c.l.b16 %v5303
  %v5384 = vunpack.c.l.b16 %v5304
  %v5385 = vunpack.c.l.b16 %v5305
  %v5386 = vunpack.c.l.b16 %v5306
  %v5387 = vunpack.c.l.b16 %v5307
  %v5388 = vunpack.c.l.b16 %v5308
  %v5389 = vpack.c.b16 %v5354, %v5353
  %v5390 = vpack.c.b16 %v5356, %v5355
  %v5391 = vpack.c.b16 %v5358, %v5357
  %v5392 = vpack.c.b16 %v5360, %v5359
  %v5393 = vpack.c.b16 %v5362, %v5361
  %v5394 = vpack.c.b16 %v5364, %v5363
  %v5395 = vpack.c.b16 %v5366, %v5365
  %v5396 = vpack.c.b16 %v5368, %v5367
  %v5397 = vpack.c.b16 %v5370, %v5369
  %v5398 = vpack.c.b16 %v5372, %v5371
  %v5399 = vpack.c.b16 %v5374, %v5373
  %v5400 = vpack.c.b16 %v5376, %v5375
  %v5401 = vpack.c.b16 %v5378, %v5377
  %v5402 = vpack.c.b16 %v5380, %v5379
  %v5403 = vpack.c.b16 %v5382, %v5381
  %v5404 = vpack.c.b16 %v5384, %v5383
  %v5405 = vpack.c.b16 %v5386, %v5385
  %v5406 = vpack.c.b16 %v5388, %v5387
  %v5426 = vsel %vm42, %v5250, 0
  %v5429 = vsel %vm42, %v5253, 0
  %v5432 = vsel %vm42, %v5256, 0
  %v5435 = vsel %vm42, %v5259, 0
  %v5438 = vsel %vm42, %v5262, 0
  %v5441 = vsel %vm42, %v5265, 0
  %v5444 = vsel %vm42, %v5268, 0
  %v5447 = vsel %vm42, %v5271, 0
  %5449 = vmatprep.subr.bf16.mxu0 0
  %5450 = vmatpush1.bf16.msra.mxu0 %v5389
  %5451 = vmatprep.subr.bf16.mxu0 0
  %5452 = vmatpush1.bf16.msra.mxu0 %v5390
  %5453 = vmatprep.subr.bf16.mxu0 0
  %5454 = vmatpush1.bf16.msra.mxu0 %v5391
  %5455 = vmatprep.subr.bf16.mxu0 0
  %5456 = vmatpush1.bf16.msra.mxu0 %v5392
  %5457 = vmatprep.subr.bf16.mxu0 0
  %5458 = vmatpush1.bf16.msra.mxu0 %v5393
  %5459 = vmatprep.subr.bf16.mxu0 0
  %5460 = vmatpush1.bf16.msra.mxu0 %v5394
  %5461 = vmatprep.subr.bf16.mxu0 0
  %5462 = vmatpush1.bf16.msra.mxu0 %v5395
  %5463 = vmatprep.subr.bf16.mxu0 0
  %5464 = vmatpush1.bf16.msra.mxu0 %v5396
  %5465 = vmatprep.subr.bf16.mxu0 0
  %5466 = vmatpush1.bf16.msra.mxu0 %v5397
  %5467 = vmatprep.subr.bf16.mxu0 0
  %5468 = vmatpush1.bf16.msra.mxu0 %v5398
  %5469 = vmatprep.subr.bf16.mxu0 0
  %5470 = vmatpush1.bf16.msra.mxu0 %v5399
  %5471 = vmatprep.subr.bf16.mxu0 0
  %5472 = vmatpush1.bf16.msra.mxu0 %v5400
  %5473 = vmatprep.subr.bf16.mxu0 0
  %5474 = vmatpush1.bf16.msra.mxu0 %v5401
  %5475 = vmatprep.subr.bf16.mxu0 0
  %5476 = vmatpush1.bf16.msra.mxu0 %v5402
  %5477 = vmatprep.subr.bf16.mxu0 0
  %5478 = vmatpush1.bf16.msra.mxu0 %v5403
  %5479 = vmatprep.subr.bf16.mxu0 0
  %5480 = vmatpush1.bf16.msra.mxu0 %v5404
  %5481 = vmatprep.mubr.bf16.mxu0 %v5249
  %5482 = vmatmul.mubr.bf16.gmra.mrb[0].mxu0 %v5248
  %v5483 = vpop.f32.mrb[0].mxu0
  %v5484 = vadd.f32 %v5315, %v5483
  %v5485 = vpop.f32.mrb[0].mxu0
  %v5486 = vpop.f32.mrb[0].mxu0
  %v5487 = vadd.f32 %v5315, %v5486
  %v5488 = vpop.f32.mrb[0].mxu0
  %5489 = vmatprep.mubr.bf16.mxu0 %v5252
  %5490 = vmatmul.mubr.bf16.gmra.mrb[0].mxu0 %v5251
  %v5491 = vpop.f32.mrb[0].mxu0
  %v5492 = vadd.f32 %v5315, %v5491
  %v5493 = vpop.f32.mrb[0].mxu0
  %v5494 = vpop.f32.mrb[0].mxu0
  %v5495 = vadd.f32 %v5315, %v5494
  %v5496 = vpop.f32.mrb[0].mxu0
  %5497 = vmatprep.mubr.bf16.mxu0 %v5255
  %5498 = vmatmul.mubr.bf16.gmra.mrb[0].mxu0 %v5254
  %v5499 = vpop.f32.mrb[0].mxu0
  %v5500 = vadd.f32 %v5315, %v5499
  %v5501 = vpop.f32.mrb[0].mxu0
  %v5502 = vpop.f32.mrb[0].mxu0
  %v5503 = vadd.f32 %v5315, %v5502
  %v5504 = vpop.f32.mrb[0].mxu0
  %5505 = vmatprep.mubr.bf16.mxu0 %v5258
  %5506 = vmatmul.mubr.bf16.gmra.mrb[0].mxu0 %v5257
  %v5507 = vpop.f32.mrb[0].mxu0
  %v5508 = vadd.f32 %v5315, %v5507
  %v5509 = vpop.f32.mrb[0].mxu0
  %v5510 = vpop.f32.mrb[0].mxu0
  %v5511 = vadd.f32 %v5315, %v5510
  %v5512 = vpop.f32.mrb[0].mxu0
  %5513 = vmatprep.mubr.bf16.mxu0 %v5261
  %5514 = vmatmul.mubr.bf16.gmra.mrb[0].mxu0 %v5260
  %v5515 = vpop.f32.mrb[0].mxu0
  %v5516 = vadd.f32 %v5315, %v5515
  %v5517 = vpop.f32.mrb[0].mxu0
  %v5518 = vpop.f32.mrb[0].mxu0
  %v5519 = vadd.f32 %v5315, %v5518
  %v5520 = vpop.f32.mrb[0].mxu0
  %5521 = vmatprep.mubr.bf16.mxu0 %v5264
  %5522 = vmatmul.mubr.bf16.gmra.mrb[0].mxu0 %v5263
  %v5523 = vpop.f32.mrb[0].mxu0
  %v5524 = vadd.f32 %v5315, %v5523
  %v5525 = vpop.f32.mrb[0].mxu0
  %v5526 = vpop.f32.mrb[0].mxu0
  %v5527 = vadd.f32 %v5315, %v5526
  %v5528 = vpop.f32.mrb[0].mxu0
  %5529 = vmatprep.mubr.bf16.mxu0 %v5267
  %5530 = vmatmul.mubr.bf16.gmra.mrb[0].mxu0 %v5266
  %v5531 = vpop.f32.mrb[0].mxu0
  %v5532 = vadd.f32 %v5315, %v5531
  %v5533 = vpop.f32.mrb[0].mxu0
  %v5534 = vpop.f32.mrb[0].mxu0
  %v5535 = vadd.f32 %v5315, %v5534
  %v5536 = vpop.f32.mrb[0].mxu0
  %5537 = vmatprep.mubr.bf16.mxu0 %v5270
  %5538 = vmatmul.mubr.bf16.gmra.mrb[0].mxu0 %v5269
  %v5539 = vpop.f32.mrb[0].mxu0
  %v5540 = vadd.f32 %v5315, %v5539
  %v5541 = vpop.f32.mrb[0].mxu0
  %v5542 = vpop.f32.mrb[0].mxu0
  %v5543 = vadd.f32 %v5315, %v5542
  %v5544 = vpop.f32.mrb[0].mxu0
  %5545 = vdwg.mxu0
  %5546 = vmatprep.subr.bf16.mxu0 0
  %5547 = vmatpush1.bf16.msra.mxu0 %v5405
  %5548 = vmatprep.subr.bf16.mxu0 0
  %5549 = vmatpush1.bf16.msra.mxu0 %v5406
  %5550 = vmatprep.subr.bf16.mxu0 0
  %5551 = vmatpush1.bf16.msra.mxu0 0
  %5552 = vmatprep.subr.bf16.mxu0 0
  %5553 = vmatpush1.bf16.msra.mxu0 0
  %5554 = vmatprep.subr.bf16.mxu0 0
  %5555 = vmatpush1.bf16.msra.mxu0 0
  %5556 = vmatprep.subr.bf16.mxu0 0
  %5557 = vmatpush1.bf16.msra.mxu0 0
  %5558 = vmatprep.subr.bf16.mxu0 0
  %5559 = vmatpush1.bf16.msra.mxu0 0
  %5560 = vmatprep.subr.bf16.mxu0 0
  %5561 = vmatpush1.bf16.msra.mxu0 0
  %5562 = vmatprep.subr.bf16.mxu0 0
  %5563 = vmatpush1.bf16.msra.mxu0 0
  %5564 = vmatprep.subr.bf16.mxu0 0
  %5565 = vmatpush1.bf16.msra.mxu0 0
  %5566 = vmatprep.subr.bf16.mxu0 0
  %5567 = vmatpush1.bf16.msra.mxu0 0
  %5568 = vmatprep.subr.bf16.mxu0 0
  %5569 = vmatpush1.bf16.msra.mxu0 0
  %5570 = vmatprep.subr.bf16.mxu0 0
  %5571 = vmatpush1.bf16.msra.mxu0 0
  %5572 = vmatprep.subr.bf16.mxu0 0
  %5573 = vmatpush1.bf16.msra.mxu0 0
  %5574 = vmatprep.subr.bf16.mxu0 0
  %5575 = vmatpush1.bf16.msra.mxu0 0
  %5576 = vmatprep.subr.bf16.mxu0 0
  %5577 = vmatpush1.bf16.msra.mxu0 0
  %5578 = vmatprep.mubr.bf16.mxu0 0
  %5579 = vmatmul.mubr.bf16.gmra.mrb[0].mxu0 %v5426
  %v5580 = vpop.f32.mrb[0].mxu0
  %v5581 = vadd.f32 %v5484, %v5580
  %v5582 = vpop.f32.mrb[0].mxu0
  %v5583 = vpop.f32.mrb[0].mxu0
  %v5584 = vadd.f32 %v5487, %v5583
  %v5585 = vpop.f32.mrb[0].mxu0
  %5586 = vmatprep.mubr.bf16.mxu0 0
  %5587 = vmatmul.mubr.bf16.gmra.mrb[0].mxu0 %v5429
  %v5588 = vpop.f32.mrb[0].mxu0
  %v5589 = vadd.f32 %v5492, %v5588
  %v5590 = vpop.f32.mrb[0].mxu0
  %v5591 = vpop.f32.mrb[0].mxu0
  %v5592 = vadd.f32 %v5495, %v5591
  %v5593 = vpop.f32.mrb[0].mxu0
  %5594 = vmatprep.mubr.bf16.mxu0 0
  %5595 = vmatmul.mubr.bf16.gmra.mrb[0].mxu0 %v5432
  %v5596 = vpop.f32.mrb[0].mxu0
  %v5597 = vadd.f32 %v5500, %v5596
  %v5598 = vpop.f32.mrb[0].mxu0
  %v5599 = vpop.f32.mrb[0].mxu0
  %v5600 = vadd.f32 %v5503, %v5599
  %v5601 = vpop.f32.mrb[0].mxu0
  %5602 = vmatprep.mubr.bf16.mxu0 0
  %5603 = vmatmul.mubr.bf16.gmra.mrb[0].mxu0 %v5435
  %v5604 = vpop.f32.mrb[0].mxu0
  %v5605 = vadd.f32 %v5508, %v5604
  %v5606 = vpop.f32.mrb[0].mxu0
  %v5607 = vpop.f32.mrb[0].mxu0
  %v5608 = vadd.f32 %v5511, %v5607
  %v5609 = vpop.f32.mrb[0].mxu0
  %5610 = vmatprep.mubr.bf16.mxu0 0
  %5611 = vmatmul.mubr.bf16.gmra.mrb[0].mxu0 %v5438
  %v5612 = vpop.f32.mrb[0].mxu0
  %v5613 = vadd.f32 %v5516, %v5612
  %v5614 = vpop.f32.mrb[0].mxu0
  %v5615 = vpop.f32.mrb[0].mxu0
  %v5616 = vadd.f32 %v5519, %v5615
  %v5617 = vpop.f32.mrb[0].mxu0
  %5618 = vmatprep.mubr.bf16.mxu0 0
  %5619 = vmatmul.mubr.bf16.gmra.mrb[0].mxu0 %v5441
  %v5620 = vpop.f32.mrb[0].mxu0
  %v5621 = vadd.f32 %v5524, %v5620
  %v5622 = vpop.f32.mrb[0].mxu0
  %v5623 = vpop.f32.mrb[0].mxu0
  %v5624 = vadd.f32 %v5527, %v5623
  %v5625 = vpop.f32.mrb[0].mxu0
  %5626 = vmatprep.mubr.bf16.mxu0 0
  %5627 = vmatmul.mubr.bf16.gmra.mrb[0].mxu0 %v5444
  %v5628 = vpop.f32.mrb[0].mxu0
  %v5629 = vadd.f32 %v5532, %v5628
  %v5630 = vpop.f32.mrb[0].mxu0
  %v5631 = vpop.f32.mrb[0].mxu0
  %v5632 = vadd.f32 %v5535, %v5631
  %v5633 = vpop.f32.mrb[0].mxu0
  %5634 = vmatprep.mubr.bf16.mxu0 0
  %5635 = vmatmul.mubr.bf16.gmra.mrb[0].mxu0 %v5447
  %v5636 = vpop.f32.mrb[0].mxu0
  %v5637 = vadd.f32 %v5540, %v5636
  %v5638 = vpop.f32.mrb[0].mxu0
  %v5639 = vpop.f32.mrb[0].mxu0
  %v5640 = vadd.f32 %v5543, %v5639
  %v5641 = vpop.f32.mrb[0].mxu0
  %5642 = vdwg.mxu0
  %v5643 = vpack.c.bf16 %v5584, %v5581
  %v5644 = vpack.c.bf16 %v5592, %v5589
  %v5645 = vpack.c.bf16 %v5600, %v5597
  %v5646 = vpack.c.bf16 %v5608, %v5605
  %5651 = vrot.lane.b32.xlu0 %v5643, 96
  %v5652 = vpop.permute.xlu0 %5651
  %5653 = vrot.lane.b32.xlu0 %v5644, 96
  %v5654 = vpop.permute.xlu0 %5653
  %5655 = vrot.lane.b32.xlu0 %v5645, 96
  %v5656 = vpop.permute.xlu0 %5655
  %5657 = vrot.lane.b32.xlu0 %v5646, 96
  %v5658 = vpop.permute.xlu0 %5657
  %v5660 = vsel %vm2169, %v5643, 0
  %v5663 = vsel %vm2169, %v5644, 0
  %v5666 = vsel %vm2169, %v5645, 0
  %v5669 = vsel %vm2169, %v5646, 0
  %v5672 = vsel %vm2169, %v5652, 0
  %v5675 = vsel %vm2169, %v5654, 0
  %v5678 = vsel %vm2169, %v5656, 0
  %v5681 = vsel %vm2169, %v5658, 0
  %5683 = vmatprep.subr.bf16.mxu0 0
  %5684 = vmatpush1.bf16.xpose.msra.mxu0 %v5672
  %5685 = vmatprep.subr.bf16.mxu0 0
  %5686 = vmatpush1.bf16.xpose.msra.mxu0 %v5675
  %5687 = vmatprep.subr.bf16.mxu0 0
  %5688 = vmatpush1.bf16.xpose.msra.mxu0 %v5678
  %5689 = vmatprep.subr.bf16.mxu0 0
  %5690 = vmatpush1.bf16.xpose.msra.mxu0 %v5681
  %5691 = vmatprep.subr.bf16.mxu0 0
  %5692 = vmatpush1.bf16.xpose.msra.mxu0 0
  %5693 = vmatprep.subr.bf16.mxu0 0
  %5694 = vmatpush1.bf16.xpose.msra.mxu0 0
  %5695 = vmatprep.subr.bf16.mxu0 0
  %5696 = vmatpush1.bf16.xpose.msra.mxu0 0
  %5697 = vmatprep.subr.bf16.mxu0 0
  %5698 = vmatpush1.bf16.xpose.msra.mxu0 0
  %5699 = vmatprep.subr.bf16.mxu0 0
  %5700 = vmatpush1.bf16.xpose.msra.mxu0 0
  %5701 = vmatprep.subr.bf16.mxu0 0
  %5702 = vmatpush1.bf16.xpose.msra.mxu0 0
  %5703 = vmatprep.subr.bf16.mxu0 0
  %5704 = vmatpush1.bf16.xpose.msra.mxu0 0
  %5705 = vmatprep.subr.bf16.mxu0 0
  %5706 = vmatpush1.bf16.xpose.msra.mxu0 0
  %5707 = vmatprep.subr.bf16.mxu0 0
  %5708 = vmatpush1.bf16.xpose.msra.mxu0 0
  %5709 = vmatprep.subr.bf16.mxu0 0
  %5710 = vmatpush1.bf16.xpose.msra.mxu0 0
  %5711 = vmatprep.subr.bf16.mxu0 0
  %5712 = vmatpush1.bf16.xpose.msra.mxu0 0
  %5713 = vmatprep.subr.bf16.mxu0 0
  %5714 = vmatpush1.bf16.xpose.msra.mxu0 0
  %5715 = vmatprep.mubr.bf16.mxu0 0
  %5716 = vmatmul.mubr.bf16.gmra.mrb[0].mxu0 %v5660
  %v5717 = vpop.f32.mrb[0].mxu0
  %v5718 = vadd.f32 0.0, %v5717
  %v5719 = vpop.f32.mrb[0].mxu0
  %v5720 = vpop.f32.mrb[0].mxu0
  %v5721 = vadd.f32 0.0, %v5720
  %v5722 = vpop.f32.mrb[0].mxu0
  %5723 = vmatprep.mubr.bf16.mxu0 0
  %5724 = vmatmul.mubr.bf16.gmra.mrb[0].mxu0 %v5663
  %v5725 = vpop.f32.mrb[0].mxu0
  %v5726 = vadd.f32 0.0, %v5725
  %v5727 = vpop.f32.mrb[0].mxu0
  %v5728 = vpop.f32.mrb[0].mxu0
  %v5729 = vadd.f32 0.0, %v5728
  %v5730 = vpop.f32.mrb[0].mxu0
  %5731 = vmatprep.mubr.bf16.mxu0 0
  %5732 = vmatmul.mubr.bf16.gmra.mrb[0].mxu0 %v5666
  %v5733 = vpop.f32.mrb[0].mxu0
  %v5734 = vadd.f32 0.0, %v5733
  %v5735 = vpop.f32.mrb[0].mxu0
  %v5736 = vpop.f32.mrb[0].mxu0
  %v5737 = vadd.f32 0.0, %v5736
  %v5738 = vpop.f32.mrb[0].mxu0
  %5739 = vmatprep.mubr.bf16.mxu0 0
  %5740 = vmatmul.mubr.bf16.gmra.mrb[0].mxu0 %v5669
  %v5741 = vpop.f32.mrb[0].mxu0
  %v5742 = vadd.f32 0.0, %v5741
  %v5743 = vpop.f32.mrb[0].mxu0
  %v5744 = vpop.f32.mrb[0].mxu0
  %v5745 = vadd.f32 0.0, %v5744
  %v5746 = vpop.f32.mrb[0].mxu0
  %5747 = vdwg.mxu0
  %v5748 = vsel %vm1678, %v5718, -inf
  %5749 = vmax.xlane.f32.xlu0 %v5748
  %v5750 = vpop.xlane.xlu0 %5749
  %v5751 = vsel %vm1678, %v5721, -inf
  %5752 = vmax.xlane.f32.xlu0 %v5751
  %v5753 = vpop.xlane.xlu0 %5752
  %v5754 = vsel %vm1678, %v5726, -inf
  %5755 = vmax.xlane.f32.xlu0 %v5754
  %v5756 = vpop.xlane.xlu0 %5755
  %v5757 = vsel %vm1678, %v5729, -inf
  %5758 = vmax.xlane.f32.xlu0 %v5757
  %v5759 = vpop.xlane.xlu0 %5758
  %v5760 = vsel %vm1678, %v5734, -inf
  %5761 = vmax.xlane.f32.xlu0 %v5760
  %v5762 = vpop.xlane.xlu0 %5761
  %v5763 = vsel %vm1678, %v5737, -inf
  %5764 = vmax.xlane.f32.xlu0 %v5763
  %v5765 = vpop.xlane.xlu0 %5764
  %v5766 = vsel %vm1678, %v5742, -inf
  %5767 = vmax.xlane.f32.xlu0 %v5766
  %v5768 = vpop.xlane.xlu0 %5767
  %v5769 = vsel %vm1678, %v5745, -inf
  %5770 = vmax.xlane.f32.xlu0 %v5769
  %v5771 = vpop.xlane.xlu0 %5770
  %v5772 = vsub.f32 %v5718, %v5750
  %v5773 = vsub.f32 %v5721, %v5753
  %v5774 = vsub.f32 %v5726, %v5756
  %v5775 = vsub.f32 %v5729, %v5759
  %v5776 = vsub.f32 %v5734, %v5762
  %v5777 = vsub.f32 %v5737, %v5765
  %v5778 = vsub.f32 %v5742, %v5768
  %v5779 = vsub.f32 %v5745, %v5771
  %v5780 = vmul.f32 %v5772, 1.442695
  %v5781 = vpow.pop %v5780
  %v5782 = vmul.f32 %v5773, 1.442695
  %v5783 = vpow.pop %v5782
  %v5784 = vmul.f32 %v5774, 1.442695
  %v5785 = vpow.pop %v5784
  %v5786 = vmul.f32 %v5775, 1.442695
  %v5787 = vpow.pop %v5786
  %v5788 = vmul.f32 %v5776, 1.442695
  %v5789 = vpow.pop %v5788
  %v5790 = vmul.f32 %v5777, 1.442695
  %v5791 = vpow.pop %v5790
  %v5792 = vmul.f32 %v5778, 1.442695
  %v5793 = vpow.pop %v5792
  %v5794 = vmul.f32 %v5779, 1.442695
  %v5795 = vpow.pop %v5794
  %v5796 = vsel %vm1678, %v5781, 0.0
  %5797 = vadd.xlane.f32.xlu0 %v5796
  %v5798 = vpop.xlane.xlu0 %5797
  %v5799 = vsel %vm1678, %v5783, 0.0
  %5800 = vadd.xlane.f32.xlu0 %v5799
  %v5801 = vpop.xlane.xlu0 %5800
  %v5802 = vsel %vm1678, %v5785, 0.0
  %5803 = vadd.xlane.f32.xlu0 %v5802
  %v5804 = vpop.xlane.xlu0 %5803
  %v5805 = vsel %vm1678, %v5787, 0.0
  %5806 = vadd.xlane.f32.xlu0 %v5805
  %v5807 = vpop.xlane.xlu0 %5806
  %v5808 = vsel %vm1678, %v5789, 0.0
  %5809 = vadd.xlane.f32.xlu0 %v5808
  %v5810 = vpop.xlane.xlu0 %5809
  %v5811 = vsel %vm1678, %v5791, 0.0
  %5812 = vadd.xlane.f32.xlu0 %v5811
  %v5813 = vpop.xlane.xlu0 %5812
  %v5814 = vsel %vm1678, %v5793, 0.0
  %5815 = vadd.xlane.f32.xlu0 %v5814
  %v5816 = vpop.xlane.xlu0 %5815
  %v5817 = vsel %vm1678, %v5795, 0.0
  %5818 = vadd.xlane.f32.xlu0 %v5817
  %v5819 = vpop.xlane.xlu0 %5818
  %v5820 = vrcp.pop %v5798
  %v5821 = vrcp.pop %v5801
  %v5822 = vrcp.pop %v5804
  %v5823 = vrcp.pop %v5807
  %v5824 = vrcp.pop %v5810
  %v5825 = vrcp.pop %v5813
  %v5826 = vrcp.pop %v5816
  %v5827 = vrcp.pop %v5819
  %v5828 = vmul.f32 %v5781, %v5820
  %v5829 = vmul.f32 %v5783, %v5821
  %v5830 = vmul.f32 %v5785, %v5822
  %v5831 = vmul.f32 %v5787, %v5823
  %v5832 = vmul.f32 %v5789, %v5824
  %v5833 = vmul.f32 %v5791, %v5825
  %v5834 = vmul.f32 %v5793, %v5826
  %v5835 = vmul.f32 %v5795, %v5827
  %v5836 = vpack.c.bf16 %v5829, %v5828
  %v5837 = vpack.c.bf16 %v5831, %v5830
  %v5838 = vpack.c.bf16 %v5833, %v5832
  %v5839 = vpack.c.bf16 %v5835, %v5834
  %5840 = vrot.lane.b32.xlu0 %v5643, 64
  %v5841 = vpop.permute.xlu0 %5840
  %5842 = vrot.lane.b32.xlu0 %v5644, 64
  %v5843 = vpop.permute.xlu0 %5842
  %5844 = vrot.lane.b32.xlu0 %v5645, 64
  %v5845 = vpop.permute.xlu0 %5844
  %5846 = vrot.lane.b32.xlu0 %v5646, 64
  %v5847 = vpop.permute.xlu0 %5846
  %v5853 = vsel %vm1678, %v5836, 0
  %v5856 = vsel %vm1678, %v5837, 0
  %v5859 = vsel %vm1678, %v5838, 0
  %v5862 = vsel %vm1678, %v5839, 0
  %5864 = vmatprep.subr.bf16.mxu0 0
  %5865 = vmatpush1.bf16.msra.mxu0 %v5841
  %5866 = vmatprep.subr.bf16.mxu0 0
  %5867 = vmatpush1.bf16.msra.mxu0 %v5843
  %5868 = vmatprep.subr.bf16.mxu0 0
  %5869 = vmatpush1.bf16.msra.mxu0 %v5845
  %5870 = vmatprep.subr.bf16.mxu0 0
  %5871 = vmatpush1.bf16.msra.mxu0 %v5847
  %5872 = vmatprep.subr.bf16.mxu0 0
  %5873 = vmatpush1.bf16.msra.mxu0 0
  %5874 = vmatprep.subr.bf16.mxu0 0
  %5875 = vmatpush1.bf16.msra.mxu0 0
  %5876 = vmatprep.subr.bf16.mxu0 0
  %5877 = vmatpush1.bf16.msra.mxu0 0
  %5878 = vmatprep.subr.bf16.mxu0 0
  %5879 = vmatpush1.bf16.msra.mxu0 0
  %5880 = vmatprep.subr.bf16.mxu0 0
  %5881 = vmatpush1.bf16.msra.mxu0 0
  %5882 = vmatprep.subr.bf16.mxu0 0
  %5883 = vmatpush1.bf16.msra.mxu0 0
  %5884 = vmatprep.subr.bf16.mxu0 0
  %5885 = vmatpush1.bf16.msra.mxu0 0
  %5886 = vmatprep.subr.bf16.mxu0 0
  %5887 = vmatpush1.bf16.msra.mxu0 0
  %5888 = vmatprep.subr.bf16.mxu0 0
  %5889 = vmatpush1.bf16.msra.mxu0 0
  %5890 = vmatprep.subr.bf16.mxu0 0
  %5891 = vmatpush1.bf16.msra.mxu0 0
  %5892 = vmatprep.subr.bf16.mxu0 0
  %5893 = vmatpush1.bf16.msra.mxu0 0
  %5894 = vmatprep.subr.bf16.mxu0 0
  %5895 = vmatpush1.bf16.msra.mxu0 0
  %5896 = vmatprep.mubr.bf16.mxu0 0
  %5897 = vmatmul.mubr.bf16.gmra.mrb[0].mxu0 %v5853
  %v5898 = vpop.f32.mrb[0].mxu0
  %v5899 = vadd.f32 0.0, %v5898
  %v5900 = vpop.f32.mrb[0].mxu0
  %v5901 = vpop.f32.mrb[0].mxu0
  %v5902 = vadd.f32 0.0, %v5901
  %v5903 = vpop.f32.mrb[0].mxu0
  %5904 = vmatprep.mubr.bf16.mxu0 0
  %5905 = vmatmul.mubr.bf16.gmra.mrb[0].mxu0 %v5856
  %v5906 = vpop.f32.mrb[0].mxu0
  %v5907 = vadd.f32 0.0, %v5906
  %v5908 = vpop.f32.mrb[0].mxu0
  %v5909 = vpop.f32.mrb[0].mxu0
  %v5910 = vadd.f32 0.0, %v5909
  %v5911 = vpop.f32.mrb[0].mxu0
  %5912 = vmatprep.mubr.bf16.mxu0 0
  %5913 = vmatmul.mubr.bf16.gmra.mrb[0].mxu0 %v5859
  %v5914 = vpop.f32.mrb[0].mxu0
  %v5915 = vadd.f32 0.0, %v5914
  %v5916 = vpop.f32.mrb[0].mxu0
  %v5917 = vpop.f32.mrb[0].mxu0
  %v5918 = vadd.f32 0.0, %v5917
  %v5919 = vpop.f32.mrb[0].mxu0
  %5920 = vmatprep.mubr.bf16.mxu0 0
  %5921 = vmatmul.mubr.bf16.gmra.mrb[0].mxu0 %v5862
  %v5922 = vpop.f32.mrb[0].mxu0
  %v5923 = vadd.f32 0.0, %v5922
  %v5924 = vpop.f32.mrb[0].mxu0
  %v5925 = vpop.f32.mrb[0].mxu0
  %v5926 = vadd.f32 0.0, %v5925
  %v5927 = vpop.f32.mrb[0].mxu0
  %5928 = vdwg.mxu0
  %5929 = vrot.lane.b32.xlu0 %v5643, 112
  %v5930 = vpop.permute.xlu0 %5929
  %5931 = vrot.lane.b32.xlu0 %v5644, 112
  %v5932 = vpop.permute.xlu0 %5931
  %5933 = vrot.lane.b32.xlu0 %v5645, 112
  %v5934 = vpop.permute.xlu0 %5933
  %5935 = vrot.lane.b32.xlu0 %v5646, 112
  %v5936 = vpop.permute.xlu0 %5935
  %5937 = vrot.lane.b32.xlu0 %v5643, 80
  %v5938 = vpop.permute.xlu0 %5937
  %5939 = vrot.lane.b32.xlu0 %v5644, 80
  %v5940 = vpop.permute.xlu0 %5939
  %5941 = vrot.lane.b32.xlu0 %v5645, 80
  %v5942 = vpop.permute.xlu0 %5941
  %5943 = vrot.lane.b32.xlu0 %v5646, 80
  %v5944 = vpop.permute.xlu0 %5943
  %v5946 = vsel %vm2169, %v5930, 0
  %v5949 = vsel %vm2169, %v5932, 0
  %v5952 = vsel %vm2169, %v5934, 0
  %v5955 = vsel %vm2169, %v5936, 0
  %v5958 = vsel %vm2169, %v5938, 0
  %v5961 = vsel %vm2169, %v5940, 0
  %v5964 = vsel %vm2169, %v5942, 0
  %v5967 = vsel %vm2169, %v5944, 0
  %5969 = vmatprep.subr.bf16.mxu0 0
  %5970 = vmatpush1.bf16.xpose.msra.mxu0 %v5958
  %5971 = vmatprep.subr.bf16.mxu0 0
  %5972 = vmatpush1.bf16.xpose.msra.mxu0 %v5961
  %5973 = vmatprep.subr.bf16.mxu0 0
  %5974 = vmatpush1.bf16.xpose.msra.mxu0 %v5964
  %5975 = vmatprep.subr.bf16.mxu0 0
  %5976 = vmatpush1.bf16.xpose.msra.mxu0 %v5967
  %5977 = vmatprep.subr.bf16.mxu0 0
  %5978 = vmatpush1.bf16.xpose.msra.mxu0 0
  %5979 = vmatprep.subr.bf16.mxu0 0
  %5980 = vmatpush1.bf16.xpose.msra.mxu0 0
  %5981 = vmatprep.subr.bf16.mxu0 0
  %5982 = vmatpush1.bf16.xpose.msra.mxu0 0
  %5983 = vmatprep.subr.bf16.mxu0 0
  %5984 = vmatpush1.bf16.xpose.msra.mxu0 0
  %5985 = vmatprep.subr.bf16.mxu0 0
  %5986 = vmatpush1.bf16.xpose.msra.mxu0 0
  %5987 = vmatprep.subr.bf16.mxu0 0
  %5988 = vmatpush1.bf16.xpose.msra.mxu0 0
  %5989 = vmatprep.subr.bf16.mxu0 0
  %5990 = vmatpush1.bf16.xpose.msra.mxu0 0
  %5991 = vmatprep.subr.bf16.mxu0 0
  %5992 = vmatpush1.bf16.xpose.msra.mxu0 0
  %5993 = vmatprep.subr.bf16.mxu0 0
  %5994 = vmatpush1.bf16.xpose.msra.mxu0 0
  %5995 = vmatprep.subr.bf16.mxu0 0
  %5996 = vmatpush1.bf16.xpose.msra.mxu0 0
  %5997 = vmatprep.subr.bf16.mxu0 0
  %5998 = vmatpush1.bf16.xpose.msra.mxu0 0
  %5999 = vmatprep.subr.bf16.mxu0 0
  %6000 = vmatpush1.bf16.xpose.msra.mxu0 0
  %6001 = vmatprep.mubr.bf16.mxu0 0
  %6002 = vmatmul.mubr.bf16.gmra.mrb[0].mxu0 %v5946
  %v6003 = vpop.f32.mrb[0].mxu0
  %v6004 = vadd.f32 0.0, %v6003
  %v6005 = vpop.f32.mrb[0].mxu0
  %v6006 = vpop.f32.mrb[0].mxu0
  %v6007 = vadd.f32 0.0, %v6006
  %v6008 = vpop.f32.mrb[0].mxu0
  %6009 = vmatprep.mubr.bf16.mxu0 0
  %6010 = vmatmul.mubr.bf16.gmra.mrb[0].mxu0 %v5949
  %v6011 = vpop.f32.mrb[0].mxu0
  %v6012 = vadd.f32 0.0, %v6011
  %v6013 = vpop.f32.mrb[0].mxu0
  %v6014 = vpop.f32.mrb[0].mxu0
  %v6015 = vadd.f32 0.0, %v6014
  %v6016 = vpop.f32.mrb[0].mxu0
  %6017 = vmatprep.mubr.bf16.mxu0 0
  %6018 = vmatmul.mubr.bf16.gmra.mrb[0].mxu0 %v5952
  %v6019 = vpop.f32.mrb[0].mxu0
  %v6020 = vadd.f32 0.0, %v6019
  %v6021 = vpop.f32.mrb[0].mxu0
  %v6022 = vpop.f32.mrb[0].mxu0
  %v6023 = vadd.f32 0.0, %v6022
  %v6024 = vpop.f32.mrb[0].mxu0
  %6025 = vmatprep.mubr.bf16.mxu0 0
  %6026 = vmatmul.mubr.bf16.gmra.mrb[0].mxu0 %v5955
  %v6027 = vpop.f32.mrb[0].mxu0
  %v6028 = vadd.f32 0.0, %v6027
  %v6029 = vpop.f32.mrb[0].mxu0
  %v6030 = vpop.f32.mrb[0].mxu0
  %v6031 = vadd.f32 0.0, %v6030
  %v6032 = vpop.f32.mrb[0].mxu0
  %6033 = vdwg.mxu0
  %v6034 = vsel %vm1678, %v6004, -inf
  %6035 = vmax.xlane.f32.xlu0 %v6034
  %v6036 = vpop.xlane.xlu0 %6035
  %v6037 = vsel %vm1678, %v6007, -inf
  %6038 = vmax.xlane.f32.xlu0 %v6037
  %v6039 = vpop.xlane.xlu0 %6038
  %v6040 = vsel %vm1678, %v6012, -inf
  %6041 = vmax.xlane.f32.xlu0 %v6040
  %v6042 = vpop.xlane.xlu0 %6041
  %v6043 = vsel %vm1678, %v6015, -inf
  %6044 = vmax.xlane.f32.xlu0 %v6043
  %v6045 = vpop.xlane.xlu0 %6044
  %v6046 = vsel %vm1678, %v6020, -inf
  %6047 = vmax.xlane.f32.xlu0 %v6046
  %v6048 = vpop.xlane.xlu0 %6047
  %v6049 = vsel %vm1678, %v6023, -inf
  %6050 = vmax.xlane.f32.xlu0 %v6049
  %v6051 = vpop.xlane.xlu0 %6050
  %v6052 = vsel %vm1678, %v6028, -inf
  %6053 = vmax.xlane.f32.xlu0 %v6052
  %v6054 = vpop.xlane.xlu0 %6053
  %v6055 = vsel %vm1678, %v6031, -inf
  %6056 = vmax.xlane.f32.xlu0 %v6055
  %v6057 = vpop.xlane.xlu0 %6056
  %v6058 = vsub.f32 %v6004, %v6036
  %v6059 = vsub.f32 %v6007, %v6039
  %v6060 = vsub.f32 %v6012, %v6042
  %v6061 = vsub.f32 %v6015, %v6045
  %v6062 = vsub.f32 %v6020, %v6048
  %v6063 = vsub.f32 %v6023, %v6051
  %v6064 = vsub.f32 %v6028, %v6054
  %v6065 = vsub.f32 %v6031, %v6057
  %v6066 = vmul.f32 %v6058, 1.442695
  %v6067 = vpow.pop %v6066
  %v6068 = vmul.f32 %v6059, 1.442695
  %v6069 = vpow.pop %v6068
  %v6070 = vmul.f32 %v6060, 1.442695
  %v6071 = vpow.pop %v6070
  %v6072 = vmul.f32 %v6061, 1.442695
  %v6073 = vpow.pop %v6072
  %v6074 = vmul.f32 %v6062, 1.442695
  %v6075 = vpow.pop %v6074
  %v6076 = vmul.f32 %v6063, 1.442695
  %v6077 = vpow.pop %v6076
  %v6078 = vmul.f32 %v6064, 1.442695
  %v6079 = vpow.pop %v6078
  %v6080 = vmul.f32 %v6065, 1.442695
  %v6081 = vpow.pop %v6080
  %v6082 = vsel %vm1678, %v6067, 0.0
  %6083 = vadd.xlane.f32.xlu0 %v6082
  %v6084 = vpop.xlane.xlu0 %6083
  %v6085 = vsel %vm1678, %v6069, 0.0
  %6086 = vadd.xlane.f32.xlu0 %v6085
  %v6087 = vpop.xlane.xlu0 %6086
  %v6088 = vsel %vm1678, %v6071, 0.0
  %6089 = vadd.xlane.f32.xlu0 %v6088
  %v6090 = vpop.xlane.xlu0 %6089
  %v6091 = vsel %vm1678, %v6073, 0.0
  %6092 = vadd.xlane.f32.xlu0 %v6091
  %v6093 = vpop.xlane.xlu0 %6092
  %v6094 = vsel %vm1678, %v6075, 0.0
  %6095 = vadd.xlane.f32.xlu0 %v6094
  %v6096 = vpop.xlane.xlu0 %6095
  %v6097 = vsel %vm1678, %v6077, 0.0
  %6098 = vadd.xlane.f32.xlu0 %v6097
  %v6099 = vpop.xlane.xlu0 %6098
  %v6100 = vsel %vm1678, %v6079, 0.0
  %6101 = vadd.xlane.f32.xlu0 %v6100
  %v6102 = vpop.xlane.xlu0 %6101
  %v6103 = vsel %vm1678, %v6081, 0.0
  %6104 = vadd.xlane.f32.xlu0 %v6103
  %v6105 = vpop.xlane.xlu0 %6104
  %v6106 = vrcp.pop %v6084
  %v6107 = vrcp.pop %v6087
  %v6108 = vrcp.pop %v6090
  %v6109 = vrcp.pop %v6093
  %v6110 = vrcp.pop %v6096
  %v6111 = vrcp.pop %v6099
  %v6112 = vrcp.pop %v6102
  %v6113 = vrcp.pop %v6105
  %v6114 = vmul.f32 %v6067, %v6106
  %v6115 = vmul.f32 %v6069, %v6107
  %v6116 = vmul.f32 %v6071, %v6108
  %v6117 = vmul.f32 %v6073, %v6109
  %v6118 = vmul.f32 %v6075, %v6110
  %v6119 = vmul.f32 %v6077, %v6111
  %v6120 = vmul.f32 %v6079, %v6112
  %v6121 = vmul.f32 %v6081, %v6113
  %v6122 = vpack.c.bf16 %v6115, %v6114
  %v6123 = vpack.c.bf16 %v6117, %v6116
  %v6124 = vpack.c.bf16 %v6119, %v6118
  %v6125 = vpack.c.bf16 %v6121, %v6120
  %6126 = vrot.lane.b32.xlu0 %v5643, 48
  %v6127 = vpop.permute.xlu0 %6126
  %6128 = vrot.lane.b32.xlu0 %v5644, 48
  %v6129 = vpop.permute.xlu0 %6128
  %6130 = vrot.lane.b32.xlu0 %v5645, 48
  %v6131 = vpop.permute.xlu0 %6130
  %6132 = vrot.lane.b32.xlu0 %v5646, 48
  %v6133 = vpop.permute.xlu0 %6132
  %v6139 = vsel %vm1678, %v6122, 0
  %v6142 = vsel %vm1678, %v6123, 0
  %v6145 = vsel %vm1678, %v6124, 0
  %v6148 = vsel %vm1678, %v6125, 0
  %6150 = vmatprep.subr.bf16.mxu0 0
  %6151 = vmatpush1.bf16.msra.mxu0 %v6127
  %6152 = vmatprep.subr.bf16.mxu0 0
  %6153 = vmatpush1.bf16.msra.mxu0 %v6129
  %6154 = vmatprep.subr.bf16.mxu0 0
  %6155 = vmatpush1.bf16.msra.mxu0 %v6131
  %6156 = vmatprep.subr.bf16.mxu0 0
  %6157 = vmatpush1.bf16.msra.mxu0 %v6133
  %6158 = vmatprep.subr.bf16.mxu0 0
  %6159 = vmatpush1.bf16.msra.mxu0 0
  %6160 = vmatprep.subr.bf16.mxu0 0
  %6161 = vmatpush1.bf16.msra.mxu0 0
  %6162 = vmatprep.subr.bf16.mxu0 0
  %6163 = vmatpush1.bf16.msra.mxu0 0
  %6164 = vmatprep.subr.bf16.mxu0 0
  %6165 = vmatpush1.bf16.msra.mxu0 0
  %6166 = vmatprep.subr.bf16.mxu0 0
  %6167 = vmatpush1.bf16.msra.mxu0 0
  %6168 = vmatprep.subr.bf16.mxu0 0
  %6169 = vmatpush1.bf16.msra.mxu0 0
  %6170 = vmatprep.subr.bf16.mxu0 0
  %6171 = vmatpush1.bf16.msra.mxu0 0
  %6172 = vmatprep.subr.bf16.mxu0 0
  %6173 = vmatpush1.bf16.msra.mxu0 0
  %6174 = vmatprep.subr.bf16.mxu0 0
  %6175 = vmatpush1.bf16.msra.mxu0 0
  %6176 = vmatprep.subr.bf16.mxu0 0
  %6177 = vmatpush1.bf16.msra.mxu0 0
  %6178 = vmatprep.subr.bf16.mxu0 0
  %6179 = vmatpush1.bf16.msra.mxu0 0
  %6180 = vmatprep.subr.bf16.mxu0 0
  %6181 = vmatpush1.bf16.msra.mxu0 0
  %6182 = vmatprep.mubr.bf16.mxu0 0
  %6183 = vmatmul.mubr.bf16.gmra.mrb[0].mxu0 %v6139
  %v6184 = vpop.f32.mrb[0].mxu0
  %v6185 = vadd.f32 0.0, %v6184
  %v6186 = vpop.f32.mrb[0].mxu0
  %v6187 = vpop.f32.mrb[0].mxu0
  %v6188 = vadd.f32 0.0, %v6187
  %v6189 = vpop.f32.mrb[0].mxu0
  %6190 = vmatprep.mubr.bf16.mxu0 0
  %6191 = vmatmul.mubr.bf16.gmra.mrb[0].mxu0 %v6142
  %v6192 = vpop.f32.mrb[0].mxu0
  %v6193 = vadd.f32 0.0, %v6192
  %v6194 = vpop.f32.mrb[0].mxu0
  %v6195 = vpop.f32.mrb[0].mxu0
  %v6196 = vadd.f32 0.0, %v6195
  %v6197 = vpop.f32.mrb[0].mxu0
  %6198 = vmatprep.mubr.bf16.mxu0 0
  %6199 = vmatmul.mubr.bf16.gmra.mrb[0].mxu0 %v6145
  %v6200 = vpop.f32.mrb[0].mxu0
  %v6201 = vadd.f32 0.0, %v6200
  %v6202 = vpop.f32.mrb[0].mxu0
  %v6203 = vpop.f32.mrb[0].mxu0
  %v6204 = vadd.f32 0.0, %v6203
  %v6205 = vpop.f32.mrb[0].mxu0
  %6206 = vmatprep.mubr.bf16.mxu0 0
  %6207 = vmatmul.mubr.bf16.gmra.mrb[0].mxu0 %v6148
  %v6208 = vpop.f32.mrb[0].mxu0
  %v6209 = vadd.f32 0.0, %v6208
  %v6210 = vpop.f32.mrb[0].mxu0
  %v6211 = vpop.f32.mrb[0].mxu0
  %v6212 = vadd.f32 0.0, %v6211
  %v6213 = vpop.f32.mrb[0].mxu0
  %6214 = vdwg.mxu0
  %6223 = vrot.lane.b32.xlu0 %v6185, 16
  %v6224 = vpop.permute.xlu0 %6223
  %6225 = vrot.lane.b32.xlu0 %v6188, 16
  %v6226 = vpop.permute.xlu0 %6225
  %6227 = vrot.lane.b32.xlu0 %v6193, 16
  %v6228 = vpop.permute.xlu0 %6227
  %6229 = vrot.lane.b32.xlu0 %v6196, 16
  %v6230 = vpop.permute.xlu0 %6229
  %6231 = vrot.lane.b32.xlu0 %v6201, 16
  %v6232 = vpop.permute.xlu0 %6231
  %6233 = vrot.lane.b32.xlu0 %v6204, 16
  %v6234 = vpop.permute.xlu0 %6233
  %6235 = vrot.lane.b32.xlu0 %v6209, 16
  %v6236 = vpop.permute.xlu0 %6235
  %6237 = vrot.lane.b32.xlu0 %v6212, 16
  %v6238 = vpop.permute.xlu0 %6237
  %v6247 = vsel %vm2169, %v5899, %v6224
  %v6248 = vsel %vm2169, %v5902, %v6226
  %v6249 = vsel %vm2169, %v5907, %v6228
  %v6250 = vsel %vm2169, %v5910, %v6230
  %v6251 = vsel %vm2169, %v5915, %v6232
  %v6252 = vsel %vm2169, %v5918, %v6234
  %v6253 = vsel %vm2169, %v5923, %v6236
  %v6254 = vsel %vm2169, %v5926, %v6238
  %v6255 = vpack.c.bf16 %v5616, %v5613
  %v6256 = vpack.c.bf16 %v5624, %v5621
  %v6257 = vpack.c.bf16 %v5632, %v5629
  %v6258 = vpack.c.bf16 %v5640, %v5637
  %6263 = vrot.lane.b32.xlu0 %v6255, 96
  %v6264 = vpop.permute.xlu0 %6263
  %6265 = vrot.lane.b32.xlu0 %v6256, 96
  %v6266 = vpop.permute.xlu0 %6265
  %6267 = vrot.lane.b32.xlu0 %v6257, 96
  %v6268 = vpop.permute.xlu0 %6267
  %6269 = vrot.lane.b32.xlu0 %v6258, 96
  %v6270 = vpop.permute.xlu0 %6269
  %v6272 = vsel %vm2169, %v6255, 0
  %v6275 = vsel %vm2169, %v6256, 0
  %v6278 = vsel %vm2169, %v6257, 0
  %v6281 = vsel %vm2169, %v6258, 0
  %v6284 = vsel %vm2169, %v6264, 0
  %v6287 = vsel %vm2169, %v6266, 0
  %v6290 = vsel %vm2169, %v6268, 0
  %v6293 = vsel %vm2169, %v6270, 0
  %6295 = vmatprep.subr.bf16.mxu0 0
  %6296 = vmatpush1.bf16.xpose.msra.mxu0 %v6284
  %6297 = vmatprep.subr.bf16.mxu0 0
  %6298 = vmatpush1.bf16.xpose.msra.mxu0 %v6287
  %6299 = vmatprep.subr.bf16.mxu0 0
  %6300 = vmatpush1.bf16.xpose.msra.mxu0 %v6290
  %6301 = vmatprep.subr.bf16.mxu0 0
  %6302 = vmatpush1.bf16.xpose.msra.mxu0 %v6293
  %6303 = vmatprep.subr.bf16.mxu0 0
  %6304 = vmatpush1.bf16.xpose.msra.mxu0 0
  %6305 = vmatprep.subr.bf16.mxu0 0
  %6306 = vmatpush1.bf16.xpose.msra.mxu0 0
  %6307 = vmatprep.subr.bf16.mxu0 0
  %6308 = vmatpush1.bf16.xpose.msra.mxu0 0
  %6309 = vmatprep.subr.bf16.mxu0 0
  %6310 = vmatpush1.bf16.xpose.msra.mxu0 0
  %6311 = vmatprep.subr.bf16.mxu0 0
  %6312 = vmatpush1.bf16.xpose.msra.mxu0 0
  %6313 = vmatprep.subr.bf16.mxu0 0
  %6314 = vmatpush1.bf16.xpose.msra.mxu0 0
  %6315 = vmatprep.subr.bf16.mxu0 0
  %6316 = vmatpush1.bf16.xpose.msra.mxu0 0
  %6317 = vmatprep.subr.bf16.mxu0 0
  %6318 = vmatpush1.bf16.xpose.msra.mxu0 0
  %6319 = vmatprep.subr.bf16.mxu0 0
  %6320 = vmatpush1.bf16.xpose.msra.mxu0 0
  %6321 = vmatprep.subr.bf16.mxu0 0
  %6322 = vmatpush1.bf16.xpose.msra.mxu0 0
  %6323 = vmatprep.subr.bf16.mxu0 0
  %6324 = vmatpush1.bf16.xpose.msra.mxu0 0
  %6325 = vmatprep.subr.bf16.mxu0 0
  %6326 = vmatpush1.bf16.xpose.msra.mxu0 0
  %6327 = vmatprep.mubr.bf16.mxu0 0
  %6328 = vmatmul.mubr.bf16.gmra.mrb[0].mxu0 %v6272
  %v6329 = vpop.f32.mrb[0].mxu0
  %v6330 = vadd.f32 0.0, %v6329
  %v6331 = vpop.f32.mrb[0].mxu0
  %v6332 = vpop.f32.mrb[0].mxu0
  %v6333 = vadd.f32 0.0, %v6332
  %v6334 = vpop.f32.mrb[0].mxu0
  %6335 = vmatprep.mubr.bf16.mxu0 0
  %6336 = vmatmul.mubr.bf16.gmra.mrb[0].mxu0 %v6275
  %v6337 = vpop.f32.mrb[0].mxu0
  %v6338 = vadd.f32 0.0, %v6337
  %v6339 = vpop.f32.mrb[0].mxu0
  %v6340 = vpop.f32.mrb[0].mxu0
  %v6341 = vadd.f32 0.0, %v6340
  %v6342 = vpop.f32.mrb[0].mxu0
  %6343 = vmatprep.mubr.bf16.mxu0 0
  %6344 = vmatmul.mubr.bf16.gmra.mrb[0].mxu0 %v6278
  %v6345 = vpop.f32.mrb[0].mxu0
  %v6346 = vadd.f32 0.0, %v6345
  %v6347 = vpop.f32.mrb[0].mxu0
  %v6348 = vpop.f32.mrb[0].mxu0
  %v6349 = vadd.f32 0.0, %v6348
  %v6350 = vpop.f32.mrb[0].mxu0
  %6351 = vmatprep.mubr.bf16.mxu0 0
  %6352 = vmatmul.mubr.bf16.gmra.mrb[0].mxu0 %v6281
  %v6353 = vpop.f32.mrb[0].mxu0
  %v6354 = vadd.f32 0.0, %v6353
  %v6355 = vpop.f32.mrb[0].mxu0
  %v6356 = vpop.f32.mrb[0].mxu0
  %v6357 = vadd.f32 0.0, %v6356
  %v6358 = vpop.f32.mrb[0].mxu0
  %6359 = vdwg.mxu0
  %v6360 = vsel %vm1678, %v6330, -inf
  %6361 = vmax.xlane.f32.xlu0 %v6360
  %v6362 = vpop.xlane.xlu0 %6361
  %v6363 = vsel %vm1678, %v6333, -inf
  %6364 = vmax.xlane.f32.xlu0 %v6363
  %v6365 = vpop.xlane.xlu0 %6364
  %v6366 = vsel %vm1678, %v6338, -inf
  %6367 = vmax.xlane.f32.xlu0 %v6366
  %v6368 = vpop.xlane.xlu0 %6367
  %v6369 = vsel %vm1678, %v6341, -inf
  %6370 = vmax.xlane.f32.xlu0 %v6369
  %v6371 = vpop.xlane.xlu0 %6370
  %v6372 = vsel %vm1678, %v6346, -inf
  %6373 = vmax.xlane.f32.xlu0 %v6372
  %v6374 = vpop.xlane.xlu0 %6373
  %v6375 = vsel %vm1678, %v6349, -inf
  %6376 = vmax.xlane.f32.xlu0 %v6375
  %v6377 = vpop.xlane.xlu0 %6376
  %v6378 = vsel %vm1678, %v6354, -inf
  %6379 = vmax.xlane.f32.xlu0 %v6378
  %v6380 = vpop.xlane.xlu0 %6379
  %v6381 = vsel %vm1678, %v6357, -inf
  %6382 = vmax.xlane.f32.xlu0 %v6381
  %v6383 = vpop.xlane.xlu0 %6382
  %v6384 = vsub.f32 %v6330, %v6362
  %v6385 = vsub.f32 %v6333, %v6365
  %v6386 = vsub.f32 %v6338, %v6368
  %v6387 = vsub.f32 %v6341, %v6371
  %v6388 = vsub.f32 %v6346, %v6374
  %v6389 = vsub.f32 %v6349, %v6377
  %v6390 = vsub.f32 %v6354, %v6380
  %v6391 = vsub.f32 %v6357, %v6383
  %v6392 = vmul.f32 %v6384, 1.442695
  %v6393 = vpow.pop %v6392
  %v6394 = vmul.f32 %v6385, 1.442695
  %v6395 = vpow.pop %v6394
  %v6396 = vmul.f32 %v6386, 1.442695
  %v6397 = vpow.pop %v6396
  %v6398 = vmul.f32 %v6387, 1.442695
  %v6399 = vpow.pop %v6398
  %v6400 = vmul.f32 %v6388, 1.442695
  %v6401 = vpow.pop %v6400
  %v6402 = vmul.f32 %v6389, 1.442695
  %v6403 = vpow.pop %v6402
  %v6404 = vmul.f32 %v6390, 1.442695
  %v6405 = vpow.pop %v6404
  %v6406 = vmul.f32 %v6391, 1.442695
  %v6407 = vpow.pop %v6406
  %v6408 = vsel %vm1678, %v6393, 0.0
  %6409 = vadd.xlane.f32.xlu0 %v6408
  %v6410 = vpop.xlane.xlu0 %6409
  %v6411 = vsel %vm1678, %v6395, 0.0
  %6412 = vadd.xlane.f32.xlu0 %v6411
  %v6413 = vpop.xlane.xlu0 %6412
  %v6414 = vsel %vm1678, %v6397, 0.0
  %6415 = vadd.xlane.f32.xlu0 %v6414
  %v6416 = vpop.xlane.xlu0 %6415
  %v6417 = vsel %vm1678, %v6399, 0.0
  %6418 = vadd.xlane.f32.xlu0 %v6417
  %v6419 = vpop.xlane.xlu0 %6418
  %v6420 = vsel %vm1678, %v6401, 0.0
  %6421 = vadd.xlane.f32.xlu0 %v6420
  %v6422 = vpop.xlane.xlu0 %6421
  %v6423 = vsel %vm1678, %v6403, 0.0
  %6424 = vadd.xlane.f32.xlu0 %v6423
  %v6425 = vpop.xlane.xlu0 %6424
  %v6426 = vsel %vm1678, %v6405, 0.0
  %6427 = vadd.xlane.f32.xlu0 %v6426
  %v6428 = vpop.xlane.xlu0 %6427
  %v6429 = vsel %vm1678, %v6407, 0.0
  %6430 = vadd.xlane.f32.xlu0 %v6429
  %v6431 = vpop.xlane.xlu0 %6430
  %v6432 = vrcp.pop %v6410
  %v6433 = vrcp.pop %v6413
  %v6434 = vrcp.pop %v6416
  %v6435 = vrcp.pop %v6419
  %v6436 = vrcp.pop %v6422
  %v6437 = vrcp.pop %v6425
  %v6438 = vrcp.pop %v6428
  %v6439 = vrcp.pop %v6431
  %v6440 = vmul.f32 %v6393, %v6432
  %v6441 = vmul.f32 %v6395, %v6433
  %v6442 = vmul.f32 %v6397, %v6434
  %v6443 = vmul.f32 %v6399, %v6435
  %v6444 = vmul.f32 %v6401, %v6436
  %v6445 = vmul.f32 %v6403, %v6437
  %v6446 = vmul.f32 %v6405, %v6438
  %v6447 = vmul.f32 %v6407, %v6439
  %v6448 = vpack.c.bf16 %v6441, %v6440
  %v6449 = vpack.c.bf16 %v6443, %v6442
  %v6450 = vpack.c.bf16 %v6445, %v6444
  %v6451 = vpack.c.bf16 %v6447, %v6446
  %6452 = vrot.lane.b32.xlu0 %v6255, 64
  %v6453 = vpop.permute.xlu0 %6452
  %6454 = vrot.lane.b32.xlu0 %v6256, 64
  %v6455 = vpop.permute.xlu0 %6454
  %6456 = vrot.lane.b32.xlu0 %v6257, 64
  %v6457 = vpop.permute.xlu0 %6456
  %6458 = vrot.lane.b32.xlu0 %v6258, 64
  %v6459 = vpop.permute.xlu0 %6458
  %v6465 = vsel %vm1678, %v6448, 0
  %v6468 = vsel %vm1678, %v6449, 0
  %v6471 = vsel %vm1678, %v6450, 0
  %v6474 = vsel %vm1678, %v6451, 0
  %6476 = vmatprep.subr.bf16.mxu0 0
  %6477 = vmatpush1.bf16.msra.mxu0 %v6453
  %6478 = vmatprep.subr.bf16.mxu0 0
  %6479 = vmatpush1.bf16.msra.mxu0 %v6455
  %6480 = vmatprep.subr.bf16.mxu0 0
  %6481 = vmatpush1.bf16.msra.mxu0 %v6457
  %6482 = vmatprep.subr.bf16.mxu0 0
  %6483 = vmatpush1.bf16.msra.mxu0 %v6459
  %6484 = vmatprep.subr.bf16.mxu0 0
  %6485 = vmatpush1.bf16.msra.mxu0 0
  %6486 = vmatprep.subr.bf16.mxu0 0
  %6487 = vmatpush1.bf16.msra.mxu0 0
  %6488 = vmatprep.subr.bf16.mxu0 0
  %6489 = vmatpush1.bf16.msra.mxu0 0
  %6490 = vmatprep.subr.bf16.mxu0 0
  %6491 = vmatpush1.bf16.msra.mxu0 0
  %6492 = vmatprep.subr.bf16.mxu0 0
  %6493 = vmatpush1.bf16.msra.mxu0 0
  %6494 = vmatprep.subr.bf16.mxu0 0
  %6495 = vmatpush1.bf16.msra.mxu0 0
  %6496 = vmatprep.subr.bf16.mxu0 0
  %6497 = vmatpush1.bf16.msra.mxu0 0
  %6498 = vmatprep.subr.bf16.mxu0 0
  %6499 = vmatpush1.bf16.msra.mxu0 0
  %6500 = vmatprep.subr.bf16.mxu0 0
  %6501 = vmatpush1.bf16.msra.mxu0 0
  %6502 = vmatprep.subr.bf16.mxu0 0
  %6503 = vmatpush1.bf16.msra.mxu0 0
  %6504 = vmatprep.subr.bf16.mxu0 0
  %6505 = vmatpush1.bf16.msra.mxu0 0
  %6506 = vmatprep.subr.bf16.mxu0 0
  %6507 = vmatpush1.bf16.msra.mxu0 0
  %6508 = vmatprep.mubr.bf16.mxu0 0
  %6509 = vmatmul.mubr.bf16.gmra.mrb[0].mxu0 %v6465
  %v6510 = vpop.f32.mrb[0].mxu0
  %v6511 = vadd.f32 0.0, %v6510
  %v6512 = vpop.f32.mrb[0].mxu0
  %v6513 = vpop.f32.mrb[0].mxu0
  %v6514 = vadd.f32 0.0, %v6513
  %v6515 = vpop.f32.mrb[0].mxu0
  %6516 = vmatprep.mubr.bf16.mxu0 0
  %6517 = vmatmul.mubr.bf16.gmra.mrb[0].mxu0 %v6468
  %v6518 = vpop.f32.mrb[0].mxu0
  %v6519 = vadd.f32 0.0, %v6518
  %v6520 = vpop.f32.mrb[0].mxu0
  %v6521 = vpop.f32.mrb[0].mxu0
  %v6522 = vadd.f32 0.0, %v6521
  %v6523 = vpop.f32.mrb[0].mxu0
  %6524 = vmatprep.mubr.bf16.mxu0 0
  %6525 = vmatmul.mubr.bf16.gmra.mrb[0].mxu0 %v6471
  %v6526 = vpop.f32.mrb[0].mxu0
  %v6527 = vadd.f32 0.0, %v6526
  %v6528 = vpop.f32.mrb[0].mxu0
  %v6529 = vpop.f32.mrb[0].mxu0
  %v6530 = vadd.f32 0.0, %v6529
  %v6531 = vpop.f32.mrb[0].mxu0
  %6532 = vmatprep.mubr.bf16.mxu0 0
  %6533 = vmatmul.mubr.bf16.gmra.mrb[0].mxu0 %v6474
  %v6534 = vpop.f32.mrb[0].mxu0
  %v6535 = vadd.f32 0.0, %v6534
  %v6536 = vpop.f32.mrb[0].mxu0
  %v6537 = vpop.f32.mrb[0].mxu0
  %v6538 = vadd.f32 0.0, %v6537
  %v6539 = vpop.f32.mrb[0].mxu0
  %6540 = vdwg.mxu0
  %6541 = vrot.lane.b32.xlu0 %v6255, 112
  %v6542 = vpop.permute.xlu0 %6541
  %6543 = vrot.lane.b32.xlu0 %v6256, 112
  %v6544 = vpop.permute.xlu0 %6543
  %6545 = vrot.lane.b32.xlu0 %v6257, 112
  %v6546 = vpop.permute.xlu0 %6545
  %6547 = vrot.lane.b32.xlu0 %v6258, 112
  %v6548 = vpop.permute.xlu0 %6547
  %6549 = vrot.lane.b32.xlu0 %v6255, 80
  %v6550 = vpop.permute.xlu0 %6549
  %6551 = vrot.lane.b32.xlu0 %v6256, 80
  %v6552 = vpop.permute.xlu0 %6551
  %6553 = vrot.lane.b32.xlu0 %v6257, 80
  %v6554 = vpop.permute.xlu0 %6553
  %6555 = vrot.lane.b32.xlu0 %v6258, 80
  %v6556 = vpop.permute.xlu0 %6555
  %v6558 = vsel %vm2169, %v6542, 0
  %v6561 = vsel %vm2169, %v6544, 0
  %v6564 = vsel %vm2169, %v6546, 0
  %v6567 = vsel %vm2169, %v6548, 0
  %v6570 = vsel %vm2169, %v6550, 0
  %v6573 = vsel %vm2169, %v6552, 0
  %v6576 = vsel %vm2169, %v6554, 0
  %v6579 = vsel %vm2169, %v6556, 0
  %6581 = vmatprep.subr.bf16.mxu0 0
  %6582 = vmatpush1.bf16.xpose.msra.mxu0 %v6570
  %6583 = vmatprep.subr.bf16.mxu0 0
  %6584 = vmatpush1.bf16.xpose.msra.mxu0 %v6573
  %6585 = vmatprep.subr.bf16.mxu0 0
  %6586 = vmatpush1.bf16.xpose.msra.mxu0 %v6576
  %6587 = vmatprep.subr.bf16.mxu0 0
  %6588 = vmatpush1.bf16.xpose.msra.mxu0 %v6579
  %6589 = vmatprep.subr.bf16.mxu0 0
  %6590 = vmatpush1.bf16.xpose.msra.mxu0 0
  %6591 = vmatprep.subr.bf16.mxu0 0
  %6592 = vmatpush1.bf16.xpose.msra.mxu0 0
  %6593 = vmatprep.subr.bf16.mxu0 0
  %6594 = vmatpush1.bf16.xpose.msra.mxu0 0
  %6595 = vmatprep.subr.bf16.mxu0 0
  %6596 = vmatpush1.bf16.xpose.msra.mxu0 0
  %6597 = vmatprep.subr.bf16.mxu0 0
  %6598 = vmatpush1.bf16.xpose.msra.mxu0 0
  %6599 = vmatprep.subr.bf16.mxu0 0
  %6600 = vmatpush1.bf16.xpose.msra.mxu0 0
  %6601 = vmatprep.subr.bf16.mxu0 0
  %6602 = vmatpush1.bf16.xpose.msra.mxu0 0
  %6603 = vmatprep.subr.bf16.mxu0 0
  %6604 = vmatpush1.bf16.xpose.msra.mxu0 0
  %6605 = vmatprep.subr.bf16.mxu0 0
  %6606 = vmatpush1.bf16.xpose.msra.mxu0 0
  %6607 = vmatprep.subr.bf16.mxu0 0
  %6608 = vmatpush1.bf16.xpose.msra.mxu0 0
  %6609 = vmatprep.subr.bf16.mxu0 0
  %6610 = vmatpush1.bf16.xpose.msra.mxu0 0
  %6611 = vmatprep.subr.bf16.mxu0 0
  %6612 = vmatpush1.bf16.xpose.msra.mxu0 0
  %6613 = vmatprep.mubr.bf16.mxu0 0
  %6614 = vmatmul.mubr.bf16.gmra.mrb[0].mxu0 %v6558
  %v6615 = vpop.f32.mrb[0].mxu0
  %v6616 = vadd.f32 0.0, %v6615
  %v6617 = vpop.f32.mrb[0].mxu0
  %v6618 = vpop.f32.mrb[0].mxu0
  %v6619 = vadd.f32 0.0, %v6618
  %v6620 = vpop.f32.mrb[0].mxu0
  %6621 = vmatprep.mubr.bf16.mxu0 0
  %6622 = vmatmul.mubr.bf16.gmra.mrb[0].mxu0 %v6561
  %v6623 = vpop.f32.mrb[0].mxu0
  %v6624 = vadd.f32 0.0, %v6623
  %v6625 = vpop.f32.mrb[0].mxu0
  %v6626 = vpop.f32.mrb[0].mxu0
  %v6627 = vadd.f32 0.0, %v6626
  %v6628 = vpop.f32.mrb[0].mxu0
  %6629 = vmatprep.mubr.bf16.mxu0 0
  %6630 = vmatmul.mubr.bf16.gmra.mrb[0].mxu0 %v6564
  %v6631 = vpop.f32.mrb[0].mxu0
  %v6632 = vadd.f32 0.0, %v6631
  %v6633 = vpop.f32.mrb[0].mxu0
  %v6634 = vpop.f32.mrb[0].mxu0
  %v6635 = vadd.f32 0.0, %v6634
  %v6636 = vpop.f32.mrb[0].mxu0
  %6637 = vmatprep.mubr.bf16.mxu0 0
  %6638 = vmatmul.mubr.bf16.gmra.mrb[0].mxu0 %v6567
  %v6639 = vpop.f32.mrb[0].mxu0
  %v6640 = vadd.f32 0.0, %v6639
  %v6641 = vpop.f32.mrb[0].mxu0
  %v6642 = vpop.f32.mrb[0].mxu0
  %v6643 = vadd.f32 0.0, %v6642
  %v6644 = vpop.f32.mrb[0].mxu0
  %6645 = vdwg.mxu0
  %v6646 = vsel %vm1678, %v6616, -inf
  %6647 = vmax.xlane.f32.xlu0 %v6646
  %v6648 = vpop.xlane.xlu0 %6647
  %v6649 = vsel %vm1678, %v6619, -inf
  %6650 = vmax.xlane.f32.xlu0 %v6649
  %v6651 = vpop.xlane.xlu0 %6650
  %v6652 = vsel %vm1678, %v6624, -inf
  %6653 = vmax.xlane.f32.xlu0 %v6652
  %v6654 = vpop.xlane.xlu0 %6653
  %v6655 = vsel %vm1678, %v6627, -inf
  %6656 = vmax.xlane.f32.xlu0 %v6655
  %v6657 = vpop.xlane.xlu0 %6656
  %v6658 = vsel %vm1678, %v6632, -inf
  %6659 = vmax.xlane.f32.xlu0 %v6658
  %v6660 = vpop.xlane.xlu0 %6659
  %v6661 = vsel %vm1678, %v6635, -inf
  %6662 = vmax.xlane.f32.xlu0 %v6661
  %v6663 = vpop.xlane.xlu0 %6662
  %v6664 = vsel %vm1678, %v6640, -inf
  %6665 = vmax.xlane.f32.xlu0 %v6664
  %v6666 = vpop.xlane.xlu0 %6665
  %v6667 = vsel %vm1678, %v6643, -inf
  %6668 = vmax.xlane.f32.xlu0 %v6667
  %v6669 = vpop.xlane.xlu0 %6668
  %v6670 = vsub.f32 %v6616, %v6648
  %v6671 = vsub.f32 %v6619, %v6651
  %v6672 = vsub.f32 %v6624, %v6654
  %v6673 = vsub.f32 %v6627, %v6657
  %v6674 = vsub.f32 %v6632, %v6660
  %v6675 = vsub.f32 %v6635, %v6663
  %v6676 = vsub.f32 %v6640, %v6666
  %v6677 = vsub.f32 %v6643, %v6669
  %v6678 = vmul.f32 %v6670, 1.442695
  %v6679 = vpow.pop %v6678
  %v6680 = vmul.f32 %v6671, 1.442695
  %v6681 = vpow.pop %v6680
  %v6682 = vmul.f32 %v6672, 1.442695
  %v6683 = vpow.pop %v6682
  %v6684 = vmul.f32 %v6673, 1.442695
  %v6685 = vpow.pop %v6684
  %v6686 = vmul.f32 %v6674, 1.442695
  %v6687 = vpow.pop %v6686
  %v6688 = vmul.f32 %v6675, 1.442695
  %v6689 = vpow.pop %v6688
  %v6690 = vmul.f32 %v6676, 1.442695
  %v6691 = vpow.pop %v6690
  %v6692 = vmul.f32 %v6677, 1.442695
  %v6693 = vpow.pop %v6692
  %v6694 = vsel %vm1678, %v6679, 0.0
  %6695 = vadd.xlane.f32.xlu0 %v6694
  %v6696 = vpop.xlane.xlu0 %6695
  %v6697 = vsel %vm1678, %v6681, 0.0
  %6698 = vadd.xlane.f32.xlu0 %v6697
  %v6699 = vpop.xlane.xlu0 %6698
  %v6700 = vsel %vm1678, %v6683, 0.0
  %6701 = vadd.xlane.f32.xlu0 %v6700
  %v6702 = vpop.xlane.xlu0 %6701
  %v6703 = vsel %vm1678, %v6685, 0.0
  %6704 = vadd.xlane.f32.xlu0 %v6703
  %v6705 = vpop.xlane.xlu0 %6704
  %v6706 = vsel %vm1678, %v6687, 0.0
  %6707 = vadd.xlane.f32.xlu0 %v6706
  %v6708 = vpop.xlane.xlu0 %6707
  %v6709 = vsel %vm1678, %v6689, 0.0
  %6710 = vadd.xlane.f32.xlu0 %v6709
  %v6711 = vpop.xlane.xlu0 %6710
  %v6712 = vsel %vm1678, %v6691, 0.0
  %6713 = vadd.xlane.f32.xlu0 %v6712
  %v6714 = vpop.xlane.xlu0 %6713
  %v6715 = vsel %vm1678, %v6693, 0.0
  %6716 = vadd.xlane.f32.xlu0 %v6715
  %v6717 = vpop.xlane.xlu0 %6716
  %v6718 = vrcp.pop %v6696
  %v6719 = vrcp.pop %v6699
  %v6720 = vrcp.pop %v6702
  %v6721 = vrcp.pop %v6705
  %v6722 = vrcp.pop %v6708
  %v6723 = vrcp.pop %v6711
  %v6724 = vrcp.pop %v6714
  %v6725 = vrcp.pop %v6717
  %v6726 = vmul.f32 %v6679, %v6718
  %v6727 = vmul.f32 %v6681, %v6719
  %v6728 = vmul.f32 %v6683, %v6720
  %v6729 = vmul.f32 %v6685, %v6721
  %v6730 = vmul.f32 %v6687, %v6722
  %v6731 = vmul.f32 %v6689, %v6723
  %v6732 = vmul.f32 %v6691, %v6724
  %v6733 = vmul.f32 %v6693, %v6725
  %v6734 = vpack.c.bf16 %v6727, %v6726
  %v6735 = vpack.c.bf16 %v6729, %v6728
  %v6736 = vpack.c.bf16 %v6731, %v6730
  %v6737 = vpack.c.bf16 %v6733, %v6732
  %6738 = vrot.lane.b32.xlu0 %v6255, 48
  %v6739 = vpop.permute.xlu0 %6738
  %6740 = vrot.lane.b32.xlu0 %v6256, 48
  %v6741 = vpop.permute.xlu0 %6740
  %6742 = vrot.lane.b32.xlu0 %v6257, 48
  %v6743 = vpop.permute.xlu0 %6742
  %6744 = vrot.lane.b32.xlu0 %v6258, 48
  %v6745 = vpop.permute.xlu0 %6744
  %v6751 = vsel %vm1678, %v6734, 0
  %v6754 = vsel %vm1678, %v6735, 0
  %v6757 = vsel %vm1678, %v6736, 0
  %v6760 = vsel %vm1678, %v6737, 0
  %6762 = vmatprep.subr.bf16.mxu0 0
  %6763 = vmatpush1.bf16.msra.mxu0 %v6739
  %6764 = vmatprep.subr.bf16.mxu0 0
  %6765 = vmatpush1.bf16.msra.mxu0 %v6741
  %6766 = vmatprep.subr.bf16.mxu0 0
  %6767 = vmatpush1.bf16.msra.mxu0 %v6743
  %6768 = vmatprep.subr.bf16.mxu0 0
  %6769 = vmatpush1.bf16.msra.mxu0 %v6745
  %6770 = vmatprep.subr.bf16.mxu0 0
  %6771 = vmatpush1.bf16.msra.mxu0 0
  %6772 = vmatprep.subr.bf16.mxu0 0
  %6773 = vmatpush1.bf16.msra.mxu0 0
  %6774 = vmatprep.subr.bf16.mxu0 0
  %6775 = vmatpush1.bf16.msra.mxu0 0
  %6776 = vmatprep.subr.bf16.mxu0 0
  %6777 = vmatpush1.bf16.msra.mxu0 0
  %6778 = vmatprep.subr.bf16.mxu0 0
  %6779 = vmatpush1.bf16.msra.mxu0 0
  %6780 = vmatprep.subr.bf16.mxu0 0
  %6781 = vmatpush1.bf16.msra.mxu0 0
  %6782 = vmatprep.subr.bf16.mxu0 0
  %6783 = vmatpush1.bf16.msra.mxu0 0
  %6784 = vmatprep.subr.bf16.mxu0 0
  %6785 = vmatpush1.bf16.msra.mxu0 0
  %6786 = vmatprep.subr.bf16.mxu0 0
  %6787 = vmatpush1.bf16.msra.mxu0 0
  %6788 = vmatprep.subr.bf16.mxu0 0
  %6789 = vmatpush1.bf16.msra.mxu0 0
  %6790 = vmatprep.subr.bf16.mxu0 0
  %6791 = vmatpush1.bf16.msra.mxu0 0
  %6792 = vmatprep.subr.bf16.mxu0 0
  %6793 = vmatpush1.bf16.msra.mxu0 0
  %6794 = vmatprep.mubr.bf16.mxu0 0
  %6795 = vmatmul.mubr.bf16.gmra.mrb[0].mxu0 %v6751
  %v6796 = vpop.f32.mrb[0].mxu0
  %v6797 = vadd.f32 0.0, %v6796
  %v6798 = vpop.f32.mrb[0].mxu0
  %v6799 = vpop.f32.mrb[0].mxu0
  %v6800 = vadd.f32 0.0, %v6799
  %v6801 = vpop.f32.mrb[0].mxu0
  %6802 = vmatprep.mubr.bf16.mxu0 0
  %6803 = vmatmul.mubr.bf16.gmra.mrb[0].mxu0 %v6754
  %v6804 = vpop.f32.mrb[0].mxu0
  %v6805 = vadd.f32 0.0, %v6804
  %v6806 = vpop.f32.mrb[0].mxu0
  %v6807 = vpop.f32.mrb[0].mxu0
  %v6808 = vadd.f32 0.0, %v6807
  %v6809 = vpop.f32.mrb[0].mxu0
  %6810 = vmatprep.mubr.bf16.mxu0 0
  %6811 = vmatmul.mubr.bf16.gmra.mrb[0].mxu0 %v6757
  %v6812 = vpop.f32.mrb[0].mxu0
  %v6813 = vadd.f32 0.0, %v6812
  %v6814 = vpop.f32.mrb[0].mxu0
  %v6815 = vpop.f32.mrb[0].mxu0
  %v6816 = vadd.f32 0.0, %v6815
  %v6817 = vpop.f32.mrb[0].mxu0
  %6818 = vmatprep.mubr.bf16.mxu0 0
  %6819 = vmatmul.mubr.bf16.gmra.mrb[0].mxu0 %v6760
  %v6820 = vpop.f32.mrb[0].mxu0
  %v6821 = vadd.f32 0.0, %v6820
  %v6822 = vpop.f32.mrb[0].mxu0
  %v6823 = vpop.f32.mrb[0].mxu0
  %v6824 = vadd.f32 0.0, %v6823
  %v6825 = vpop.f32.mrb[0].mxu0
  %6826 = vdwg.mxu0
  %6835 = vrot.lane.b32.xlu0 %v6797, 16
  %v6836 = vpop.permute.xlu0 %6835
  %6837 = vrot.lane.b32.xlu0 %v6800, 16
  %v6838 = vpop.permute.xlu0 %6837
  %6839 = vrot.lane.b32.xlu0 %v6805, 16
  %v6840 = vpop.permute.xlu0 %6839
  %6841 = vrot.lane.b32.xlu0 %v6808, 16
  %v6842 = vpop.permute.xlu0 %6841
  %6843 = vrot.lane.b32.xlu0 %v6813, 16
  %v6844 = vpop.permute.xlu0 %6843
  %6845 = vrot.lane.b32.xlu0 %v6816, 16
  %v6846 = vpop.permute.xlu0 %6845
  %6847 = vrot.lane.b32.xlu0 %v6821, 16
  %v6848 = vpop.permute.xlu0 %6847
  %6849 = vrot.lane.b32.xlu0 %v6824, 16
  %v6850 = vpop.permute.xlu0 %6849
  %v6859 = vsel %vm2169, %v6511, %v6836
  %v6860 = vsel %vm2169, %v6514, %v6838
  %v6861 = vsel %vm2169, %v6519, %v6840
  %v6862 = vsel %vm2169, %v6522, %v6842
  %v6863 = vsel %vm2169, %v6527, %v6844
  %v6864 = vsel %vm2169, %v6530, %v6846
  %v6865 = vsel %vm2169, %v6535, %v6848
  %v6866 = vsel %vm2169, %v6538, %v6850
  %v6867 = vpack.c.bf16 %v6248, %v6247
  %v6868 = vpack.c.bf16 %v6250, %v6249
  %v6869 = vpack.c.bf16 %v6252, %v6251
  %v6870 = vpack.c.bf16 %v6254, %v6253
  %v6871 = vpack.c.bf16 %v6860, %v6859
  %v6872 = vpack.c.bf16 %v6862, %v6861
  %v6873 = vpack.c.bf16 %v6864, %v6863
  %v6874 = vpack.c.bf16 %v6866, %v6865
  %s6875 = scalar_lea.vmem %s6, 16
  %v6876 = vld [vmem:[%s6875] sm:$0xf]
  %v6877 = vld [vmem:[%s6875 + $0x4] sm:$0xf]
  %v6878 = vld [vmem:[%s6875 + $0x8] sm:$0xf]
  %v6879 = vld [vmem:[%s6875 + $0xc] sm:$0xf]
  %v6884 = vunpack.c.l.b16 %v6876
  %v6885 = vunpack.c.l.b16 %v6877
  %v6886 = vunpack.c.l.b16 %v6878
  %v6887 = vunpack.c.l.b16 %v6879
  %v6888 = vpack.c.b16 %v6885, %v6884
  %v6889 = vpack.c.b16 %v6887, %v6886
  %v6893 = vsel %vm42, %v6867, 0
  %v6896 = vsel %vm42, %v6868, 0
  %v6899 = vsel %vm42, %v6869, 0
  %v6902 = vsel %vm42, %v6870, 0
  %v6905 = vsel %vm42, %v6871, 0
  %v6908 = vsel %vm42, %v6872, 0
  %v6911 = vsel %vm42, %v6873, 0
  %v6914 = vsel %vm42, %v6874, 0
  %6916 = vmatprep.subr.bf16.mxu0 0
  %6917 = vmatpush1.bf16.msra.mxu0 %v6888
  %6918 = vmatprep.subr.bf16.mxu0 0
  %6919 = vmatpush1.bf16.msra.mxu0 %v6889
  %6920 = vmatprep.subr.bf16.mxu0 0
  %6921 = vmatpush1.bf16.msra.mxu0 0
  %6922 = vmatprep.subr.bf16.mxu0 0
  %6923 = vmatpush1.bf16.msra.mxu0 0
  %6924 = vmatprep.subr.bf16.mxu0 0
  %6925 = vmatpush1.bf16.msra.mxu0 0
  %6926 = vmatprep.subr.bf16.mxu0 0
  %6927 = vmatpush1.bf16.msra.mxu0 0
  %6928 = vmatprep.subr.bf16.mxu0 0
  %6929 = vmatpush1.bf16.msra.mxu0 0
  %6930 = vmatprep.subr.bf16.mxu0 0
  %6931 = vmatpush1.bf16.msra.mxu0 0
  %6932 = vmatprep.subr.bf16.mxu0 0
  %6933 = vmatpush1.bf16.msra.mxu0 0
  %6934 = vmatprep.subr.bf16.mxu0 0
  %6935 = vmatpush1.bf16.msra.mxu0 0
  %6936 = vmatprep.subr.bf16.mxu0 0
  %6937 = vmatpush1.bf16.msra.mxu0 0
  %6938 = vmatprep.subr.bf16.mxu0 0
  %6939 = vmatpush1.bf16.msra.mxu0 0
  %6940 = vmatprep.subr.bf16.mxu0 0
  %6941 = vmatpush1.bf16.msra.mxu0 0
  %6942 = vmatprep.subr.bf16.mxu0 0
  %6943 = vmatpush1.bf16.msra.mxu0 0
  %6944 = vmatprep.subr.bf16.mxu0 0
  %6945 = vmatpush1.bf16.msra.mxu0 0
  %6946 = vmatprep.subr.bf16.mxu0 0
  %6947 = vmatpush1.bf16.msra.mxu0 0
  %6948 = vmatprep.mubr.bf16.mxu0 0
  %6949 = vmatmul.mubr.bf16.gmra.mrb[0].mxu0 %v6893
  %v6950 = vpop.f32.mrb[0].mxu0
  %v6951 = vadd.f32 0.0, %v6950
  %v6952 = vpop.f32.mrb[0].mxu0
  %v6953 = vpop.f32.mrb[0].mxu0
  %v6954 = vadd.f32 0.0, %v6953
  %v6955 = vpop.f32.mrb[0].mxu0
  %6956 = vmatprep.mubr.bf16.mxu0 0
  %6957 = vmatmul.mubr.bf16.gmra.mrb[0].mxu0 %v6896
  %v6958 = vpop.f32.mrb[0].mxu0
  %v6959 = vadd.f32 0.0, %v6958
  %v6960 = vpop.f32.mrb[0].mxu0
  %v6961 = vpop.f32.mrb[0].mxu0
  %v6962 = vadd.f32 0.0, %v6961
  %v6963 = vpop.f32.mrb[0].mxu0
  %6964 = vmatprep.mubr.bf16.mxu0 0
  %6965 = vmatmul.mubr.bf16.gmra.mrb[0].mxu0 %v6899
  %v6966 = vpop.f32.mrb[0].mxu0
  %v6967 = vadd.f32 0.0, %v6966
  %v6968 = vpop.f32.mrb[0].mxu0
  %v6969 = vpop.f32.mrb[0].mxu0
  %v6970 = vadd.f32 0.0, %v6969
  %v6971 = vpop.f32.mrb[0].mxu0
  %6972 = vmatprep.mubr.bf16.mxu0 0
  %6973 = vmatmul.mubr.bf16.gmra.mrb[0].mxu0 %v6902
  %v6974 = vpop.f32.mrb[0].mxu0
  %v6975 = vadd.f32 0.0, %v6974
  %v6976 = vpop.f32.mrb[0].mxu0
  %v6977 = vpop.f32.mrb[0].mxu0
  %v6978 = vadd.f32 0.0, %v6977
  %v6979 = vpop.f32.mrb[0].mxu0
  %6980 = vmatprep.mubr.bf16.mxu0 0
  %6981 = vmatmul.mubr.bf16.gmra.mrb[0].mxu0 %v6905
  %v6982 = vpop.f32.mrb[0].mxu0
  %v6983 = vadd.f32 0.0, %v6982
  %v6984 = vpop.f32.mrb[0].mxu0
  %v6985 = vpop.f32.mrb[0].mxu0
  %v6986 = vadd.f32 0.0, %v6985
  %v6987 = vpop.f32.mrb[0].mxu0
  %6988 = vmatprep.mubr.bf16.mxu0 0
  %6989 = vmatmul.mubr.bf16.gmra.mrb[0].mxu0 %v6908
  %v6990 = vpop.f32.mrb[0].mxu0
  %v6991 = vadd.f32 0.0, %v6990
  %v6992 = vpop.f32.mrb[0].mxu0
  %v6993 = vpop.f32.mrb[0].mxu0
  %v6994 = vadd.f32 0.0, %v6993
  %v6995 = vpop.f32.mrb[0].mxu0
  %6996 = vmatprep.mubr.bf16.mxu0 0
  %6997 = vmatmul.mubr.bf16.gmra.mrb[0].mxu0 %v6911
  %v6998 = vpop.f32.mrb[0].mxu0
  %v6999 = vadd.f32 0.0, %v6998
  %v7000 = vpop.f32.mrb[0].mxu0
  %v7001 = vpop.f32.mrb[0].mxu0
  %v7002 = vadd.f32 0.0, %v7001
  %v7003 = vpop.f32.mrb[0].mxu0
  %7004 = vmatprep.mubr.bf16.mxu0 0
  %7005 = vmatmul.mubr.bf16.gmra.mrb[0].mxu0 %v6914
  %v7006 = vpop.f32.mrb[0].mxu0
  %v7007 = vadd.f32 0.0, %v7006
  %v7008 = vpop.f32.mrb[0].mxu0
  %v7009 = vpop.f32.mrb[0].mxu0
  %v7010 = vadd.f32 0.0, %v7009
  %v7011 = vpop.f32.mrb[0].mxu0
  %7012 = vdwg.mxu0
  %v7013 = vadd.f32 %v4250, %v6951
  %v7014 = vadd.f32 %v4251, %v6954
  %v7015 = vadd.f32 %v4252, %v6959
  %v7016 = vadd.f32 %v4253, %v6962
  %v7017 = vadd.f32 %v4254, %v6967
  %v7018 = vadd.f32 %v4255, %v6970
  %v7019 = vadd.f32 %v4256, %v6975
  %v7020 = vadd.f32 %v4257, %v6978
  %v7021 = vadd.f32 %v4258, %v6983
  %v7022 = vadd.f32 %v4259, %v6986
  %v7023 = vadd.f32 %v4260, %v6991
  %v7024 = vadd.f32 %v4261, %v6994
  %v7025 = vadd.f32 %v4262, %v6999
  %v7026 = vadd.f32 %v4263, %v7002
  %v7027 = vadd.f32 %v4264, %v7007
  %v7028 = vadd.f32 %v4265, %v7010
  %s7029 = scalar_lea.vmem %s7, 1
  %v7030 = vld [vmem:[%s7029] sm:$0x1]
  %v7032 = vlaneseq
  %v7033 = vshrl.u32 %v7032, 7
  %v7034 = vsub.s32 0, %v7033
  %v7035 = vrot.slane %v7030, %v7034
  %v7037 = vadd.f32 %v7013, %v7035
  %v7038 = vadd.f32 %v7014, %v7035
  %v7039 = vadd.f32 %v7015, %v7035
  %v7040 = vadd.f32 %v7016, %v7035
  %v7041 = vadd.f32 %v7017, %v7035
  %v7042 = vadd.f32 %v7018, %v7035
  %v7043 = vadd.f32 %v7019, %v7035
  %v7044 = vadd.f32 %v7020, %v7035
  %v7045 = vadd.f32 %v7021, %v7035
  %v7046 = vadd.f32 %v7022, %v7035
  %v7047 = vadd.f32 %v7023, %v7035
  %v7048 = vadd.f32 %v7024, %v7035
  %v7049 = vadd.f32 %v7025, %v7035
  %v7050 = vadd.f32 %v7026, %v7035
  %v7051 = vadd.f32 %v7027, %v7035
  %v7052 = vadd.f32 %v7028, %v7035
  %s7053 = scalar_lea.vmem %s2, 3
  %v7054 = vld [vmem:[%s7053] sm:$0x1]
  %s7055 = scalar_lea.vmem %s3, 3
  %v7056 = vld [vmem:[%s7055] sm:$0x1]
  %v7057 = vsel %vm42, %v7037, 0.0
  %7058 = vadd.xlane.f32.xlu0 %v7057
  %v7059 = vpop.xlane.xlu0 %7058
  %v7060 = vsel %vm42, %v7038, 0.0
  %7061 = vadd.xlane.f32.xlu0 %v7060
  %v7062 = vpop.xlane.xlu0 %7061
  %v7063 = vsel %vm42, %v7039, 0.0
  %7064 = vadd.xlane.f32.xlu0 %v7063
  %v7065 = vpop.xlane.xlu0 %7064
  %v7066 = vsel %vm42, %v7040, 0.0
  %7067 = vadd.xlane.f32.xlu0 %v7066
  %v7068 = vpop.xlane.xlu0 %7067
  %v7069 = vsel %vm42, %v7041, 0.0
  %7070 = vadd.xlane.f32.xlu0 %v7069
  %v7071 = vpop.xlane.xlu0 %7070
  %v7072 = vsel %vm42, %v7042, 0.0
  %7073 = vadd.xlane.f32.xlu0 %v7072
  %v7074 = vpop.xlane.xlu0 %7073
  %v7075 = vsel %vm42, %v7043, 0.0
  %7076 = vadd.xlane.f32.xlu0 %v7075
  %v7077 = vpop.xlane.xlu0 %7076
  %v7078 = vsel %vm42, %v7044, 0.0
  %7079 = vadd.xlane.f32.xlu0 %v7078
  %v7080 = vpop.xlane.xlu0 %7079
  %v7081 = vsel %vm42, %v7045, 0.0
  %7082 = vadd.xlane.f32.xlu0 %v7081
  %v7083 = vpop.xlane.xlu0 %7082
  %v7084 = vsel %vm42, %v7046, 0.0
  %7085 = vadd.xlane.f32.xlu0 %v7084
  %v7086 = vpop.xlane.xlu0 %7085
  %v7087 = vsel %vm42, %v7047, 0.0
  %7088 = vadd.xlane.f32.xlu0 %v7087
  %v7089 = vpop.xlane.xlu0 %7088
  %v7090 = vsel %vm42, %v7048, 0.0
  %7091 = vadd.xlane.f32.xlu0 %v7090
  %v7092 = vpop.xlane.xlu0 %7091
  %v7093 = vsel %vm42, %v7049, 0.0
  %7094 = vadd.xlane.f32.xlu0 %v7093
  %v7095 = vpop.xlane.xlu0 %7094
  %v7096 = vsel %vm42, %v7050, 0.0
  %7097 = vadd.xlane.f32.xlu0 %v7096
  %v7098 = vpop.xlane.xlu0 %7097
  %v7099 = vsel %vm42, %v7051, 0.0
  %7100 = vadd.xlane.f32.xlu0 %v7099
  %v7101 = vpop.xlane.xlu0 %7100
  %v7102 = vsel %vm42, %v7052, 0.0
  %7103 = vadd.xlane.f32.xlu0 %v7102
  %v7104 = vpop.xlane.xlu0 %7103
  %v7105 = vmul.f32 %v7059, %v145
  %v7106 = vmul.f32 %v7062, %v145
  %v7107 = vmul.f32 %v7065, %v145
  %v7108 = vmul.f32 %v7068, %v145
  %v7109 = vmul.f32 %v7071, %v145
  %v7110 = vmul.f32 %v7074, %v145
  %v7111 = vmul.f32 %v7077, %v145
  %v7112 = vmul.f32 %v7080, %v145
  %v7113 = vmul.f32 %v7083, %v145
  %v7114 = vmul.f32 %v7086, %v145
  %v7115 = vmul.f32 %v7089, %v145
  %v7116 = vmul.f32 %v7092, %v145
  %v7117 = vmul.f32 %v7095, %v145
  %v7118 = vmul.f32 %v7098, %v145
  %v7119 = vmul.f32 %v7101, %v145
  %v7120 = vmul.f32 %v7104, %v145
  %v7121 = vmul.f32 %v7037, %v7037
  %v7122 = vmul.f32 %v7038, %v7038
  %v7123 = vmul.f32 %v7039, %v7039
  %v7124 = vmul.f32 %v7040, %v7040
  %v7125 = vmul.f32 %v7041, %v7041
  %v7126 = vmul.f32 %v7042, %v7042
  %v7127 = vmul.f32 %v7043, %v7043
  %v7128 = vmul.f32 %v7044, %v7044
  %v7129 = vmul.f32 %v7045, %v7045
  %v7130 = vmul.f32 %v7046, %v7046
  %v7131 = vmul.f32 %v7047, %v7047
  %v7132 = vmul.f32 %v7048, %v7048
  %v7133 = vmul.f32 %v7049, %v7049
  %v7134 = vmul.f32 %v7050, %v7050
  %v7135 = vmul.f32 %v7051, %v7051
  %v7136 = vmul.f32 %v7052, %v7052
  %v7137 = vsel %vm42, %v7121, 0.0
  %7138 = vadd.xlane.f32.xlu0 %v7137
  %v7139 = vpop.xlane.xlu0 %7138
  %v7140 = vsel %vm42, %v7122, 0.0
  %7141 = vadd.xlane.f32.xlu0 %v7140
  %v7142 = vpop.xlane.xlu0 %7141
  %v7143 = vsel %vm42, %v7123, 0.0
  %7144 = vadd.xlane.f32.xlu0 %v7143
  %v7145 = vpop.xlane.xlu0 %7144
  %v7146 = vsel %vm42, %v7124, 0.0
  %7147 = vadd.xlane.f32.xlu0 %v7146
  %v7148 = vpop.xlane.xlu0 %7147
  %v7149 = vsel %vm42, %v7125, 0.0
  %7150 = vadd.xlane.f32.xlu0 %v7149
  %v7151 = vpop.xlane.xlu0 %7150
  %v7152 = vsel %vm42, %v7126, 0.0
  %7153 = vadd.xlane.f32.xlu0 %v7152
  %v7154 = vpop.xlane.xlu0 %7153
  %v7155 = vsel %vm42, %v7127, 0.0
  %7156 = vadd.xlane.f32.xlu0 %v7155
  %v7157 = vpop.xlane.xlu0 %7156
  %v7158 = vsel %vm42, %v7128, 0.0
  %7159 = vadd.xlane.f32.xlu0 %v7158
  %v7160 = vpop.xlane.xlu0 %7159
  %v7161 = vsel %vm42, %v7129, 0.0
  %7162 = vadd.xlane.f32.xlu0 %v7161
  %v7163 = vpop.xlane.xlu0 %7162
  %v7164 = vsel %vm42, %v7130, 0.0
  %7165 = vadd.xlane.f32.xlu0 %v7164
  %v7166 = vpop.xlane.xlu0 %7165
  %v7167 = vsel %vm42, %v7131, 0.0
  %7168 = vadd.xlane.f32.xlu0 %v7167
  %v7169 = vpop.xlane.xlu0 %7168
  %v7170 = vsel %vm42, %v7132, 0.0
  %7171 = vadd.xlane.f32.xlu0 %v7170
  %v7172 = vpop.xlane.xlu0 %7171
  %v7173 = vsel %vm42, %v7133, 0.0
  %7174 = vadd.xlane.f32.xlu0 %v7173
  %v7175 = vpop.xlane.xlu0 %7174
  %v7176 = vsel %vm42, %v7134, 0.0
  %7177 = vadd.xlane.f32.xlu0 %v7176
  %v7178 = vpop.xlane.xlu0 %7177
  %v7179 = vsel %vm42, %v7135, 0.0
  %7180 = vadd.xlane.f32.xlu0 %v7179
  %v7181 = vpop.xlane.xlu0 %7180
  %v7182 = vsel %vm42, %v7136, 0.0
  %7183 = vadd.xlane.f32.xlu0 %v7182
  %v7184 = vpop.xlane.xlu0 %7183
  %v7185 = vmul.f32 %v7139, %v145
  %v7186 = vmul.f32 %v7142, %v145
  %v7187 = vmul.f32 %v7145, %v145
  %v7188 = vmul.f32 %v7148, %v145
  %v7189 = vmul.f32 %v7151, %v145
  %v7190 = vmul.f32 %v7154, %v145
  %v7191 = vmul.f32 %v7157, %v145
  %v7192 = vmul.f32 %v7160, %v145
  %v7193 = vmul.f32 %v7163, %v145
  %v7194 = vmul.f32 %v7166, %v145
  %v7195 = vmul.f32 %v7169, %v145
  %v7196 = vmul.f32 %v7172, %v145
  %v7197 = vmul.f32 %v7175, %v145
  %v7198 = vmul.f32 %v7178, %v145
  %v7199 = vmul.f32 %v7181, %v145
  %v7200 = vmul.f32 %v7184, %v145
  %v7201 = vmul.f32 %v7105, %v7105
  %v7202 = vmul.f32 %v7106, %v7106
  %v7203 = vmul.f32 %v7107, %v7107
  %v7204 = vmul.f32 %v7108, %v7108
  %v7205 = vmul.f32 %v7109, %v7109
  %v7206 = vmul.f32 %v7110, %v7110
  %v7207 = vmul.f32 %v7111, %v7111
  %v7208 = vmul.f32 %v7112, %v7112
  %v7209 = vmul.f32 %v7113, %v7113
  %v7210 = vmul.f32 %v7114, %v7114
  %v7211 = vmul.f32 %v7115, %v7115
  %v7212 = vmul.f32 %v7116, %v7116
  %v7213 = vmul.f32 %v7117, %v7117
  %v7214 = vmul.f32 %v7118, %v7118
  %v7215 = vmul.f32 %v7119, %v7119
  %v7216 = vmul.f32 %v7120, %v7120
  %v7217 = vsub.f32 %v7185, %v7201
  %v7218 = vsub.f32 %v7186, %v7202
  %v7219 = vsub.f32 %v7187, %v7203
  %v7220 = vsub.f32 %v7188, %v7204
  %v7221 = vsub.f32 %v7189, %v7205
  %v7222 = vsub.f32 %v7190, %v7206
  %v7223 = vsub.f32 %v7191, %v7207
  %v7224 = vsub.f32 %v7192, %v7208
  %v7225 = vsub.f32 %v7193, %v7209
  %v7226 = vsub.f32 %v7194, %v7210
  %v7227 = vsub.f32 %v7195, %v7211
  %v7228 = vsub.f32 %v7196, %v7212
  %v7229 = vsub.f32 %v7197, %v7213
  %v7230 = vsub.f32 %v7198, %v7214
  %v7231 = vsub.f32 %v7199, %v7215
  %v7232 = vsub.f32 %v7200, %v7216
  %v7233 = vsub.f32 %v7037, %v7105
  %v7234 = vsub.f32 %v7038, %v7106
  %v7235 = vsub.f32 %v7039, %v7107
  %v7236 = vsub.f32 %v7040, %v7108
  %v7237 = vsub.f32 %v7041, %v7109
  %v7238 = vsub.f32 %v7042, %v7110
  %v7239 = vsub.f32 %v7043, %v7111
  %v7240 = vsub.f32 %v7044, %v7112
  %v7241 = vsub.f32 %v7045, %v7113
  %v7242 = vsub.f32 %v7046, %v7114
  %v7243 = vsub.f32 %v7047, %v7115
  %v7244 = vsub.f32 %v7048, %v7116
  %v7245 = vsub.f32 %v7049, %v7117
  %v7246 = vsub.f32 %v7050, %v7118
  %v7247 = vsub.f32 %v7051, %v7119
  %v7248 = vsub.f32 %v7052, %v7120
  %v7249 = vadd.f32 %v7217, 1e-05
  %v7250 = vadd.f32 %v7218, 1e-05
  %v7251 = vadd.f32 %v7219, 1e-05
  %v7252 = vadd.f32 %v7220, 1e-05
  %v7253 = vadd.f32 %v7221, 1e-05
  %v7254 = vadd.f32 %v7222, 1e-05
  %v7255 = vadd.f32 %v7223, 1e-05
  %v7256 = vadd.f32 %v7224, 1e-05
  %v7257 = vadd.f32 %v7225, 1e-05
  %v7258 = vadd.f32 %v7226, 1e-05
  %v7259 = vadd.f32 %v7227, 1e-05
  %v7260 = vadd.f32 %v7228, 1e-05
  %v7261 = vadd.f32 %v7229, 1e-05
  %v7262 = vadd.f32 %v7230, 1e-05
  %v7263 = vadd.f32 %v7231, 1e-05
  %v7264 = vadd.f32 %v7232, 1e-05
  %v7265 = vrsqrt.pop %v7249
  %v7266 = vrsqrt.pop %v7250
  %v7267 = vrsqrt.pop %v7251
  %v7268 = vrsqrt.pop %v7252
  %v7269 = vrsqrt.pop %v7253
  %v7270 = vrsqrt.pop %v7254
  %v7271 = vrsqrt.pop %v7255
  %v7272 = vrsqrt.pop %v7256
  %v7273 = vrsqrt.pop %v7257
  %v7274 = vrsqrt.pop %v7258
  %v7275 = vrsqrt.pop %v7259
  %v7276 = vrsqrt.pop %v7260
  %v7277 = vrsqrt.pop %v7261
  %v7278 = vrsqrt.pop %v7262
  %v7279 = vrsqrt.pop %v7263
  %v7280 = vrsqrt.pop %v7264
  %v7281 = vmul.f32 %v7233, %v7265
  %v7282 = vmul.f32 %v7234, %v7266
  %v7283 = vmul.f32 %v7235, %v7267
  %v7284 = vmul.f32 %v7236, %v7268
  %v7285 = vmul.f32 %v7237, %v7269
  %v7286 = vmul.f32 %v7238, %v7270
  %v7287 = vmul.f32 %v7239, %v7271
  %v7288 = vmul.f32 %v7240, %v7272
  %v7289 = vmul.f32 %v7241, %v7273
  %v7290 = vmul.f32 %v7242, %v7274
  %v7291 = vmul.f32 %v7243, %v7275
  %v7292 = vmul.f32 %v7244, %v7276
  %v7293 = vmul.f32 %v7245, %v7277
  %v7294 = vmul.f32 %v7246, %v7278
  %v7295 = vmul.f32 %v7247, %v7279
  %v7296 = vmul.f32 %v7248, %v7280
  %v7298 = vlaneseq
  %v7299 = vshrl.u32 %v7298, 7
  %v7300 = vsub.s32 0, %v7299
  %v7301 = vrot.slane %v7054, %v7300
  %v7303 = vmul.f32 %v7281, %v7301
  %v7304 = vmul.f32 %v7282, %v7301
  %v7305 = vmul.f32 %v7283, %v7301
  %v7306 = vmul.f32 %v7284, %v7301
  %v7307 = vmul.f32 %v7285, %v7301
  %v7308 = vmul.f32 %v7286, %v7301
  %v7309 = vmul.f32 %v7287, %v7301
  %v7310 = vmul.f32 %v7288, %v7301
  %v7311 = vmul.f32 %v7289, %v7301
  %v7312 = vmul.f32 %v7290, %v7301
  %v7313 = vmul.f32 %v7291, %v7301
  %v7314 = vmul.f32 %v7292, %v7301
  %v7315 = vmul.f32 %v7293, %v7301
  %v7316 = vmul.f32 %v7294, %v7301
  %v7317 = vmul.f32 %v7295, %v7301
  %v7318 = vmul.f32 %v7296, %v7301
  %v7320 = vlaneseq
  %v7321 = vshrl.u32 %v7320, 7
  %v7322 = vsub.s32 0, %v7321
  %v7323 = vrot.slane %v7056, %v7322
  %v7325 = vadd.f32 %v7303, %v7323
  %v7326 = vadd.f32 %v7304, %v7323
  %v7327 = vadd.f32 %v7305, %v7323
  %v7328 = vadd.f32 %v7306, %v7323
  %v7329 = vadd.f32 %v7307, %v7323
  %v7330 = vadd.f32 %v7308, %v7323
  %v7331 = vadd.f32 %v7309, %v7323
  %v7332 = vadd.f32 %v7310, %v7323
  %v7333 = vadd.f32 %v7311, %v7323
  %v7334 = vadd.f32 %v7312, %v7323
  %v7335 = vadd.f32 %v7313, %v7323
  %v7336 = vadd.f32 %v7314, %v7323
  %v7337 = vadd.f32 %v7315, %v7323
  %v7338 = vadd.f32 %v7316, %v7323
  %v7339 = vadd.f32 %v7317, %v7323
  %v7340 = vadd.f32 %v7318, %v7323
  %v7341 = vpack.c.bf16 %v7326, %v7325
  %v7342 = vpack.c.bf16 %v7328, %v7327
  %v7343 = vpack.c.bf16 %v7330, %v7329
  %v7344 = vpack.c.bf16 %v7332, %v7331
  %v7345 = vpack.c.bf16 %v7334, %v7333
  %v7346 = vpack.c.bf16 %v7336, %v7335
  %v7347 = vpack.c.bf16 %v7338, %v7337
  %v7348 = vpack.c.bf16 %v7340, %v7339
  %s7349 = scalar_lea.vmem %s8, 16
  %v7350 = vld [vmem:[%s7349] sm:$0xf]
  %v7351 = vld [vmem:[%s7349 + $0x4] sm:$0xf]
  %v7352 = vld [vmem:[%s7349 + $0x8] sm:$0xf]
  %v7353 = vld [vmem:[%s7349 + $0xc] sm:$0xf]
  %s7354 = scalar_lea.vmem %s9, 1
  %v7355 = vld [vmem:[%s7354] sm:$0x1]
  %v7357 = vlaneseq
  %v7358 = vshrl.u32 %v7357, 7
  %v7359 = vsub.s32 0, %v7358
  %v7360 = vrot.slane %v7355, %v7359
  %v7366 = vunpack.c.l.b16 %v7350
  %v7367 = vunpack.c.l.b16 %v7351
  %v7368 = vunpack.c.l.b16 %v7352
  %v7369 = vunpack.c.l.b16 %v7353
  %v7370 = vpack.c.b16 %v7367, %v7366
  %v7371 = vpack.c.b16 %v7369, %v7368
  %v7375 = vsel %vm42, %v7341, 0
  %v7378 = vsel %vm42, %v7342, 0
  %v7381 = vsel %vm42, %v7343, 0
  %v7384 = vsel %vm42, %v7344, 0
  %v7387 = vsel %vm42, %v7345, 0
  %v7390 = vsel %vm42, %v7346, 0
  %v7393 = vsel %vm42, %v7347, 0
  %v7396 = vsel %vm42, %v7348, 0
  %7398 = vmatprep.subr.bf16.mxu0 0
  %7399 = vmatpush1.bf16.msra.mxu0 %v7370
  %7400 = vmatprep.subr.bf16.mxu0 0
  %7401 = vmatpush1.bf16.msra.mxu0 %v7371
  %7402 = vmatprep.subr.bf16.mxu0 0
  %7403 = vmatpush1.bf16.msra.mxu0 0
  %7404 = vmatprep.subr.bf16.mxu0 0
  %7405 = vmatpush1.bf16.msra.mxu0 0
  %7406 = vmatprep.subr.bf16.mxu0 0
  %7407 = vmatpush1.bf16.msra.mxu0 0
  %7408 = vmatprep.subr.bf16.mxu0 0
  %7409 = vmatpush1.bf16.msra.mxu0 0
  %7410 = vmatprep.subr.bf16.mxu0 0
  %7411 = vmatpush1.bf16.msra.mxu0 0
  %7412 = vmatprep.subr.bf16.mxu0 0
  %7413 = vmatpush1.bf16.msra.mxu0 0
  %7414 = vmatprep.subr.bf16.mxu0 0
  %7415 = vmatpush1.bf16.msra.mxu0 0
  %7416 = vmatprep.subr.bf16.mxu0 0
  %7417 = vmatpush1.bf16.msra.mxu0 0
  %7418 = vmatprep.subr.bf16.mxu0 0
  %7419 = vmatpush1.bf16.msra.mxu0 0
  %7420 = vmatprep.subr.bf16.mxu0 0
  %7421 = vmatpush1.bf16.msra.mxu0 0
  %7422 = vmatprep.subr.bf16.mxu0 0
  %7423 = vmatpush1.bf16.msra.mxu0 0
  %7424 = vmatprep.subr.bf16.mxu0 0
  %7425 = vmatpush1.bf16.msra.mxu0 0
  %7426 = vmatprep.subr.bf16.mxu0 0
  %7427 = vmatpush1.bf16.msra.mxu0 0
  %7428 = vmatprep.subr.bf16.mxu0 0
  %7429 = vmatpush1.bf16.msra.mxu0 0
  %7430 = vmatprep.mubr.bf16.mxu0 0
  %7431 = vmatmul.mubr.bf16.gmra.mrb[0].mxu0 %v7375
  %v7432 = vpop.f32.mrb[0].mxu0
  %v7433 = vadd.f32 %v7360, %v7432
  %v7434 = vpop.f32.mrb[0].mxu0
  %v7435 = vpop.f32.mrb[0].mxu0
  %v7436 = vadd.f32 %v7360, %v7435
  %v7437 = vpop.f32.mrb[0].mxu0
  %7438 = vmatprep.mubr.bf16.mxu0 0
  %7439 = vmatmul.mubr.bf16.gmra.mrb[0].mxu0 %v7378
  %v7440 = vpop.f32.mrb[0].mxu0
  %v7441 = vadd.f32 %v7360, %v7440
  %v7442 = vpop.f32.mrb[0].mxu0
  %v7443 = vpop.f32.mrb[0].mxu0
  %v7444 = vadd.f32 %v7360, %v7443
  %v7445 = vpop.f32.mrb[0].mxu0
  %7446 = vmatprep.mubr.bf16.mxu0 0
  %7447 = vmatmul.mubr.bf16.gmra.mrb[0].mxu0 %v7381
  %v7448 = vpop.f32.mrb[0].mxu0
  %v7449 = vadd.f32 %v7360, %v7448
  %v7450 = vpop.f32.mrb[0].mxu0
  %v7451 = vpop.f32.mrb[0].mxu0
  %v7452 = vadd.f32 %v7360, %v7451
  %v7453 = vpop.f32.mrb[0].mxu0
  %7454 = vmatprep.mubr.bf16.mxu0 0
  %7455 = vmatmul.mubr.bf16.gmra.mrb[0].mxu0 %v7384
  %v7456 = vpop.f32.mrb[0].mxu0
  %v7457 = vadd.f32 %v7360, %v7456
  %v7458 = vpop.f32.mrb[0].mxu0
  %v7459 = vpop.f32.mrb[0].mxu0
  %v7460 = vadd.f32 %v7360, %v7459
  %v7461 = vpop.f32.mrb[0].mxu0
  %7462 = vmatprep.mubr.bf16.mxu0 0
  %7463 = vmatmul.mubr.bf16.gmra.mrb[0].mxu0 %v7387
  %v7464 = vpop.f32.mrb[0].mxu0
  %v7465 = vadd.f32 %v7360, %v7464
  %v7466 = vpop.f32.mrb[0].mxu0
  %v7467 = vpop.f32.mrb[0].mxu0
  %v7468 = vadd.f32 %v7360, %v7467
  %v7469 = vpop.f32.mrb[0].mxu0
  %7470 = vmatprep.mubr.bf16.mxu0 0
  %7471 = vmatmul.mubr.bf16.gmra.mrb[0].mxu0 %v7390
  %v7472 = vpop.f32.mrb[0].mxu0
  %v7473 = vadd.f32 %v7360, %v7472
  %v7474 = vpop.f32.mrb[0].mxu0
  %v7475 = vpop.f32.mrb[0].mxu0
  %v7476 = vadd.f32 %v7360, %v7475
  %v7477 = vpop.f32.mrb[0].mxu0
  %7478 = vmatprep.mubr.bf16.mxu0 0
  %7479 = vmatmul.mubr.bf16.gmra.mrb[0].mxu0 %v7393
  %v7480 = vpop.f32.mrb[0].mxu0
  %v7481 = vadd.f32 %v7360, %v7480
  %v7482 = vpop.f32.mrb[0].mxu0
  %v7483 = vpop.f32.mrb[0].mxu0
  %v7484 = vadd.f32 %v7360, %v7483
  %v7485 = vpop.f32.mrb[0].mxu0
  %7486 = vmatprep.mubr.bf16.mxu0 0
  %7487 = vmatmul.mubr.bf16.gmra.mrb[0].mxu0 %v7396
  %v7488 = vpop.f32.mrb[0].mxu0
  %v7489 = vadd.f32 %v7360, %v7488
  %v7490 = vpop.f32.mrb[0].mxu0
  %v7491 = vpop.f32.mrb[0].mxu0
  %v7492 = vadd.f32 %v7360, %v7491
  %v7493 = vpop.f32.mrb[0].mxu0
  %7494 = vdwg.mxu0
  %v7495 = vmul.f32 %v7433, 0.5
  %v7496 = vmul.f32 %v7436, 0.5
  %v7497 = vmul.f32 %v7441, 0.5
  %v7498 = vmul.f32 %v7444, 0.5
  %v7499 = vmul.f32 %v7449, 0.5
  %v7500 = vmul.f32 %v7452, 0.5
  %v7501 = vmul.f32 %v7457, 0.5
  %v7502 = vmul.f32 %v7460, 0.5
  %v7503 = vmul.f32 %v7465, 0.5
  %v7504 = vmul.f32 %v7468, 0.5
  %v7505 = vmul.f32 %v7473, 0.5
  %v7506 = vmul.f32 %v7476, 0.5
  %v7507 = vmul.f32 %v7481, 0.5
  %v7508 = vmul.f32 %v7484, 0.5
  %v7509 = vmul.f32 %v7489, 0.5
  %v7510 = vmul.f32 %v7492, 0.5
  %v7511 = vmul.f32 %v7433, 0.70710677
  %v7512 = vmul.f32 %v7436, 0.70710677
  %v7513 = vmul.f32 %v7441, 0.70710677
  %v7514 = vmul.f32 %v7444, 0.70710677
  %v7515 = vmul.f32 %v7449, 0.70710677
  %v7516 = vmul.f32 %v7452, 0.70710677
  %v7517 = vmul.f32 %v7457, 0.70710677
  %v7518 = vmul.f32 %v7460, 0.70710677
  %v7519 = vmul.f32 %v7465, 0.70710677
  %v7520 = vmul.f32 %v7468, 0.70710677
  %v7521 = vmul.f32 %v7473, 0.70710677
  %v7522 = vmul.f32 %v7476, 0.70710677
  %v7523 = vmul.f32 %v7481, 0.70710677
  %v7524 = vmul.f32 %v7484, 0.70710677
  %v7525 = vmul.f32 %v7489, 0.70710677
  %v7526 = vmul.f32 %v7492, 0.70710677
  %v7527 = verf.f32.pop %v7511
  %v7528 = verf.f32.pop %v7512
  %v7529 = verf.f32.pop %v7513
  %v7530 = verf.f32.pop %v7514
  %v7531 = verf.f32.pop %v7515
  %v7532 = verf.f32.pop %v7516
  %v7533 = verf.f32.pop %v7517
  %v7534 = verf.f32.pop %v7518
  %v7535 = verf.f32.pop %v7519
  %v7536 = verf.f32.pop %v7520
  %v7537 = verf.f32.pop %v7521
  %v7538 = verf.f32.pop %v7522
  %v7539 = verf.f32.pop %v7523
  %v7540 = verf.f32.pop %v7524
  %v7541 = verf.f32.pop %v7525
  %v7542 = verf.f32.pop %v7526
  %v7543 = vadd.f32 %v7527, 1.0
  %v7544 = vadd.f32 %v7528, 1.0
  %v7545 = vadd.f32 %v7529, 1.0
  %v7546 = vadd.f32 %v7530, 1.0
  %v7547 = vadd.f32 %v7531, 1.0
  %v7548 = vadd.f32 %v7532, 1.0
  %v7549 = vadd.f32 %v7533, 1.0
  %v7550 = vadd.f32 %v7534, 1.0
  %v7551 = vadd.f32 %v7535, 1.0
  %v7552 = vadd.f32 %v7536, 1.0
  %v7553 = vadd.f32 %v7537, 1.0
  %v7554 = vadd.f32 %v7538, 1.0
  %v7555 = vadd.f32 %v7539, 1.0
  %v7556 = vadd.f32 %v7540, 1.0
  %v7557 = vadd.f32 %v7541, 1.0
  %v7558 = vadd.f32 %v7542, 1.0
  %v7559 = vmul.f32 %v7495, %v7543
  %v7560 = vmul.f32 %v7496, %v7544
  %v7561 = vmul.f32 %v7497, %v7545
  %v7562 = vmul.f32 %v7498, %v7546
  %v7563 = vmul.f32 %v7499, %v7547
  %v7564 = vmul.f32 %v7500, %v7548
  %v7565 = vmul.f32 %v7501, %v7549
  %v7566 = vmul.f32 %v7502, %v7550
  %v7567 = vmul.f32 %v7503, %v7551
  %v7568 = vmul.f32 %v7504, %v7552
  %v7569 = vmul.f32 %v7505, %v7553
  %v7570 = vmul.f32 %v7506, %v7554
  %v7571 = vmul.f32 %v7507, %v7555
  %v7572 = vmul.f32 %v7508, %v7556
  %v7573 = vmul.f32 %v7509, %v7557
  %v7574 = vmul.f32 %v7510, %v7558
  %v7575 = vpack.c.bf16 %v7560, %v7559
  %v7576 = vpack.c.bf16 %v7562, %v7561
  %v7577 = vpack.c.bf16 %v7564, %v7563
  %v7578 = vpack.c.bf16 %v7566, %v7565
  %v7579 = vpack.c.bf16 %v7568, %v7567
  %v7580 = vpack.c.bf16 %v7570, %v7569
  %v7581 = vpack.c.bf16 %v7572, %v7571
  %v7582 = vpack.c.bf16 %v7574, %v7573
  %s7583 = scalar_lea.vmem %s10, 32
  %v7584 = vld [vmem:[%s7583] sm:$0xf]
  %v7585 = vld [vmem:[%s7583 + $0x4] sm:$0xf]
  %v7586 = vld [vmem:[%s7583 + $0x8] sm:$0xf]
  %v7587 = vld [vmem:[%s7583 + $0xc] sm:$0xf]
  %v7588 = vld [vmem:[%s7583 + $0x10] sm:$0xf]
  %v7589 = vld [vmem:[%s7583 + $0x14] sm:$0xf]
  %v7590 = vld [vmem:[%s7583 + $0x18] sm:$0xf]
  %v7591 = vld [vmem:[%s7583 + $0x1c] sm:$0xf]
  %s7592 = scalar_lea.vmem %s11, 1
  %v7593 = vld [vmem:[%s7592] sm:$0x1]
  %v7595 = vlaneseq
  %v7596 = vshrl.u32 %v7595, 7
  %v7597 = vsub.s32 0, %v7596
  %v7598 = vrot.slane %v7593, %v7597
  %v7608 = vunpack.c.l.b16 %v7584
  %v7609 = vunpack.c.l.b16 %v7585
  %v7610 = vunpack.c.l.b16 %v7586
  %v7611 = vunpack.c.l.b16 %v7587
  %v7612 = vunpack.c.l.b16 %v7588
  %v7613 = vunpack.c.l.b16 %v7589
  %v7614 = vunpack.c.l.b16 %v7590
  %v7615 = vunpack.c.l.b16 %v7591
  %v7616 = vpack.c.b16 %v7609, %v7608
  %v7617 = vpack.c.b16 %v7611, %v7610
  %v7618 = vpack.c.b16 %v7613, %v7612
  %v7619 = vpack.c.b16 %v7615, %v7614
  %v7625 = vsel %vm1678, %v7575, 0
  %v7628 = vsel %vm1678, %v7576, 0
  %v7631 = vsel %vm1678, %v7577, 0
  %v7634 = vsel %vm1678, %v7578, 0
  %v7637 = vsel %vm1678, %v7579, 0
  %v7640 = vsel %vm1678, %v7580, 0
  %v7643 = vsel %vm1678, %v7581, 0
  %v7646 = vsel %vm1678, %v7582, 0
  %7648 = vmatprep.subr.bf16.mxu0 0
  %7649 = vmatpush1.bf16.msra.mxu0 %v7616
  %7650 = vmatprep.subr.bf16.mxu0 0
  %7651 = vmatpush1.bf16.msra.mxu0 %v7617
  %7652 = vmatprep.subr.bf16.mxu0 0
  %7653 = vmatpush1.bf16.msra.mxu0 %v7618
  %7654 = vmatprep.subr.bf16.mxu0 0
  %7655 = vmatpush1.bf16.msra.mxu0 %v7619
  %7656 = vmatprep.subr.bf16.mxu0 0
  %7657 = vmatpush1.bf16.msra.mxu0 0
  %7658 = vmatprep.subr.bf16.mxu0 0
  %7659 = vmatpush1.bf16.msra.mxu0 0
  %7660 = vmatprep.subr.bf16.mxu0 0
  %7661 = vmatpush1.bf16.msra.mxu0 0
  %7662 = vmatprep.subr.bf16.mxu0 0
  %7663 = vmatpush1.bf16.msra.mxu0 0
  %7664 = vmatprep.subr.bf16.mxu0 0
  %7665 = vmatpush1.bf16.msra.mxu0 0
  %7666 = vmatprep.subr.bf16.mxu0 0
  %7667 = vmatpush1.bf16.msra.mxu0 0
  %7668 = vmatprep.subr.bf16.mxu0 0
  %7669 = vmatpush1.bf16.msra.mxu0 0
  %7670 = vmatprep.subr.bf16.mxu0 0
  %7671 = vmatpush1.bf16.msra.mxu0 0
  %7672 = vmatprep.subr.bf16.mxu0 0
  %7673 = vmatpush1.bf16.msra.mxu0 0
  %7674 = vmatprep.subr.bf16.mxu0 0
  %7675 = vmatpush1.bf16.msra.mxu0 0
  %7676 = vmatprep.subr.bf16.mxu0 0
  %7677 = vmatpush1.bf16.msra.mxu0 0
  %7678 = vmatprep.subr.bf16.mxu0 0
  %7679 = vmatpush1.bf16.msra.mxu0 0
  %7680 = vmatprep.mubr.bf16.mxu0 0
  %7681 = vmatmul.mubr.bf16.gmra.mrb[0].mxu0 %v7625
  %v7682 = vpop.f32.mrb[0].mxu0
  %v7683 = vadd.f32 %v7598, %v7682
  %v7684 = vpop.f32.mrb[0].mxu0
  %v7685 = vpop.f32.mrb[0].mxu0
  %v7686 = vadd.f32 %v7598, %v7685
  %v7687 = vpop.f32.mrb[0].mxu0
  %7688 = vmatprep.mubr.bf16.mxu0 0
  %7689 = vmatmul.mubr.bf16.gmra.mrb[0].mxu0 %v7628
  %v7690 = vpop.f32.mrb[0].mxu0
  %v7691 = vadd.f32 %v7598, %v7690
  %v7692 = vpop.f32.mrb[0].mxu0
  %v7693 = vpop.f32.mrb[0].mxu0
  %v7694 = vadd.f32 %v7598, %v7693
  %v7695 = vpop.f32.mrb[0].mxu0
  %7696 = vmatprep.mubr.bf16.mxu0 0
  %7697 = vmatmul.mubr.bf16.gmra.mrb[0].mxu0 %v7631
  %v7698 = vpop.f32.mrb[0].mxu0
  %v7699 = vadd.f32 %v7598, %v7698
  %v7700 = vpop.f32.mrb[0].mxu0
  %v7701 = vpop.f32.mrb[0].mxu0
  %v7702 = vadd.f32 %v7598, %v7701
  %v7703 = vpop.f32.mrb[0].mxu0
  %7704 = vmatprep.mubr.bf16.mxu0 0
  %7705 = vmatmul.mubr.bf16.gmra.mrb[0].mxu0 %v7634
  %v7706 = vpop.f32.mrb[0].mxu0
  %v7707 = vadd.f32 %v7598, %v7706
  %v7708 = vpop.f32.mrb[0].mxu0
  %v7709 = vpop.f32.mrb[0].mxu0
  %v7710 = vadd.f32 %v7598, %v7709
  %v7711 = vpop.f32.mrb[0].mxu0
  %7712 = vmatprep.mubr.bf16.mxu0 0
  %7713 = vmatmul.mubr.bf16.gmra.mrb[0].mxu0 %v7637
  %v7714 = vpop.f32.mrb[0].mxu0
  %v7715 = vadd.f32 %v7598, %v7714
  %v7716 = vpop.f32.mrb[0].mxu0
  %v7717 = vpop.f32.mrb[0].mxu0
  %v7718 = vadd.f32 %v7598, %v7717
  %v7719 = vpop.f32.mrb[0].mxu0
  %7720 = vmatprep.mubr.bf16.mxu0 0
  %7721 = vmatmul.mubr.bf16.gmra.mrb[0].mxu0 %v7640
  %v7722 = vpop.f32.mrb[0].mxu0
  %v7723 = vadd.f32 %v7598, %v7722
  %v7724 = vpop.f32.mrb[0].mxu0
  %v7725 = vpop.f32.mrb[0].mxu0
  %v7726 = vadd.f32 %v7598, %v7725
  %v7727 = vpop.f32.mrb[0].mxu0
  %7728 = vmatprep.mubr.bf16.mxu0 0
  %7729 = vmatmul.mubr.bf16.gmra.mrb[0].mxu0 %v7643
  %v7730 = vpop.f32.mrb[0].mxu0
  %v7731 = vadd.f32 %v7598, %v7730
  %v7732 = vpop.f32.mrb[0].mxu0
  %v7733 = vpop.f32.mrb[0].mxu0
  %v7734 = vadd.f32 %v7598, %v7733
  %v7735 = vpop.f32.mrb[0].mxu0
  %7736 = vmatprep.mubr.bf16.mxu0 0
  %7737 = vmatmul.mubr.bf16.gmra.mrb[0].mxu0 %v7646
  %v7738 = vpop.f32.mrb[0].mxu0
  %v7739 = vadd.f32 %v7598, %v7738
  %v7740 = vpop.f32.mrb[0].mxu0
  %v7741 = vpop.f32.mrb[0].mxu0
  %v7742 = vadd.f32 %v7598, %v7741
  %v7743 = vpop.f32.mrb[0].mxu0
  %7744 = vdwg.mxu0
  %v7745 = vadd.f32 %v7037, %v7683
  %v7746 = vadd.f32 %v7038, %v7686
  %v7747 = vadd.f32 %v7039, %v7691
  %v7748 = vadd.f32 %v7040, %v7694
  %v7749 = vadd.f32 %v7041, %v7699
  %v7750 = vadd.f32 %v7042, %v7702
  %v7751 = vadd.f32 %v7043, %v7707
  %v7752 = vadd.f32 %v7044, %v7710
  %v7753 = vadd.f32 %v7045, %v7715
  %v7754 = vadd.f32 %v7046, %v7718
  %v7755 = vadd.f32 %v7047, %v7723
  %v7756 = vadd.f32 %v7048, %v7726
  %v7757 = vadd.f32 %v7049, %v7731
  %v7758 = vadd.f32 %v7050, %v7734
  %v7759 = vadd.f32 %v7051, %v7739
  %v7760 = vadd.f32 %v7052, %v7742
  %7761 = vst.msk [vmem:[%s12] sm:$0xff] %vm42, %v7745
  %7762 = vst.msk [vmem:[%s12 + $0x8] sm:$0xff] %vm42, %v7746
  %7763 = vst.msk [vmem:[%s12 + $0x10] sm:$0xff] %vm42, %v7747
  %7764 = vst.msk [vmem:[%s12 + $0x18] sm:$0xff] %vm42, %v7748
  %7765 = vst.msk [vmem:[%s12 + $0x20] sm:$0xff] %vm42, %v7749
  %7766 = vst.msk [vmem:[%s12 + $0x28] sm:$0xff] %vm42, %v7750
  %7767 = vst.msk [vmem:[%s12 + $0x30] sm:$0xff] %vm42, %v7751
  %7768 = vst.msk [vmem:[%s12 + $0x38] sm:$0xff] %vm42, %v7752
  %7769 = vst.msk [vmem:[%s12 + $0x40] sm:$0xff] %vm42, %v7753
  %7770 = vst.msk [vmem:[%s12 + $0x48] sm:$0xff] %vm42, %v7754
  %7771 = vst.msk [vmem:[%s12 + $0x50] sm:$0xff] %vm42, %v7755
  %7772 = vst.msk [vmem:[%s12 + $0x58] sm:$0xff] %vm42, %v7756
  %7773 = vst.msk [vmem:[%s12 + $0x60] sm:$0xff] %vm42, %v7757
  %7774 = vst.msk [vmem:[%s12 + $0x68] sm:$0xff] %vm42, %v7758
  %7775 = vst.msk [vmem:[%s12 + $0x70] sm:$0xff] %vm42, %v7759
  %7776 = vst.msk [vmem:[%s12 + $0x78] sm:$0xff] %vm42, %v7760
  // Predicated region
  $region50: #{tpu_custom_call.1} parent=0 // pred_check
    _
  $region51: #{tpu_custom_call.1} parent=0 // pred_check_branch
    %7778 = sbr.rel (0) target = $region53
  $region52: #{tpu_custom_call.1} parent=0 // pred_region
    _
  $region53: #{tpu_custom_call.1} parent=0 // pred_fallthru
    _
  // Predicated region
  $region54: #{tpu_custom_call.1} parent=0 // pred_check
    _
  $region55: #{tpu_custom_call.1} parent=0 // pred_check_branch
    %7780 = sbr.rel (0) target = $region57
  $region56: #{tpu_custom_call.1} parent=0 // pred_region
    _
  $region57: #{tpu_custom_call.1} parent=0 // pred_fallthru
    _

</llo_original>
